<compile_context>
chip_gen: v7x
topology: tpu7x:2x2x1
jax: 0.10.0
libtpu: 0.0.40
codegen_flags: <defaults>
</compile_context>

<pallas_src>
import numpy as np
import jax
import jax.numpy as jnp
from jax import lax
from jax.experimental import pallas as pl
from jax.experimental.pallas import tpu as pltpu

F32 = jnp.float32
BF16 = jnp.bfloat16


# ----------------------------------------------------------------------------
# Pallas kernel
# ----------------------------------------------------------------------------
def make_layer_kernel(N, TN, C, H, eps, causal, apply_final_norm, head_batched):
    hd = C // H
    half = hd // 2
    C2 = C // 2

    def rms(v, w):
        return v * lax.rsqrt(jnp.mean(v * v, axis=-1, keepdims=True) + eps) * w

    def bcast_heads(a):  # (rows, half) -> (rows, C/2), column m -> a[:, m % half]
        return jnp.concatenate([a] * H, axis=-1)

    def kernel(x_ref, cos_ref, sin_ref,
               nw1_ref, wqab_ref, wkv_ref, wproj_ref, bproj_ref,
               nw2_ref, wfc1a_ref, wfc1b_ref, wfc2_ref, fnw_ref,
               out_ref, *scratch):
        t = pl.program_id(1)
        q0 = pl.multiple_of(t * TN, TN)
        nw1 = nw1_ref[...]

        # ---- K/V cache: full-seq RMSNorm + KV projection + K-RoPE, once per batch ----
        @pl.when(t == 0)
        def _build_kv():
            x_full = x_ref[...]                                             # (N, C) f32
            xn_full = rms(x_full, nw1).astype(BF16)
            kvf = jnp.dot(xn_full, wkv_ref[...], preferred_element_type=F32)  # (N, 2C)
            ka, kb, v = kvf[:, :C2], kvf[:, C2:C], kvf[:, C:]
            cf = bcast_heads(cos_ref[...])                                  # (N, C/2)
            sf = bcast_heads(sin_ref[...])
            ka_r = ka * cf - kb * sf                                        # rotated evens
            kb_r = ka * sf + kb * cf                                        # rotated odds
            if head_batched:
                kT_scr, v_scr = scratch
                kT = jnp.concatenate([ka_r.T.reshape(H, half, N),
                                      kb_r.T.reshape(H, half, N)], axis=1)  # (H, hd, N)
                kT_scr[...] = kT.astype(BF16)
                v_scr[...] = v.reshape(N, H, hd).swapaxes(0, 1).astype(BF16)  # (H, N, hd)
            else:
                ka_scr, kb_scr, v_scr = scratch
                ka_scr[...] = ka_r
                kb_scr[...] = kb_r
                v_scr[...] = v

        # ---- Q path for this q tile (sliced from the resident full-x buffer) ----
        x_q = x_ref[pl.ds(q0, TN), :]                                       # (TN, C) f32
        xn_q = rms(x_q, nw1).astype(BF16)
        qab = jnp.dot(xn_q, wqab_ref[...], preferred_element_type=F32)      # (TN, C)
        qa, qb = qab[:, :C2], qab[:, C2:]
        cq = bcast_heads(cos_ref[pl.ds(q0, TN), :])                         # (TN, C/2)
        sq = bcast_heads(sin_ref[pl.ds(q0, TN), :])
        qa_r = qa * cq - qb * sq
        qb_r = qa * sq + qb * cq

        if causal:
            row = q0 + lax.broadcasted_iota(jnp.int32, (TN, N), 0)
            col = lax.broadcasted_iota(jnp.int32, (TN, N), 1)
            keep = col <= row                                               # (TN, N)

        if head_batched:
            # ---- head-packed attention: one batched einsum per matmul ----
            kT_scr, v_scr = scratch
            q_heads = jnp.concatenate([qa_r.reshape(TN, H, half),
                                       qb_r.reshape(TN, H, half)], axis=-1)  # (TN, H, hd)
            q_heads = q_heads.swapaxes(0, 1).astype(BF16)                     # (H, TN, hd)
            s = jnp.einsum('hqd,hdk->hqk', q_heads, kT_scr[...],
                           preferred_element_type=F32)                        # (H, TN, N)
            if causal:
                s = jnp.where(keep[None], s, jnp.float32(-1e30))
            m = jnp.max(s, axis=-1, keepdims=True)
            p = jnp.exp(s - m)
            p = p * pl.reciprocal(jnp.sum(p, axis=-1, keepdims=True), approx=True)
            ctx3 = jnp.einsum('hqk,hkd->hqd', p.astype(BF16), v_scr[...],
                              preferred_element_type=F32)                     # (H, TN, hd)
            ctx = ctx3.swapaxes(0, 1).reshape(TN, C)
        else:
            # ---- fallback per-head loop (conservative op set) ----
            ka_scr, kb_scr, v_scr = scratch
            ka_c, kb_c, v_c = ka_scr[...], kb_scr[...], v_scr[...]
            dn = (((1,), (1,)), ((), ()))
            ctx_heads = []
            for h in range(H):
                hs = slice(h * half, (h + 1) * half)
                vs = slice(h * hd, (h + 1) * hd)
                qh = jnp.concatenate([qa_r[:, hs], qb_r[:, hs]], -1).astype(BF16)
                kh = jnp.concatenate([ka_c[:, hs], kb_c[:, hs]], -1).astype(BF16)
                s = lax.dot_general(qh, kh, dn, preferred_element_type=F32)
                if causal:
                    s = jnp.where(keep, s, jnp.float32(-1e30))
                m = jnp.max(s, axis=-1, keepdims=True)
                p = jnp.exp(s - m)
                p = p * pl.reciprocal(jnp.sum(p, axis=-1, keepdims=True), approx=True)
                ctx_heads.append(jnp.dot(p.astype(BF16), v_c[:, vs].astype(BF16),
                                         preferred_element_type=F32))
            ctx = jnp.concatenate(ctx_heads, axis=-1)

        # ---- output projection + residual ----
        h_state = x_q + jnp.dot(ctx.astype(BF16), wproj_ref[...],
                                preferred_element_type=F32) + bproj_ref[...]

        # ---- RMSNorm (ffn) + SwiGLU + residual ----
        hn = rms(h_state, nw2_ref[...]).astype(BF16)
        f1 = jnp.dot(hn, wfc1a_ref[...], preferred_element_type=F32)
        f2 = jnp.dot(hn, wfc1b_ref[...], preferred_element_type=F32)
        g = (f1 * jax.nn.sigmoid(f1)) * f2
        out = h_state + jnp.dot(g.astype(BF16), wfc2_ref[...],
                                preferred_element_type=F32)

        # ---- fused model-final RMSNorm (last layer only) ----
        if apply_final_norm:
            out = rms(out, fnw_ref[...])
        out_ref[...] = out

    return kernel


# ----------------------------------------------------------------------------
# Wrapper
# ----------------------------------------------------------------------------
def _vmem_limit_bytes():
    try:
        phys = int(pltpu.get_tpu_info().vmem_capacity_bytes)
    except Exception:
        phys = 64 * 1024 * 1024          # conservative default (v7x-sized)
    return max(32 * 1024 * 1024, min(phys - 16 * 1024 * 1024, 100 * 1024 * 1024))


def transformer_block_pallas(x, cos_half, sin_half, p, final_w, *, H, causal, eps,
                             apply_final_norm, seq_tile=None):
    B, N, C = x.shape
    hd = C // H
    half = hd // 2
    C2 = C // 2
    Hf = p["wfc2"].shape[0]

    # TN=256 fills the 256-wide MXU of v6e/v7x; pass seq_tile=128 on v5e.
    TN = seq_tile if seq_tile is not None else min(N, 256)
    if N % TN or (TN != N and TN % 8):
        TN = N
    T = N // TN

    def build_and_run(head_batched, single_buffer_weights):
        def w_spec(shape):
            nd = len(shape)
            idx = lambda b, t, _nd=nd: (0,) * _nd
            if single_buffer_weights:
                # constant block index -> double buffering buys nothing; halve VMEM use
                return pl.BlockSpec(shape, idx, pipeline_mode=pl.Buffered(1))
            return pl.BlockSpec(shape, idx)

        if head_batched:
            scratch = [pltpu.VMEM((H, hd, N), BF16),     # K^T cache (per head: hd x N)
                       pltpu.VMEM((H, N, hd), BF16)]     # V cache   (per head: N x hd)
        else:
            scratch = [pltpu.VMEM((N, C2), F32),         # rotated K, even block
                       pltpu.VMEM((N, C2), F32),         # rotated K, odd block
                       pltpu.VMEM((N, C), F32)]          # V

        kernel = make_layer_kernel(N, TN, C, H, eps, causal, apply_final_norm,
                                   head_batched)
        fn = pl.pallas_call(
            kernel,
            out_shape=jax.ShapeDtypeStruct((B, N, C), jnp.float32),
            grid=(B, T),
            in_specs=[
                pl.BlockSpec((None, N, C), lambda b, t: (b, 0, 0)),   # x (full seq)
                w_spec((N, half)), w_spec((N, half)),                 # cos / sin (compact)
                w_spec((1, C)),                                       # attention norm w
                w_spec((C, C)),                                       # wqab (scale folded)
                w_spec((C, 2 * C)),                                   # wkv
                w_spec((C, C)),                                       # wproj
                w_spec((1, C)),                                       # proj bias
                w_spec((1, C)),                                       # ffn norm w
                w_spec((C, Hf)), w_spec((C, Hf)),                     # fc1 gate / value
                w_spec((Hf, C)),                                      # fc2
                w_spec((1, C)),                                       # final model norm w
            ],
            out_specs=pl.BlockSpec((None, TN, C), lambda b, t: (b, t, 0)),
            scratch_shapes=scratch,
            compiler_params=pltpu.CompilerParams(
                dimension_semantics=("parallel", "arbitrary"),
                vmem_limit_bytes=_vmem_limit_bytes()),
        )
        out = fn(x, cos_half, sin_half,
                 p["nw1"], p["wqab"], p["wkv"], p["wproj"], p["bproj"], p["nw2"],
                 p["wfc1a"], p["wfc1b"], p["wfc2"], final_w)
        return jax.block_until_ready(out)

    last_err = None
    for head_batched, single_buf in ((True, True), (True, False),
                                     (False, True), (False, False)):
        try:
            return build_and_run(head_batched, single_buf)
        except Exception as e:     # graceful degradation on older Mosaic feature sets
            last_err = e
    raise last_err


# ----------------------------------------------------------------------------
# Parameter / RoPE setup helpers (host-side glue)
# ----------------------------------------------------------------------------
def precompute_freqs(head_dim, end, theta=10000.0):
    half = head_dim // 2
    freqs = 1.0 / theta ** (np.arange(0, head_dim, 2)[:half].astype(np.float32) / head_dim)
    t = np.arange(end, dtype=np.float32)
    ang = np.outer(t, freqs).astype(np.float32)          # (end, half)
    return np.cos(ang), np.sin(ang)


def qk_even_odd_perm(C, H):
    hd = C // H
    half = hd // 2
    even = np.array([h * hd + 2 * p for h in range(H) for p in range(half)], np.int32)
    odd = even + 1
    return even, odd


# ----------------------------------------------------------------------------
# Pure-JAX reference (mirrors the PyTorch module; same bf16 matmul precision)
# ----------------------------------------------------------------------------
def ref_forward(x, layers, final_w, cos, sin, *, H, causal, eps):
    B, N, C = x.shape
    hd = C // H
    half = hd // 2
    scale = hd ** -0.5
    f32, bf16 = jnp.float32, jnp.bfloat16

    def rms(t, w):
        return t * lax.rsqrt(jnp.mean(t * t, -1, keepdims=True) + eps) * w

    def rope(t):  # t: (B, H, N, hd), interleaved pairs
        tr = t.reshape(B, H, N, half, 2)
        te, to = tr[..., 0], tr[..., 1]
        c = cos[None, None]
        s = sin[None, None]
        return jnp.stack([te * c - to * s, te * s + to * c], -1).reshape(B, H, N, hd)

    for p in layers:
        xn = rms(x, p["nw1"]).astype(bf16)
        qkv = jnp.dot(xn, p["wqkv"], preferred_element_type=f32)
        qkv = qkv.reshape(B, N, 3, H, hd).transpose(2, 0, 3, 1, 4)
        q, k, v = rope(qkv[0]), rope(qkv[1]), qkv[2]
        scores = jnp.einsum("bhqd,bhkd->bhqk", q.astype(bf16), k.astype(bf16),
                            preferred_element_type=f32) * scale
        if causal:
            scores = jnp.where(jnp.tril(jnp.ones((N, N), bool)), scores, -jnp.inf)
        attn = jax.nn.softmax(scores, -1)
        ctx = jnp.einsum("bhqk,bhkd->bhqd", attn.astype(bf16), v.astype(bf16),
                         preferred_element_type=f32)
        ctx = ctx.transpose(0, 2, 1, 3).reshape(B, N, C)
        h = x + jnp.dot(ctx.astype(bf16), p["wproj"], preferred_element_type=f32) + p["bproj"]
        hn = rms(h, p["nw2"]).astype(bf16)
        Hf = p["wfc2"].shape[0]
        f = jnp.dot(hn, p["wfc1"], preferred_element_type=f32)
        g = jax.nn.silu(f[..., :Hf]) * f[..., Hf:]
        x = h + jnp.dot(g.astype(bf16), p["wfc2"], preferred_element_type=f32)
    return rms(x, final_w)


# ----------------------------------------------------------------------------
if __name__ == "__main__":
    B, N, C, H, depth = 2, 8, 32, 4, 2
    max_len, mlp_ratio, eps, causal = 16, 4, 1e-5, True
    hd = C // H
    half = hd // 2
    scale = float(hd) ** -0.5
    Hf = ((int(int(C * mlp_ratio) * 2 / 3) + 7) // 8) * 8   # SwiGLU hidden (= 88)

    key = jax.random.PRNGKey(0)
    keys = jax.random.split(key, 1 + depth * 5)
    x = jax.random.normal(keys[0], (B, N, C), jnp.float32)

    cos_np, sin_np = precompute_freqs(hd, max_len * 2)
    cos = jnp.asarray(cos_np[:N])                            # (N, hd//2)
    sin = jnp.asarray(sin_np[:N])
    perm_even, perm_odd = qk_even_odd_perm(C, H)

    layers_kernel, layers_ref = [], []
    ki = 1
    for _ in range(depth):
        wqkv = jax.random.normal(keys[ki], (C, 3 * C), jnp.float32) * 0.05; ki += 1
        wproj = jax.random.normal(keys[ki], (C, C), jnp.float32) * 0.05;    ki += 1
        bproj = jax.random.normal(keys[ki], (C,), jnp.float32) * 0.02;      ki += 1
        wfc1 = jax.random.normal(keys[ki], (C, 2 * Hf), jnp.float32) * 0.05; ki += 1
        wfc2 = jax.random.normal(keys[ki], (Hf, C), jnp.float32) * 0.05;    ki += 1
        nw1 = jnp.ones((C,), jnp.float32)
        nw2 = jnp.ones((C,), jnp.float32)

        wq, wk, wv = wqkv[:, :C], wqkv[:, C:2 * C], wqkv[:, 2 * C:]
        # fold the softmax scale into the Q projection (RoPE is linear -> equivalent);
        # pre-permute q/k columns into the even-block | odd-block RoPE layout.
        wqab = jnp.concatenate([wq[:, perm_even], wq[:, perm_odd]], 1) * scale    # (C, C)
        wkv_cat = jnp.concatenate([wk[:, perm_even], wk[:, perm_odd], wv], 1)     # (C, 2C)

        layers_kernel.append(dict(
            nw1=nw1.reshape(1, C), nw2=nw2.reshape(1, C),
            wqab=wqab.astype(BF16), wkv=wkv_cat.astype(BF16),
            wproj=wproj.astype(BF16), bproj=bproj.reshape(1, C),
            wfc1a=wfc1[:, :Hf].astype(BF16), wfc1b=wfc1[:, Hf:].astype(BF16),
            wfc2=wfc2.astype(BF16)))
        layers_ref.append(dict(nw1=nw1, nw2=nw2, wqkv=wqkv.astype(BF16),
                               wproj=wproj.astype(BF16), bproj=bproj,
                               wfc1=wfc1.astype(BF16), wfc2=wfc2.astype(BF16)))
    final_w = jnp.ones((C,), jnp.float32)

    out = x
    for li, lp in enumerate(layers_kernel):
        out = transformer_block_pallas(out, cos, sin, lp, final_w.reshape(1, C),
                                       H=H, causal=causal, eps=eps,
                                       apply_final_norm=(li == depth - 1))
    out = jax.block_until_ready(out)

    ref = ref_forward(x, layers_ref, final_w, cos, sin, H=H, causal=causal, eps=eps)
    np.testing.assert_allclose(np.asarray(out), np.asarray(ref), atol=2e-2, rtol=2e-2)
    print("KERNEL_OK")
</pallas_src>

<mosaic_0001>
module attributes {stable_mosaic.version = 11 : i64} {
  func.func @kernel(%arg0: i32, %arg1: i32, %arg2: memref<1x8x32xf32, #tpu.memory_space<vmem>>, %arg3: memref<8x4xf32, #tpu.memory_space<vmem>>, %arg4: memref<8x4xf32, #tpu.memory_space<vmem>>, %arg5: memref<1x32xf32, #tpu.memory_space<vmem>>, %arg6: memref<32x32xbf16, #tpu.memory_space<vmem>>, %arg7: memref<32x64xbf16, #tpu.memory_space<vmem>>, %arg8: memref<32x32xbf16, #tpu.memory_space<vmem>>, %arg9: memref<1x32xf32, #tpu.memory_space<vmem>>, %arg10: memref<1x32xf32, #tpu.memory_space<vmem>>, %arg11: memref<32x88xbf16, #tpu.memory_space<vmem>>, %arg12: memref<32x88xbf16, #tpu.memory_space<vmem>>, %arg13: memref<88x32xbf16, #tpu.memory_space<vmem>>, %arg14: memref<1x32xf32, #tpu.memory_space<vmem>>, %arg15: memref<1x8x32xf32, #tpu.memory_space<vmem>>, %arg16: memref<4x8x8xbf16, #tpu.memory_space<vmem>>, %arg17: memref<4x8x8xbf16, #tpu.memory_space<vmem>>) attributes {dimension_semantics = [#tpu.dimension_semantics<parallel>, #tpu.dimension_semantics<arbitrary>], iteration_bounds = array<i64: 2, 1>, scalar_prefetch = 0 : i64, scratch_operands = 2 : i64, tpu.core_type = #tpu.core_type<tc>, window_params = [{transform_indices = @transform_0, window_bounds = array<i64: 1, 8, 32>}, {pipeline_mode = #tpu.pipeline_mode<synchronous>, transform_indices = @transform_1, window_bounds = array<i64: 8, 4>}, {pipeline_mode = #tpu.pipeline_mode<synchronous>, transform_indices = @transform_2, window_bounds = array<i64: 8, 4>}, {pipeline_mode = #tpu.pipeline_mode<synchronous>, transform_indices = @transform_3, window_bounds = array<i64: 1, 32>}, {pipeline_mode = #tpu.pipeline_mode<synchronous>, transform_indices = @transform_4, window_bounds = array<i64: 32, 32>}, {pipeline_mode = #tpu.pipeline_mode<synchronous>, transform_indices = @transform_5, window_bounds = array<i64: 32, 64>}, {pipeline_mode = #tpu.pipeline_mode<synchronous>, transform_indices = @transform_6, window_bounds = array<i64: 32, 32>}, {pipeline_mode = #tpu.pipeline_mode<synchronous>, transform_indices = @transform_7, window_bounds = array<i64: 1, 32>}, {pipeline_mode = #tpu.pipeline_mode<synchronous>, transform_indices = @transform_8, window_bounds = array<i64: 1, 32>}, {pipeline_mode = #tpu.pipeline_mode<synchronous>, transform_indices = @transform_9, window_bounds = array<i64: 32, 88>}, {pipeline_mode = #tpu.pipeline_mode<synchronous>, transform_indices = @transform_10, window_bounds = array<i64: 32, 88>}, {pipeline_mode = #tpu.pipeline_mode<synchronous>, transform_indices = @transform_11, window_bounds = array<i64: 88, 32>}, {pipeline_mode = #tpu.pipeline_mode<synchronous>, transform_indices = @transform_12, window_bounds = array<i64: 1, 32>}, {transform_indices = @transform_13, window_bounds = array<i64: 1, 8, 32>}]} {
    %c8_i32 = arith.constant 8 : i32
    %0 = arith.muli %arg1, %c8_i32 : i32
    %1 = tpu.assume_multiple %0, 8 : i32
    %c0 = arith.constant 0 : index
    %c0_0 = arith.constant 0 : index
    %2 = vector.load %arg5[%c0, %c0_0] : memref<1x32xf32, #tpu.memory_space<vmem>>, vector<1x32xf32>
    %c0_i32 = arith.constant 0 : i32
    %3 = arith.cmpi eq, %arg1, %c0_i32 : i32
    %4 = arith.extui %3 : i1 to i32
    %c0_i32_1 = arith.constant 0 : i32
    %5 = arith.cmpi ne, %4, %c0_i32_1 : i32
    scf.if %5 {
      %c0_45 = arith.constant 0 : index
      %c0_46 = arith.constant 0 : index
      %c0_47 = arith.constant 0 : index
      %109 = vector.load %arg2[%c0_45, %c0_46, %c0_47] : memref<1x8x32xf32, #tpu.memory_space<vmem>>, vector<1x8x32xf32>
      %110 = vector.shape_cast %109 : vector<1x8x32xf32> to vector<8x32xf32>
      %111 = arith.mulf %110, %110 : vector<8x32xf32>
      %cst_48 = arith.constant dense<0.000000e+00> : vector<8xf32>
      %112 = vector.multi_reduction <add>, %111, %cst_48 [1] : vector<8x32xf32> to vector<8xf32>
      %113 = vector.shape_cast %112 : vector<8xf32> to vector<8x1xf32>
      %cst_49 = arith.constant 3.200000e+01 : f32
      %114 = vector.broadcast %cst_49 : f32 to vector<8x1xf32>
      %115 = arith.divf %113, %114 : vector<8x1xf32>
      %cst_50 = arith.constant 9.99999974E-6 : f32
      %116 = vector.broadcast %cst_50 : f32 to vector<8x1xf32>
      %117 = arith.addf %115, %116 : vector<8x1xf32>
      %118 = math.rsqrt %117 : vector<8x1xf32>
      %119 = vector.broadcast %118 : vector<8x1xf32> to vector<8x32xf32>
      %120 = arith.mulf %110, %119 : vector<8x32xf32>
      %121 = vector.broadcast %2 : vector<1x32xf32> to vector<8x32xf32>
      %122 = arith.mulf %120, %121 : vector<8x32xf32>
      %123 = arith.truncf %122 : vector<8x32xf32> to vector<8x32xbf16>
      %c0_51 = arith.constant 0 : index
      %c0_52 = arith.constant 0 : index
      %124 = vector.load %arg7[%c0_51, %c0_52] : memref<32x64xbf16, #tpu.memory_space<vmem>>, vector<32x64xbf16>
      %cst_53 = arith.constant dense<0.000000e+00> : vector<8x64xf32>
      %125 = tpu.matmul %123, %124, %cst_53 {dimension_numbers = #tpu.dot_dimension_numbers<[1], [0], [0], [1], [0, 0, 1, 1], [], []>} : vector<8x32xbf16>, vector<32x64xbf16>, vector<8x64xf32> -> vector<8x64xf32>
      %126 = vector.extract_strided_slice %125 {offsets = [0, 0], sizes = [8, 16], strides = [1, 1]} : vector<8x64xf32> to vector<8x16xf32>
      %127 = vector.extract_strided_slice %125 {offsets = [0, 16], sizes = [8, 16], strides = [1, 1]} : vector<8x64xf32> to vector<8x16xf32>
      %128 = vector.extract_strided_slice %125 {offsets = [0, 32], sizes = [8, 32], strides = [1, 1]} : vector<8x64xf32> to vector<8x32xf32>
      %c0_54 = arith.constant 0 : index
      %c0_55 = arith.constant 0 : index
      %129 = vector.load %arg3[%c0_54, %c0_55] : memref<8x4xf32, #tpu.memory_space<vmem>>, vector<8x4xf32>
      %130 = tpu.concatenate %129, %129, %129, %129 in 1 : vector<8x4xf32>, vector<8x4xf32>, vector<8x4xf32>, vector<8x4xf32> -> vector<8x16xf32>
      %c0_56 = arith.constant 0 : index
      %c0_57 = arith.constant 0 : index
      %131 = vector.load %arg4[%c0_56, %c0_57] : memref<8x4xf32, #tpu.memory_space<vmem>>, vector<8x4xf32>
      %132 = tpu.concatenate %131, %131, %131, %131 in 1 : vector<8x4xf32>, vector<8x4xf32>, vector<8x4xf32>, vector<8x4xf32> -> vector<8x16xf32>
      %133 = arith.mulf %126, %130 : vector<8x16xf32>
      %134 = arith.mulf %127, %132 : vector<8x16xf32>
      %135 = arith.subf %133, %134 : vector<8x16xf32>
      %136 = arith.mulf %126, %132 : vector<8x16xf32>
      %137 = arith.mulf %127, %130 : vector<8x16xf32>
      %138 = arith.addf %136, %137 : vector<8x16xf32>
      %139 = tpu.transpose %135, [1, 0] : vector<8x16xf32> -> vector<16x8xf32>
      %140 = vector.shape_cast %139 : vector<16x8xf32> to vector<4x4x8xf32>
      %141 = tpu.transpose %138, [1, 0] : vector<8x16xf32> -> vector<16x8xf32>
      %142 = vector.shape_cast %141 : vector<16x8xf32> to vector<4x4x8xf32>
      %143 = tpu.concatenate %140, %142 in 1 : vector<4x4x8xf32>, vector<4x4x8xf32> -> vector<4x8x8xf32>
      %144 = arith.truncf %143 : vector<4x8x8xf32> to vector<4x8x8xbf16>
      %c0_58 = arith.constant 0 : index
      %c0_59 = arith.constant 0 : index
      %c0_60 = arith.constant 0 : index
      %145 = vector.load %arg16[%c0_58, %c0_59, %c0_60] : memref<4x8x8xbf16, #tpu.memory_space<vmem>>, vector<4x8x8xbf16>
      tpu.vector_store %arg16[%c0_58, %c0_59, %c0_60], %144 {strides = array<i32>} : memref<4x8x8xbf16, #tpu.memory_space<vmem>>, vector<4x8x8xbf16>,
      %146 = vector.shape_cast %128 : vector<8x32xf32> to vector<8x4x8xf32>
      %147 = tpu.transpose %146, [1, 0, 2] : vector<8x4x8xf32> -> vector<4x8x8xf32>
      %148 = arith.truncf %147 : vector<4x8x8xf32> to vector<4x8x8xbf16>
      %c0_61 = arith.constant 0 : index
      %c0_62 = arith.constant 0 : index
      %c0_63 = arith.constant 0 : index
      %149 = vector.load %arg17[%c0_61, %c0_62, %c0_63] : memref<4x8x8xbf16, #tpu.memory_space<vmem>>, vector<4x8x8xbf16>
      tpu.vector_store %arg17[%c0_61, %c0_62, %c0_63], %148 {strides = array<i32>} : memref<4x8x8xbf16, #tpu.memory_space<vmem>>, vector<4x8x8xbf16>,
    } else {
    }
    %c0_2 = arith.constant 0 : index
    %6 = arith.index_cast %1 : i32 to index
    %c0_3 = arith.constant 0 : index
    %7 = vector.load %arg2[%c0_2, %6, %c0_3] : memref<1x8x32xf32, #tpu.memory_space<vmem>>, vector<1x8x32xf32>
    %8 = vector.shape_cast %7 : vector<1x8x32xf32> to vector<8x32xf32>
    %9 = arith.mulf %8, %8 : vector<8x32xf32>
    %cst = arith.constant dense<0.000000e+00> : vector<8xf32>
    %10 = vector.multi_reduction <add>, %9, %cst [1] : vector<8x32xf32> to vector<8xf32>
    %11 = vector.shape_cast %10 : vector<8xf32> to vector<8x1xf32>
    %cst_4 = arith.constant 3.200000e+01 : f32
    %12 = vector.broadcast %cst_4 : f32 to vector<8x1xf32>
    %13 = arith.divf %11, %12 : vector<8x1xf32>
    %cst_5 = arith.constant 9.99999974E-6 : f32
    %14 = vector.broadcast %cst_5 : f32 to vector<8x1xf32>
    %15 = arith.addf %13, %14 : vector<8x1xf32>
    %16 = math.rsqrt %15 : vector<8x1xf32>
    %17 = vector.broadcast %16 : vector<8x1xf32> to vector<8x32xf32>
    %18 = arith.mulf %8, %17 : vector<8x32xf32>
    %19 = vector.broadcast %2 : vector<1x32xf32> to vector<8x32xf32>
    %20 = arith.mulf %18, %19 : vector<8x32xf32>
    %21 = arith.truncf %20 : vector<8x32xf32> to vector<8x32xbf16>
    %c0_6 = arith.constant 0 : index
    %c0_7 = arith.constant 0 : index
    %22 = vector.load %arg6[%c0_6, %c0_7] : memref<32x32xbf16, #tpu.memory_space<vmem>>, vector<32x32xbf16>
    %cst_8 = arith.constant dense<0.000000e+00> : vector<8x32xf32>
    %23 = tpu.matmul %21, %22, %cst_8 {dimension_numbers = #tpu.dot_dimension_numbers<[1], [0], [0], [1], [0, 0, 1, 1], [], []>} : vector<8x32xbf16>, vector<32x32xbf16>, vector<8x32xf32> -> vector<8x32xf32>
    %24 = vector.extract_strided_slice %23 {offsets = [0, 0], sizes = [8, 16], strides = [1, 1]} : vector<8x32xf32> to vector<8x16xf32>
    %25 = vector.extract_strided_slice %23 {offsets = [0, 16], sizes = [8, 16], strides = [1, 1]} : vector<8x32xf32> to vector<8x16xf32>
    %26 = arith.index_cast %1 : i32 to index
    %c0_9 = arith.constant 0 : index
    %27 = vector.load %arg3[%26, %c0_9] : memref<8x4xf32, #tpu.memory_space<vmem>>, vector<8x4xf32>
    %28 = tpu.concatenate %27, %27, %27, %27 in 1 : vector<8x4xf32>, vector<8x4xf32>, vector<8x4xf32>, vector<8x4xf32> -> vector<8x16xf32>
    %29 = arith.index_cast %1 : i32 to index
    %c0_10 = arith.constant 0 : index
    %30 = vector.load %arg4[%29, %c0_10] : memref<8x4xf32, #tpu.memory_space<vmem>>, vector<8x4xf32>
    %31 = tpu.concatenate %30, %30, %30, %30 in 1 : vector<8x4xf32>, vector<8x4xf32>, vector<8x4xf32>, vector<8x4xf32> -> vector<8x16xf32>
    %32 = arith.mulf %24, %28 : vector<8x16xf32>
    %33 = arith.mulf %25, %31 : vector<8x16xf32>
    %34 = arith.subf %32, %33 : vector<8x16xf32>
    %35 = arith.mulf %24, %31 : vector<8x16xf32>
    %36 = arith.mulf %25, %28 : vector<8x16xf32>
    %37 = arith.addf %35, %36 : vector<8x16xf32>
    %38 = tpu.iota {dimensions = array<i32: 0>} : vector<8x8xi32>
    %39 = vector.broadcast %1 : i32 to vector<8x8xi32>
    %40 = arith.addi %39, %38 : vector<8x8xi32>
    %41 = tpu.iota {dimensions = array<i32: 1>} : vector<8x8xi32>
    %42 = arith.cmpi sle, %41, %40 : vector<8x8xi32>
    %43 = vector.shape_cast %34 : vector<8x16xf32> to vector<8x4x4xf32>
    %44 = vector.shape_cast %37 : vector<8x16xf32> to vector<8x4x4xf32>
    %45 = tpu.concatenate %43, %44 in 2 : vector<8x4x4xf32>, vector<8x4x4xf32> -> vector<8x4x8xf32>
    %46 = tpu.transpose %45, [1, 0, 2] : vector<8x4x8xf32> -> vector<4x8x8xf32>
    %47 = arith.truncf %46 : vector<4x8x8xf32> to vector<4x8x8xbf16>
    %c0_11 = arith.constant 0 : index
    %c0_12 = arith.constant 0 : index
    %c0_13 = arith.constant 0 : index
    %48 = vector.load %arg16[%c0_11, %c0_12, %c0_13] : memref<4x8x8xbf16, #tpu.memory_space<vmem>>, vector<4x8x8xbf16>
    "tpu.trace_start"() <{level = 10 : i32, message = "hqd,hdk->hqk"}> : () -> ()
    %cst_14 = arith.constant dense<0.000000e+00> : vector<4x8x8xf32>
    %49 = tpu.matmul %47, %48, %cst_14 {dimension_numbers = #tpu.dot_dimension_numbers<[2], [1], [1], [2], [0, 0, 0, 1, 1, 2], [0], [0]>} : vector<4x8x8xbf16>, vector<4x8x8xbf16>, vector<4x8x8xf32> -> vector<4x8x8xf32>
    "tpu.trace_stop"() : () -> ()
    %50 = vector.shape_cast %42 : vector<8x8xi1> to vector<1x8x8xi1>
    %cst_15 = arith.constant -1.000000e+30 : f32
    %51 = vector.shape_cast %50 : vector<1x8x8xi1> to vector<1x8x8xi1>
    %52 = vector.broadcast %51 : vector<1x8x8xi1> to vector<4x8x8xi1>
    %53 = vector.broadcast %cst_15 : f32 to vector<4x8x8xf32>
    %54 = arith.select %52, %49, %53 : vector<4x8x8xi1>, vector<4x8x8xf32>
    %cst_16 = arith.constant dense<0xFF800000> : vector<4x8xf32>
    %55 = vector.multi_reduction <maximumf>, %54, %cst_16 [2] : vector<4x8x8xf32> to vector<4x8xf32>
    %56 = vector.shape_cast %55 : vector<4x8xf32> to vector<4x8x1xf32>
    %57 = vector.broadcast %56 : vector<4x8x1xf32> to vector<4x8x8xf32>
    %58 = arith.subf %54, %57 : vector<4x8x8xf32>
    %59 = math.exp %58 : vector<4x8x8xf32>
    %cst_17 = arith.constant dense<0.000000e+00> : vector<4x8xf32>
    %60 = vector.multi_reduction <add>, %59, %cst_17 [2] : vector<4x8x8xf32> to vector<4x8xf32>
    %61 = vector.shape_cast %60 : vector<4x8xf32> to vector<4x8x1xf32>
    %62 = tpu.reciprocal %61 {approx = true} : vector<4x8x1xf32> -> vector<4x8x1xf32>
    %63 = vector.broadcast %62 : vector<4x8x1xf32> to vector<4x8x8xf32>
    %64 = arith.mulf %59, %63 : vector<4x8x8xf32>
    %65 = arith.truncf %64 : vector<4x8x8xf32> to vector<4x8x8xbf16>
    %c0_18 = arith.constant 0 : index
    %c0_19 = arith.constant 0 : index
    %c0_20 = arith.constant 0 : index
    %66 = vector.load %arg17[%c0_18, %c0_19, %c0_20] : memref<4x8x8xbf16, #tpu.memory_space<vmem>>, vector<4x8x8xbf16>
    "tpu.trace_start"() <{level = 10 : i32, message = "hqk,hkd->hqd"}> : () -> ()
    %cst_21 = arith.constant dense<0.000000e+00> : vector<4x8x8xf32>
    %67 = tpu.matmul %65, %66, %cst_21 {dimension_numbers = #tpu.dot_dimension_numbers<[2], [1], [1], [2], [0, 0, 0, 1, 1, 2], [0], [0]>} : vector<4x8x8xbf16>, vector<4x8x8xbf16>, vector<4x8x8xf32> -> vector<4x8x8xf32>
    "tpu.trace_stop"() : () -> ()
    %68 = tpu.transpose %67, [1, 0, 2] : vector<4x8x8xf32> -> vector<8x4x8xf32>
    %69 = vector.shape_cast %68 : vector<8x4x8xf32> to vector<8x32xf32>
    %70 = arith.truncf %69 : vector<8x32xf32> to vector<8x32xbf16>
    %c0_22 = arith.constant 0 : index
    %c0_23 = arith.constant 0 : index
    %71 = vector.load %arg8[%c0_22, %c0_23] : memref<32x32xbf16, #tpu.memory_space<vmem>>, vector<32x32xbf16>
    %cst_24 = arith.constant dense<0.000000e+00> : vector<8x32xf32>
    %72 = tpu.matmul %70, %71, %cst_24 {dimension_numbers = #tpu.dot_dimension_numbers<[1], [0], [0], [1], [0, 0, 1, 1], [], []>} : vector<8x32xbf16>, vector<32x32xbf16>, vector<8x32xf32> -> vector<8x32xf32>
    %73 = arith.addf %8, %72 : vector<8x32xf32>
    %c0_25 = arith.constant 0 : index
    %c0_26 = arith.constant 0 : index
    %74 = vector.load %arg9[%c0_25, %c0_26] : memref<1x32xf32, #tpu.memory_space<vmem>>, vector<1x32xf32>
    %75 = vector.broadcast %74 : vector<1x32xf32> to vector<8x32xf32>
    %76 = arith.addf %73, %75 : vector<8x32xf32>
    %c0_27 = arith.constant 0 : index
    %c0_28 = arith.constant 0 : index
    %77 = vector.load %arg10[%c0_27, %c0_28] : memref<1x32xf32, #tpu.memory_space<vmem>>, vector<1x32xf32>
    %78 = arith.mulf %76, %76 : vector<8x32xf32>
    %cst_29 = arith.constant dense<0.000000e+00> : vector<8xf32>
    %79 = vector.multi_reduction <add>, %78, %cst_29 [1] : vector<8x32xf32> to vector<8xf32>
    %80 = vector.shape_cast %79 : vector<8xf32> to vector<8x1xf32>
    %cst_30 = arith.constant 3.200000e+01 : f32
    %81 = vector.broadcast %cst_30 : f32 to vector<8x1xf32>
    %82 = arith.divf %80, %81 : vector<8x1xf32>
    %cst_31 = arith.constant 9.99999974E-6 : f32
    %83 = vector.broadcast %cst_31 : f32 to vector<8x1xf32>
    %84 = arith.addf %82, %83 : vector<8x1xf32>
    %85 = math.rsqrt %84 : vector<8x1xf32>
    %86 = vector.broadcast %85 : vector<8x1xf32> to vector<8x32xf32>
    %87 = arith.mulf %76, %86 : vector<8x32xf32>
    %88 = vector.broadcast %77 : vector<1x32xf32> to vector<8x32xf32>
    %89 = arith.mulf %87, %88 : vector<8x32xf32>
    %90 = arith.truncf %89 : vector<8x32xf32> to vector<8x32xbf16>
    %c0_32 = arith.constant 0 : index
    %c0_33 = arith.constant 0 : index
    %91 = vector.load %arg11[%c0_32, %c0_33] : memref<32x88xbf16, #tpu.memory_space<vmem>>, vector<32x88xbf16>
    %cst_34 = arith.constant dense<0.000000e+00> : vector<8x88xf32>
    %92 = tpu.matmul %90, %91, %cst_34 {dimension_numbers = #tpu.dot_dimension_numbers<[1], [0], [0], [1], [0, 0, 1, 1], [], []>} : vector<8x32xbf16>, vector<32x88xbf16>, vector<8x88xf32> -> vector<8x88xf32>
    %c0_35 = arith.constant 0 : index
    %c0_36 = arith.constant 0 : index
    %93 = vector.load %arg12[%c0_35, %c0_36] : memref<32x88xbf16, #tpu.memory_space<vmem>>, vector<32x88xbf16>
    %cst_37 = arith.constant dense<0.000000e+00> : vector<8x88xf32>
    %94 = tpu.matmul %90, %93, %cst_37 {dimension_numbers = #tpu.dot_dimension_numbers<[1], [0], [0], [1], [0, 0, 1, 1], [], []>} : vector<8x32xbf16>, vector<32x88xbf16>, vector<8x88xf32> -> vector<8x88xf32>
    %95 = arith.negf %92 : vector<8x88xf32>
    %96 = math.exp %95 : vector<8x88xf32>
    %cst_38 = arith.constant 1.000000e+00 : f32
    %97 = vector.broadcast %cst_38 : f32 to vector<8x88xf32>
    %98 = arith.addf %97, %96 : vector<8x88xf32>
    %99 = arith.divf %97, %98 : vector<8x88xf32>
    %100 = arith.mulf %92, %99 : vector<8x88xf32>
    %101 = arith.mulf %100, %94 : vector<8x88xf32>
    %102 = arith.truncf %101 : vector<8x88xf32> to vector<8x88xbf16>
    %c0_39 = arith.constant 0 : index
    %c0_40 = arith.constant 0 : index
    %103 = vector.load %arg13[%c0_39, %c0_40] : memref<88x32xbf16, #tpu.memory_space<vmem>>, vector<88x32xbf16>
    %cst_41 = arith.constant dense<0.000000e+00> : vector<8x32xf32>
    %104 = tpu.matmul %102, %103, %cst_41 {dimension_numbers = #tpu.dot_dimension_numbers<[1], [0], [0], [1], [0, 0, 1, 1], [], []>} : vector<8x88xbf16>, vector<88x32xbf16>, vector<8x32xf32> -> vector<8x32xf32>
    %105 = arith.addf %76, %104 : vector<8x32xf32>
    %c0_42 = arith.constant 0 : index
    %c0_43 = arith.constant 0 : index
    %c0_44 = arith.constant 0 : index
    %106 = vector.load %arg15[%c0_42, %c0_43, %c0_44] : memref<1x8x32xf32, #tpu.memory_space<vmem>>, vector<1x8x32xf32>
    %107 = vector.shape_cast %106 : vector<1x8x32xf32> to vector<8x32xf32>
    %108 = vector.shape_cast %105 : vector<8x32xf32> to vector<1x8x32xf32>
    tpu.vector_store %arg15[%c0_42, %c0_43, %c0_44], %108 {strides = array<i32>} : memref<1x8x32xf32, #tpu.memory_space<vmem>>, vector<1x8x32xf32>,
    return
  }
  func.func @transform_0(%arg0: i32, %arg1: i32) -> (i32, i32, i32) {
    %c0_i32 = arith.constant 0 : i32
    %c0_i32_0 = arith.constant 0 : i32
    %c0_i32_1 = arith.constant 0 : i32
    return %arg0, %c0_i32, %c0_i32_0 : i32, i32, i32
  }
  func.func @transform_1(%arg0: i32, %arg1: i32) -> (i32, i32) {
    %c0_i32 = arith.constant 0 : i32
    %c0_i32_0 = arith.constant 0 : i32
    %c0_i32_1 = arith.constant 0 : i32
    return %c0_i32, %c0_i32_0 : i32, i32
  }
  func.func @transform_2(%arg0: i32, %arg1: i32) -> (i32, i32) {
    %c0_i32 = arith.constant 0 : i32
    %c0_i32_0 = arith.constant 0 : i32
    %c0_i32_1 = arith.constant 0 : i32
    return %c0_i32, %c0_i32_0 : i32, i32
  }
  func.func @transform_3(%arg0: i32, %arg1: i32) -> (i32, i32) {
    %c0_i32 = arith.constant 0 : i32
    %c0_i32_0 = arith.constant 0 : i32
    %c0_i32_1 = arith.constant 0 : i32
    return %c0_i32, %c0_i32_0 : i32, i32
  }
  func.func @transform_4(%arg0: i32, %arg1: i32) -> (i32, i32) {
    %c0_i32 = arith.constant 0 : i32
    %c0_i32_0 = arith.constant 0 : i32
    %c0_i32_1 = arith.constant 0 : i32
    return %c0_i32, %c0_i32_0 : i32, i32
  }
  func.func @transform_5(%arg0: i32, %arg1: i32) -> (i32, i32) {
    %c0_i32 = arith.constant 0 : i32
    %c0_i32_0 = arith.constant 0 : i32
    %c0_i32_1 = arith.constant 0 : i32
    return %c0_i32, %c0_i32_0 : i32, i32
  }
  func.func @transform_6(%arg0: i32, %arg1: i32) -> (i32, i32) {
    %c0_i32 = arith.constant 0 : i32
    %c0_i32_0 = arith.constant 0 : i32
    %c0_i32_1 = arith.constant 0 : i32
    return %c0_i32, %c0_i32_0 : i32, i32
  }
  func.func @transform_7(%arg0: i32, %arg1: i32) -> (i32, i32) {
    %c0_i32 = arith.constant 0 : i32
    %c0_i32_0 = arith.constant 0 : i32
    %c0_i32_1 = arith.constant 0 : i32
    return %c0_i32, %c0_i32_0 : i32, i32
  }
  func.func @transform_8(%arg0: i32, %arg1: i32) -> (i32, i32) {
    %c0_i32 = arith.constant 0 : i32
    %c0_i32_0 = arith.constant 0 : i32
    %c0_i32_1 = arith.constant 0 : i32
    return %c0_i32, %c0_i32_0 : i32, i32
  }
  func.func @transform_9(%arg0: i32, %arg1: i32) -> (i32, i32) {
    %c0_i32 = arith.constant 0 : i32
    %c0_i32_0 = arith.constant 0 : i32
    %c0_i32_1 = arith.constant 0 : i32
    return %c0_i32, %c0_i32_0 : i32, i32
  }
  func.func @transform_10(%arg0: i32, %arg1: i32) -> (i32, i32) {
    %c0_i32 = arith.constant 0 : i32
    %c0_i32_0 = arith.constant 0 : i32
    %c0_i32_1 = arith.constant 0 : i32
    return %c0_i32, %c0_i32_0 : i32, i32
  }
  func.func @transform_11(%arg0: i32, %arg1: i32) -> (i32, i32) {
    %c0_i32 = arith.constant 0 : i32
    %c0_i32_0 = arith.constant 0 : i32
    %c0_i32_1 = arith.constant 0 : i32
    return %c0_i32, %c0_i32_0 : i32, i32
  }
  func.func @transform_12(%arg0: i32, %arg1: i32) -> (i32, i32) {
    %c0_i32 = arith.constant 0 : i32
    %c0_i32_0 = arith.constant 0 : i32
    %c0_i32_1 = arith.constant 0 : i32
    return %c0_i32, %c0_i32_0 : i32, i32
  }
  func.func @transform_13(%arg0: i32, %arg1: i32) -> (i32, i32, i32) {
    %c0_i32 = arith.constant 0 : i32
    %c0_i32_0 = arith.constant 0 : i32
    return %arg0, %arg1, %c0_i32 : i32, i32, i32
  }
}

module attributes {stable_mosaic.version = 11 : i64} {
  func.func @kernel(%arg0: i32, %arg1: i32, %arg2: memref<1x8x32xf32, #tpu.memory_space<vmem>>, %arg3: memref<8x4xf32, #tpu.memory_space<vmem>>, %arg4: memref<8x4xf32, #tpu.memory_space<vmem>>, %arg5: memref<1x32xf32, #tpu.memory_space<vmem>>, %arg6: memref<32x32xbf16, #tpu.memory_space<vmem>>, %arg7: memref<32x64xbf16, #tpu.memory_space<vmem>>, %arg8: memref<32x32xbf16, #tpu.memory_space<vmem>>, %arg9: memref<1x32xf32, #tpu.memory_space<vmem>>, %arg10: memref<1x32xf32, #tpu.memory_space<vmem>>, %arg11: memref<32x88xbf16, #tpu.memory_space<vmem>>, %arg12: memref<32x88xbf16, #tpu.memory_space<vmem>>, %arg13: memref<88x32xbf16, #tpu.memory_space<vmem>>, %arg14: memref<1x32xf32, #tpu.memory_space<vmem>>, %arg15: memref<1x8x32xf32, #tpu.memory_space<vmem>>, %arg16: memref<4x8x8xbf16, #tpu.memory_space<vmem>>, %arg17: memref<4x8x8xbf16, #tpu.memory_space<vmem>>) attributes {dimension_semantics = [#tpu.dimension_semantics<parallel>, #tpu.dimension_semantics<arbitrary>], iteration_bounds = array<i64: 2, 1>, scalar_prefetch = 0 : i64, scratch_operands = 2 : i64, tpu.core_type = #tpu.core_type<tc>, window_params = [{transform_indices = @transform_0, window_bounds = array<i64: 1, 8, 32>}, {pipeline_mode = #tpu.pipeline_mode<synchronous>, transform_indices = @transform_1, window_bounds = array<i64: 8, 4>}, {pipeline_mode = #tpu.pipeline_mode<synchronous>, transform_indices = @transform_2, window_bounds = array<i64: 8, 4>}, {pipeline_mode = #tpu.pipeline_mode<synchronous>, transform_indices = @transform_3, window_bounds = array<i64: 1, 32>}, {pipeline_mode = #tpu.pipeline_mode<synchronous>, transform_indices = @transform_4, window_bounds = array<i64: 32, 32>}, {pipeline_mode = #tpu.pipeline_mode<synchronous>, transform_indices = @transform_5, window_bounds = array<i64: 32, 64>}, {pipeline_mode = #tpu.pipeline_mode<synchronous>, transform_indices = @transform_6, window_bounds = array<i64: 32, 32>}, {pipeline_mode = #tpu.pipeline_mode<synchronous>, transform_indices = @transform_7, window_bounds = array<i64: 1, 32>}, {pipeline_mode = #tpu.pipeline_mode<synchronous>, transform_indices = @transform_8, window_bounds = array<i64: 1, 32>}, {pipeline_mode = #tpu.pipeline_mode<synchronous>, transform_indices = @transform_9, window_bounds = array<i64: 32, 88>}, {pipeline_mode = #tpu.pipeline_mode<synchronous>, transform_indices = @transform_10, window_bounds = array<i64: 32, 88>}, {pipeline_mode = #tpu.pipeline_mode<synchronous>, transform_indices = @transform_11, window_bounds = array<i64: 88, 32>}, {pipeline_mode = #tpu.pipeline_mode<synchronous>, transform_indices = @transform_12, window_bounds = array<i64: 1, 32>}, {transform_indices = @transform_13, window_bounds = array<i64: 1, 8, 32>}]} {
    %c8_i32 = arith.constant 8 : i32
    %0 = arith.muli %arg1, %c8_i32 : i32
    %1 = tpu.assume_multiple %0, 8 : i32
    %c0 = arith.constant 0 : index
    %c0_0 = arith.constant 0 : index
    %2 = vector.load %arg5[%c0, %c0_0] : memref<1x32xf32, #tpu.memory_space<vmem>>, vector<1x32xf32>
    %c0_i32 = arith.constant 0 : i32
    %3 = arith.cmpi eq, %arg1, %c0_i32 : i32
    %4 = arith.extui %3 : i1 to i32
    %c0_i32_1 = arith.constant 0 : i32
    %5 = arith.cmpi ne, %4, %c0_i32_1 : i32
    scf.if %5 {
      %c0_45 = arith.constant 0 : index
      %c0_46 = arith.constant 0 : index
      %c0_47 = arith.constant 0 : index
      %109 = vector.load %arg2[%c0_45, %c0_46, %c0_47] : memref<1x8x32xf32, #tpu.memory_space<vmem>>, vector<1x8x32xf32>
      %110 = vector.shape_cast %109 : vector<1x8x32xf32> to vector<8x32xf32>
      %111 = arith.mulf %110, %110 : vector<8x32xf32>
      %cst_48 = arith.constant dense<0.000000e+00> : vector<8xf32>
      %112 = vector.multi_reduction <add>, %111, %cst_48 [1] : vector<8x32xf32> to vector<8xf32>
      %113 = vector.shape_cast %112 : vector<8xf32> to vector<8x1xf32>
      %cst_49 = arith.constant 3.200000e+01 : f32
      %114 = vector.broadcast %cst_49 : f32 to vector<8x1xf32>
      %115 = arith.divf %113, %114 : vector<8x1xf32>
      %cst_50 = arith.constant 9.99999974E-6 : f32
      %116 = vector.broadcast %cst_50 : f32 to vector<8x1xf32>
      %117 = arith.addf %115, %116 : vector<8x1xf32>
      %118 = math.rsqrt %117 : vector<8x1xf32>
      %119 = vector.broadcast %118 : vector<8x1xf32> to vector<8x32xf32>
      %120 = arith.mulf %110, %119 : vector<8x32xf32>
      %121 = vector.broadcast %2 : vector<1x32xf32> to vector<8x32xf32>
      %122 = arith.mulf %120, %121 : vector<8x32xf32>
      %123 = arith.truncf %122 : vector<8x32xf32> to vector<8x32xbf16>
      %c0_51 = arith.constant 0 : index
      %c0_52 = arith.constant 0 : index
      %124 = vector.load %arg7[%c0_51, %c0_52] : memref<32x64xbf16, #tpu.memory_space<vmem>>, vector<32x64xbf16>
      %cst_53 = arith.constant dense<0.000000e+00> : vector<8x64xf32>
      %125 = tpu.matmul %123, %124, %cst_53 {dimension_numbers = #tpu.dot_dimension_numbers<[1], [0], [0], [1], [0, 0, 1, 1], [], []>} : vector<8x32xbf16>, vector<32x64xbf16>, vector<8x64xf32> -> vector<8x64xf32>
      %126 = vector.extract_strided_slice %125 {offsets = [0, 0], sizes = [8, 16], strides = [1, 1]} : vector<8x64xf32> to vector<8x16xf32>
      %127 = vector.extract_strided_slice %125 {offsets = [0, 16], sizes = [8, 16], strides = [1, 1]} : vector<8x64xf32> to vector<8x16xf32>
      %128 = vector.extract_strided_slice %125 {offsets = [0, 32], sizes = [8, 32], strides = [1, 1]} : vector<8x64xf32> to vector<8x32xf32>
      %c0_54 = arith.constant 0 : index
      %c0_55 = arith.constant 0 : index
      %129 = vector.load %arg3[%c0_54, %c0_55] : memref<8x4xf32, #tpu.memory_space<vmem>>, vector<8x4xf32>
      %130 = tpu.concatenate %129, %129, %129, %129 in 1 : vector<8x4xf32>, vector<8x4xf32>, vector<8x4xf32>, vector<8x4xf32> -> vector<8x16xf32>
      %c0_56 = arith.constant 0 : index
      %c0_57 = arith.constant 0 : index
      %131 = vector.load %arg4[%c0_56, %c0_57] : memref<8x4xf32, #tpu.memory_space<vmem>>, vector<8x4xf32>
      %132 = tpu.concatenate %131, %131, %131, %131 in 1 : vector<8x4xf32>, vector<8x4xf32>, vector<8x4xf32>, vector<8x4xf32> -> vector<8x16xf32>
      %133 = arith.mulf %126, %130 : vector<8x16xf32>
      %134 = arith.mulf %127, %132 : vector<8x16xf32>
      %135 = arith.subf %133, %134 : vector<8x16xf32>
      %136 = arith.mulf %126, %132 : vector<8x16xf32>
      %137 = arith.mulf %127, %130 : vector<8x16xf32>
      %138 = arith.addf %136, %137 : vector<8x16xf32>
      %139 = tpu.transpose %135, [1, 0] : vector<8x16xf32> -> vector<16x8xf32>
      %140 = vector.shape_cast %139 : vector<16x8xf32> to vector<4x4x8xf32>
      %141 = tpu.transpose %138, [1, 0] : vector<8x16xf32> -> vector<16x8xf32>
      %142 = vector.shape_cast %141 : vector<16x8xf32> to vector<4x4x8xf32>
      %143 = tpu.concatenate %140, %142 in 1 : vector<4x4x8xf32>, vector<4x4x8xf32> -> vector<4x8x8xf32>
      %144 = arith.truncf %143 : vector<4x8x8xf32> to vector<4x8x8xbf16>
      %c0_58 = arith.constant 0 : index
      %c0_59 = arith.constant 0 : index
      %c0_60 = arith.constant 0 : index
      %145 = vector.load %arg16[%c0_58, %c0_59, %c0_60] : memref<4x8x8xbf16, #tpu.memory_space<vmem>>, vector<4x8x8xbf16>
      tpu.vector_store %arg16[%c0_58, %c0_59, %c0_60], %144 {strides = array<i32>} : memref<4x8x8xbf16, #tpu.memory_space<vmem>>, vector<4x8x8xbf16>,
      %146 = vector.shape_cast %128 : vector<8x32xf32> to vector<8x4x8xf32>
      %147 = tpu.transpose %146, [1, 0, 2] : vector<8x4x8xf32> -> vector<4x8x8xf32>
      %148 = arith.truncf %147 : vector<4x8x8xf32> to vector<4x8x8xbf16>
      %c0_61 = arith.constant 0 : index
      %c0_62 = arith.constant 0 : index
      %c0_63 = arith.constant 0 : index
      %149 = vector.load %arg17[%c0_61, %c0_62, %c0_63] : memref<4x8x8xbf16, #tpu.memory_space<vmem>>, vector<4x8x8xbf16>
      tpu.vector_store %arg17[%c0_61, %c0_62, %c0_63], %148 {strides = array<i32>} : memref<4x8x8xbf16, #tpu.memory_space<vmem>>, vector<4x8x8xbf16>,
    } else {
    }
    %c0_2 = arith.constant 0 : index
    %6 = arith.index_cast %1 : i32 to index
    %c0_3 = arith.constant 0 : index
    %7 = vector.load %arg2[%c0_2, %6, %c0_3] : memref<1x8x32xf32, #tpu.memory_space<vmem>>, vector<1x8x32xf32>
    %8 = vector.shape_cast %7 : vector<1x8x32xf32> to vector<8x32xf32>
    %9 = arith.mulf %8, %8 : vector<8x32xf32>
    %cst = arith.constant dense<0.000000e+00> : vector<8xf32>
    %10 = vector.multi_reduction <add>, %9, %cst [1] : vector<8x32xf32> to vector<8xf32>
    %11 = vector.shape_cast %10 : vector<8xf32> to vector<8x1xf32>
    %cst_4 = arith.constant 3.200000e+01 : f32
    %12 = vector.broadcast %cst_4 : f32 to vector<8x1xf32>
    %13 = arith.divf %11, %12 : vector<8x1xf32>
    %cst_5 = arith.constant 9.99999974E-6 : f32
    %14 = vector.broadcast %cst_5 : f32 to vector<8x1xf32>
    %15 = arith.addf %13, %14 : vector<8x1xf32>
    %16 = math.rsqrt %15 : vector<8x1xf32>
    %17 = vector.broadcast %16 : vector<8x1xf32> to vector<8x32xf32>
    %18 = arith.mulf %8, %17 : vector<8x32xf32>
    %19 = vector.broadcast %2 : vector<1x32xf32> to vector<8x32xf32>
    %20 = arith.mulf %18, %19 : vector<8x32xf32>
    %21 = arith.truncf %20 : vector<8x32xf32> to vector<8x32xbf16>
    %c0_6 = arith.constant 0 : index
    %c0_7 = arith.constant 0 : index
    %22 = vector.load %arg6[%c0_6, %c0_7] : memref<32x32xbf16, #tpu.memory_space<vmem>>, vector<32x32xbf16>
    %cst_8 = arith.constant dense<0.000000e+00> : vector<8x32xf32>
    %23 = tpu.matmul %21, %22, %cst_8 {dimension_numbers = #tpu.dot_dimension_numbers<[1], [0], [0], [1], [0, 0, 1, 1], [], []>} : vector<8x32xbf16>, vector<32x32xbf16>, vector<8x32xf32> -> vector<8x32xf32>
    %24 = vector.extract_strided_slice %23 {offsets = [0, 0], sizes = [8, 16], strides = [1, 1]} : vector<8x32xf32> to vector<8x16xf32>
    %25 = vector.extract_strided_slice %23 {offsets = [0, 16], sizes = [8, 16], strides = [1, 1]} : vector<8x32xf32> to vector<8x16xf32>
    %26 = arith.index_cast %1 : i32 to index
    %c0_9 = arith.constant 0 : index
    %27 = vector.load %arg3[%26, %c0_9] : memref<8x4xf32, #tpu.memory_space<vmem>>, vector<8x4xf32>
    %28 = tpu.concatenate %27, %27, %27, %27 in 1 : vector<8x4xf32>, vector<8x4xf32>, vector<8x4xf32>, vector<8x4xf32> -> vector<8x16xf32>
    %29 = arith.index_cast %1 : i32 to index
    %c0_10 = arith.constant 0 : index
    %30 = vector.load %arg4[%29, %c0_10] : memref<8x4xf32, #tpu.memory_space<vmem>>, vector<8x4xf32>
    %31 = tpu.concatenate %30, %30, %30, %30 in 1 : vector<8x4xf32>, vector<8x4xf32>, vector<8x4xf32>, vector<8x4xf32> -> vector<8x16xf32>
    %32 = arith.mulf %24, %28 : vector<8x16xf32>
    %33 = arith.mulf %25, %31 : vector<8x16xf32>
    %34 = arith.subf %32, %33 : vector<8x16xf32>
    %35 = arith.mulf %24, %31 : vector<8x16xf32>
    %36 = arith.mulf %25, %28 : vector<8x16xf32>
    %37 = arith.addf %35, %36 : vector<8x16xf32>
    %38 = tpu.iota {dimensions = array<i32: 0>} : vector<8x8xi32>
    %39 = vector.broadcast %1 : i32 to vector<8x8xi32>
    %40 = arith.addi %39, %38 : vector<8x8xi32>
    %41 = tpu.iota {dimensions = array<i32: 1>} : vector<8x8xi32>
    %42 = arith.cmpi sle, %41, %40 : vector<8x8xi32>
    %43 = vector.shape_cast %34 : vector<8x16xf32> to vector<8x4x4xf32>
    %44 = vector.shape_cast %37 : vector<8x16xf32> to vector<8x4x4xf32>
    %45 = tpu.concatenate %43, %44 in 2 : vector<8x4x4xf32>, vector<8x4x4xf32> -> vector<8x4x8xf32>
    %46 = tpu.transpose %45, [1, 0, 2] : vector<8x4x8xf32> -> vector<4x8x8xf32>
    %47 = arith.truncf %46 : vector<4x8x8xf32> to vector<4x8x8xbf16>
    %c0_11 = arith.constant 0 : index
    %c0_12 = arith.constant 0 : index
    %c0_13 = arith.constant 0 : index
    %48 = vector.load %arg16[%c0_11, %c0_12, %c0_13] : memref<4x8x8xbf16, #tpu.memory_space<vmem>>, vector<4x8x8xbf16>
    "tpu.trace_start"() <{level = 10 : i32, message = "hqd,hdk->hqk"}> : () -> ()
    %cst_14 = arith.constant dense<0.000000e+00> : vector<4x8x8xf32>
    %49 = tpu.matmul %47, %48, %cst_14 {dimension_numbers = #tpu.dot_dimension_numbers<[2], [1], [1], [2], [0, 0, 0, 1, 1, 2], [0], [0]>} : vector<4x8x8xbf16>, vector<4x8x8xbf16>, vector<4x8x8xf32> -> vector<4x8x8xf32>
    "tpu.trace_stop"() : () -> ()
    %50 = vector.shape_cast %42 : vector<8x8xi1> to vector<1x8x8xi1>
    %cst_15 = arith.constant -1.000000e+30 : f32
    %51 = vector.shape_cast %50 : vector<1x8x8xi1> to vector<1x8x8xi1>
    %52 = vector.broadcast %51 : vector<1x8x8xi1> to vector<4x8x8xi1>
    %53 = vector.broadcast %cst_15 : f32 to vector<4x8x8xf32>
    %54 = arith.select %52, %49, %53 : vector<4x8x8xi1>, vector<4x8x8xf32>
    %cst_16 = arith.constant dense<0xFF800000> : vector<4x8xf32>
    %55 = vector.multi_reduction <maximumf>, %54, %cst_16 [2] : vector<4x8x8xf32> to vector<4x8xf32>
    %56 = vector.shape_cast %55 : vector<4x8xf32> to vector<4x8x1xf32>
    %57 = vector.broadcast %56 : vector<4x8x1xf32> to vector<4x8x8xf32>
    %58 = arith.subf %54, %57 : vector<4x8x8xf32>
    %59 = math.exp %58 : vector<4x8x8xf32>
    %cst_17 = arith.constant dense<0.000000e+00> : vector<4x8xf32>
    %60 = vector.multi_reduction <add>, %59, %cst_17 [2] : vector<4x8x8xf32> to vector<4x8xf32>
    %61 = vector.shape_cast %60 : vector<4x8xf32> to vector<4x8x1xf32>
    %62 = tpu.reciprocal %61 {approx = true} : vector<4x8x1xf32> -> vector<4x8x1xf32>
    %63 = vector.broadcast %62 : vector<4x8x1xf32> to vector<4x8x8xf32>
    %64 = arith.mulf %59, %63 : vector<4x8x8xf32>
    %65 = arith.truncf %64 : vector<4x8x8xf32> to vector<4x8x8xbf16>
    %c0_18 = arith.constant 0 : index
    %c0_19 = arith.constant 0 : index
    %c0_20 = arith.constant 0 : index
    %66 = vector.load %arg17[%c0_18, %c0_19, %c0_20] : memref<4x8x8xbf16, #tpu.memory_space<vmem>>, vector<4x8x8xbf16>
    "tpu.trace_start"() <{level = 10 : i32, message = "hqk,hkd->hqd"}> : () -> ()
    %cst_21 = arith.constant dense<0.000000e+00> : vector<4x8x8xf32>
    %67 = tpu.matmul %65, %66, %cst_21 {dimension_numbers = #tpu.dot_dimension_numbers<[2], [1], [1], [2], [0, 0, 0, 1, 1, 2], [0], [0]>} : vector<4x8x8xbf16>, vector<4x8x8xbf16>, vector<4x8x8xf32> -> vector<4x8x8xf32>
    "tpu.trace_stop"() : () -> ()
    %68 = tpu.transpose %67, [1, 0, 2] : vector<4x8x8xf32> -> vector<8x4x8xf32>
    %69 = vector.shape_cast %68 : vector<8x4x8xf32> to vector<8x32xf32>
    %70 = arith.truncf %69 : vector<8x32xf32> to vector<8x32xbf16>
    %c0_22 = arith.constant 0 : index
    %c0_23 = arith.constant 0 : index
    %71 = vector.load %arg8[%c0_22, %c0_23] : memref<32x32xbf16, #tpu.memory_space<vmem>>, vector<32x32xbf16>
    %cst_24 = arith.constant dense<0.000000e+00> : vector<8x32xf32>
    %72 = tpu.matmul %70, %71, %cst_24 {dimension_numbers = #tpu.dot_dimension_numbers<[1], [0], [0], [1], [0, 0, 1, 1], [], []>} : vector<8x32xbf16>, vector<32x32xbf16>, vector<8x32xf32> -> vector<8x32xf32>
    %73 = arith.addf %8, %72 : vector<8x32xf32>
    %c0_25 = arith.constant 0 : index
    %c0_26 = arith.constant 0 : index
    %74 = vector.load %arg9[%c0_25, %c0_26] : memref<1x32xf32, #tpu.memory_space<vmem>>, vector<1x32xf32>
    %75 = vector.broadcast %74 : vector<1x32xf32> to vector<8x32xf32>
    %76 = arith.addf %73, %75 : vector<8x32xf32>
    %c0_27 = arith.constant 0 : index
    %c0_28 = arith.constant 0 : index
    %77 = vector.load %arg10[%c0_27, %c0_28] : memref<1x32xf32, #tpu.memory_space<vmem>>, vector<1x32xf32>
    %78 = arith.mulf %76, %76 : vector<8x32xf32>
    %cst_29 = arith.constant dense<0.000000e+00> : vector<8xf32>
    %79 = vector.multi_reduction <add>, %78, %cst_29 [1] : vector<8x32xf32> to vector<8xf32>
    %80 = vector.shape_cast %79 : vector<8xf32> to vector<8x1xf32>
    %cst_30 = arith.constant 3.200000e+01 : f32
    %81 = vector.broadcast %cst_30 : f32 to vector<8x1xf32>
    %82 = arith.divf %80, %81 : vector<8x1xf32>
    %cst_31 = arith.constant 9.99999974E-6 : f32
    %83 = vector.broadcast %cst_31 : f32 to vector<8x1xf32>
    %84 = arith.addf %82, %83 : vector<8x1xf32>
    %85 = math.rsqrt %84 : vector<8x1xf32>
    %86 = vector.broadcast %85 : vector<8x1xf32> to vector<8x32xf32>
    %87 = arith.mulf %76, %86 : vector<8x32xf32>
    %88 = vector.broadcast %77 : vector<1x32xf32> to vector<8x32xf32>
    %89 = arith.mulf %87, %88 : vector<8x32xf32>
    %90 = arith.truncf %89 : vector<8x32xf32> to vector<8x32xbf16>
    %c0_32 = arith.constant 0 : index
    %c0_33 = arith.constant 0 : index
    %91 = vector.load %arg11[%c0_32, %c0_33] : memref<32x88xbf16, #tpu.memory_space<vmem>>, vector<32x88xbf16>
    %cst_34 = arith.constant dense<0.000000e+00> : vector<8x88xf32>
    %92 = tpu.matmul %90, %91, %cst_34 {dimension_numbers = #tpu.dot_dimension_numbers<[1], [0], [0], [1], [0, 0, 1, 1], [], []>} : vector<8x32xbf16>, vector<32x88xbf16>, vector<8x88xf32> -> vector<8x88xf32>
    %c0_35 = arith.constant 0 : index
    %c0_36 = arith.constant 0 : index
    %93 = vector.load %arg12[%c0_35, %c0_36] : memref<32x88xbf16, #tpu.memory_space<vmem>>, vector<32x88xbf16>
    %cst_37 = arith.constant dense<0.000000e+00> : vector<8x88xf32>
    %94 = tpu.matmul %90, %93, %cst_37 {dimension_numbers = #tpu.dot_dimension_numbers<[1], [0], [0], [1], [0, 0, 1, 1], [], []>} : vector<8x32xbf16>, vector<32x88xbf16>, vector<8x88xf32> -> vector<8x88xf32>
    %95 = arith.negf %92 : vector<8x88xf32>
    %96 = math.exp %95 : vector<8x88xf32>
    %cst_38 = arith.constant 1.000000e+00 : f32
    %97 = vector.broadcast %cst_38 : f32 to vector<8x88xf32>
    %98 = arith.addf %97, %96 : vector<8x88xf32>
    %99 = arith.divf %97, %98 : vector<8x88xf32>
    %100 = arith.mulf %92, %99 : vector<8x88xf32>
    %101 = arith.mulf %100, %94 : vector<8x88xf32>
    %102 = arith.truncf %101 : vector<8x88xf32> to vector<8x88xbf16>
    %c0_39 = arith.constant 0 : index
    %c0_40 = arith.constant 0 : index
    %103 = vector.load %arg13[%c0_39, %c0_40] : memref<88x32xbf16, #tpu.memory_space<vmem>>, vector<88x32xbf16>
    %cst_41 = arith.constant dense<0.000000e+00> : vector<8x32xf32>
    %104 = tpu.matmul %102, %103, %cst_41 {dimension_numbers = #tpu.dot_dimension_numbers<[1], [0], [0], [1], [0, 0, 1, 1], [], []>} : vector<8x88xbf16>, vector<88x32xbf16>, vector<8x32xf32> -> vector<8x32xf32>
    %105 = arith.addf %76, %104 : vector<8x32xf32>
    %c0_42 = arith.constant 0 : index
    %c0_43 = arith.constant 0 : index
    %c0_44 = arith.constant 0 : index
    %106 = vector.load %arg15[%c0_42, %c0_43, %c0_44] : memref<1x8x32xf32, #tpu.memory_space<vmem>>, vector<1x8x32xf32>
    %107 = vector.shape_cast %106 : vector<1x8x32xf32> to vector<8x32xf32>
    %108 = vector.shape_cast %105 : vector<8x32xf32> to vector<1x8x32xf32>
    tpu.vector_store %arg15[%c0_42, %c0_43, %c0_44], %108 {strides = array<i32>} : memref<1x8x32xf32, #tpu.memory_space<vmem>>, vector<1x8x32xf32>,
    return
  }
  func.func @transform_0(%arg0: i32, %arg1: i32) -> (i32, i32, i32) {
    %c0_i32 = arith.constant 0 : i32
    %c0_i32_0 = arith.constant 0 : i32
    %c0_i32_1 = arith.constant 0 : i32
    return %arg0, %c0_i32, %c0_i32_0 : i32, i32, i32
  }
  func.func @transform_1(%arg0: i32, %arg1: i32) -> (i32, i32) {
    %c0_i32 = arith.constant 0 : i32
    %c0_i32_0 = arith.constant 0 : i32
    %c0_i32_1 = arith.constant 0 : i32
    return %c0_i32, %c0_i32_0 : i32, i32
  }
  func.func @transform_2(%arg0: i32, %arg1: i32) -> (i32, i32) {
    %c0_i32 = arith.constant 0 : i32
    %c0_i32_0 = arith.constant 0 : i32
    %c0_i32_1 = arith.constant 0 : i32
    return %c0_i32, %c0_i32_0 : i32, i32
  }
  func.func @transform_3(%arg0: i32, %arg1: i32) -> (i32, i32) {
    %c0_i32 = arith.constant 0 : i32
    %c0_i32_0 = arith.constant 0 : i32
    %c0_i32_1 = arith.constant 0 : i32
    return %c0_i32, %c0_i32_0 : i32, i32
  }
  func.func @transform_4(%arg0: i32, %arg1: i32) -> (i32, i32) {
    %c0_i32 = arith.constant 0 : i32
    %c0_i32_0 = arith.constant 0 : i32
    %c0_i32_1 = arith.constant 0 : i32
    return %c0_i32, %c0_i32_0 : i32, i32
  }
  func.func @transform_5(%arg0: i32, %arg1: i32) -> (i32, i32) {
    %c0_i32 = arith.constant 0 : i32
    %c0_i32_0 = arith.constant 0 : i32
    %c0_i32_1 = arith.constant 0 : i32
    return %c0_i32, %c0_i32_0 : i32, i32
  }
  func.func @transform_6(%arg0: i32, %arg1: i32) -> (i32, i32) {
    %c0_i32 = arith.constant 0 : i32
    %c0_i32_0 = arith.constant 0 : i32
    %c0_i32_1 = arith.constant 0 : i32
    return %c0_i32, %c0_i32_0 : i32, i32
  }
  func.func @transform_7(%arg0: i32, %arg1: i32) -> (i32, i32) {
    %c0_i32 = arith.constant 0 : i32
    %c0_i32_0 = arith.constant 0 : i32
    %c0_i32_1 = arith.constant 0 : i32
    return %c0_i32, %c0_i32_0 : i32, i32
  }
  func.func @transform_8(%arg0: i32, %arg1: i32) -> (i32, i32) {
    %c0_i32 = arith.constant 0 : i32
    %c0_i32_0 = arith.constant 0 : i32
    %c0_i32_1 = arith.constant 0 : i32
    return %c0_i32, %c0_i32_0 : i32, i32
  }
  func.func @transform_9(%arg0: i32, %arg1: i32) -> (i32, i32) {
    %c0_i32 = arith.constant 0 : i32
    %c0_i32_0 = arith.constant 0 : i32
    %c0_i32_1 = arith.constant 0 : i32
    return %c0_i32, %c0_i32_0 : i32, i32
  }
  func.func @transform_10(%arg0: i32, %arg1: i32) -> (i32, i32) {
    %c0_i32 = arith.constant 0 : i32
    %c0_i32_0 = arith.constant 0 : i32
    %c0_i32_1 = arith.constant 0 : i32
    return %c0_i32, %c0_i32_0 : i32, i32
  }
  func.func @transform_11(%arg0: i32, %arg1: i32) -> (i32, i32) {
    %c0_i32 = arith.constant 0 : i32
    %c0_i32_0 = arith.constant 0 : i32
    %c0_i32_1 = arith.constant 0 : i32
    return %c0_i32, %c0_i32_0 : i32, i32
  }
  func.func @transform_12(%arg0: i32, %arg1: i32) -> (i32, i32) {
    %c0_i32 = arith.constant 0 : i32
    %c0_i32_0 = arith.constant 0 : i32
    %c0_i32_1 = arith.constant 0 : i32
    return %c0_i32, %c0_i32_0 : i32, i32
  }
  func.func @transform_13(%arg0: i32, %arg1: i32) -> (i32, i32, i32) {
    %c0_i32 = arith.constant 0 : i32
    %c0_i32_0 = arith.constant 0 : i32
    return %arg0, %arg1, %c0_i32 : i32, i32, i32
  }
}

module attributes {stable_mosaic.version = 11 : i64} {
  func.func @kernel(%arg0: i32, %arg1: i32, %arg2: memref<1x8x32xf32, #tpu.memory_space<vmem>>, %arg3: memref<8x4xf32, #tpu.memory_space<vmem>>, %arg4: memref<8x4xf32, #tpu.memory_space<vmem>>, %arg5: memref<1x32xf32, #tpu.memory_space<vmem>>, %arg6: memref<32x32xbf16, #tpu.memory_space<vmem>>, %arg7: memref<32x64xbf16, #tpu.memory_space<vmem>>, %arg8: memref<32x32xbf16, #tpu.memory_space<vmem>>, %arg9: memref<1x32xf32, #tpu.memory_space<vmem>>, %arg10: memref<1x32xf32, #tpu.memory_space<vmem>>, %arg11: memref<32x88xbf16, #tpu.memory_space<vmem>>, %arg12: memref<32x88xbf16, #tpu.memory_space<vmem>>, %arg13: memref<88x32xbf16, #tpu.memory_space<vmem>>, %arg14: memref<1x32xf32, #tpu.memory_space<vmem>>, %arg15: memref<1x8x32xf32, #tpu.memory_space<vmem>>, %arg16: memref<8x16xf32, #tpu.memory_space<vmem>>, %arg17: memref<8x16xf32, #tpu.memory_space<vmem>>, %arg18: memref<8x32xf32, #tpu.memory_space<vmem>>) attributes {dimension_semantics = [#tpu.dimension_semantics<parallel>, #tpu.dimension_semantics<arbitrary>], iteration_bounds = array<i64: 2, 1>, scalar_prefetch = 0 : i64, scratch_operands = 3 : i64, tpu.core_type = #tpu.core_type<tc>, window_params = [{transform_indices = @transform_0, window_bounds = array<i64: 1, 8, 32>}, {pipeline_mode = #tpu.pipeline_mode<synchronous>, transform_indices = @transform_1, window_bounds = array<i64: 8, 4>}, {pipeline_mode = #tpu.pipeline_mode<synchronous>, transform_indices = @transform_2, window_bounds = array<i64: 8, 4>}, {pipeline_mode = #tpu.pipeline_mode<synchronous>, transform_indices = @transform_3, window_bounds = array<i64: 1, 32>}, {pipeline_mode = #tpu.pipeline_mode<synchronous>, transform_indices = @transform_4, window_bounds = array<i64: 32, 32>}, {pipeline_mode = #tpu.pipeline_mode<synchronous>, transform_indices = @transform_5, window_bounds = array<i64: 32, 64>}, {pipeline_mode = #tpu.pipeline_mode<synchronous>, transform_indices = @transform_6, window_bounds = array<i64: 32, 32>}, {pipeline_mode = #tpu.pipeline_mode<synchronous>, transform_indices = @transform_7, window_bounds = array<i64: 1, 32>}, {pipeline_mode = #tpu.pipeline_mode<synchronous>, transform_indices = @transform_8, window_bounds = array<i64: 1, 32>}, {pipeline_mode = #tpu.pipeline_mode<synchronous>, transform_indices = @transform_9, window_bounds = array<i64: 32, 88>}, {pipeline_mode = #tpu.pipeline_mode<synchronous>, transform_indices = @transform_10, window_bounds = array<i64: 32, 88>}, {pipeline_mode = #tpu.pipeline_mode<synchronous>, transform_indices = @transform_11, window_bounds = array<i64: 88, 32>}, {pipeline_mode = #tpu.pipeline_mode<synchronous>, transform_indices = @transform_12, window_bounds = array<i64: 1, 32>}, {transform_indices = @transform_13, window_bounds = array<i64: 1, 8, 32>}]} {
    %c8_i32 = arith.constant 8 : i32
    %0 = arith.muli %arg1, %c8_i32 : i32
    %1 = tpu.assume_multiple %0, 8 : i32
    %c0 = arith.constant 0 : index
    %c0_0 = arith.constant 0 : index
    %2 = vector.load %arg5[%c0, %c0_0] : memref<1x32xf32, #tpu.memory_space<vmem>>, vector<1x32xf32>
    %c0_i32 = arith.constant 0 : i32
    %3 = arith.cmpi eq, %arg1, %c0_i32 : i32
    %4 = arith.extui %3 : i1 to i32
    %c0_i32_1 = arith.constant 0 : i32
    %5 = arith.cmpi ne, %4, %c0_i32_1 : i32
    scf.if %5 {
      %c0_60 = arith.constant 0 : index
      %c0_61 = arith.constant 0 : index
      %c0_62 = arith.constant 0 : index
      %186 = vector.load %arg2[%c0_60, %c0_61, %c0_62] : memref<1x8x32xf32, #tpu.memory_space<vmem>>, vector<1x8x32xf32>
      %187 = vector.shape_cast %186 : vector<1x8x32xf32> to vector<8x32xf32>
      %188 = arith.mulf %187, %187 : vector<8x32xf32>
      %cst_63 = arith.constant dense<0.000000e+00> : vector<8xf32>
      %189 = vector.multi_reduction <add>, %188, %cst_63 [1] : vector<8x32xf32> to vector<8xf32>
      %190 = vector.shape_cast %189 : vector<8xf32> to vector<8x1xf32>
      %cst_64 = arith.constant 3.200000e+01 : f32
      %191 = vector.broadcast %cst_64 : f32 to vector<8x1xf32>
      %192 = arith.divf %190, %191 : vector<8x1xf32>
      %cst_65 = arith.constant 9.99999974E-6 : f32
      %193 = vector.broadcast %cst_65 : f32 to vector<8x1xf32>
      %194 = arith.addf %192, %193 : vector<8x1xf32>
      %195 = math.rsqrt %194 : vector<8x1xf32>
      %196 = vector.broadcast %195 : vector<8x1xf32> to vector<8x32xf32>
      %197 = arith.mulf %187, %196 : vector<8x32xf32>
      %198 = vector.broadcast %2 : vector<1x32xf32> to vector<8x32xf32>
      %199 = arith.mulf %197, %198 : vector<8x32xf32>
      %200 = arith.truncf %199 : vector<8x32xf32> to vector<8x32xbf16>
      %c0_66 = arith.constant 0 : index
      %c0_67 = arith.constant 0 : index
      %201 = vector.load %arg7[%c0_66, %c0_67] : memref<32x64xbf16, #tpu.memory_space<vmem>>, vector<32x64xbf16>
      %cst_68 = arith.constant dense<0.000000e+00> : vector<8x64xf32>
      %202 = tpu.matmul %200, %201, %cst_68 {dimension_numbers = #tpu.dot_dimension_numbers<[1], [0], [0], [1], [0, 0, 1, 1], [], []>} : vector<8x32xbf16>, vector<32x64xbf16>, vector<8x64xf32> -> vector<8x64xf32>
      %203 = vector.extract_strided_slice %202 {offsets = [0, 0], sizes = [8, 16], strides = [1, 1]} : vector<8x64xf32> to vector<8x16xf32>
      %204 = vector.extract_strided_slice %202 {offsets = [0, 16], sizes = [8, 16], strides = [1, 1]} : vector<8x64xf32> to vector<8x16xf32>
      %205 = vector.extract_strided_slice %202 {offsets = [0, 32], sizes = [8, 32], strides = [1, 1]} : vector<8x64xf32> to vector<8x32xf32>
      %c0_69 = arith.constant 0 : index
      %c0_70 = arith.constant 0 : index
      %206 = vector.load %arg3[%c0_69, %c0_70] : memref<8x4xf32, #tpu.memory_space<vmem>>, vector<8x4xf32>
      %207 = tpu.concatenate %206, %206, %206, %206 in 1 : vector<8x4xf32>, vector<8x4xf32>, vector<8x4xf32>, vector<8x4xf32> -> vector<8x16xf32>
      %c0_71 = arith.constant 0 : index
      %c0_72 = arith.constant 0 : index
      %208 = vector.load %arg4[%c0_71, %c0_72] : memref<8x4xf32, #tpu.memory_space<vmem>>, vector<8x4xf32>
      %209 = tpu.concatenate %208, %208, %208, %208 in 1 : vector<8x4xf32>, vector<8x4xf32>, vector<8x4xf32>, vector<8x4xf32> -> vector<8x16xf32>
      %210 = arith.mulf %203, %207 : vector<8x16xf32>
      %211 = arith.mulf %204, %209 : vector<8x16xf32>
      %212 = arith.subf %210, %211 : vector<8x16xf32>
      %213 = arith.mulf %203, %209 : vector<8x16xf32>
      %214 = arith.mulf %204, %207 : vector<8x16xf32>
      %215 = arith.addf %213, %214 : vector<8x16xf32>
      %c0_73 = arith.constant 0 : index
      %c0_74 = arith.constant 0 : index
      %216 = vector.load %arg16[%c0_73, %c0_74] : memref<8x16xf32, #tpu.memory_space<vmem>>, vector<8x16xf32>
      tpu.vector_store %arg16[%c0_73, %c0_74], %212 {strides = array<i32>} : memref<8x16xf32, #tpu.memory_space<vmem>>, vector<8x16xf32>,
      %c0_75 = arith.constant 0 : index
      %c0_76 = arith.constant 0 : index
      %217 = vector.load %arg17[%c0_75, %c0_76] : memref<8x16xf32, #tpu.memory_space<vmem>>, vector<8x16xf32>
      tpu.vector_store %arg17[%c0_75, %c0_76], %215 {strides = array<i32>} : memref<8x16xf32, #tpu.memory_space<vmem>>, vector<8x16xf32>,
      %c0_77 = arith.constant 0 : index
      %c0_78 = arith.constant 0 : index
      %218 = vector.load %arg18[%c0_77, %c0_78] : memref<8x32xf32, #tpu.memory_space<vmem>>, vector<8x32xf32>
      tpu.vector_store %arg18[%c0_77, %c0_78], %205 {strides = array<i32>} : memref<8x32xf32, #tpu.memory_space<vmem>>, vector<8x32xf32>,
    } else {
    }
    %c0_2 = arith.constant 0 : index
    %6 = arith.index_cast %1 : i32 to index
    %c0_3 = arith.constant 0 : index
    %7 = vector.load %arg2[%c0_2, %6, %c0_3] : memref<1x8x32xf32, #tpu.memory_space<vmem>>, vector<1x8x32xf32>
    %8 = vector.shape_cast %7 : vector<1x8x32xf32> to vector<8x32xf32>
    %9 = arith.mulf %8, %8 : vector<8x32xf32>
    %cst = arith.constant dense<0.000000e+00> : vector<8xf32>
    %10 = vector.multi_reduction <add>, %9, %cst [1] : vector<8x32xf32> to vector<8xf32>
    %11 = vector.shape_cast %10 : vector<8xf32> to vector<8x1xf32>
    %cst_4 = arith.constant 3.200000e+01 : f32
    %12 = vector.broadcast %cst_4 : f32 to vector<8x1xf32>
    %13 = arith.divf %11, %12 : vector<8x1xf32>
    %cst_5 = arith.constant 9.99999974E-6 : f32
    %14 = vector.broadcast %cst_5 : f32 to vector<8x1xf32>
    %15 = arith.addf %13, %14 : vector<8x1xf32>
    %16 = math.rsqrt %15 : vector<8x1xf32>
    %17 = vector.broadcast %16 : vector<8x1xf32> to vector<8x32xf32>
    %18 = arith.mulf %8, %17 : vector<8x32xf32>
    %19 = vector.broadcast %2 : vector<1x32xf32> to vector<8x32xf32>
    %20 = arith.mulf %18, %19 : vector<8x32xf32>
    %21 = arith.truncf %20 : vector<8x32xf32> to vector<8x32xbf16>
    %c0_6 = arith.constant 0 : index
    %c0_7 = arith.constant 0 : index
    %22 = vector.load %arg6[%c0_6, %c0_7] : memref<32x32xbf16, #tpu.memory_space<vmem>>, vector<32x32xbf16>
    %cst_8 = arith.constant dense<0.000000e+00> : vector<8x32xf32>
    %23 = tpu.matmul %21, %22, %cst_8 {dimension_numbers = #tpu.dot_dimension_numbers<[1], [0], [0], [1], [0, 0, 1, 1], [], []>} : vector<8x32xbf16>, vector<32x32xbf16>, vector<8x32xf32> -> vector<8x32xf32>
    %24 = vector.extract_strided_slice %23 {offsets = [0, 0], sizes = [8, 16], strides = [1, 1]} : vector<8x32xf32> to vector<8x16xf32>
    %25 = vector.extract_strided_slice %23 {offsets = [0, 16], sizes = [8, 16], strides = [1, 1]} : vector<8x32xf32> to vector<8x16xf32>
    %26 = arith.index_cast %1 : i32 to index
    %c0_9 = arith.constant 0 : index
    %27 = vector.load %arg3[%26, %c0_9] : memref<8x4xf32, #tpu.memory_space<vmem>>, vector<8x4xf32>
    %28 = tpu.concatenate %27, %27, %27, %27 in 1 : vector<8x4xf32>, vector<8x4xf32>, vector<8x4xf32>, vector<8x4xf32> -> vector<8x16xf32>
    %29 = arith.index_cast %1 : i32 to index
    %c0_10 = arith.constant 0 : index
    %30 = vector.load %arg4[%29, %c0_10] : memref<8x4xf32, #tpu.memory_space<vmem>>, vector<8x4xf32>
    %31 = tpu.concatenate %30, %30, %30, %30 in 1 : vector<8x4xf32>, vector<8x4xf32>, vector<8x4xf32>, vector<8x4xf32> -> vector<8x16xf32>
    %32 = arith.mulf %24, %28 : vector<8x16xf32>
    %33 = arith.mulf %25, %31 : vector<8x16xf32>
    %34 = arith.subf %32, %33 : vector<8x16xf32>
    %35 = arith.mulf %24, %31 : vector<8x16xf32>
    %36 = arith.mulf %25, %28 : vector<8x16xf32>
    %37 = arith.addf %35, %36 : vector<8x16xf32>
    %38 = tpu.iota {dimensions = array<i32: 0>} : vector<8x8xi32>
    %39 = vector.broadcast %1 : i32 to vector<8x8xi32>
    %40 = arith.addi %39, %38 : vector<8x8xi32>
    %41 = tpu.iota {dimensions = array<i32: 1>} : vector<8x8xi32>
    %42 = arith.cmpi sle, %41, %40 : vector<8x8xi32>
    %c0_11 = arith.constant 0 : index
    %c0_12 = arith.constant 0 : index
    %43 = vector.load %arg16[%c0_11, %c0_12] : memref<8x16xf32, #tpu.memory_space<vmem>>, vector<8x16xf32>
    %c0_13 = arith.constant 0 : index
    %c0_14 = arith.constant 0 : index
    %44 = vector.load %arg17[%c0_13, %c0_14] : memref<8x16xf32, #tpu.memory_space<vmem>>, vector<8x16xf32>
    %c0_15 = arith.constant 0 : index
    %c0_16 = arith.constant 0 : index
    %45 = vector.load %arg18[%c0_15, %c0_16] : memref<8x32xf32, #tpu.memory_space<vmem>>, vector<8x32xf32>
    %46 = vector.extract_strided_slice %34 {offsets = [0, 0], sizes = [8, 4], strides = [1, 1]} : vector<8x16xf32> to vector<8x4xf32>
    %47 = vector.extract_strided_slice %37 {offsets = [0, 0], sizes = [8, 4], strides = [1, 1]} : vector<8x16xf32> to vector<8x4xf32>
    %48 = tpu.concatenate %46, %47 in 1 : vector<8x4xf32>, vector<8x4xf32> -> vector<8x8xf32>
    %49 = arith.truncf %48 : vector<8x8xf32> to vector<8x8xbf16>
    %50 = vector.extract_strided_slice %43 {offsets = [0, 0], sizes = [8, 4], strides = [1, 1]} : vector<8x16xf32> to vector<8x4xf32>
    %51 = vector.extract_strided_slice %44 {offsets = [0, 0], sizes = [8, 4], strides = [1, 1]} : vector<8x16xf32> to vector<8x4xf32>
    %52 = tpu.concatenate %50, %51 in 1 : vector<8x4xf32>, vector<8x4xf32> -> vector<8x8xf32>
    %53 = arith.truncf %52 : vector<8x8xf32> to vector<8x8xbf16>
    %cst_17 = arith.constant dense<0.000000e+00> : vector<8x8xf32>
    %54 = tpu.matmul %49, %53, %cst_17 {dimension_numbers = #tpu.dot_dimension_numbers<[1], [1], [0], [0], [0, 0, 1, 0], [], []>} : vector<8x8xbf16>, vector<8x8xbf16>, vector<8x8xf32> -> vector<8x8xf32>
    %cst_18 = arith.constant -1.000000e+30 : f32
    %55 = vector.broadcast %cst_18 : f32 to vector<8x8xf32>
    %56 = arith.select %42, %54, %55 : vector<8x8xi1>, vector<8x8xf32>
    %cst_19 = arith.constant dense<0xFF800000> : vector<8xf32>
    %57 = vector.multi_reduction <maximumf>, %56, %cst_19 [1] : vector<8x8xf32> to vector<8xf32>
    %58 = vector.shape_cast %57 : vector<8xf32> to vector<8x1xf32>
    %59 = vector.broadcast %58 : vector<8x1xf32> to vector<8x8xf32>
    %60 = arith.subf %56, %59 : vector<8x8xf32>
    %61 = math.exp %60 : vector<8x8xf32>
    %cst_20 = arith.constant dense<0.000000e+00> : vector<8xf32>
    %62 = vector.multi_reduction <add>, %61, %cst_20 [1] : vector<8x8xf32> to vector<8xf32>
    %63 = vector.shape_cast %62 : vector<8xf32> to vector<8x1xf32>
    %64 = tpu.reciprocal %63 {approx = true} : vector<8x1xf32> -> vector<8x1xf32>
    %65 = vector.broadcast %64 : vector<8x1xf32> to vector<8x8xf32>
    %66 = arith.mulf %61, %65 : vector<8x8xf32>
    %67 = arith.truncf %66 : vector<8x8xf32> to vector<8x8xbf16>
    %68 = vector.extract_strided_slice %45 {offsets = [0, 0], sizes = [8, 8], strides = [1, 1]} : vector<8x32xf32> to vector<8x8xf32>
    %69 = arith.truncf %68 : vector<8x8xf32> to vector<8x8xbf16>
    %cst_21 = arith.constant dense<0.000000e+00> : vector<8x8xf32>
    %70 = tpu.matmul %67, %69, %cst_21 {dimension_numbers = #tpu.dot_dimension_numbers<[1], [0], [0], [1], [0, 0, 1, 1], [], []>} : vector<8x8xbf16>, vector<8x8xbf16>, vector<8x8xf32> -> vector<8x8xf32>
    %71 = vector.extract_strided_slice %34 {offsets = [0, 4], sizes = [8, 4], strides = [1, 1]} : vector<8x16xf32> to vector<8x4xf32>
    %72 = vector.extract_strided_slice %37 {offsets = [0, 4], sizes = [8, 4], strides = [1, 1]} : vector<8x16xf32> to vector<8x4xf32>
    %73 = tpu.concatenate %71, %72 in 1 : vector<8x4xf32>, vector<8x4xf32> -> vector<8x8xf32>
    %74 = arith.truncf %73 : vector<8x8xf32> to vector<8x8xbf16>
    %75 = vector.extract_strided_slice %43 {offsets = [0, 4], sizes = [8, 4], strides = [1, 1]} : vector<8x16xf32> to vector<8x4xf32>
    %76 = vector.extract_strided_slice %44 {offsets = [0, 4], sizes = [8, 4], strides = [1, 1]} : vector<8x16xf32> to vector<8x4xf32>
    %77 = tpu.concatenate %75, %76 in 1 : vector<8x4xf32>, vector<8x4xf32> -> vector<8x8xf32>
    %78 = arith.truncf %77 : vector<8x8xf32> to vector<8x8xbf16>
    %cst_22 = arith.constant dense<0.000000e+00> : vector<8x8xf32>
    %79 = tpu.matmul %74, %78, %cst_22 {dimension_numbers = #tpu.dot_dimension_numbers<[1], [1], [0], [0], [0, 0, 1, 0], [], []>} : vector<8x8xbf16>, vector<8x8xbf16>, vector<8x8xf32> -> vector<8x8xf32>
    %cst_23 = arith.constant -1.000000e+30 : f32
    %80 = vector.broadcast %cst_23 : f32 to vector<8x8xf32>
    %81 = arith.select %42, %79, %80 : vector<8x8xi1>, vector<8x8xf32>
    %cst_24 = arith.constant dense<0xFF800000> : vector<8xf32>
    %82 = vector.multi_reduction <maximumf>, %81, %cst_24 [1] : vector<8x8xf32> to vector<8xf32>
    %83 = vector.shape_cast %82 : vector<8xf32> to vector<8x1xf32>
    %84 = vector.broadcast %83 : vector<8x1xf32> to vector<8x8xf32>
    %85 = arith.subf %81, %84 : vector<8x8xf32>
    %86 = math.exp %85 : vector<8x8xf32>
    %cst_25 = arith.constant dense<0.000000e+00> : vector<8xf32>
    %87 = vector.multi_reduction <add>, %86, %cst_25 [1] : vector<8x8xf32> to vector<8xf32>
    %88 = vector.shape_cast %87 : vector<8xf32> to vector<8x1xf32>
    %89 = tpu.reciprocal %88 {approx = true} : vector<8x1xf32> -> vector<8x1xf32>
    %90 = vector.broadcast %89 : vector<8x1xf32> to vector<8x8xf32>
    %91 = arith.mulf %86, %90 : vector<8x8xf32>
    %92 = arith.truncf %91 : vector<8x8xf32> to vector<8x8xbf16>
    %93 = vector.extract_strided_slice %45 {offsets = [0, 8], sizes = [8, 8], strides = [1, 1]} : vector<8x32xf32> to vector<8x8xf32>
    %94 = arith.truncf %93 : vector<8x8xf32> to vector<8x8xbf16>
    %cst_26 = arith.constant dense<0.000000e+00> : vector<8x8xf32>
    %95 = tpu.matmul %92, %94, %cst_26 {dimension_numbers = #tpu.dot_dimension_numbers<[1], [0], [0], [1], [0, 0, 1, 1], [], []>} : vector<8x8xbf16>, vector<8x8xbf16>, vector<8x8xf32> -> vector<8x8xf32>
    %96 = vector.extract_strided_slice %34 {offsets = [0, 8], sizes = [8, 4], strides = [1, 1]} : vector<8x16xf32> to vector<8x4xf32>
    %97 = vector.extract_strided_slice %37 {offsets = [0, 8], sizes = [8, 4], strides = [1, 1]} : vector<8x16xf32> to vector<8x4xf32>
    %98 = tpu.concatenate %96, %97 in 1 : vector<8x4xf32>, vector<8x4xf32> -> vector<8x8xf32>
    %99 = arith.truncf %98 : vector<8x8xf32> to vector<8x8xbf16>
    %100 = vector.extract_strided_slice %43 {offsets = [0, 8], sizes = [8, 4], strides = [1, 1]} : vector<8x16xf32> to vector<8x4xf32>
    %101 = vector.extract_strided_slice %44 {offsets = [0, 8], sizes = [8, 4], strides = [1, 1]} : vector<8x16xf32> to vector<8x4xf32>
    %102 = tpu.concatenate %100, %101 in 1 : vector<8x4xf32>, vector<8x4xf32> -> vector<8x8xf32>
    %103 = arith.truncf %102 : vector<8x8xf32> to vector<8x8xbf16>
    %cst_27 = arith.constant dense<0.000000e+00> : vector<8x8xf32>
    %104 = tpu.matmul %99, %103, %cst_27 {dimension_numbers = #tpu.dot_dimension_numbers<[1], [1], [0], [0], [0, 0, 1, 0], [], []>} : vector<8x8xbf16>, vector<8x8xbf16>, vector<8x8xf32> -> vector<8x8xf32>
    %cst_28 = arith.constant -1.000000e+30 : f32
    %105 = vector.broadcast %cst_28 : f32 to vector<8x8xf32>
    %106 = arith.select %42, %104, %105 : vector<8x8xi1>, vector<8x8xf32>
    %cst_29 = arith.constant dense<0xFF800000> : vector<8xf32>
    %107 = vector.multi_reduction <maximumf>, %106, %cst_29 [1] : vector<8x8xf32> to vector<8xf32>
    %108 = vector.shape_cast %107 : vector<8xf32> to vector<8x1xf32>
    %109 = vector.broadcast %108 : vector<8x1xf32> to vector<8x8xf32>
    %110 = arith.subf %106, %109 : vector<8x8xf32>
    %111 = math.exp %110 : vector<8x8xf32>
    %cst_30 = arith.constant dense<0.000000e+00> : vector<8xf32>
    %112 = vector.multi_reduction <add>, %111, %cst_30 [1] : vector<8x8xf32> to vector<8xf32>
    %113 = vector.shape_cast %112 : vector<8xf32> to vector<8x1xf32>
    %114 = tpu.reciprocal %113 {approx = true} : vector<8x1xf32> -> vector<8x1xf32>
    %115 = vector.broadcast %114 : vector<8x1xf32> to vector<8x8xf32>
    %116 = arith.mulf %111, %115 : vector<8x8xf32>
    %117 = arith.truncf %116 : vector<8x8xf32> to vector<8x8xbf16>
    %118 = vector.extract_strided_slice %45 {offsets = [0, 16], sizes = [8, 8], strides = [1, 1]} : vector<8x32xf32> to vector<8x8xf32>
    %119 = arith.truncf %118 : vector<8x8xf32> to vector<8x8xbf16>
    %cst_31 = arith.constant dense<0.000000e+00> : vector<8x8xf32>
    %120 = tpu.matmul %117, %119, %cst_31 {dimension_numbers = #tpu.dot_dimension_numbers<[1], [0], [0], [1], [0, 0, 1, 1], [], []>} : vector<8x8xbf16>, vector<8x8xbf16>, vector<8x8xf32> -> vector<8x8xf32>
    %121 = vector.extract_strided_slice %34 {offsets = [0, 12], sizes = [8, 4], strides = [1, 1]} : vector<8x16xf32> to vector<8x4xf32>
    %122 = vector.extract_strided_slice %37 {offsets = [0, 12], sizes = [8, 4], strides = [1, 1]} : vector<8x16xf32> to vector<8x4xf32>
    %123 = tpu.concatenate %121, %122 in 1 : vector<8x4xf32>, vector<8x4xf32> -> vector<8x8xf32>
    %124 = arith.truncf %123 : vector<8x8xf32> to vector<8x8xbf16>
    %125 = vector.extract_strided_slice %43 {offsets = [0, 12], sizes = [8, 4], strides = [1, 1]} : vector<8x16xf32> to vector<8x4xf32>
    %126 = vector.extract_strided_slice %44 {offsets = [0, 12], sizes = [8, 4], strides = [1, 1]} : vector<8x16xf32> to vector<8x4xf32>
    %127 = tpu.concatenate %125, %126 in 1 : vector<8x4xf32>, vector<8x4xf32> -> vector<8x8xf32>
    %128 = arith.truncf %127 : vector<8x8xf32> to vector<8x8xbf16>
    %cst_32 = arith.constant dense<0.000000e+00> : vector<8x8xf32>
    %129 = tpu.matmul %124, %128, %cst_32 {dimension_numbers = #tpu.dot_dimension_numbers<[1], [1], [0], [0], [0, 0, 1, 0], [], []>} : vector<8x8xbf16>, vector<8x8xbf16>, vector<8x8xf32> -> vector<8x8xf32>
    %cst_33 = arith.constant -1.000000e+30 : f32
    %130 = vector.broadcast %cst_33 : f32 to vector<8x8xf32>
    %131 = arith.select %42, %129, %130 : vector<8x8xi1>, vector<8x8xf32>
    %cst_34 = arith.constant dense<0xFF800000> : vector<8xf32>
    %132 = vector.multi_reduction <maximumf>, %131, %cst_34 [1] : vector<8x8xf32> to vector<8xf32>
    %133 = vector.shape_cast %132 : vector<8xf32> to vector<8x1xf32>
    %134 = vector.broadcast %133 : vector<8x1xf32> to vector<8x8xf32>
    %135 = arith.subf %131, %134 : vector<8x8xf32>
    %136 = math.exp %135 : vector<8x8xf32>
    %cst_35 = arith.constant dense<0.000000e+00> : vector<8xf32>
    %137 = vector.multi_reduction <add>, %136, %cst_35 [1] : vector<8x8xf32> to vector<8xf32>
    %138 = vector.shape_cast %137 : vector<8xf32> to vector<8x1xf32>
    %139 = tpu.reciprocal %138 {approx = true} : vector<8x1xf32> -> vector<8x1xf32>
    %140 = vector.broadcast %139 : vector<8x1xf32> to vector<8x8xf32>
    %141 = arith.mulf %136, %140 : vector<8x8xf32>
    %142 = arith.truncf %141 : vector<8x8xf32> to vector<8x8xbf16>
    %143 = vector.extract_strided_slice %45 {offsets = [0, 24], sizes = [8, 8], strides = [1, 1]} : vector<8x32xf32> to vector<8x8xf32>
    %144 = arith.truncf %143 : vector<8x8xf32> to vector<8x8xbf16>
    %cst_36 = arith.constant dense<0.000000e+00> : vector<8x8xf32>
    %145 = tpu.matmul %142, %144, %cst_36 {dimension_numbers = #tpu.dot_dimension_numbers<[1], [0], [0], [1], [0, 0, 1, 1], [], []>} : vector<8x8xbf16>, vector<8x8xbf16>, vector<8x8xf32> -> vector<8x8xf32>
    %146 = tpu.concatenate %70, %95, %120, %145 in 1 : vector<8x8xf32>, vector<8x8xf32>, vector<8x8xf32>, vector<8x8xf32> -> vector<8x32xf32>
    %147 = arith.truncf %146 : vector<8x32xf32> to vector<8x32xbf16>
    %c0_37 = arith.constant 0 : index
    %c0_38 = arith.constant 0 : index
    %148 = vector.load %arg8[%c0_37, %c0_38] : memref<32x32xbf16, #tpu.memory_space<vmem>>, vector<32x32xbf16>
    %cst_39 = arith.constant dense<0.000000e+00> : vector<8x32xf32>
    %149 = tpu.matmul %147, %148, %cst_39 {dimension_numbers = #tpu.dot_dimension_numbers<[1], [0], [0], [1], [0, 0, 1, 1], [], []>} : vector<8x32xbf16>, vector<32x32xbf16>, vector<8x32xf32> -> vector<8x32xf32>
    %150 = arith.addf %8, %149 : vector<8x32xf32>
    %c0_40 = arith.constant 0 : index
    %c0_41 = arith.constant 0 : index
    %151 = vector.load %arg9[%c0_40, %c0_41] : memref<1x32xf32, #tpu.memory_space<vmem>>, vector<1x32xf32>
    %152 = vector.broadcast %151 : vector<1x32xf32> to vector<8x32xf32>
    %153 = arith.addf %150, %152 : vector<8x32xf32>
    %c0_42 = arith.constant 0 : index
    %c0_43 = arith.constant 0 : index
    %154 = vector.load %arg10[%c0_42, %c0_43] : memref<1x32xf32, #tpu.memory_space<vmem>>, vector<1x32xf32>
    %155 = arith.mulf %153, %153 : vector<8x32xf32>
    %cst_44 = arith.constant dense<0.000000e+00> : vector<8xf32>
    %156 = vector.multi_reduction <add>, %155, %cst_44 [1] : vector<8x32xf32> to vector<8xf32>
    %157 = vector.shape_cast %156 : vector<8xf32> to vector<8x1xf32>
    %cst_45 = arith.constant 3.200000e+01 : f32
    %158 = vector.broadcast %cst_45 : f32 to vector<8x1xf32>
    %159 = arith.divf %157, %158 : vector<8x1xf32>
    %cst_46 = arith.constant 9.99999974E-6 : f32
    %160 = vector.broadcast %cst_46 : f32 to vector<8x1xf32>
    %161 = arith.addf %159, %160 : vector<8x1xf32>
    %162 = math.rsqrt %161 : vector<8x1xf32>
    %163 = vector.broadcast %162 : vector<8x1xf32> to vector<8x32xf32>
    %164 = arith.mulf %153, %163 : vector<8x32xf32>
    %165 = vector.broadcast %154 : vector<1x32xf32> to vector<8x32xf32>
    %166 = arith.mulf %164, %165 : vector<8x32xf32>
    %167 = arith.truncf %166 : vector<8x32xf32> to vector<8x32xbf16>
    %c0_47 = arith.constant 0 : index
    %c0_48 = arith.constant 0 : index
    %168 = vector.load %arg11[%c0_47, %c0_48] : memref<32x88xbf16, #tpu.memory_space<vmem>>, vector<32x88xbf16>
    %cst_49 = arith.constant dense<0.000000e+00> : vector<8x88xf32>
    %169 = tpu.matmul %167, %168, %cst_49 {dimension_numbers = #tpu.dot_dimension_numbers<[1], [0], [0], [1], [0, 0, 1, 1], [], []>} : vector<8x32xbf16>, vector<32x88xbf16>, vector<8x88xf32> -> vector<8x88xf32>
    %c0_50 = arith.constant 0 : index
    %c0_51 = arith.constant 0 : index
    %170 = vector.load %arg12[%c0_50, %c0_51] : memref<32x88xbf16, #tpu.memory_space<vmem>>, vector<32x88xbf16>
    %cst_52 = arith.constant dense<0.000000e+00> : vector<8x88xf32>
    %171 = tpu.matmul %167, %170, %cst_52 {dimension_numbers = #tpu.dot_dimension_numbers<[1], [0], [0], [1], [0, 0, 1, 1], [], []>} : vector<8x32xbf16>, vector<32x88xbf16>, vector<8x88xf32> -> vector<8x88xf32>
    %172 = arith.negf %169 : vector<8x88xf32>
    %173 = math.exp %172 : vector<8x88xf32>
    %cst_53 = arith.constant 1.000000e+00 : f32
    %174 = vector.broadcast %cst_53 : f32 to vector<8x88xf32>
    %175 = arith.addf %174, %173 : vector<8x88xf32>
    %176 = arith.divf %174, %175 : vector<8x88xf32>
    %177 = arith.mulf %169, %176 : vector<8x88xf32>
    %178 = arith.mulf %177, %171 : vector<8x88xf32>
    %179 = arith.truncf %178 : vector<8x88xf32> to vector<8x88xbf16>
    %c0_54 = arith.constant 0 : index
    %c0_55 = arith.constant 0 : index
    %180 = vector.load %arg13[%c0_54, %c0_55] : memref<88x32xbf16, #tpu.memory_space<vmem>>, vector<88x32xbf16>
    %cst_56 = arith.constant dense<0.000000e+00> : vector<8x32xf32>
    %181 = tpu.matmul %179, %180, %cst_56 {dimension_numbers = #tpu.dot_dimension_numbers<[1], [0], [0], [1], [0, 0, 1, 1], [], []>} : vector<8x88xbf16>, vector<88x32xbf16>, vector<8x32xf32> -> vector<8x32xf32>
    %182 = arith.addf %153, %181 : vector<8x32xf32>
    %c0_57 = arith.constant 0 : index
    %c0_58 = arith.constant 0 : index
    %c0_59 = arith.constant 0 : index
    %183 = vector.load %arg15[%c0_57, %c0_58, %c0_59] : memref<1x8x32xf32, #tpu.memory_space<vmem>>, vector<1x8x32xf32>
    %184 = vector.shape_cast %183 : vector<1x8x32xf32> to vector<8x32xf32>
    %185 = vector.shape_cast %182 : vector<8x32xf32> to vector<1x8x32xf32>
    tpu.vector_store %arg15[%c0_57, %c0_58, %c0_59], %185 {strides = array<i32>} : memref<1x8x32xf32, #tpu.memory_space<vmem>>, vector<1x8x32xf32>,
    return
  }
  func.func @transform_0(%arg0: i32, %arg1: i32) -> (i32, i32, i32) {
    %c0_i32 = arith.constant 0 : i32
    %c0_i32_0 = arith.constant 0 : i32
    %c0_i32_1 = arith.constant 0 : i32
    return %arg0, %c0_i32, %c0_i32_0 : i32, i32, i32
  }
  func.func @transform_1(%arg0: i32, %arg1: i32) -> (i32, i32) {
    %c0_i32 = arith.constant 0 : i32
    %c0_i32_0 = arith.constant 0 : i32
    %c0_i32_1 = arith.constant 0 : i32
    return %c0_i32, %c0_i32_0 : i32, i32
  }
  func.func @transform_2(%arg0: i32, %arg1: i32) -> (i32, i32) {
    %c0_i32 = arith.constant 0 : i32
    %c0_i32_0 = arith.constant 0 : i32
    %c0_i32_1 = arith.constant 0 : i32
    return %c0_i32, %c0_i32_0 : i32, i32
  }
  func.func @transform_3(%arg0: i32, %arg1: i32) -> (i32, i32) {
    %c0_i32 = arith.constant 0 : i32
    %c0_i32_0 = arith.constant 0 : i32
    %c0_i32_1 = arith.constant 0 : i32
    return %c0_i32, %c0_i32_0 : i32, i32
  }
  func.func @transform_4(%arg0: i32, %arg1: i32) -> (i32, i32) {
    %c0_i32 = arith.constant 0 : i32
    %c0_i32_0 = arith.constant 0 : i32
    %c0_i32_1 = arith.constant 0 : i32
    return %c0_i32, %c0_i32_0 : i32, i32
  }
  func.func @transform_5(%arg0: i32, %arg1: i32) -> (i32, i32) {
    %c0_i32 = arith.constant 0 : i32
    %c0_i32_0 = arith.constant 0 : i32
    %c0_i32_1 = arith.constant 0 : i32
    return %c0_i32, %c0_i32_0 : i32, i32
  }
  func.func @transform_6(%arg0: i32, %arg1: i32) -> (i32, i32) {
    %c0_i32 = arith.constant 0 : i32
    %c0_i32_0 = arith.constant 0 : i32
    %c0_i32_1 = arith.constant 0 : i32
    return %c0_i32, %c0_i32_0 : i32, i32
  }
  func.func @transform_7(%arg0: i32, %arg1: i32) -> (i32, i32) {
    %c0_i32 = arith.constant 0 : i32
    %c0_i32_0 = arith.constant 0 : i32
    %c0_i32_1 = arith.constant 0 : i32
    return %c0_i32, %c0_i32_0 : i32, i32
  }
  func.func @transform_8(%arg0: i32, %arg1: i32) -> (i32, i32) {
    %c0_i32 = arith.constant 0 : i32
    %c0_i32_0 = arith.constant 0 : i32
    %c0_i32_1 = arith.constant 0 : i32
    return %c0_i32, %c0_i32_0 : i32, i32
  }
  func.func @transform_9(%arg0: i32, %arg1: i32) -> (i32, i32) {
    %c0_i32 = arith.constant 0 : i32
    %c0_i32_0 = arith.constant 0 : i32
    %c0_i32_1 = arith.constant 0 : i32
    return %c0_i32, %c0_i32_0 : i32, i32
  }
  func.func @transform_10(%arg0: i32, %arg1: i32) -> (i32, i32) {
    %c0_i32 = arith.constant 0 : i32
    %c0_i32_0 = arith.constant 0 : i32
    %c0_i32_1 = arith.constant 0 : i32
    return %c0_i32, %c0_i32_0 : i32, i32
  }
  func.func @transform_11(%arg0: i32, %arg1: i32) -> (i32, i32) {
    %c0_i32 = arith.constant 0 : i32
    %c0_i32_0 = arith.constant 0 : i32
    %c0_i32_1 = arith.constant 0 : i32
    return %c0_i32, %c0_i32_0 : i32, i32
  }
  func.func @transform_12(%arg0: i32, %arg1: i32) -> (i32, i32) {
    %c0_i32 = arith.constant 0 : i32
    %c0_i32_0 = arith.constant 0 : i32
    %c0_i32_1 = arith.constant 0 : i32
    return %c0_i32, %c0_i32_0 : i32, i32
  }
  func.func @transform_13(%arg0: i32, %arg1: i32) -> (i32, i32, i32) {
    %c0_i32 = arith.constant 0 : i32
    %c0_i32_0 = arith.constant 0 : i32
    return %arg0, %arg1, %c0_i32 : i32, i32, i32
  }
}

module attributes {stable_mosaic.version = 11 : i64} {
  func.func @kernel(%arg0: i32, %arg1: i32, %arg2: memref<1x8x32xf32, #tpu.memory_space<vmem>>, %arg3: memref<8x4xf32, #tpu.memory_space<vmem>>, %arg4: memref<8x4xf32, #tpu.memory_space<vmem>>, %arg5: memref<1x32xf32, #tpu.memory_space<vmem>>, %arg6: memref<32x32xbf16, #tpu.memory_space<vmem>>, %arg7: memref<32x64xbf16, #tpu.memory_space<vmem>>, %arg8: memref<32x32xbf16, #tpu.memory_space<vmem>>, %arg9: memref<1x32xf32, #tpu.memory_space<vmem>>, %arg10: memref<1x32xf32, #tpu.memory_space<vmem>>, %arg11: memref<32x88xbf16, #tpu.memory_space<vmem>>, %arg12: memref<32x88xbf16, #tpu.memory_space<vmem>>, %arg13: memref<88x32xbf16, #tpu.memory_space<vmem>>, %arg14: memref<1x32xf32, #tpu.memory_space<vmem>>, %arg15: memref<1x8x32xf32, #tpu.memory_space<vmem>>, %arg16: memref<8x16xf32, #tpu.memory_space<vmem>>, %arg17: memref<8x16xf32, #tpu.memory_space<vmem>>, %arg18: memref<8x32xf32, #tpu.memory_space<vmem>>) attributes {dimension_semantics = [#tpu.dimension_semantics<parallel>, #tpu.dimension_semantics<arbitrary>], iteration_bounds = array<i64: 2, 1>, scalar_prefetch = 0 : i64, scratch_operands = 3 : i64, tpu.core_type = #tpu.core_type<tc>, window_params = [{transform_indices = @transform_0, window_bounds = array<i64: 1, 8, 32>}, {pipeline_mode = #tpu.pipeline_mode<synchronous>, transform_indices = @transform_1, window_bounds = array<i64: 8, 4>}, {pipeline_mode = #tpu.pipeline_mode<synchronous>, transform_indices = @transform_2, window_bounds = array<i64: 8, 4>}, {pipeline_mode = #tpu.pipeline_mode<synchronous>, transform_indices = @transform_3, window_bounds = array<i64: 1, 32>}, {pipeline_mode = #tpu.pipeline_mode<synchronous>, transform_indices = @transform_4, window_bounds = array<i64: 32, 32>}, {pipeline_mode = #tpu.pipeline_mode<synchronous>, transform_indices = @transform_5, window_bounds = array<i64: 32, 64>}, {pipeline_mode = #tpu.pipeline_mode<synchronous>, transform_indices = @transform_6, window_bounds = array<i64: 32, 32>}, {pipeline_mode = #tpu.pipeline_mode<synchronous>, transform_indices = @transform_7, window_bounds = array<i64: 1, 32>}, {pipeline_mode = #tpu.pipeline_mode<synchronous>, transform_indices = @transform_8, window_bounds = array<i64: 1, 32>}, {pipeline_mode = #tpu.pipeline_mode<synchronous>, transform_indices = @transform_9, window_bounds = array<i64: 32, 88>}, {pipeline_mode = #tpu.pipeline_mode<synchronous>, transform_indices = @transform_10, window_bounds = array<i64: 32, 88>}, {pipeline_mode = #tpu.pipeline_mode<synchronous>, transform_indices = @transform_11, window_bounds = array<i64: 88, 32>}, {pipeline_mode = #tpu.pipeline_mode<synchronous>, transform_indices = @transform_12, window_bounds = array<i64: 1, 32>}, {transform_indices = @transform_13, window_bounds = array<i64: 1, 8, 32>}]} {
    %c8_i32 = arith.constant 8 : i32
    %0 = arith.muli %arg1, %c8_i32 : i32
    %1 = tpu.assume_multiple %0, 8 : i32
    %c0 = arith.constant 0 : index
    %c0_0 = arith.constant 0 : index
    %2 = vector.load %arg5[%c0, %c0_0] : memref<1x32xf32, #tpu.memory_space<vmem>>, vector<1x32xf32>
    %c0_i32 = arith.constant 0 : i32
    %3 = arith.cmpi eq, %arg1, %c0_i32 : i32
    %4 = arith.extui %3 : i1 to i32
    %c0_i32_1 = arith.constant 0 : i32
    %5 = arith.cmpi ne, %4, %c0_i32_1 : i32
    scf.if %5 {
      %c0_60 = arith.constant 0 : index
      %c0_61 = arith.constant 0 : index
      %c0_62 = arith.constant 0 : index
      %186 = vector.load %arg2[%c0_60, %c0_61, %c0_62] : memref<1x8x32xf32, #tpu.memory_space<vmem>>, vector<1x8x32xf32>
      %187 = vector.shape_cast %186 : vector<1x8x32xf32> to vector<8x32xf32>
      %188 = arith.mulf %187, %187 : vector<8x32xf32>
      %cst_63 = arith.constant dense<0.000000e+00> : vector<8xf32>
      %189 = vector.multi_reduction <add>, %188, %cst_63 [1] : vector<8x32xf32> to vector<8xf32>
      %190 = vector.shape_cast %189 : vector<8xf32> to vector<8x1xf32>
      %cst_64 = arith.constant 3.200000e+01 : f32
      %191 = vector.broadcast %cst_64 : f32 to vector<8x1xf32>
      %192 = arith.divf %190, %191 : vector<8x1xf32>
      %cst_65 = arith.constant 9.99999974E-6 : f32
      %193 = vector.broadcast %cst_65 : f32 to vector<8x1xf32>
      %194 = arith.addf %192, %193 : vector<8x1xf32>
      %195 = math.rsqrt %194 : vector<8x1xf32>
      %196 = vector.broadcast %195 : vector<8x1xf32> to vector<8x32xf32>
      %197 = arith.mulf %187, %196 : vector<8x32xf32>
      %198 = vector.broadcast %2 : vector<1x32xf32> to vector<8x32xf32>
      %199 = arith.mulf %197, %198 : vector<8x32xf32>
      %200 = arith.truncf %199 : vector<8x32xf32> to vector<8x32xbf16>
      %c0_66 = arith.constant 0 : index
      %c0_67 = arith.constant 0 : index
      %201 = vector.load %arg7[%c0_66, %c0_67] : memref<32x64xbf16, #tpu.memory_space<vmem>>, vector<32x64xbf16>
      %cst_68 = arith.constant dense<0.000000e+00> : vector<8x64xf32>
      %202 = tpu.matmul %200, %201, %cst_68 {dimension_numbers = #tpu.dot_dimension_numbers<[1], [0], [0], [1], [0, 0, 1, 1], [], []>} : vector<8x32xbf16>, vector<32x64xbf16>, vector<8x64xf32> -> vector<8x64xf32>
      %203 = vector.extract_strided_slice %202 {offsets = [0, 0], sizes = [8, 16], strides = [1, 1]} : vector<8x64xf32> to vector<8x16xf32>
      %204 = vector.extract_strided_slice %202 {offsets = [0, 16], sizes = [8, 16], strides = [1, 1]} : vector<8x64xf32> to vector<8x16xf32>
      %205 = vector.extract_strided_slice %202 {offsets = [0, 32], sizes = [8, 32], strides = [1, 1]} : vector<8x64xf32> to vector<8x32xf32>
      %c0_69 = arith.constant 0 : index
      %c0_70 = arith.constant 0 : index
      %206 = vector.load %arg3[%c0_69, %c0_70] : memref<8x4xf32, #tpu.memory_space<vmem>>, vector<8x4xf32>
      %207 = tpu.concatenate %206, %206, %206, %206 in 1 : vector<8x4xf32>, vector<8x4xf32>, vector<8x4xf32>, vector<8x4xf32> -> vector<8x16xf32>
      %c0_71 = arith.constant 0 : index
      %c0_72 = arith.constant 0 : index
      %208 = vector.load %arg4[%c0_71, %c0_72] : memref<8x4xf32, #tpu.memory_space<vmem>>, vector<8x4xf32>
      %209 = tpu.concatenate %208, %208, %208, %208 in 1 : vector<8x4xf32>, vector<8x4xf32>, vector<8x4xf32>, vector<8x4xf32> -> vector<8x16xf32>
      %210 = arith.mulf %203, %207 : vector<8x16xf32>
      %211 = arith.mulf %204, %209 : vector<8x16xf32>
      %212 = arith.subf %210, %211 : vector<8x16xf32>
      %213 = arith.mulf %203, %209 : vector<8x16xf32>
      %214 = arith.mulf %204, %207 : vector<8x16xf32>
      %215 = arith.addf %213, %214 : vector<8x16xf32>
      %c0_73 = arith.constant 0 : index
      %c0_74 = arith.constant 0 : index
      %216 = vector.load %arg16[%c0_73, %c0_74] : memref<8x16xf32, #tpu.memory_space<vmem>>, vector<8x16xf32>
      tpu.vector_store %arg16[%c0_73, %c0_74], %212 {strides = array<i32>} : memref<8x16xf32, #tpu.memory_space<vmem>>, vector<8x16xf32>,
      %c0_75 = arith.constant 0 : index
      %c0_76 = arith.constant 0 : index
      %217 = vector.load %arg17[%c0_75, %c0_76] : memref<8x16xf32, #tpu.memory_space<vmem>>, vector<8x16xf32>
      tpu.vector_store %arg17[%c0_75, %c0_76], %215 {strides = array<i32>} : memref<8x16xf32, #tpu.memory_space<vmem>>, vector<8x16xf32>,
      %c0_77 = arith.constant 0 : index
      %c0_78 = arith.constant 0 : index
      %218 = vector.load %arg18[%c0_77, %c0_78] : memref<8x32xf32, #tpu.memory_space<vmem>>, vector<8x32xf32>
      tpu.vector_store %arg18[%c0_77, %c0_78], %205 {strides = array<i32>} : memref<8x32xf32, #tpu.memory_space<vmem>>, vector<8x32xf32>,
    } else {
    }
    %c0_2 = arith.constant 0 : index
    %6 = arith.index_cast %1 : i32 to index
    %c0_3 = arith.constant 0 : index
    %7 = vector.load %arg2[%c0_2, %6, %c0_3] : memref<1x8x32xf32, #tpu.memory_space<vmem>>, vector<1x8x32xf32>
    %8 = vector.shape_cast %7 : vector<1x8x32xf32> to vector<8x32xf32>
    %9 = arith.mulf %8, %8 : vector<8x32xf32>
    %cst = arith.constant dense<0.000000e+00> : vector<8xf32>
    %10 = vector.multi_reduction <add>, %9, %cst [1] : vector<8x32xf32> to vector<8xf32>
    %11 = vector.shape_cast %10 : vector<8xf32> to vector<8x1xf32>
    %cst_4 = arith.constant 3.200000e+01 : f32
    %12 = vector.broadcast %cst_4 : f32 to vector<8x1xf32>
    %13 = arith.divf %11, %12 : vector<8x1xf32>
    %cst_5 = arith.constant 9.99999974E-6 : f32
    %14 = vector.broadcast %cst_5 : f32 to vector<8x1xf32>
    %15 = arith.addf %13, %14 : vector<8x1xf32>
    %16 = math.rsqrt %15 : vector<8x1xf32>
    %17 = vector.broadcast %16 : vector<8x1xf32> to vector<8x32xf32>
    %18 = arith.mulf %8, %17 : vector<8x32xf32>
    %19 = vector.broadcast %2 : vector<1x32xf32> to vector<8x32xf32>
    %20 = arith.mulf %18, %19 : vector<8x32xf32>
    %21 = arith.truncf %20 : vector<8x32xf32> to vector<8x32xbf16>
    %c0_6 = arith.constant 0 : index
    %c0_7 = arith.constant 0 : index
    %22 = vector.load %arg6[%c0_6, %c0_7] : memref<32x32xbf16, #tpu.memory_space<vmem>>, vector<32x32xbf16>
    %cst_8 = arith.constant dense<0.000000e+00> : vector<8x32xf32>
    %23 = tpu.matmul %21, %22, %cst_8 {dimension_numbers = #tpu.dot_dimension_numbers<[1], [0], [0], [1], [0, 0, 1, 1], [], []>} : vector<8x32xbf16>, vector<32x32xbf16>, vector<8x32xf32> -> vector<8x32xf32>
    %24 = vector.extract_strided_slice %23 {offsets = [0, 0], sizes = [8, 16], strides = [1, 1]} : vector<8x32xf32> to vector<8x16xf32>
    %25 = vector.extract_strided_slice %23 {offsets = [0, 16], sizes = [8, 16], strides = [1, 1]} : vector<8x32xf32> to vector<8x16xf32>
    %26 = arith.index_cast %1 : i32 to index
    %c0_9 = arith.constant 0 : index
    %27 = vector.load %arg3[%26, %c0_9] : memref<8x4xf32, #tpu.memory_space<vmem>>, vector<8x4xf32>
    %28 = tpu.concatenate %27, %27, %27, %27 in 1 : vector<8x4xf32>, vector<8x4xf32>, vector<8x4xf32>, vector<8x4xf32> -> vector<8x16xf32>
    %29 = arith.index_cast %1 : i32 to index
    %c0_10 = arith.constant 0 : index
    %30 = vector.load %arg4[%29, %c0_10] : memref<8x4xf32, #tpu.memory_space<vmem>>, vector<8x4xf32>
    %31 = tpu.concatenate %30, %30, %30, %30 in 1 : vector<8x4xf32>, vector<8x4xf32>, vector<8x4xf32>, vector<8x4xf32> -> vector<8x16xf32>
    %32 = arith.mulf %24, %28 : vector<8x16xf32>
    %33 = arith.mulf %25, %31 : vector<8x16xf32>
    %34 = arith.subf %32, %33 : vector<8x16xf32>
    %35 = arith.mulf %24, %31 : vector<8x16xf32>
    %36 = arith.mulf %25, %28 : vector<8x16xf32>
    %37 = arith.addf %35, %36 : vector<8x16xf32>
    %38 = tpu.iota {dimensions = array<i32: 0>} : vector<8x8xi32>
    %39 = vector.broadcast %1 : i32 to vector<8x8xi32>
    %40 = arith.addi %39, %38 : vector<8x8xi32>
    %41 = tpu.iota {dimensions = array<i32: 1>} : vector<8x8xi32>
    %42 = arith.cmpi sle, %41, %40 : vector<8x8xi32>
    %c0_11 = arith.constant 0 : index
    %c0_12 = arith.constant 0 : index
    %43 = vector.load %arg16[%c0_11, %c0_12] : memref<8x16xf32, #tpu.memory_space<vmem>>, vector<8x16xf32>
    %c0_13 = arith.constant 0 : index
    %c0_14 = arith.constant 0 : index
    %44 = vector.load %arg17[%c0_13, %c0_14] : memref<8x16xf32, #tpu.memory_space<vmem>>, vector<8x16xf32>
    %c0_15 = arith.constant 0 : index
    %c0_16 = arith.constant 0 : index
    %45 = vector.load %arg18[%c0_15, %c0_16] : memref<8x32xf32, #tpu.memory_space<vmem>>, vector<8x32xf32>
    %46 = vector.extract_strided_slice %34 {offsets = [0, 0], sizes = [8, 4], strides = [1, 1]} : vector<8x16xf32> to vector<8x4xf32>
    %47 = vector.extract_strided_slice %37 {offsets = [0, 0], sizes = [8, 4], strides = [1, 1]} : vector<8x16xf32> to vector<8x4xf32>
    %48 = tpu.concatenate %46, %47 in 1 : vector<8x4xf32>, vector<8x4xf32> -> vector<8x8xf32>
    %49 = arith.truncf %48 : vector<8x8xf32> to vector<8x8xbf16>
    %50 = vector.extract_strided_slice %43 {offsets = [0, 0], sizes = [8, 4], strides = [1, 1]} : vector<8x16xf32> to vector<8x4xf32>
    %51 = vector.extract_strided_slice %44 {offsets = [0, 0], sizes = [8, 4], strides = [1, 1]} : vector<8x16xf32> to vector<8x4xf32>
    %52 = tpu.concatenate %50, %51 in 1 : vector<8x4xf32>, vector<8x4xf32> -> vector<8x8xf32>
    %53 = arith.truncf %52 : vector<8x8xf32> to vector<8x8xbf16>
    %cst_17 = arith.constant dense<0.000000e+00> : vector<8x8xf32>
    %54 = tpu.matmul %49, %53, %cst_17 {dimension_numbers = #tpu.dot_dimension_numbers<[1], [1], [0], [0], [0, 0, 1, 0], [], []>} : vector<8x8xbf16>, vector<8x8xbf16>, vector<8x8xf32> -> vector<8x8xf32>
    %cst_18 = arith.constant -1.000000e+30 : f32
    %55 = vector.broadcast %cst_18 : f32 to vector<8x8xf32>
    %56 = arith.select %42, %54, %55 : vector<8x8xi1>, vector<8x8xf32>
    %cst_19 = arith.constant dense<0xFF800000> : vector<8xf32>
    %57 = vector.multi_reduction <maximumf>, %56, %cst_19 [1] : vector<8x8xf32> to vector<8xf32>
    %58 = vector.shape_cast %57 : vector<8xf32> to vector<8x1xf32>
    %59 = vector.broadcast %58 : vector<8x1xf32> to vector<8x8xf32>
    %60 = arith.subf %56, %59 : vector<8x8xf32>
    %61 = math.exp %60 : vector<8x8xf32>
    %cst_20 = arith.constant dense<0.000000e+00> : vector<8xf32>
    %62 = vector.multi_reduction <add>, %61, %cst_20 [1] : vector<8x8xf32> to vector<8xf32>
    %63 = vector.shape_cast %62 : vector<8xf32> to vector<8x1xf32>
    %64 = tpu.reciprocal %63 {approx = true} : vector<8x1xf32> -> vector<8x1xf32>
    %65 = vector.broadcast %64 : vector<8x1xf32> to vector<8x8xf32>
    %66 = arith.mulf %61, %65 : vector<8x8xf32>
    %67 = arith.truncf %66 : vector<8x8xf32> to vector<8x8xbf16>
    %68 = vector.extract_strided_slice %45 {offsets = [0, 0], sizes = [8, 8], strides = [1, 1]} : vector<8x32xf32> to vector<8x8xf32>
    %69 = arith.truncf %68 : vector<8x8xf32> to vector<8x8xbf16>
    %cst_21 = arith.constant dense<0.000000e+00> : vector<8x8xf32>
    %70 = tpu.matmul %67, %69, %cst_21 {dimension_numbers = #tpu.dot_dimension_numbers<[1], [0], [0], [1], [0, 0, 1, 1], [], []>} : vector<8x8xbf16>, vector<8x8xbf16>, vector<8x8xf32> -> vector<8x8xf32>
    %71 = vector.extract_strided_slice %34 {offsets = [0, 4], sizes = [8, 4], strides = [1, 1]} : vector<8x16xf32> to vector<8x4xf32>
    %72 = vector.extract_strided_slice %37 {offsets = [0, 4], sizes = [8, 4], strides = [1, 1]} : vector<8x16xf32> to vector<8x4xf32>
    %73 = tpu.concatenate %71, %72 in 1 : vector<8x4xf32>, vector<8x4xf32> -> vector<8x8xf32>
    %74 = arith.truncf %73 : vector<8x8xf32> to vector<8x8xbf16>
    %75 = vector.extract_strided_slice %43 {offsets = [0, 4], sizes = [8, 4], strides = [1, 1]} : vector<8x16xf32> to vector<8x4xf32>
    %76 = vector.extract_strided_slice %44 {offsets = [0, 4], sizes = [8, 4], strides = [1, 1]} : vector<8x16xf32> to vector<8x4xf32>
    %77 = tpu.concatenate %75, %76 in 1 : vector<8x4xf32>, vector<8x4xf32> -> vector<8x8xf32>
    %78 = arith.truncf %77 : vector<8x8xf32> to vector<8x8xbf16>
    %cst_22 = arith.constant dense<0.000000e+00> : vector<8x8xf32>
    %79 = tpu.matmul %74, %78, %cst_22 {dimension_numbers = #tpu.dot_dimension_numbers<[1], [1], [0], [0], [0, 0, 1, 0], [], []>} : vector<8x8xbf16>, vector<8x8xbf16>, vector<8x8xf32> -> vector<8x8xf32>
    %cst_23 = arith.constant -1.000000e+30 : f32
    %80 = vector.broadcast %cst_23 : f32 to vector<8x8xf32>
    %81 = arith.select %42, %79, %80 : vector<8x8xi1>, vector<8x8xf32>
    %cst_24 = arith.constant dense<0xFF800000> : vector<8xf32>
    %82 = vector.multi_reduction <maximumf>, %81, %cst_24 [1] : vector<8x8xf32> to vector<8xf32>
    %83 = vector.shape_cast %82 : vector<8xf32> to vector<8x1xf32>
    %84 = vector.broadcast %83 : vector<8x1xf32> to vector<8x8xf32>
    %85 = arith.subf %81, %84 : vector<8x8xf32>
    %86 = math.exp %85 : vector<8x8xf32>
    %cst_25 = arith.constant dense<0.000000e+00> : vector<8xf32>
    %87 = vector.multi_reduction <add>, %86, %cst_25 [1] : vector<8x8xf32> to vector<8xf32>
    %88 = vector.shape_cast %87 : vector<8xf32> to vector<8x1xf32>
    %89 = tpu.reciprocal %88 {approx = true} : vector<8x1xf32> -> vector<8x1xf32>
    %90 = vector.broadcast %89 : vector<8x1xf32> to vector<8x8xf32>
    %91 = arith.mulf %86, %90 : vector<8x8xf32>
    %92 = arith.truncf %91 : vector<8x8xf32> to vector<8x8xbf16>
    %93 = vector.extract_strided_slice %45 {offsets = [0, 8], sizes = [8, 8], strides = [1, 1]} : vector<8x32xf32> to vector<8x8xf32>
    %94 = arith.truncf %93 : vector<8x8xf32> to vector<8x8xbf16>
    %cst_26 = arith.constant dense<0.000000e+00> : vector<8x8xf32>
    %95 = tpu.matmul %92, %94, %cst_26 {dimension_numbers = #tpu.dot_dimension_numbers<[1], [0], [0], [1], [0, 0, 1, 1], [], []>} : vector<8x8xbf16>, vector<8x8xbf16>, vector<8x8xf32> -> vector<8x8xf32>
    %96 = vector.extract_strided_slice %34 {offsets = [0, 8], sizes = [8, 4], strides = [1, 1]} : vector<8x16xf32> to vector<8x4xf32>
    %97 = vector.extract_strided_slice %37 {offsets = [0, 8], sizes = [8, 4], strides = [1, 1]} : vector<8x16xf32> to vector<8x4xf32>
    %98 = tpu.concatenate %96, %97 in 1 : vector<8x4xf32>, vector<8x4xf32> -> vector<8x8xf32>
    %99 = arith.truncf %98 : vector<8x8xf32> to vector<8x8xbf16>
    %100 = vector.extract_strided_slice %43 {offsets = [0, 8], sizes = [8, 4], strides = [1, 1]} : vector<8x16xf32> to vector<8x4xf32>
    %101 = vector.extract_strided_slice %44 {offsets = [0, 8], sizes = [8, 4], strides = [1, 1]} : vector<8x16xf32> to vector<8x4xf32>
    %102 = tpu.concatenate %100, %101 in 1 : vector<8x4xf32>, vector<8x4xf32> -> vector<8x8xf32>
    %103 = arith.truncf %102 : vector<8x8xf32> to vector<8x8xbf16>
    %cst_27 = arith.constant dense<0.000000e+00> : vector<8x8xf32>
    %104 = tpu.matmul %99, %103, %cst_27 {dimension_numbers = #tpu.dot_dimension_numbers<[1], [1], [0], [0], [0, 0, 1, 0], [], []>} : vector<8x8xbf16>, vector<8x8xbf16>, vector<8x8xf32> -> vector<8x8xf32>
    %cst_28 = arith.constant -1.000000e+30 : f32
    %105 = vector.broadcast %cst_28 : f32 to vector<8x8xf32>
    %106 = arith.select %42, %104, %105 : vector<8x8xi1>, vector<8x8xf32>
    %cst_29 = arith.constant dense<0xFF800000> : vector<8xf32>
    %107 = vector.multi_reduction <maximumf>, %106, %cst_29 [1] : vector<8x8xf32> to vector<8xf32>
    %108 = vector.shape_cast %107 : vector<8xf32> to vector<8x1xf32>
    %109 = vector.broadcast %108 : vector<8x1xf32> to vector<8x8xf32>
    %110 = arith.subf %106, %109 : vector<8x8xf32>
    %111 = math.exp %110 : vector<8x8xf32>
    %cst_30 = arith.constant dense<0.000000e+00> : vector<8xf32>
    %112 = vector.multi_reduction <add>, %111, %cst_30 [1] : vector<8x8xf32> to vector<8xf32>
    %113 = vector.shape_cast %112 : vector<8xf32> to vector<8x1xf32>
    %114 = tpu.reciprocal %113 {approx = true} : vector<8x1xf32> -> vector<8x1xf32>
    %115 = vector.broadcast %114 : vector<8x1xf32> to vector<8x8xf32>
    %116 = arith.mulf %111, %115 : vector<8x8xf32>
    %117 = arith.truncf %116 : vector<8x8xf32> to vector<8x8xbf16>
    %118 = vector.extract_strided_slice %45 {offsets = [0, 16], sizes = [8, 8], strides = [1, 1]} : vector<8x32xf32> to vector<8x8xf32>
    %119 = arith.truncf %118 : vector<8x8xf32> to vector<8x8xbf16>
    %cst_31 = arith.constant dense<0.000000e+00> : vector<8x8xf32>
    %120 = tpu.matmul %117, %119, %cst_31 {dimension_numbers = #tpu.dot_dimension_numbers<[1], [0], [0], [1], [0, 0, 1, 1], [], []>} : vector<8x8xbf16>, vector<8x8xbf16>, vector<8x8xf32> -> vector<8x8xf32>
    %121 = vector.extract_strided_slice %34 {offsets = [0, 12], sizes = [8, 4], strides = [1, 1]} : vector<8x16xf32> to vector<8x4xf32>
    %122 = vector.extract_strided_slice %37 {offsets = [0, 12], sizes = [8, 4], strides = [1, 1]} : vector<8x16xf32> to vector<8x4xf32>
    %123 = tpu.concatenate %121, %122 in 1 : vector<8x4xf32>, vector<8x4xf32> -> vector<8x8xf32>
    %124 = arith.truncf %123 : vector<8x8xf32> to vector<8x8xbf16>
    %125 = vector.extract_strided_slice %43 {offsets = [0, 12], sizes = [8, 4], strides = [1, 1]} : vector<8x16xf32> to vector<8x4xf32>
    %126 = vector.extract_strided_slice %44 {offsets = [0, 12], sizes = [8, 4], strides = [1, 1]} : vector<8x16xf32> to vector<8x4xf32>
    %127 = tpu.concatenate %125, %126 in 1 : vector<8x4xf32>, vector<8x4xf32> -> vector<8x8xf32>
    %128 = arith.truncf %127 : vector<8x8xf32> to vector<8x8xbf16>
    %cst_32 = arith.constant dense<0.000000e+00> : vector<8x8xf32>
    %129 = tpu.matmul %124, %128, %cst_32 {dimension_numbers = #tpu.dot_dimension_numbers<[1], [1], [0], [0], [0, 0, 1, 0], [], []>} : vector<8x8xbf16>, vector<8x8xbf16>, vector<8x8xf32> -> vector<8x8xf32>
    %cst_33 = arith.constant -1.000000e+30 : f32
    %130 = vector.broadcast %cst_33 : f32 to vector<8x8xf32>
    %131 = arith.select %42, %129, %130 : vector<8x8xi1>, vector<8x8xf32>
    %cst_34 = arith.constant dense<0xFF800000> : vector<8xf32>
    %132 = vector.multi_reduction <maximumf>, %131, %cst_34 [1] : vector<8x8xf32> to vector<8xf32>
    %133 = vector.shape_cast %132 : vector<8xf32> to vector<8x1xf32>
    %134 = vector.broadcast %133 : vector<8x1xf32> to vector<8x8xf32>
    %135 = arith.subf %131, %134 : vector<8x8xf32>
    %136 = math.exp %135 : vector<8x8xf32>
    %cst_35 = arith.constant dense<0.000000e+00> : vector<8xf32>
    %137 = vector.multi_reduction <add>, %136, %cst_35 [1] : vector<8x8xf32> to vector<8xf32>
    %138 = vector.shape_cast %137 : vector<8xf32> to vector<8x1xf32>
    %139 = tpu.reciprocal %138 {approx = true} : vector<8x1xf32> -> vector<8x1xf32>
    %140 = vector.broadcast %139 : vector<8x1xf32> to vector<8x8xf32>
    %141 = arith.mulf %136, %140 : vector<8x8xf32>
    %142 = arith.truncf %141 : vector<8x8xf32> to vector<8x8xbf16>
    %143 = vector.extract_strided_slice %45 {offsets = [0, 24], sizes = [8, 8], strides = [1, 1]} : vector<8x32xf32> to vector<8x8xf32>
    %144 = arith.truncf %143 : vector<8x8xf32> to vector<8x8xbf16>
    %cst_36 = arith.constant dense<0.000000e+00> : vector<8x8xf32>
    %145 = tpu.matmul %142, %144, %cst_36 {dimension_numbers = #tpu.dot_dimension_numbers<[1], [0], [0], [1], [0, 0, 1, 1], [], []>} : vector<8x8xbf16>, vector<8x8xbf16>, vector<8x8xf32> -> vector<8x8xf32>
    %146 = tpu.concatenate %70, %95, %120, %145 in 1 : vector<8x8xf32>, vector<8x8xf32>, vector<8x8xf32>, vector<8x8xf32> -> vector<8x32xf32>
    %147 = arith.truncf %146 : vector<8x32xf32> to vector<8x32xbf16>
    %c0_37 = arith.constant 0 : index
    %c0_38 = arith.constant 0 : index
    %148 = vector.load %arg8[%c0_37, %c0_38] : memref<32x32xbf16, #tpu.memory_space<vmem>>, vector<32x32xbf16>
    %cst_39 = arith.constant dense<0.000000e+00> : vector<8x32xf32>
    %149 = tpu.matmul %147, %148, %cst_39 {dimension_numbers = #tpu.dot_dimension_numbers<[1], [0], [0], [1], [0, 0, 1, 1], [], []>} : vector<8x32xbf16>, vector<32x32xbf16>, vector<8x32xf32> -> vector<8x32xf32>
    %150 = arith.addf %8, %149 : vector<8x32xf32>
    %c0_40 = arith.constant 0 : index
    %c0_41 = arith.constant 0 : index
    %151 = vector.load %arg9[%c0_40, %c0_41] : memref<1x32xf32, #tpu.memory_space<vmem>>, vector<1x32xf32>
    %152 = vector.broadcast %151 : vector<1x32xf32> to vector<8x32xf32>
    %153 = arith.addf %150, %152 : vector<8x32xf32>
    %c0_42 = arith.constant 0 : index
    %c0_43 = arith.constant 0 : index
    %154 = vector.load %arg10[%c0_42, %c0_43] : memref<1x32xf32, #tpu.memory_space<vmem>>, vector<1x32xf32>
    %155 = arith.mulf %153, %153 : vector<8x32xf32>
    %cst_44 = arith.constant dense<0.000000e+00> : vector<8xf32>
    %156 = vector.multi_reduction <add>, %155, %cst_44 [1] : vector<8x32xf32> to vector<8xf32>
    %157 = vector.shape_cast %156 : vector<8xf32> to vector<8x1xf32>
    %cst_45 = arith.constant 3.200000e+01 : f32
    %158 = vector.broadcast %cst_45 : f32 to vector<8x1xf32>
    %159 = arith.divf %157, %158 : vector<8x1xf32>
    %cst_46 = arith.constant 9.99999974E-6 : f32
    %160 = vector.broadcast %cst_46 : f32 to vector<8x1xf32>
    %161 = arith.addf %159, %160 : vector<8x1xf32>
    %162 = math.rsqrt %161 : vector<8x1xf32>
    %163 = vector.broadcast %162 : vector<8x1xf32> to vector<8x32xf32>
    %164 = arith.mulf %153, %163 : vector<8x32xf32>
    %165 = vector.broadcast %154 : vector<1x32xf32> to vector<8x32xf32>
    %166 = arith.mulf %164, %165 : vector<8x32xf32>
    %167 = arith.truncf %166 : vector<8x32xf32> to vector<8x32xbf16>
    %c0_47 = arith.constant 0 : index
    %c0_48 = arith.constant 0 : index
    %168 = vector.load %arg11[%c0_47, %c0_48] : memref<32x88xbf16, #tpu.memory_space<vmem>>, vector<32x88xbf16>
    %cst_49 = arith.constant dense<0.000000e+00> : vector<8x88xf32>
    %169 = tpu.matmul %167, %168, %cst_49 {dimension_numbers = #tpu.dot_dimension_numbers<[1], [0], [0], [1], [0, 0, 1, 1], [], []>} : vector<8x32xbf16>, vector<32x88xbf16>, vector<8x88xf32> -> vector<8x88xf32>
    %c0_50 = arith.constant 0 : index
    %c0_51 = arith.constant 0 : index
    %170 = vector.load %arg12[%c0_50, %c0_51] : memref<32x88xbf16, #tpu.memory_space<vmem>>, vector<32x88xbf16>
    %cst_52 = arith.constant dense<0.000000e+00> : vector<8x88xf32>
    %171 = tpu.matmul %167, %170, %cst_52 {dimension_numbers = #tpu.dot_dimension_numbers<[1], [0], [0], [1], [0, 0, 1, 1], [], []>} : vector<8x32xbf16>, vector<32x88xbf16>, vector<8x88xf32> -> vector<8x88xf32>
    %172 = arith.negf %169 : vector<8x88xf32>
    %173 = math.exp %172 : vector<8x88xf32>
    %cst_53 = arith.constant 1.000000e+00 : f32
    %174 = vector.broadcast %cst_53 : f32 to vector<8x88xf32>
    %175 = arith.addf %174, %173 : vector<8x88xf32>
    %176 = arith.divf %174, %175 : vector<8x88xf32>
    %177 = arith.mulf %169, %176 : vector<8x88xf32>
    %178 = arith.mulf %177, %171 : vector<8x88xf32>
    %179 = arith.truncf %178 : vector<8x88xf32> to vector<8x88xbf16>
    %c0_54 = arith.constant 0 : index
    %c0_55 = arith.constant 0 : index
    %180 = vector.load %arg13[%c0_54, %c0_55] : memref<88x32xbf16, #tpu.memory_space<vmem>>, vector<88x32xbf16>
    %cst_56 = arith.constant dense<0.000000e+00> : vector<8x32xf32>
    %181 = tpu.matmul %179, %180, %cst_56 {dimension_numbers = #tpu.dot_dimension_numbers<[1], [0], [0], [1], [0, 0, 1, 1], [], []>} : vector<8x88xbf16>, vector<88x32xbf16>, vector<8x32xf32> -> vector<8x32xf32>
    %182 = arith.addf %153, %181 : vector<8x32xf32>
    %c0_57 = arith.constant 0 : index
    %c0_58 = arith.constant 0 : index
    %c0_59 = arith.constant 0 : index
    %183 = vector.load %arg15[%c0_57, %c0_58, %c0_59] : memref<1x8x32xf32, #tpu.memory_space<vmem>>, vector<1x8x32xf32>
    %184 = vector.shape_cast %183 : vector<1x8x32xf32> to vector<8x32xf32>
    %185 = vector.shape_cast %182 : vector<8x32xf32> to vector<1x8x32xf32>
    tpu.vector_store %arg15[%c0_57, %c0_58, %c0_59], %185 {strides = array<i32>} : memref<1x8x32xf32, #tpu.memory_space<vmem>>, vector<1x8x32xf32>,
    return
  }
  func.func @transform_0(%arg0: i32, %arg1: i32) -> (i32, i32, i32) {
    %c0_i32 = arith.constant 0 : i32
    %c0_i32_0 = arith.constant 0 : i32
    %c0_i32_1 = arith.constant 0 : i32
    return %arg0, %c0_i32, %c0_i32_0 : i32, i32, i32
  }
  func.func @transform_1(%arg0: i32, %arg1: i32) -> (i32, i32) {
    %c0_i32 = arith.constant 0 : i32
    %c0_i32_0 = arith.constant 0 : i32
    %c0_i32_1 = arith.constant 0 : i32
    return %c0_i32, %c0_i32_0 : i32, i32
  }
  func.func @transform_2(%arg0: i32, %arg1: i32) -> (i32, i32) {
    %c0_i32 = arith.constant 0 : i32
    %c0_i32_0 = arith.constant 0 : i32
    %c0_i32_1 = arith.constant 0 : i32
    return %c0_i32, %c0_i32_0 : i32, i32
  }
  func.func @transform_3(%arg0: i32, %arg1: i32) -> (i32, i32) {
    %c0_i32 = arith.constant 0 : i32
    %c0_i32_0 = arith.constant 0 : i32
    %c0_i32_1 = arith.constant 0 : i32
    return %c0_i32, %c0_i32_0 : i32, i32
  }
  func.func @transform_4(%arg0: i32, %arg1: i32) -> (i32, i32) {
    %c0_i32 = arith.constant 0 : i32
    %c0_i32_0 = arith.constant 0 : i32
    %c0_i32_1 = arith.constant 0 : i32
    return %c0_i32, %c0_i32_0 : i32, i32
  }
  func.func @transform_5(%arg0: i32, %arg1: i32) -> (i32, i32) {
    %c0_i32 = arith.constant 0 : i32
    %c0_i32_0 = arith.constant 0 : i32
    %c0_i32_1 = arith.constant 0 : i32
    return %c0_i32, %c0_i32_0 : i32, i32
  }
  func.func @transform_6(%arg0: i32, %arg1: i32) -> (i32, i32) {
    %c0_i32 = arith.constant 0 : i32
    %c0_i32_0 = arith.constant 0 : i32
    %c0_i32_1 = arith.constant 0 : i32
    return %c0_i32, %c0_i32_0 : i32, i32
  }
  func.func @transform_7(%arg0: i32, %arg1: i32) -> (i32, i32) {
    %c0_i32 = arith.constant 0 : i32
    %c0_i32_0 = arith.constant 0 : i32
    %c0_i32_1 = arith.constant 0 : i32
    return %c0_i32, %c0_i32_0 : i32, i32
  }
  func.func @transform_8(%arg0: i32, %arg1: i32) -> (i32, i32) {
    %c0_i32 = arith.constant 0 : i32
    %c0_i32_0 = arith.constant 0 : i32
    %c0_i32_1 = arith.constant 0 : i32
    return %c0_i32, %c0_i32_0 : i32, i32
  }
  func.func @transform_9(%arg0: i32, %arg1: i32) -> (i32, i32) {
    %c0_i32 = arith.constant 0 : i32
    %c0_i32_0 = arith.constant 0 : i32
    %c0_i32_1 = arith.constant 0 : i32
    return %c0_i32, %c0_i32_0 : i32, i32
  }
  func.func @transform_10(%arg0: i32, %arg1: i32) -> (i32, i32) {
    %c0_i32 = arith.constant 0 : i32
    %c0_i32_0 = arith.constant 0 : i32
    %c0_i32_1 = arith.constant 0 : i32
    return %c0_i32, %c0_i32_0 : i32, i32
  }
  func.func @transform_11(%arg0: i32, %arg1: i32) -> (i32, i32) {
    %c0_i32 = arith.constant 0 : i32
    %c0_i32_0 = arith.constant 0 : i32
    %c0_i32_1 = arith.constant 0 : i32
    return %c0_i32, %c0_i32_0 : i32, i32
  }
  func.func @transform_12(%arg0: i32, %arg1: i32) -> (i32, i32) {
    %c0_i32 = arith.constant 0 : i32
    %c0_i32_0 = arith.constant 0 : i32
    %c0_i32_1 = arith.constant 0 : i32
    return %c0_i32, %c0_i32_0 : i32, i32
  }
  func.func @transform_13(%arg0: i32, %arg1: i32) -> (i32, i32, i32) {
    %c0_i32 = arith.constant 0 : i32
    %c0_i32_0 = arith.constant 0 : i32
    return %arg0, %arg1, %c0_i32 : i32, i32, i32
  }
}

</mosaic_0001>

<llo_original>
// kernel: tpu_custom_call.1
$region0: #{tpu_custom_call.1}
  #allocation0 [shape = 'u32[]', space=smem, size = 0x4, offset = 0x4, fixed_abs, tag = 'smem constant byte address 0x4 - core index']
  #allocation1 [shape = 'u32[144,128]{1,0:T(1,128)}', space=vmem, size = 0x12000, scoped, tag = 'internal scratch']
  #allocation2 [shape = 'bf16[4,8,8]{2,1,0:T(8,128)(2,1)}', space=vmem, size = 0x2000, scoped, tag = 'scratch operand']
  #allocation3 [shape = 'bf16[4,8,8]{2,1,0:T(8,128)(2,1)}', space=vmem, size = 0x2000, scoped, tag = 'scratch operand']
  %s0 = inlined_call_operand.vmem [shape: f32[2,8,32], index: 0, kind: input, shape index: {}]
  %s1 = inlined_call_operand.vmem [shape: f32[8,4], index: 1, kind: input, shape index: {}]
  %s2 = inlined_call_operand.vmem [shape: f32[8,4], index: 2, kind: input, shape index: {}]
  %s3 = inlined_call_operand.vmem [shape: f32[1,32], index: 3, kind: input, shape index: {}]
  %s4 = inlined_call_operand.vmem [shape: bf16[32,32], index: 4, kind: input, shape index: {}]
  %s5 = inlined_call_operand.vmem [shape: bf16[32,64], index: 5, kind: input, shape index: {}]
  %s6 = inlined_call_operand.vmem [shape: bf16[32,32], index: 6, kind: input, shape index: {}]
  %s7 = inlined_call_operand.vmem [shape: f32[1,32], index: 7, kind: input, shape index: {}]
  %s8 = inlined_call_operand.hbm [shape: f32[1,32], index: 8, kind: input, shape index: {}]
  %s9 = inlined_call_operand.vmem [shape: bf16[32,88], index: 9, kind: input, shape index: {}]
  %s10 = inlined_call_operand.vmem [shape: bf16[32,88], index: 10, kind: input, shape index: {}]
  %s11 = inlined_call_operand.vmem [shape: bf16[88,32], index: 11, kind: input, shape index: {}]
  %s12 = inlined_call_operand.vmem [shape: f32[1,32], index: 12, kind: input, shape index: {}]
  %s13 = inlined_call_operand.hbm [shape: f32[2,8,32], index: 13, kind: output, shape index: {}]
  %s14 = sld [smem:[#allocation0]]
  $region93: #{tpu_custom_call.1} parent=0
    _
  %s16 = ssub.s32 1, %s14
  %s17 = scalar_select 0, %s16, %s14
  $region1: #{tpu_custom_call.1} parent=0
    #allocation4 [shape = 'u8[512]{0}', space=vmem, size = 0x400, scoped, tag = 'input window, operand 8, single buffered']
    #allocation5 [shape = 's32[2]{0}', space=sflag, size = 0x8, scoped, tag = 'scoped memory for tpu_custom_call.1']
    #allocation6 [shape = 's32[2]{0}', space=sflag, size = 0x8, scoped, tag = 'scoped memory for tpu_custom_call.1']
    #allocation7 [shape = 'u8[8192]{0}', space=vmem, size = 0x2000, scoped, tag = 'output window, operand 0']
    %18 = vsyncpa [#allocation5], 0
    %19 = vsyncpa [#allocation6], 0
    %s20 = scalar_lea.sflag [#allocation6], 1
    %21 = vsyncpa %s20, 0
    loop: start=0, step=1, limit=4
    $region2: #{tpu_custom_call.1} parent=1 // loop_pre_header
      _
    $region3: #{tpu_custom_call.1} parent=1 // loop_header
      %s23 = sphi 0, %s27
      %p24 = scmp.ge.s32.totalorder %s23, 4
      %s30 = sphi 0, %s42
      %s31 = sphi 0, %s38
      %s32 = sphi 0, %s30
      %s33 = sphi 0, %s31
      %s34 = sphi 0, %s32
      %s35 = sphi 0, %s33
      %s45 = sphi 0, %s47
      %s48 = sphi 0, %s45
      %s49 = sphi 0, %s48
      %s65 = sphi 0, %s49
      %s69 = sphi 0, %s69
      %s71 = sphi 0, %s69
      %s72 = sphi 0, %s71
      %s86 = sphi 0, %s72
      %s90 = sphi 0, %s90
      %s92 = sphi 0, %s90
      %s93 = sphi 0, %s92
      %s107 = sphi 0, %s93
      %s111 = sphi 0, %s111
      %s113 = sphi 0, %s111
      %s114 = sphi 0, %s113
      %s128 = sphi 0, %s114
      %s132 = sphi 0, %s132
      %s134 = sphi 0, %s132
      %s135 = sphi 0, %s134
      %s149 = sphi 0, %s135
      %s153 = sphi 0, %s153
      %s155 = sphi 0, %s153
      %s156 = sphi 0, %s155
      %s170 = sphi 0, %s156
      %s174 = sphi 0, %s174
      %s176 = sphi 0, %s174
      %s177 = sphi 0, %s176
      %s191 = sphi 0, %s177
      %s195 = sphi 0, %s195
      %s197 = sphi 0, %s195
      %s198 = sphi 0, %s197
      %s212 = sphi 0, %s198
      %s216 = sphi 0, %s216
      %s218 = sphi 0, %s216
      %s219 = sphi 0, %s218
      %s233 = sphi 0, %s219
      %s237 = sphi 0, %s237
      %s239 = sphi 0, %s237
      %s240 = sphi 0, %s239
      %s254 = sphi 0, %s240
      %s258 = sphi 0, %s258
      %s260 = sphi 0, %s258
      %s261 = sphi 0, %s260
      %s275 = sphi 0, %s261
      %s279 = sphi 0, %s279
      %s281 = sphi 0, %s279
      %s282 = sphi 0, %s281
      %s296 = sphi 0, %s282
      %s300 = sphi 0, %s300
      %s302 = sphi 0, %s300
      %s303 = sphi 0, %s302
      %s317 = sphi 0, %s303
      %s325 = sphi 0, %s327
      %s328 = sphi 0, %s325
      %s329 = sphi 0, %s328
      %s345 = sphi 0, %s329
    $region4: #{tpu_custom_call.1} parent=1 // loop_header_branch
      %26 = sbr.rel (%p24) target = $region8
    $region5: #{tpu_custom_call.1} parent=1 // loop_body
      %s28 = ssub.s32 %s23, 1
      %s29 = ssub.s32 %s23, 2
      %s36 = sadd.s32 1, %s31
      %p37 = scmp.ge.s32.totalorder %s36, 1
      %s38 = scalar_select %p37, 0, %s36
      %s39 = sadd.s32 1, %s30
      %s40 = scalar_select %p37, %s39, %s30
      %p41 = scmp.ge.s32.totalorder %s40, 2
      %s42 = scalar_select %p41, 0, %s40
      %s43 = ssub.s32 %s30, %s42
      %p44 = scmp.eq.s32.totalorder %s43, 0
      %s46 = sadd.s32 %s45, 1
      %s47 = scalar_select %p44, %s45, %s46
      %p50 = pneg %p44
      %p51 = scmp.eq.s32.totalorder %s23, 1
      %p52 = por %p50, %p51
      %p53 = scmp.ne.s32.totalorder %s45, %s48
      %p54 = scmp.eq.s32.totalorder %s23, 0
      %p55 = por %p53, %p54
      %p56 = scmp.ne.s32.totalorder %s45, %s48
      %p57 = scmp.eq.s32.totalorder %s28, 1
      %p58 = por %p56, %p57
      %p59 = scmp.ne.s32.totalorder %s48, %s49
      %p60 = scmp.eq.s32.totalorder %s28, 0
      %p61 = por %p59, %p60
      %p62 = scmp.ne.s32.totalorder %s48, %s49
      %p63 = scmp.eq.s32.totalorder %s29, 1
      %p64 = por %p62, %p63
      %p66 = scmp.ne.s32.totalorder %s49, %s65
      %p67 = scmp.eq.s32.totalorder %s29, 0
      %p68 = por %p66, %p67
      %s70 = sadd.s32 %s69, 1
      %p73 = scmp.eq.s32.totalorder %s23, 1
      %p74 = scmp.ne.s32.totalorder %s69, %s71
      %p75 = scmp.eq.s32.totalorder %s23, 0
      %p76 = por %p74, %p75
      %p77 = scmp.ne.s32.totalorder %s69, %s71
      %p78 = scmp.eq.s32.totalorder %s28, 1
      %p79 = por %p77, %p78
      %p80 = scmp.ne.s32.totalorder %s71, %s72
      %p81 = scmp.eq.s32.totalorder %s28, 0
      %p82 = por %p80, %p81
      %p83 = scmp.ne.s32.totalorder %s71, %s72
      %p84 = scmp.eq.s32.totalorder %s29, 1
      %p85 = por %p83, %p84
      %p87 = scmp.ne.s32.totalorder %s72, %s86
      %p88 = scmp.eq.s32.totalorder %s29, 0
      %p89 = por %p87, %p88
      %s91 = sadd.s32 %s90, 1
      %p94 = scmp.eq.s32.totalorder %s23, 1
      %p95 = scmp.ne.s32.totalorder %s90, %s92
      %p96 = scmp.eq.s32.totalorder %s23, 0
      %p97 = por %p95, %p96
      %p98 = scmp.ne.s32.totalorder %s90, %s92
      %p99 = scmp.eq.s32.totalorder %s28, 1
      %p100 = por %p98, %p99
      %p101 = scmp.ne.s32.totalorder %s92, %s93
      %p102 = scmp.eq.s32.totalorder %s28, 0
      %p103 = por %p101, %p102
      %p104 = scmp.ne.s32.totalorder %s92, %s93
      %p105 = scmp.eq.s32.totalorder %s29, 1
      %p106 = por %p104, %p105
      %p108 = scmp.ne.s32.totalorder %s93, %s107
      %p109 = scmp.eq.s32.totalorder %s29, 0
      %p110 = por %p108, %p109
      %s112 = sadd.s32 %s111, 1
      %p115 = scmp.eq.s32.totalorder %s23, 1
      %p116 = scmp.ne.s32.totalorder %s111, %s113
      %p117 = scmp.eq.s32.totalorder %s23, 0
      %p118 = por %p116, %p117
      %p119 = scmp.ne.s32.totalorder %s111, %s113
      %p120 = scmp.eq.s32.totalorder %s28, 1
      %p121 = por %p119, %p120
      %p122 = scmp.ne.s32.totalorder %s113, %s114
      %p123 = scmp.eq.s32.totalorder %s28, 0
      %p124 = por %p122, %p123
      %p125 = scmp.ne.s32.totalorder %s113, %s114
      %p126 = scmp.eq.s32.totalorder %s29, 1
      %p127 = por %p125, %p126
      %p129 = scmp.ne.s32.totalorder %s114, %s128
      %p130 = scmp.eq.s32.totalorder %s29, 0
      %p131 = por %p129, %p130
      %s133 = sadd.s32 %s132, 1
      %p136 = scmp.eq.s32.totalorder %s23, 1
      %p137 = scmp.ne.s32.totalorder %s132, %s134
      %p138 = scmp.eq.s32.totalorder %s23, 0
      %p139 = por %p137, %p138
      %p140 = scmp.ne.s32.totalorder %s132, %s134
      %p141 = scmp.eq.s32.totalorder %s28, 1
      %p142 = por %p140, %p141
      %p143 = scmp.ne.s32.totalorder %s134, %s135
      %p144 = scmp.eq.s32.totalorder %s28, 0
      %p145 = por %p143, %p144
      %p146 = scmp.ne.s32.totalorder %s134, %s135
      %p147 = scmp.eq.s32.totalorder %s29, 1
      %p148 = por %p146, %p147
      %p150 = scmp.ne.s32.totalorder %s135, %s149
      %p151 = scmp.eq.s32.totalorder %s29, 0
      %p152 = por %p150, %p151
      %s154 = sadd.s32 %s153, 1
      %p157 = scmp.eq.s32.totalorder %s23, 1
      %p158 = scmp.ne.s32.totalorder %s153, %s155
      %p159 = scmp.eq.s32.totalorder %s23, 0
      %p160 = por %p158, %p159
      %p161 = scmp.ne.s32.totalorder %s153, %s155
      %p162 = scmp.eq.s32.totalorder %s28, 1
      %p163 = por %p161, %p162
      %p164 = scmp.ne.s32.totalorder %s155, %s156
      %p165 = scmp.eq.s32.totalorder %s28, 0
      %p166 = por %p164, %p165
      %p167 = scmp.ne.s32.totalorder %s155, %s156
      %p168 = scmp.eq.s32.totalorder %s29, 1
      %p169 = por %p167, %p168
      %p171 = scmp.ne.s32.totalorder %s156, %s170
      %p172 = scmp.eq.s32.totalorder %s29, 0
      %p173 = por %p171, %p172
      %s175 = sadd.s32 %s174, 1
      %p178 = scmp.eq.s32.totalorder %s23, 1
      %p179 = scmp.ne.s32.totalorder %s174, %s176
      %p180 = scmp.eq.s32.totalorder %s23, 0
      %p181 = por %p179, %p180
      %p182 = scmp.ne.s32.totalorder %s174, %s176
      %p183 = scmp.eq.s32.totalorder %s28, 1
      %p184 = por %p182, %p183
      %p185 = scmp.ne.s32.totalorder %s176, %s177
      %p186 = scmp.eq.s32.totalorder %s28, 0
      %p187 = por %p185, %p186
      %p188 = scmp.ne.s32.totalorder %s176, %s177
      %p189 = scmp.eq.s32.totalorder %s29, 1
      %p190 = por %p188, %p189
      %p192 = scmp.ne.s32.totalorder %s177, %s191
      %p193 = scmp.eq.s32.totalorder %s29, 0
      %p194 = por %p192, %p193
      %s196 = sadd.s32 %s195, 1
      %p199 = scmp.eq.s32.totalorder %s23, 1
      %p200 = scmp.ne.s32.totalorder %s195, %s197
      %p201 = scmp.eq.s32.totalorder %s23, 0
      %p202 = por %p200, %p201
      %p203 = scmp.ne.s32.totalorder %s195, %s197
      %p204 = scmp.eq.s32.totalorder %s28, 1
      %p205 = por %p203, %p204
      %p206 = scmp.ne.s32.totalorder %s197, %s198
      %p207 = scmp.eq.s32.totalorder %s28, 0
      %p208 = por %p206, %p207
      %p209 = scmp.ne.s32.totalorder %s197, %s198
      %p210 = scmp.eq.s32.totalorder %s29, 1
      %p211 = por %p209, %p210
      %p213 = scmp.ne.s32.totalorder %s198, %s212
      %p214 = scmp.eq.s32.totalorder %s29, 0
      %p215 = por %p213, %p214
      %s217 = sadd.s32 %s216, 1
      %p220 = scmp.eq.s32.totalorder %s23, 1
      %p221 = scmp.ne.s32.totalorder %s216, %s218
      %p222 = scmp.eq.s32.totalorder %s23, 0
      %p223 = por %p221, %p222
      %p224 = scmp.ne.s32.totalorder %s216, %s218
      %p225 = scmp.eq.s32.totalorder %s28, 1
      %p226 = por %p224, %p225
      %p227 = scmp.ne.s32.totalorder %s218, %s219
      %p228 = scmp.eq.s32.totalorder %s28, 0
      %p229 = por %p227, %p228
      %p230 = scmp.ne.s32.totalorder %s218, %s219
      %p231 = scmp.eq.s32.totalorder %s29, 1
      %p232 = por %p230, %p231
      %p234 = scmp.ne.s32.totalorder %s219, %s233
      %p235 = scmp.eq.s32.totalorder %s29, 0
      %p236 = por %p234, %p235
      %s238 = sadd.s32 %s237, 1
      %p241 = scmp.eq.s32.totalorder %s23, 1
      %p242 = scmp.ne.s32.totalorder %s237, %s239
      %p243 = scmp.eq.s32.totalorder %s23, 0
      %p244 = por %p242, %p243
      %p245 = scmp.ne.s32.totalorder %s237, %s239
      %p246 = scmp.eq.s32.totalorder %s28, 1
      %p247 = por %p245, %p246
      %p248 = scmp.ne.s32.totalorder %s239, %s240
      %p249 = scmp.eq.s32.totalorder %s28, 0
      %p250 = por %p248, %p249
      %p251 = scmp.ne.s32.totalorder %s239, %s240
      %p252 = scmp.eq.s32.totalorder %s29, 1
      %p253 = por %p251, %p252
      %p255 = scmp.ne.s32.totalorder %s240, %s254
      %p256 = scmp.eq.s32.totalorder %s29, 0
      %p257 = por %p255, %p256
      %s259 = sadd.s32 %s258, 1
      %p262 = scmp.eq.s32.totalorder %s23, 1
      %p263 = scmp.ne.s32.totalorder %s258, %s260
      %p264 = scmp.eq.s32.totalorder %s23, 0
      %p265 = por %p263, %p264
      %p266 = scmp.ne.s32.totalorder %s258, %s260
      %p267 = scmp.eq.s32.totalorder %s28, 1
      %p268 = por %p266, %p267
      %p269 = scmp.ne.s32.totalorder %s260, %s261
      %p270 = scmp.eq.s32.totalorder %s28, 0
      %p271 = por %p269, %p270
      %p272 = scmp.ne.s32.totalorder %s260, %s261
      %p273 = scmp.eq.s32.totalorder %s29, 1
      %p274 = por %p272, %p273
      %p276 = scmp.ne.s32.totalorder %s261, %s275
      %p277 = scmp.eq.s32.totalorder %s29, 0
      %p278 = por %p276, %p277
      %s280 = sadd.s32 %s279, 1
      %p283 = scmp.eq.s32.totalorder %s23, 1
      %p284 = scmp.ne.s32.totalorder %s279, %s281
      %p285 = scmp.eq.s32.totalorder %s23, 0
      %p286 = por %p284, %p285
      %p287 = scmp.ne.s32.totalorder %s279, %s281
      %p288 = scmp.eq.s32.totalorder %s28, 1
      %p289 = por %p287, %p288
      %p290 = scmp.ne.s32.totalorder %s281, %s282
      %p291 = scmp.eq.s32.totalorder %s28, 0
      %p292 = por %p290, %p291
      %p293 = scmp.ne.s32.totalorder %s281, %s282
      %p294 = scmp.eq.s32.totalorder %s29, 1
      %p295 = por %p293, %p294
      %p297 = scmp.ne.s32.totalorder %s282, %s296
      %p298 = scmp.eq.s32.totalorder %s29, 0
      %p299 = por %p297, %p298
      %s301 = sadd.s32 %s300, 1
      %p304 = scmp.eq.s32.totalorder %s23, 1
      %p305 = scmp.ne.s32.totalorder %s300, %s302
      %p306 = scmp.eq.s32.totalorder %s23, 0
      %p307 = por %p305, %p306
      %p308 = scmp.ne.s32.totalorder %s300, %s302
      %p309 = scmp.eq.s32.totalorder %s28, 1
      %p310 = por %p308, %p309
      %p311 = scmp.ne.s32.totalorder %s302, %s303
      %p312 = scmp.eq.s32.totalorder %s28, 0
      %p313 = por %p311, %p312
      %p314 = scmp.ne.s32.totalorder %s302, %s303
      %p315 = scmp.eq.s32.totalorder %s29, 1
      %p316 = por %p314, %p315
      %p318 = scmp.ne.s32.totalorder %s303, %s317
      %p319 = scmp.eq.s32.totalorder %s29, 0
      %p320 = por %p318, %p319
      %s321 = ssub.s32 %s30, %s42
      %s322 = ssub.s32 %s31, %s38
      %s323 = sor.u32 %s321, %s322
      %p324 = scmp.eq.s32.totalorder %s323, 0
      %s326 = sadd.s32 %s325, 1
      %s327 = scalar_select %p324, %s325, %s326
      %p330 = pneg %p324
      %p331 = scmp.eq.s32.totalorder %s23, 1
      %p332 = por %p330, %p331
      %p333 = scmp.ne.s32.totalorder %s325, %s328
      %p334 = scmp.eq.s32.totalorder %s23, 0
      %p335 = por %p333, %p334
      %p336 = scmp.ne.s32.totalorder %s325, %s328
      %p337 = scmp.eq.s32.totalorder %s28, 1
      %p338 = por %p336, %p337
      %p339 = scmp.ne.s32.totalorder %s328, %s329
      %p340 = scmp.eq.s32.totalorder %s28, 0
      %p341 = por %p339, %p340
      %p342 = scmp.ne.s32.totalorder %s328, %s329
      %p343 = scmp.eq.s32.totalorder %s29, 1
      %p344 = por %p342, %p343
      %p346 = scmp.ne.s32.totalorder %s329, %s345
      %p347 = scmp.eq.s32.totalorder %s29, 0
      %p348 = por %p346, %p347
      %p349 = scmp.le.s32.totalorder 1, %s23
      %p350 = scmp.lt.s32.totalorder %s23, 3
      %p351 = pnand %p349, %p350
      %p352 = pneg %p351
      // Predicated region
      $region9: #{tpu_custom_call.1} parent=5 // pred_check
        _
      $region10: #{tpu_custom_call.1} parent=5 // pred_check_branch
        %354 = sbr.rel (%p351) target = $region12
      $region11: #{tpu_custom_call.1} parent=5 // pred_region
        %s355 = ssub.s32 %s23, 1
        // Predicated region
        $region13: #{tpu_custom_call.1} parent=11 // pred_check
          %p356 = pneg %p82
        $region14: #{tpu_custom_call.1} parent=11 // pred_check_branch
          %358 = sbr.rel (%p356) target = $region16
        $region15: #{tpu_custom_call.1} parent=11 // pred_region
          _
        $region16: #{tpu_custom_call.1} parent=11 // pred_fallthru
          _
        // Predicated region
        $region17: #{tpu_custom_call.1} parent=11 // pred_check
          %p359 = pneg %p103
        $region18: #{tpu_custom_call.1} parent=11 // pred_check_branch
          %361 = sbr.rel (%p359) target = $region20
        $region19: #{tpu_custom_call.1} parent=11 // pred_region
          _
        $region20: #{tpu_custom_call.1} parent=11 // pred_fallthru
          _
        // Predicated region
        $region21: #{tpu_custom_call.1} parent=11 // pred_check
          %p362 = pneg %p124
        $region22: #{tpu_custom_call.1} parent=11 // pred_check_branch
          %364 = sbr.rel (%p362) target = $region24
        $region23: #{tpu_custom_call.1} parent=11 // pred_region
          _
        $region24: #{tpu_custom_call.1} parent=11 // pred_fallthru
          _
        // Predicated region
        $region25: #{tpu_custom_call.1} parent=11 // pred_check
          %p365 = pneg %p145
        $region26: #{tpu_custom_call.1} parent=11 // pred_check_branch
          %367 = sbr.rel (%p365) target = $region28
        $region27: #{tpu_custom_call.1} parent=11 // pred_region
          _
        $region28: #{tpu_custom_call.1} parent=11 // pred_fallthru
          _
        // Predicated region
        $region29: #{tpu_custom_call.1} parent=11 // pred_check
          %p368 = pneg %p166
        $region30: #{tpu_custom_call.1} parent=11 // pred_check_branch
          %370 = sbr.rel (%p368) target = $region32
        $region31: #{tpu_custom_call.1} parent=11 // pred_region
          _
        $region32: #{tpu_custom_call.1} parent=11 // pred_fallthru
          _
        // Predicated region
        $region33: #{tpu_custom_call.1} parent=11 // pred_check
          %p371 = pneg %p187
        $region34: #{tpu_custom_call.1} parent=11 // pred_check_branch
          %373 = sbr.rel (%p371) target = $region36
        $region35: #{tpu_custom_call.1} parent=11 // pred_region
          _
        $region36: #{tpu_custom_call.1} parent=11 // pred_fallthru
          _
        // Predicated region
        $region37: #{tpu_custom_call.1} parent=11 // pred_check
          %p374 = pneg %p208
        $region38: #{tpu_custom_call.1} parent=11 // pred_check_branch
          %376 = sbr.rel (%p374) target = $region40
        $region39: #{tpu_custom_call.1} parent=11 // pred_region
          _
        $region40: #{tpu_custom_call.1} parent=11 // pred_fallthru
          _
        // Predicated region
        $region41: #{tpu_custom_call.1} parent=11 // pred_check
          %p377 = pneg %p229
        $region42: #{tpu_custom_call.1} parent=11 // pred_check_branch
          %379 = sbr.rel (%p377) target = $region44
        $region43: #{tpu_custom_call.1} parent=11 // pred_region
          %s381 = ssub.s32 16, 16
          %382 = vsyncadd [#allocation5], %s381
          %s384 = sshll.u32 [#allocation4], 4
          %s385 = int_to_ptr.vmem [resolvable:$true] %s384
          %387 = dma.hbm_to_vmem [thread:$0]  %s8, 16, %s385, [#allocation5]
        $region44: #{tpu_custom_call.1} parent=11 // pred_fallthru
          _
        // Predicated region
        $region45: #{tpu_custom_call.1} parent=11 // pred_check
          %p388 = pneg %p250
        $region46: #{tpu_custom_call.1} parent=11 // pred_check_branch
          %390 = sbr.rel (%p388) target = $region48
        $region47: #{tpu_custom_call.1} parent=11 // pred_region
          _
        $region48: #{tpu_custom_call.1} parent=11 // pred_fallthru
          _
        // Predicated region
        $region49: #{tpu_custom_call.1} parent=11 // pred_check
          %p391 = pneg %p271
        $region50: #{tpu_custom_call.1} parent=11 // pred_check_branch
          %393 = sbr.rel (%p391) target = $region52
        $region51: #{tpu_custom_call.1} parent=11 // pred_region
          _
        $region52: #{tpu_custom_call.1} parent=11 // pred_fallthru
          _
        // Predicated region
        $region53: #{tpu_custom_call.1} parent=11 // pred_check
          %p394 = pneg %p292
        $region54: #{tpu_custom_call.1} parent=11 // pred_check_branch
          %396 = sbr.rel (%p394) target = $region56
        $region55: #{tpu_custom_call.1} parent=11 // pred_region
          _
        $region56: #{tpu_custom_call.1} parent=11 // pred_fallthru
          _
        // Predicated region
        $region57: #{tpu_custom_call.1} parent=11 // pred_check
          %p397 = pneg %p313
        $region58: #{tpu_custom_call.1} parent=11 // pred_check_branch
          %399 = sbr.rel (%p397) target = $region60
        $region59: #{tpu_custom_call.1} parent=11 // pred_region
          _
        $region60: #{tpu_custom_call.1} parent=11 // pred_fallthru
          _
      $region12: #{tpu_custom_call.1} parent=5 // pred_fallthru
        _
      %p400 = scmp.lt.s32.totalorder %s23, 2
      // Predicated region
      $region61: #{tpu_custom_call.1} parent=5 // pred_check
        %p401 = pneg %p400
      $region62: #{tpu_custom_call.1} parent=5 // pred_check_branch
        %403 = sbr.rel (%p401) target = $region64
      $region63: #{tpu_custom_call.1} parent=5 // pred_region
        // Predicated region
        $region65: #{tpu_custom_call.1} parent=63 // pred_check
          %p404 = pneg %p55
        $region66: #{tpu_custom_call.1} parent=63 // pred_check_branch
          %406 = sbr.rel (%p404) target = $region68
        $region67: #{tpu_custom_call.1} parent=63 // pred_region
          %p407 = scmp.lt.s32.totalorder %s30, 1
          %s408 = scalar_select %p407, %s30, 1
          %s409 = smul.addr %s408, 8
          %s410 = scalar_lea.vmem %s0, %s409
        $region68: #{tpu_custom_call.1} parent=63 // pred_fallthru
          _
      $region64: #{tpu_custom_call.1} parent=5 // pred_fallthru
        _
      %p411 = scmp.le.s32.totalorder 1, %s23
      %p412 = scmp.lt.s32.totalorder %s23, 3
      %p413 = pnand %p411, %p412
      %p414 = pneg %p413
      // Predicated region
      $region69: #{tpu_custom_call.1} parent=5 // pred_check
        _
      $region70: #{tpu_custom_call.1} parent=5 // pred_check_branch
        %416 = sbr.rel (%p413) target = $region72
      $region71: #{tpu_custom_call.1} parent=5 // pred_region
        %s417 = ssub.s32 %s23, 1
        // Predicated region
        $region73: #{tpu_custom_call.1} parent=71 // pred_check
          %p418 = pneg %p229
        $region74: #{tpu_custom_call.1} parent=71 // pred_check_branch
          %420 = sbr.rel (%p418) target = $region76
        $region75: #{tpu_custom_call.1} parent=71 // pred_region
          %421 = dma.done [#allocation5], 16
        $region76: #{tpu_custom_call.1} parent=71 // pred_fallthru
          _
        %p422 = scmp.lt.s32.totalorder %s32, 1
        %s423 = scalar_select %p422, %s32, 1
        %s424 = smul.addr %s423, 8
        %s425 = scalar_lea.vmem %s0, %s424
        %p426 = pneg %p61
        %p427 = pneg %p58
        %p428 = pneg %p82
        %p429 = pneg %p79
        %p430 = pneg %p103
        %p431 = pneg %p100
        %p432 = pneg %p124
        %p433 = pneg %p121
        %p434 = pneg %p145
        %p435 = pneg %p142
        %p436 = pneg %p166
        %p437 = pneg %p163
        %p438 = pneg %p187
        %p439 = pneg %p184
        %p440 = pneg %p208
        %p441 = pneg %p205
        %p442 = pneg %p229
        %p443 = pneg %p226
        %p444 = pneg %p250
        %p445 = pneg %p247
        %p446 = pneg %p271
        %p447 = pneg %p268
        %p448 = pneg %p292
        %p449 = pneg %p289
        %p450 = pneg %p313
        %p451 = pneg %p310
        %p452 = pneg %p341
        %p453 = pneg %p338
        %s454 = sand.u32 %s328, 1
        %s455 = scalar_lea.sflag [#allocation6], %s454
        %s456 = sand.u32 %s328, 1
        %s457 = smul.addr %s456, 8
        %s458 = scalar_lea.vmem [#allocation7], %s457
        %p459 = scmp.lt.s32.totalorder %s32, 1
        %s460 = scalar_select %p459, %s32, 1
        %s461 = smul.addr %s460, 8
        %s462 = scalar_lea.vmem %s0, %s461
        %s464 = smul.u32 %s33, 8
        %v465 = vld [vmem:[%s3] sm:$0x1]
        %p466 = scmp.eq.s32.totalorder %s33, 0
        // Predicated region
        $region77: #{tpu_custom_call.1} parent=71 // pred_check
          %p467 = pneg %p466
        $region78: #{tpu_custom_call.1} parent=71 // pred_check_branch
          %469 = sbr.rel (%p467) target = $region80
        $region79: #{tpu_custom_call.1} parent=71 // pred_region
          %v470 = vld [vmem:[%s462] sm:$0xff]
          %v471 = vmul.f32 %v470, %v470
          %vm472 = vcmask 261120
          %v473 = vsel %vm472, %v471, 0.0
          %474 = vadd.xlane.f32.xlu0 %v473
          %v475 = vpop.xlane.xlu0 %474
          %v476 = vrcp.pop 32.0
          %v477 = vmul.f32 %v475, %v476
          %v478 = vadd.f32 %v477, 1e-05
          %v479 = vrsqrt.pop %v478
          %v480 = vmul.f32 %v470, %v479
          %v482 = vlaneseq
          %v483 = vshrl.u32 %v482, 7
          %v484 = vsub.s32 0, %v483
          %v485 = vrot.slane %v465, %v484
          %v487 = vmul.f32 %v480, %v485
          %v488 = vpack.c.bf16 %v487, %v487
          %v489 = vld [vmem:[%s5] sm:$0xf]
          %v490 = vld [vmem:[%s5 + $0x4] sm:$0xf]
          %v491 = vld [vmem:[%s5 + $0x8] sm:$0xf]
          %v492 = vld [vmem:[%s5 + $0xc] sm:$0xf]
          %v497 = vunpack.c.l.b16 %v489
          %v498 = vunpack.c.l.b16 %v490
          %v499 = vunpack.c.l.b16 %v491
          %v500 = vunpack.c.l.b16 %v492
          %v501 = vpack.c.b16 %v498, %v497
          %v502 = vpack.c.b16 %v500, %v499
          %v506 = vsel %vm472, %v488, 0
          %508 = vmatprep.subr.bf16.mxu0 0
          %509 = vmatpush1.bf16.msra.mxu0 %v501
          %510 = vmatprep.subr.bf16.mxu0 0
          %511 = vmatpush1.bf16.msra.mxu0 %v502
          %512 = vmatprep.subr.bf16.mxu0 0
          %513 = vmatpush1.bf16.msra.mxu0 0
          %514 = vmatprep.subr.bf16.mxu0 0
          %515 = vmatpush1.bf16.msra.mxu0 0
          %516 = vmatprep.subr.bf16.mxu0 0
          %517 = vmatpush1.bf16.msra.mxu0 0
          %518 = vmatprep.subr.bf16.mxu0 0
          %519 = vmatpush1.bf16.msra.mxu0 0
          %520 = vmatprep.subr.bf16.mxu0 0
          %521 = vmatpush1.bf16.msra.mxu0 0
          %522 = vmatprep.subr.bf16.mxu0 0
          %523 = vmatpush1.bf16.msra.mxu0 0
          %524 = vmatprep.subr.bf16.mxu0 0
          %525 = vmatpush1.bf16.msra.mxu0 0
          %526 = vmatprep.subr.bf16.mxu0 0
          %527 = vmatpush1.bf16.msra.mxu0 0
          %528 = vmatprep.subr.bf16.mxu0 0
          %529 = vmatpush1.bf16.msra.mxu0 0
          %530 = vmatprep.subr.bf16.mxu0 0
          %531 = vmatpush1.bf16.msra.mxu0 0
          %532 = vmatprep.subr.bf16.mxu0 0
          %533 = vmatpush1.bf16.msra.mxu0 0
          %534 = vmatprep.subr.bf16.mxu0 0
          %535 = vmatpush1.bf16.msra.mxu0 0
          %536 = vmatprep.subr.bf16.mxu0 0
          %537 = vmatpush1.bf16.msra.mxu0 0
          %538 = vmatprep.subr.bf16.mxu0 0
          %539 = vmatpush1.bf16.msra.mxu0 0
          %540 = vmatprep.mubr.bf16.mxu0 0
          %541 = vmatmul.mubr.bf16.gmra.mrb[0].mxu0 %v506
          %v542 = vpop.f32.mrb[0].mxu0
          %v543 = vadd.f32 0.0, %v542
          %v544 = vpop.f32.mrb[0].mxu0
          %v545 = vpop.f32.mrb[0].mxu0
          %v546 = vpop.f32.mrb[0].mxu0
          %547 = vdwg.mxu0
          %v548 = vld [vmem:[%s1] sm:$0xff]
          %550 = vrot.lane.b32.xlu0 %v548, 4
          %v551 = vpop.permute.xlu0 %550
          %553 = vrot.lane.b32.xlu0 %v548, 8
          %v554 = vpop.permute.xlu0 %553
          %556 = vrot.lane.b32.xlu0 %v548, 12
          %v557 = vpop.permute.xlu0 %556
          %vm559 = vcmask 31744
          %v560 = vsel %vm559, %v548, %v551
          %vm561 = vcmask 64512
          %v562 = vsel %vm561, %v560, %v554
          %vm563 = vcmask 97280
          %v564 = vsel %vm563, %v562, %v557
          %v565 = vld [vmem:[%s2] sm:$0xff]
          %567 = vrot.lane.b32.xlu0 %v565, 4
          %v568 = vpop.permute.xlu0 %567
          %570 = vrot.lane.b32.xlu0 %v565, 8
          %v571 = vpop.permute.xlu0 %570
          %573 = vrot.lane.b32.xlu0 %v565, 12
          %v574 = vpop.permute.xlu0 %573
          %v576 = vsel %vm559, %v565, %v568
          %v577 = vsel %vm561, %v576, %v571
          %v578 = vsel %vm563, %v577, %v574
          %v579 = vmul.f32 %v543, %v564
          %581 = vrot.lane.b32.xlu0 %v578, 16
          %v582 = vpop.permute.xlu0 %581
          %v584 = vmul.f32 %v543, %v582
          %586 = vrot.lane.b32.xlu0 %v584, 112
          %v587 = vpop.permute.xlu0 %586
          %v589 = vsub.f32 %v579, %v587
          %v590 = vmul.f32 %v543, %v578
          %592 = vrot.lane.b32.xlu0 %v564, 16
          %v593 = vpop.permute.xlu0 %592
          %v595 = vmul.f32 %v543, %v593
          %597 = vrot.lane.b32.xlu0 %v595, 112
          %v598 = vpop.permute.xlu0 %597
          %v600 = vadd.f32 %v590, %v598
          %601 = vxpose.xlu0.b32.start [1/16] %v589, 128
          %602 = vxpose.xlu0.b32.cont [2/16] 0.0, 128
          %603 = vxpose.xlu0.b32.cont [3/16] 0.0, 128
          %604 = vxpose.xlu0.b32.cont [4/16] 0.0, 128
          %605 = vxpose.xlu0.b32.cont [5/16] 0.0, 128
          %606 = vxpose.xlu0.b32.cont [6/16] 0.0, 128
          %607 = vxpose.xlu0.b32.cont [7/16] 0.0, 128
          %608 = vxpose.xlu0.b32.cont [8/16] 0.0, 128
          %609 = vxpose.xlu0.b32.cont [9/16] 0.0, 128
          %610 = vxpose.xlu0.b32.cont [10/16] 0.0, 128
          %611 = vxpose.xlu0.b32.cont [11/16] 0.0, 128
          %612 = vxpose.xlu0.b32.cont [12/16] 0.0, 128
          %613 = vxpose.xlu0.b32.cont [13/16] 0.0, 128
          %614 = vxpose.xlu0.b32.cont [14/16] 0.0, 128
          %615 = vxpose.xlu0.b32.cont [15/16] 0.0, 128
          %616 = vxpose.xlu0.b32.end [16/16] 0.0, 128
          %v617 = vpop.trf.xlu0
          %v618 = vpop.trf.xlu0
          %v619 = vpop.trf.xlu0
          %v620 = vpop.trf.xlu0
          %v621 = vpop.trf.xlu0
          %v622 = vpop.trf.xlu0
          %v623 = vpop.trf.xlu0
          %v624 = vpop.trf.xlu0
          %v625 = vpop.trf.xlu0
          %v626 = vpop.trf.xlu0
          %v627 = vpop.trf.xlu0
          %v628 = vpop.trf.xlu0
          %v629 = vpop.trf.xlu0
          %v630 = vpop.trf.xlu0
          %v631 = vpop.trf.xlu0
          %v632 = vpop.trf.xlu0
          %v635 = vcombine.high %v617, %v617
          %v636 = vcombine.high %v618, %v618
          %639 = vxpose.xlu0.b32.start [1/16] %v600, 128
          %640 = vxpose.xlu0.b32.cont [2/16] 0.0, 128
          %641 = vxpose.xlu0.b32.cont [3/16] 0.0, 128
          %642 = vxpose.xlu0.b32.cont [4/16] 0.0, 128
          %643 = vxpose.xlu0.b32.cont [5/16] 0.0, 128
          %644 = vxpose.xlu0.b32.cont [6/16] 0.0, 128
          %645 = vxpose.xlu0.b32.cont [7/16] 0.0, 128
          %646 = vxpose.xlu0.b32.cont [8/16] 0.0, 128
          %647 = vxpose.xlu0.b32.cont [9/16] 0.0, 128
          %648 = vxpose.xlu0.b32.cont [10/16] 0.0, 128
          %649 = vxpose.xlu0.b32.cont [11/16] 0.0, 128
          %650 = vxpose.xlu0.b32.cont [12/16] 0.0, 128
          %651 = vxpose.xlu0.b32.cont [13/16] 0.0, 128
          %652 = vxpose.xlu0.b32.cont [14/16] 0.0, 128
          %653 = vxpose.xlu0.b32.cont [15/16] 0.0, 128
          %654 = vxpose.xlu0.b32.end [16/16] 0.0, 128
          %v655 = vpop.trf.xlu0
          %v656 = vpop.trf.xlu0
          %v657 = vpop.trf.xlu0
          %v658 = vpop.trf.xlu0
          %v659 = vpop.trf.xlu0
          %v660 = vpop.trf.xlu0
          %v661 = vpop.trf.xlu0
          %v662 = vpop.trf.xlu0
          %v663 = vpop.trf.xlu0
          %v664 = vpop.trf.xlu0
          %v665 = vpop.trf.xlu0
          %v666 = vpop.trf.xlu0
          %v667 = vpop.trf.xlu0
          %v668 = vpop.trf.xlu0
          %v669 = vpop.trf.xlu0
          %v670 = vpop.trf.xlu0
          %v673 = vcombine.high %v655, %v655
          %v674 = vcombine.high %v656, %v656
          %v675 = vcombine.low %v655, %v655
          %v676 = vcombine.low %v673, %v673
          %v677 = vcombine.low %v656, %v656
          %v678 = vcombine.low %v674, %v674
          %vm683 = vcmask 1043456
          %v684 = vsel %vm683, %v617, %v675
          %v685 = vsel %vm683, %v635, %v676
          %v686 = vsel %vm683, %v618, %v677
          %v687 = vsel %vm683, %v636, %v678
          %v688 = vpack.c.bf16 %v684, %v684
          %v689 = vpack.c.bf16 %v685, %v685
          %v690 = vpack.c.bf16 %v686, %v686
          %v691 = vpack.c.bf16 %v687, %v687
          %vm692 = vcmask 60416
          %693 = vst.msk [vmem:[#allocation2] sm:$0xf] %vm692, %v688
          %694 = vst.msk [vmem:[#allocation2 + $0x4] sm:$0xf] %vm692, %v689
          %695 = vst.msk [vmem:[#allocation2 + $0x8] sm:$0xf] %vm692, %v690
          %696 = vst.msk [vmem:[#allocation2 + $0xc] sm:$0xf] %vm692, %v691
          %698 = vrot.lane.b32.xlu0 %v543, 120
          %v699 = vpop.permute.xlu0 %698
          %700 = vrot.lane.b32.xlu0 %v543, 112
          %v701 = vpop.permute.xlu0 %700
          %702 = vrot.lane.b32.xlu0 %v543, 104
          %v703 = vpop.permute.xlu0 %702
          %704 = vrot.lane.b32.xlu0 %v543, 96
          %v705 = vpop.permute.xlu0 %704
          %706 = vrot.lane.b32.xlu0 %v699, 96
          %v707 = vpop.permute.xlu0 %706
          %708 = vrot.lane.b32.xlu0 %v701, 96
          %v709 = vpop.permute.xlu0 %708
          %710 = vrot.lane.b32.xlu0 %v703, 96
          %v711 = vpop.permute.xlu0 %710
          %v716 = vcombine.low %v705, %v709
          %v717 = vcombine.high %v705, %v709
          %v719 = vunpack.c.l.s4 1983009808
          %v720 = vunpack.c.0.s8 %v719
          %v721 = vlaneseq
          %v722 = vshrl.u32 %v721, 7
          %v723 = vsub.s32 %v720, %v722
          %v724 = vrot.slane %v716, %v723
          %v726 = vunpack.c.l.s4 1983009808
          %v727 = vunpack.c.0.s8 %v726
          %v728 = vlaneseq
          %v729 = vshrl.u32 %v728, 7
          %v730 = vsub.s32 %v727, %v729
          %v731 = vrot.slane %v717, %v730
          %v732 = vcombine.low %v707, %v711
          %v733 = vcombine.high %v707, %v711
          %v735 = vunpack.c.l.s4 1983009808
          %v736 = vunpack.c.0.s8 %v735
          %v737 = vlaneseq
          %v738 = vshrl.u32 %v737, 7
          %v739 = vsub.s32 %v736, %v738
          %v740 = vrot.slane %v732, %v739
          %v742 = vunpack.c.l.s4 1983009808
          %v743 = vunpack.c.0.s8 %v742
          %v744 = vlaneseq
          %v745 = vshrl.u32 %v744, 7
          %v746 = vsub.s32 %v743, %v745
          %v747 = vrot.slane %v733, %v746
          %v748 = vcombine.low %v724, %v740
          %v749 = vcombine.high %v724, %v740
          %v751 = vunpack.c.l.s4 1934713408
          %v752 = vunpack.c.0.s8 %v751
          %v753 = vlaneseq
          %v754 = vshrl.u32 %v753, 7
          %v755 = vsub.s32 %v752, %v754
          %v756 = vrot.slane %v748, %v755
          %v758 = vunpack.c.l.s4 1934713408
          %v759 = vunpack.c.0.s8 %v758
          %v760 = vlaneseq
          %v761 = vshrl.u32 %v760, 7
          %v762 = vsub.s32 %v759, %v761
          %v763 = vrot.slane %v749, %v762
          %v764 = vcombine.low %v731, %v747
          %v765 = vcombine.high %v731, %v747
          %v767 = vunpack.c.l.s4 1934713408
          %v768 = vunpack.c.0.s8 %v767
          %v769 = vlaneseq
          %v770 = vshrl.u32 %v769, 7
          %v771 = vsub.s32 %v768, %v770
          %v772 = vrot.slane %v764, %v771
          %v774 = vunpack.c.l.s4 1934713408
          %v775 = vunpack.c.0.s8 %v774
          %v776 = vlaneseq
          %v777 = vshrl.u32 %v776, 7
          %v778 = vsub.s32 %v775, %v777
          %v779 = vrot.slane %v765, %v778
          %v780 = vcombine.high %v756, 0.0
          %v781 = vcombine.high %v763, 0.0
          %v782 = vcombine.high %v772, 0.0
          %v783 = vcombine.high %v779, 0.0
          %v784 = vcombine.low %v756, %v763
          %v786 = vunpack.c.l.s4 1983009808
          %v787 = vunpack.c.0.s8 %v786
          %v788 = vlaneseq
          %v789 = vshrl.u32 %v788, 7
          %v790 = vsub.s32 %v787, %v789
          %v791 = vrot.slane %v784, %v790
          %v792 = vcombine.low %v780, %v781
          %v794 = vunpack.c.l.s4 1983009808
          %v795 = vunpack.c.0.s8 %v794
          %v796 = vlaneseq
          %v797 = vshrl.u32 %v796, 7
          %v798 = vsub.s32 %v795, %v797
          %v799 = vrot.slane %v792, %v798
          %v800 = vcombine.low %v772, %v779
          %v802 = vunpack.c.l.s4 1983009808
          %v803 = vunpack.c.0.s8 %v802
          %v804 = vlaneseq
          %v805 = vshrl.u32 %v804, 7
          %v806 = vsub.s32 %v803, %v805
          %v807 = vrot.slane %v800, %v806
          %v808 = vcombine.low %v782, %v783
          %v810 = vunpack.c.l.s4 1983009808
          %v811 = vunpack.c.0.s8 %v810
          %v812 = vlaneseq
          %v813 = vshrl.u32 %v812, 7
          %v814 = vsub.s32 %v811, %v813
          %v815 = vrot.slane %v808, %v814
          %v816 = vcombine.low %v791, %v799
          %v817 = vcombine.high %v791, %v799
          %v819 = vunpack.c.l.s4 1934713408
          %v820 = vunpack.c.0.s8 %v819
          %v821 = vlaneseq
          %v822 = vshrl.u32 %v821, 7
          %v823 = vsub.s32 %v820, %v822
          %v824 = vrot.slane %v816, %v823
          %v826 = vunpack.c.l.s4 1934713408
          %v827 = vunpack.c.0.s8 %v826
          %v828 = vlaneseq
          %v829 = vshrl.u32 %v828, 7
          %v830 = vsub.s32 %v827, %v829
          %v831 = vrot.slane %v817, %v830
          %v832 = vcombine.low %v807, %v815
          %v833 = vcombine.high %v807, %v815
          %v835 = vunpack.c.l.s4 1934713408
          %v836 = vunpack.c.0.s8 %v835
          %v837 = vlaneseq
          %v838 = vshrl.u32 %v837, 7
          %v839 = vsub.s32 %v836, %v838
          %v840 = vrot.slane %v832, %v839
          %v842 = vunpack.c.l.s4 1934713408
          %v843 = vunpack.c.0.s8 %v842
          %v844 = vlaneseq
          %v845 = vshrl.u32 %v844, 7
          %v846 = vsub.s32 %v843, %v845
          %v847 = vrot.slane %v833, %v846
          %v848 = vcombine.low %v824, %v840
          %v849 = vcombine.high %v824, %v840
          %v850 = vcombine.low %v831, %v847
          %v851 = vcombine.high %v831, %v847
          %v852 = vpack.c.bf16 %v848, %v848
          %v853 = vpack.c.bf16 %v849, %v849
          %v854 = vpack.c.bf16 %v850, %v850
          %v855 = vpack.c.bf16 %v851, %v851
          %856 = vst.msk [vmem:[#allocation3] sm:$0xf] %vm692, %v852
          %857 = vst.msk [vmem:[#allocation3 + $0x4] sm:$0xf] %vm692, %v853
          %858 = vst.msk [vmem:[#allocation3 + $0x8] sm:$0xf] %vm692, %v854
          %859 = vst.msk [vmem:[#allocation3 + $0xc] sm:$0xf] %vm692, %v855
        $region80: #{tpu_custom_call.1} parent=71 // pred_fallthru
          _
        %s860 = scalar_lea.vmem %s462, %s464
        %v861 = vld [vmem:[%s860] sm:$0xff]
        %v862 = vmul.f32 %v861, %v861
        %vm863 = vcmask 261120
        %v864 = vsel %vm863, %v862, 0.0
        %865 = vadd.xlane.f32.xlu0 %v864
        %v866 = vpop.xlane.xlu0 %865
        %v867 = vrcp.pop 32.0
        %v868 = vmul.f32 %v866, %v867
        %v869 = vadd.f32 %v868, 1e-05
        %v870 = vrsqrt.pop %v869
        %v871 = vmul.f32 %v861, %v870
        %v873 = vlaneseq
        %v874 = vshrl.u32 %v873, 7
        %v875 = vsub.s32 0, %v874
        %v876 = vrot.slane %v465, %v875
        %v878 = vmul.f32 %v871, %v876
        %v879 = vpack.c.bf16 %v878, %v878
        %v880 = vld [vmem:[%s4] sm:$0xf]
        %v881 = vld [vmem:[%s4 + $0x4] sm:$0xf]
        %v882 = vld [vmem:[%s4 + $0x8] sm:$0xf]
        %v883 = vld [vmem:[%s4 + $0xc] sm:$0xf]
        %v888 = vunpack.c.l.b16 %v880
        %v889 = vunpack.c.l.b16 %v881
        %v890 = vunpack.c.l.b16 %v882
        %v891 = vunpack.c.l.b16 %v883
        %v892 = vpack.c.b16 %v889, %v888
        %v893 = vpack.c.b16 %v891, %v890
        %v897 = vsel %vm863, %v879, 0
        %899 = vmatprep.subr.bf16.mxu0 0
        %900 = vmatpush1.bf16.msra.mxu0 %v892
        %901 = vmatprep.subr.bf16.mxu0 0
        %902 = vmatpush1.bf16.msra.mxu0 %v893
        %903 = vmatprep.subr.bf16.mxu0 0
        %904 = vmatpush1.bf16.msra.mxu0 0
        %905 = vmatprep.subr.bf16.mxu0 0
        %906 = vmatpush1.bf16.msra.mxu0 0
        %907 = vmatprep.subr.bf16.mxu0 0
        %908 = vmatpush1.bf16.msra.mxu0 0
        %909 = vmatprep.subr.bf16.mxu0 0
        %910 = vmatpush1.bf16.msra.mxu0 0
        %911 = vmatprep.subr.bf16.mxu0 0
        %912 = vmatpush1.bf16.msra.mxu0 0
        %913 = vmatprep.subr.bf16.mxu0 0
        %914 = vmatpush1.bf16.msra.mxu0 0
        %915 = vmatprep.subr.bf16.mxu0 0
        %916 = vmatpush1.bf16.msra.mxu0 0
        %917 = vmatprep.subr.bf16.mxu0 0
        %918 = vmatpush1.bf16.msra.mxu0 0
        %919 = vmatprep.subr.bf16.mxu0 0
        %920 = vmatpush1.bf16.msra.mxu0 0
        %921 = vmatprep.subr.bf16.mxu0 0
        %922 = vmatpush1.bf16.msra.mxu0 0
        %923 = vmatprep.subr.bf16.mxu0 0
        %924 = vmatpush1.bf16.msra.mxu0 0
        %925 = vmatprep.subr.bf16.mxu0 0
        %926 = vmatpush1.bf16.msra.mxu0 0
        %927 = vmatprep.subr.bf16.mxu0 0
        %928 = vmatpush1.bf16.msra.mxu0 0
        %929 = vmatprep.subr.bf16.mxu0 0
        %930 = vmatpush1.bf16.msra.mxu0 0
        %931 = vmatprep.mubr.bf16.mxu0 0
        %932 = vmatmul.mubr.bf16.gmra.mrb[0].mxu0 %v897
        %v933 = vpop.f32.mrb[0].mxu0
        %v934 = vadd.f32 0.0, %v933
        %v935 = vpop.f32.mrb[0].mxu0
        %v936 = vpop.f32.mrb[0].mxu0
        %v937 = vpop.f32.mrb[0].mxu0
        %938 = vdwg.mxu0
        %s939 = scalar_lea.vmem %s1, %s464
        %v940 = vld [vmem:[%s939] sm:$0xff]
        %942 = vrot.lane.b32.xlu0 %v940, 4
        %v943 = vpop.permute.xlu0 %942
        %945 = vrot.lane.b32.xlu0 %v940, 8
        %v946 = vpop.permute.xlu0 %945
        %948 = vrot.lane.b32.xlu0 %v940, 12
        %v949 = vpop.permute.xlu0 %948
        %vm951 = vcmask 31744
        %v952 = vsel %vm951, %v940, %v943
        %vm953 = vcmask 64512
        %v954 = vsel %vm953, %v952, %v946
        %vm955 = vcmask 97280
        %v956 = vsel %vm955, %v954, %v949
        %s957 = scalar_lea.vmem %s2, %s464
        %v958 = vld [vmem:[%s957] sm:$0xff]
        %960 = vrot.lane.b32.xlu0 %v958, 4
        %v961 = vpop.permute.xlu0 %960
        %963 = vrot.lane.b32.xlu0 %v958, 8
        %v964 = vpop.permute.xlu0 %963
        %966 = vrot.lane.b32.xlu0 %v958, 12
        %v967 = vpop.permute.xlu0 %966
        %v969 = vsel %vm951, %v958, %v961
        %v970 = vsel %vm953, %v969, %v964
        %v971 = vsel %vm955, %v970, %v967
        %v972 = vmul.f32 %v934, %v956
        %974 = vrot.lane.b32.xlu0 %v971, 16
        %v975 = vpop.permute.xlu0 %974
        %v977 = vmul.f32 %v934, %v975
        %979 = vrot.lane.b32.xlu0 %v977, 112
        %v980 = vpop.permute.xlu0 %979
        %v982 = vsub.f32 %v972, %v980
        %v983 = vmul.f32 %v934, %v971
        %985 = vrot.lane.b32.xlu0 %v956, 16
        %v986 = vpop.permute.xlu0 %985
        %v988 = vmul.f32 %v934, %v986
        %990 = vrot.lane.b32.xlu0 %v988, 112
        %v991 = vpop.permute.xlu0 %990
        %v993 = vadd.f32 %v983, %v991
        %v994 = vlaneseq
        %v995 = vshrl.u32 %v994, 7
        %v996 = vstv %s464
        %v997 = vadd.s32 %v996, %v995
        %v998 = vlaneseq
        %v999 = vand.u32 %v998, 127
        %vm1000 = vcmp.le.s32.totalorder %v999, %v997
        %1002 = vrot.lane.b32.xlu0 %v982, 124
        %v1003 = vpop.permute.xlu0 %1002
        %1005 = vrot.lane.b32.xlu0 %v982, 120
        %v1006 = vpop.permute.xlu0 %1005
        %1008 = vrot.lane.b32.xlu0 %v982, 116
        %v1009 = vpop.permute.xlu0 %1008
        %v1011 = vcombine.low %v982, %v1006
        %v1012 = vcombine.high %v982, %v1006
        %v1014 = vunpack.c.l.s4 1983009808
        %v1015 = vunpack.c.0.s8 %v1014
        %v1016 = vlaneseq
        %v1017 = vshrl.u32 %v1016, 7
        %v1018 = vsub.s32 %v1015, %v1017
        %v1019 = vrot.slane %v1011, %v1018
        %v1021 = vunpack.c.l.s4 1983009808
        %v1022 = vunpack.c.0.s8 %v1021
        %v1023 = vlaneseq
        %v1024 = vshrl.u32 %v1023, 7
        %v1025 = vsub.s32 %v1022, %v1024
        %v1026 = vrot.slane %v1012, %v1025
        %v1027 = vcombine.low %v1003, %v1009
        %v1028 = vcombine.high %v1003, %v1009
        %v1030 = vunpack.c.l.s4 1983009808
        %v1031 = vunpack.c.0.s8 %v1030
        %v1032 = vlaneseq
        %v1033 = vshrl.u32 %v1032, 7
        %v1034 = vsub.s32 %v1031, %v1033
        %v1035 = vrot.slane %v1027, %v1034
        %v1037 = vunpack.c.l.s4 1983009808
        %v1038 = vunpack.c.0.s8 %v1037
        %v1039 = vlaneseq
        %v1040 = vshrl.u32 %v1039, 7
        %v1041 = vsub.s32 %v1038, %v1040
        %v1042 = vrot.slane %v1028, %v1041
        %v1043 = vcombine.low %v1019, %v1035
        %v1044 = vcombine.high %v1019, %v1035
        %v1046 = vunpack.c.l.s4 1934713408
        %v1047 = vunpack.c.0.s8 %v1046
        %v1048 = vlaneseq
        %v1049 = vshrl.u32 %v1048, 7
        %v1050 = vsub.s32 %v1047, %v1049
        %v1051 = vrot.slane %v1043, %v1050
        %v1053 = vunpack.c.l.s4 1934713408
        %v1054 = vunpack.c.0.s8 %v1053
        %v1055 = vlaneseq
        %v1056 = vshrl.u32 %v1055, 7
        %v1057 = vsub.s32 %v1054, %v1056
        %v1058 = vrot.slane %v1044, %v1057
        %v1059 = vcombine.low %v1026, %v1042
        %v1060 = vcombine.high %v1026, %v1042
        %v1062 = vunpack.c.l.s4 1934713408
        %v1063 = vunpack.c.0.s8 %v1062
        %v1064 = vlaneseq
        %v1065 = vshrl.u32 %v1064, 7
        %v1066 = vsub.s32 %v1063, %v1065
        %v1067 = vrot.slane %v1059, %v1066
        %v1069 = vunpack.c.l.s4 1934713408
        %v1070 = vunpack.c.0.s8 %v1069
        %v1071 = vlaneseq
        %v1072 = vshrl.u32 %v1071, 7
        %v1073 = vsub.s32 %v1070, %v1072
        %v1074 = vrot.slane %v1060, %v1073
        %v1075 = vcombine.high %v1051, 0.0
        %v1076 = vcombine.high %v1058, 0.0
        %v1077 = vcombine.high %v1067, 0.0
        %v1078 = vcombine.high %v1074, 0.0
        %1080 = vrot.lane.b32.xlu0 %v993, 124
        %v1081 = vpop.permute.xlu0 %1080
        %1083 = vrot.lane.b32.xlu0 %v993, 120
        %v1084 = vpop.permute.xlu0 %1083
        %1086 = vrot.lane.b32.xlu0 %v993, 116
        %v1087 = vpop.permute.xlu0 %1086
        %v1089 = vcombine.low %v993, %v1084
        %v1090 = vcombine.high %v993, %v1084
        %v1092 = vunpack.c.l.s4 1983009808
        %v1093 = vunpack.c.0.s8 %v1092
        %v1094 = vlaneseq
        %v1095 = vshrl.u32 %v1094, 7
        %v1096 = vsub.s32 %v1093, %v1095
        %v1097 = vrot.slane %v1089, %v1096
        %v1099 = vunpack.c.l.s4 1983009808
        %v1100 = vunpack.c.0.s8 %v1099
        %v1101 = vlaneseq
        %v1102 = vshrl.u32 %v1101, 7
        %v1103 = vsub.s32 %v1100, %v1102
        %v1104 = vrot.slane %v1090, %v1103
        %v1105 = vcombine.low %v1081, %v1087
        %v1106 = vcombine.high %v1081, %v1087
        %v1108 = vunpack.c.l.s4 1983009808
        %v1109 = vunpack.c.0.s8 %v1108
        %v1110 = vlaneseq
        %v1111 = vshrl.u32 %v1110, 7
        %v1112 = vsub.s32 %v1109, %v1111
        %v1113 = vrot.slane %v1105, %v1112
        %v1115 = vunpack.c.l.s4 1983009808
        %v1116 = vunpack.c.0.s8 %v1115
        %v1117 = vlaneseq
        %v1118 = vshrl.u32 %v1117, 7
        %v1119 = vsub.s32 %v1116, %v1118
        %v1120 = vrot.slane %v1106, %v1119
        %v1121 = vcombine.low %v1097, %v1113
        %v1122 = vcombine.high %v1097, %v1113
        %v1124 = vunpack.c.l.s4 1934713408
        %v1125 = vunpack.c.0.s8 %v1124
        %v1126 = vlaneseq
        %v1127 = vshrl.u32 %v1126, 7
        %v1128 = vsub.s32 %v1125, %v1127
        %v1129 = vrot.slane %v1121, %v1128
        %v1131 = vunpack.c.l.s4 1934713408
        %v1132 = vunpack.c.0.s8 %v1131
        %v1133 = vlaneseq
        %v1134 = vshrl.u32 %v1133, 7
        %v1135 = vsub.s32 %v1132, %v1134
        %v1136 = vrot.slane %v1122, %v1135
        %v1137 = vcombine.low %v1104, %v1120
        %v1138 = vcombine.high %v1104, %v1120
        %v1140 = vunpack.c.l.s4 1934713408
        %v1141 = vunpack.c.0.s8 %v1140
        %v1142 = vlaneseq
        %v1143 = vshrl.u32 %v1142, 7
        %v1144 = vsub.s32 %v1141, %v1143
        %v1145 = vrot.slane %v1137, %v1144
        %v1147 = vunpack.c.l.s4 1934713408
        %v1148 = vunpack.c.0.s8 %v1147
        %v1149 = vlaneseq
        %v1150 = vshrl.u32 %v1149, 7
        %v1151 = vsub.s32 %v1148, %v1150
        %v1152 = vrot.slane %v1138, %v1151
        %v1153 = vcombine.high %v1129, 0.0
        %v1154 = vcombine.high %v1136, 0.0
        %v1155 = vcombine.high %v1145, 0.0
        %v1156 = vcombine.high %v1152, 0.0
        %1165 = vrot.lane.b32.xlu0 %v1129, 4
        %v1166 = vpop.permute.xlu0 %1165
        %1167 = vrot.lane.b32.xlu0 %v1153, 4
        %v1168 = vpop.permute.xlu0 %1167
        %1169 = vrot.lane.b32.xlu0 %v1136, 4
        %v1170 = vpop.permute.xlu0 %1169
        %1171 = vrot.lane.b32.xlu0 %v1154, 4
        %v1172 = vpop.permute.xlu0 %1171
        %1173 = vrot.lane.b32.xlu0 %v1145, 4
        %v1174 = vpop.permute.xlu0 %1173
        %1175 = vrot.lane.b32.xlu0 %v1155, 4
        %v1176 = vpop.permute.xlu0 %1175
        %1177 = vrot.lane.b32.xlu0 %v1152, 4
        %v1178 = vpop.permute.xlu0 %1177
        %1179 = vrot.lane.b32.xlu0 %v1156, 4
        %v1180 = vpop.permute.xlu0 %1179
        %v1189 = vsel %vm951, %v1051, %v1166
        %v1190 = vsel %vm951, %v1075, %v1168
        %v1191 = vsel %vm951, %v1058, %v1170
        %v1192 = vsel %vm951, %v1076, %v1172
        %v1193 = vsel %vm951, %v1067, %v1174
        %v1194 = vsel %vm951, %v1077, %v1176
        %v1195 = vsel %vm951, %v1074, %v1178
        %v1196 = vsel %vm951, %v1078, %v1180
        %v1197 = vcombine.low %v1189, %v1191
        %v1199 = vunpack.c.l.s4 1983009808
        %v1200 = vunpack.c.0.s8 %v1199
        %v1201 = vlaneseq
        %v1202 = vshrl.u32 %v1201, 7
        %v1203 = vsub.s32 %v1200, %v1202
        %v1204 = vrot.slane %v1197, %v1203
        %v1205 = vcombine.low %v1190, %v1192
        %v1207 = vunpack.c.l.s4 1983009808
        %v1208 = vunpack.c.0.s8 %v1207
        %v1209 = vlaneseq
        %v1210 = vshrl.u32 %v1209, 7
        %v1211 = vsub.s32 %v1208, %v1210
        %v1212 = vrot.slane %v1205, %v1211
        %v1213 = vcombine.low %v1193, %v1195
        %v1215 = vunpack.c.l.s4 1983009808
        %v1216 = vunpack.c.0.s8 %v1215
        %v1217 = vlaneseq
        %v1218 = vshrl.u32 %v1217, 7
        %v1219 = vsub.s32 %v1216, %v1218
        %v1220 = vrot.slane %v1213, %v1219
        %v1221 = vcombine.low %v1194, %v1196
        %v1223 = vunpack.c.l.s4 1983009808
        %v1224 = vunpack.c.0.s8 %v1223
        %v1225 = vlaneseq
        %v1226 = vshrl.u32 %v1225, 7
        %v1227 = vsub.s32 %v1224, %v1226
        %v1228 = vrot.slane %v1221, %v1227
        %v1229 = vcombine.low %v1204, %v1212
        %v1230 = vcombine.high %v1204, %v1212
        %v1232 = vunpack.c.l.s4 1934713408
        %v1233 = vunpack.c.0.s8 %v1232
        %v1234 = vlaneseq
        %v1235 = vshrl.u32 %v1234, 7
        %v1236 = vsub.s32 %v1233, %v1235
        %v1237 = vrot.slane %v1229, %v1236
        %v1239 = vunpack.c.l.s4 1934713408
        %v1240 = vunpack.c.0.s8 %v1239
        %v1241 = vlaneseq
        %v1242 = vshrl.u32 %v1241, 7
        %v1243 = vsub.s32 %v1240, %v1242
        %v1244 = vrot.slane %v1230, %v1243
        %v1245 = vcombine.low %v1220, %v1228
        %v1246 = vcombine.high %v1220, %v1228
        %v1248 = vunpack.c.l.s4 1934713408
        %v1249 = vunpack.c.0.s8 %v1248
        %v1250 = vlaneseq
        %v1251 = vshrl.u32 %v1250, 7
        %v1252 = vsub.s32 %v1249, %v1251
        %v1253 = vrot.slane %v1245, %v1252
        %v1255 = vunpack.c.l.s4 1934713408
        %v1256 = vunpack.c.0.s8 %v1255
        %v1257 = vlaneseq
        %v1258 = vshrl.u32 %v1257, 7
        %v1259 = vsub.s32 %v1256, %v1258
        %v1260 = vrot.slane %v1246, %v1259
        %v1261 = vcombine.low %v1237, %v1253
        %v1262 = vcombine.high %v1237, %v1253
        %v1263 = vcombine.low %v1244, %v1260
        %v1264 = vcombine.high %v1244, %v1260
        %v1265 = vpack.c.bf16 %v1261, %v1261
        %v1266 = vpack.c.bf16 %v1262, %v1262
        %v1267 = vpack.c.bf16 %v1263, %v1263
        %v1268 = vpack.c.bf16 %v1264, %v1264
        %v1269 = vld [vmem:[#allocation2] sm:$0xf]
        %v1270 = vld [vmem:[#allocation2 + $0x4] sm:$0xf]
        %v1271 = vld [vmem:[#allocation2 + $0x8] sm:$0xf]
        %v1272 = vld [vmem:[#allocation2 + $0xc] sm:$0xf]
        %v1274 = vsel %vm953, %v1265, 0
        %vm1276 = vcmask 1043456
        %v1278 = vsel %vm1276, %v1269, 0
        %1280 = vmatprep.subr.bf16.mxu0 0
        %1281 = vmatpush1.bf16.msra.mxu0 %v1278
        %1282 = vmatprep.subr.bf16.mxu0 0
        %1283 = vmatpush1.bf16.msra.mxu0 0
        %1284 = vmatprep.subr.bf16.mxu0 0
        %1285 = vmatpush1.bf16.msra.mxu0 0
        %1286 = vmatprep.subr.bf16.mxu0 0
        %1287 = vmatpush1.bf16.msra.mxu0 0
        %1288 = vmatprep.subr.bf16.mxu0 0
        %1289 = vmatpush1.bf16.msra.mxu0 0
        %1290 = vmatprep.subr.bf16.mxu0 0
        %1291 = vmatpush1.bf16.msra.mxu0 0
        %1292 = vmatprep.subr.bf16.mxu0 0
        %1293 = vmatpush1.bf16.msra.mxu0 0
        %1294 = vmatprep.subr.bf16.mxu0 0
        %1295 = vmatpush1.bf16.msra.mxu0 0
        %1296 = vmatprep.subr.bf16.mxu0 0
        %1297 = vmatpush1.bf16.msra.mxu0 0
        %1298 = vmatprep.subr.bf16.mxu0 0
        %1299 = vmatpush1.bf16.msra.mxu0 0
        %1300 = vmatprep.subr.bf16.mxu0 0
        %1301 = vmatpush1.bf16.msra.mxu0 0
        %1302 = vmatprep.subr.bf16.mxu0 0
        %1303 = vmatpush1.bf16.msra.mxu0 0
        %1304 = vmatprep.subr.bf16.mxu0 0
        %1305 = vmatpush1.bf16.msra.mxu0 0
        %1306 = vmatprep.subr.bf16.mxu0 0
        %1307 = vmatpush1.bf16.msra.mxu0 0
        %1308 = vmatprep.subr.bf16.mxu0 0
        %1309 = vmatpush1.bf16.msra.mxu0 0
        %1310 = vmatprep.subr.bf16.mxu0 0
        %1311 = vmatpush1.bf16.msra.mxu0 0
        %1312 = vmatprep.mubr.bf16.mxu0 0
        %1313 = vmatmul.mubr.bf16.gmra.mrb[0].mxu0 %v1274
        %v1314 = vpop.f32.mrb[0].mxu0
        %v1315 = vadd.f32 0.0, %v1314
        %v1316 = vpop.f32.mrb[0].mxu0
        %v1317 = vpop.f32.mrb[0].mxu0
        %v1318 = vpop.f32.mrb[0].mxu0
        %1319 = vdwg.mxu0
        %v1321 = vsel %vm953, %v1266, 0
        %v1324 = vsel %vm1276, %v1270, 0
        %1326 = vmatprep.subr.bf16.mxu0 0
        %1327 = vmatpush1.bf16.msra.mxu0 %v1324
        %1328 = vmatprep.subr.bf16.mxu0 0
        %1329 = vmatpush1.bf16.msra.mxu0 0
        %1330 = vmatprep.subr.bf16.mxu0 0
        %1331 = vmatpush1.bf16.msra.mxu0 0
        %1332 = vmatprep.subr.bf16.mxu0 0
        %1333 = vmatpush1.bf16.msra.mxu0 0
        %1334 = vmatprep.subr.bf16.mxu0 0
        %1335 = vmatpush1.bf16.msra.mxu0 0
        %1336 = vmatprep.subr.bf16.mxu0 0
        %1337 = vmatpush1.bf16.msra.mxu0 0
        %1338 = vmatprep.subr.bf16.mxu0 0
        %1339 = vmatpush1.bf16.msra.mxu0 0
        %1340 = vmatprep.subr.bf16.mxu0 0
        %1341 = vmatpush1.bf16.msra.mxu0 0
        %1342 = vmatprep.subr.bf16.mxu0 0
        %1343 = vmatpush1.bf16.msra.mxu0 0
        %1344 = vmatprep.subr.bf16.mxu0 0
        %1345 = vmatpush1.bf16.msra.mxu0 0
        %1346 = vmatprep.subr.bf16.mxu0 0
        %1347 = vmatpush1.bf16.msra.mxu0 0
        %1348 = vmatprep.subr.bf16.mxu0 0
        %1349 = vmatpush1.bf16.msra.mxu0 0
        %1350 = vmatprep.subr.bf16.mxu0 0
        %1351 = vmatpush1.bf16.msra.mxu0 0
        %1352 = vmatprep.subr.bf16.mxu0 0
        %1353 = vmatpush1.bf16.msra.mxu0 0
        %1354 = vmatprep.subr.bf16.mxu0 0
        %1355 = vmatpush1.bf16.msra.mxu0 0
        %1356 = vmatprep.subr.bf16.mxu0 0
        %1357 = vmatpush1.bf16.msra.mxu0 0
        %1358 = vmatprep.mubr.bf16.mxu0 0
        %1359 = vmatmul.mubr.bf16.gmra.mrb[0].mxu0 %v1321
        %v1360 = vpop.f32.mrb[0].mxu0
        %v1361 = vadd.f32 0.0, %v1360
        %v1362 = vpop.f32.mrb[0].mxu0
        %v1363 = vpop.f32.mrb[0].mxu0
        %v1364 = vpop.f32.mrb[0].mxu0
        %1365 = vdwg.mxu0
        %v1367 = vsel %vm953, %v1267, 0
        %v1370 = vsel %vm1276, %v1271, 0
        %1372 = vmatprep.subr.bf16.mxu0 0
        %1373 = vmatpush1.bf16.msra.mxu0 %v1370
        %1374 = vmatprep.subr.bf16.mxu0 0
        %1375 = vmatpush1.bf16.msra.mxu0 0
        %1376 = vmatprep.subr.bf16.mxu0 0
        %1377 = vmatpush1.bf16.msra.mxu0 0
        %1378 = vmatprep.subr.bf16.mxu0 0
        %1379 = vmatpush1.bf16.msra.mxu0 0
        %1380 = vmatprep.subr.bf16.mxu0 0
        %1381 = vmatpush1.bf16.msra.mxu0 0
        %1382 = vmatprep.subr.bf16.mxu0 0
        %1383 = vmatpush1.bf16.msra.mxu0 0
        %1384 = vmatprep.subr.bf16.mxu0 0
        %1385 = vmatpush1.bf16.msra.mxu0 0
        %1386 = vmatprep.subr.bf16.mxu0 0
        %1387 = vmatpush1.bf16.msra.mxu0 0
        %1388 = vmatprep.subr.bf16.mxu0 0
        %1389 = vmatpush1.bf16.msra.mxu0 0
        %1390 = vmatprep.subr.bf16.mxu0 0
        %1391 = vmatpush1.bf16.msra.mxu0 0
        %1392 = vmatprep.subr.bf16.mxu0 0
        %1393 = vmatpush1.bf16.msra.mxu0 0
        %1394 = vmatprep.subr.bf16.mxu0 0
        %1395 = vmatpush1.bf16.msra.mxu0 0
        %1396 = vmatprep.subr.bf16.mxu0 0
        %1397 = vmatpush1.bf16.msra.mxu0 0
        %1398 = vmatprep.subr.bf16.mxu0 0
        %1399 = vmatpush1.bf16.msra.mxu0 0
        %1400 = vmatprep.subr.bf16.mxu0 0
        %1401 = vmatpush1.bf16.msra.mxu0 0
        %1402 = vmatprep.subr.bf16.mxu0 0
        %1403 = vmatpush1.bf16.msra.mxu0 0
        %1404 = vmatprep.mubr.bf16.mxu0 0
        %1405 = vmatmul.mubr.bf16.gmra.mrb[0].mxu0 %v1367
        %v1406 = vpop.f32.mrb[0].mxu0
        %v1407 = vadd.f32 0.0, %v1406
        %v1408 = vpop.f32.mrb[0].mxu0
        %v1409 = vpop.f32.mrb[0].mxu0
        %v1410 = vpop.f32.mrb[0].mxu0
        %1411 = vdwg.mxu0
        %v1413 = vsel %vm953, %v1268, 0
        %v1416 = vsel %vm1276, %v1272, 0
        %1418 = vmatprep.subr.bf16.mxu0 0
        %1419 = vmatpush1.bf16.msra.mxu0 %v1416
        %1420 = vmatprep.subr.bf16.mxu0 0
        %1421 = vmatpush1.bf16.msra.mxu0 0
        %1422 = vmatprep.subr.bf16.mxu0 0
        %1423 = vmatpush1.bf16.msra.mxu0 0
        %1424 = vmatprep.subr.bf16.mxu0 0
        %1425 = vmatpush1.bf16.msra.mxu0 0
        %1426 = vmatprep.subr.bf16.mxu0 0
        %1427 = vmatpush1.bf16.msra.mxu0 0
        %1428 = vmatprep.subr.bf16.mxu0 0
        %1429 = vmatpush1.bf16.msra.mxu0 0
        %1430 = vmatprep.subr.bf16.mxu0 0
        %1431 = vmatpush1.bf16.msra.mxu0 0
        %1432 = vmatprep.subr.bf16.mxu0 0
        %1433 = vmatpush1.bf16.msra.mxu0 0
        %1434 = vmatprep.subr.bf16.mxu0 0
        %1435 = vmatpush1.bf16.msra.mxu0 0
        %1436 = vmatprep.subr.bf16.mxu0 0
        %1437 = vmatpush1.bf16.msra.mxu0 0
        %1438 = vmatprep.subr.bf16.mxu0 0
        %1439 = vmatpush1.bf16.msra.mxu0 0
        %1440 = vmatprep.subr.bf16.mxu0 0
        %1441 = vmatpush1.bf16.msra.mxu0 0
        %1442 = vmatprep.subr.bf16.mxu0 0
        %1443 = vmatpush1.bf16.msra.mxu0 0
        %1444 = vmatprep.subr.bf16.mxu0 0
        %1445 = vmatpush1.bf16.msra.mxu0 0
        %1446 = vmatprep.subr.bf16.mxu0 0
        %1447 = vmatpush1.bf16.msra.mxu0 0
        %1448 = vmatprep.subr.bf16.mxu0 0
        %1449 = vmatpush1.bf16.msra.mxu0 0
        %1450 = vmatprep.mubr.bf16.mxu0 0
        %1451 = vmatmul.mubr.bf16.gmra.mrb[0].mxu0 %v1413
        %v1452 = vpop.f32.mrb[0].mxu0
        %v1453 = vadd.f32 0.0, %v1452
        %v1454 = vpop.f32.mrb[0].mxu0
        %v1455 = vpop.f32.mrb[0].mxu0
        %v1456 = vpop.f32.mrb[0].mxu0
        %1457 = vdwg.mxu0
        %v1458 = vsel %vm1000, 1, 0
        %vm1459 = vcmp.eq.s32.totalorder %v1458, 1
        %v1460 = vsel %vm1459, %v1315, -1e+30
        %v1461 = vsel %vm1459, %v1361, -1e+30
        %v1462 = vsel %vm1459, %v1407, -1e+30
        %v1463 = vsel %vm1459, %v1453, -1e+30
        %v1464 = vsel %vm953, %v1460, -inf
        %1465 = vmax.xlane.f32.xlu0 %v1464
        %v1466 = vpop.xlane.xlu0 %1465
        %v1467 = vsel %vm953, %v1461, -inf
        %1468 = vmax.xlane.f32.xlu0 %v1467
        %v1469 = vpop.xlane.xlu0 %1468
        %v1470 = vsel %vm953, %v1462, -inf
        %1471 = vmax.xlane.f32.xlu0 %v1470
        %v1472 = vpop.xlane.xlu0 %1471
        %v1473 = vsel %vm953, %v1463, -inf
        %1474 = vmax.xlane.f32.xlu0 %v1473
        %v1475 = vpop.xlane.xlu0 %1474
        %v1476 = vsub.f32 %v1460, %v1466
        %v1477 = vsub.f32 %v1461, %v1469
        %v1478 = vsub.f32 %v1462, %v1472
        %v1479 = vsub.f32 %v1463, %v1475
        %v1480 = vmul.f32 %v1476, 1.442695
        %v1481 = vpow.pop %v1480
        %v1482 = vmul.f32 %v1477, 1.442695
        %v1483 = vpow.pop %v1482
        %v1484 = vmul.f32 %v1478, 1.442695
        %v1485 = vpow.pop %v1484
        %v1486 = vmul.f32 %v1479, 1.442695
        %v1487 = vpow.pop %v1486
        %v1488 = vsel %vm953, %v1481, 0.0
        %1489 = vadd.xlane.f32.xlu0 %v1488
        %v1490 = vpop.xlane.xlu0 %1489
        %v1491 = vsel %vm953, %v1483, 0.0
        %1492 = vadd.xlane.f32.xlu0 %v1491
        %v1493 = vpop.xlane.xlu0 %1492
        %v1494 = vsel %vm953, %v1485, 0.0
        %1495 = vadd.xlane.f32.xlu0 %v1494
        %v1496 = vpop.xlane.xlu0 %1495
        %v1497 = vsel %vm953, %v1487, 0.0
        %1498 = vadd.xlane.f32.xlu0 %v1497
        %v1499 = vpop.xlane.xlu0 %1498
        %v1500 = vrcp.pop %v1490
        %v1501 = vrcp.pop %v1493
        %v1502 = vrcp.pop %v1496
        %v1503 = vrcp.pop %v1499
        %v1504 = vmul.f32 %v1481, %v1500
        %v1505 = vmul.f32 %v1483, %v1501
        %v1506 = vmul.f32 %v1485, %v1502
        %v1507 = vmul.f32 %v1487, %v1503
        %v1508 = vpack.c.bf16 %v1504, %v1504
        %v1509 = vpack.c.bf16 %v1505, %v1505
        %v1510 = vpack.c.bf16 %v1506, %v1506
        %v1511 = vpack.c.bf16 %v1507, %v1507
        %v1512 = vld [vmem:[#allocation3] sm:$0xf]
        %v1513 = vld [vmem:[#allocation3 + $0x4] sm:$0xf]
        %v1514 = vld [vmem:[#allocation3 + $0x8] sm:$0xf]
        %v1515 = vld [vmem:[#allocation3 + $0xc] sm:$0xf]
        %v1517 = vsel %vm953, %v1508, 0
        %v1520 = vsel %vm1276, %v1512, 0
        %1522 = vmatprep.subr.bf16.mxu0 0
        %1523 = vmatpush1.bf16.msra.mxu0 %v1520
        %1524 = vmatprep.subr.bf16.mxu0 0
        %1525 = vmatpush1.bf16.msra.mxu0 0
        %1526 = vmatprep.subr.bf16.mxu0 0
        %1527 = vmatpush1.bf16.msra.mxu0 0
        %1528 = vmatprep.subr.bf16.mxu0 0
        %1529 = vmatpush1.bf16.msra.mxu0 0
        %1530 = vmatprep.subr.bf16.mxu0 0
        %1531 = vmatpush1.bf16.msra.mxu0 0
        %1532 = vmatprep.subr.bf16.mxu0 0
        %1533 = vmatpush1.bf16.msra.mxu0 0
        %1534 = vmatprep.subr.bf16.mxu0 0
        %1535 = vmatpush1.bf16.msra.mxu0 0
        %1536 = vmatprep.subr.bf16.mxu0 0
        %1537 = vmatpush1.bf16.msra.mxu0 0
        %1538 = vmatprep.subr.bf16.mxu0 0
        %1539 = vmatpush1.bf16.msra.mxu0 0
        %1540 = vmatprep.subr.bf16.mxu0 0
        %1541 = vmatpush1.bf16.msra.mxu0 0
        %1542 = vmatprep.subr.bf16.mxu0 0
        %1543 = vmatpush1.bf16.msra.mxu0 0
        %1544 = vmatprep.subr.bf16.mxu0 0
        %1545 = vmatpush1.bf16.msra.mxu0 0
        %1546 = vmatprep.subr.bf16.mxu0 0
        %1547 = vmatpush1.bf16.msra.mxu0 0
        %1548 = vmatprep.subr.bf16.mxu0 0
        %1549 = vmatpush1.bf16.msra.mxu0 0
        %1550 = vmatprep.subr.bf16.mxu0 0
        %1551 = vmatpush1.bf16.msra.mxu0 0
        %1552 = vmatprep.subr.bf16.mxu0 0
        %1553 = vmatpush1.bf16.msra.mxu0 0
        %1554 = vmatprep.mubr.bf16.mxu0 0
        %1555 = vmatmul.mubr.bf16.gmra.mrb[0].mxu0 %v1517
        %v1556 = vpop.f32.mrb[0].mxu0
        %v1557 = vadd.f32 0.0, %v1556
        %v1558 = vpop.f32.mrb[0].mxu0
        %v1559 = vpop.f32.mrb[0].mxu0
        %v1560 = vpop.f32.mrb[0].mxu0
        %1561 = vdwg.mxu0
        %v1563 = vsel %vm953, %v1509, 0
        %v1566 = vsel %vm1276, %v1513, 0
        %1568 = vmatprep.subr.bf16.mxu0 0
        %1569 = vmatpush1.bf16.msra.mxu0 %v1566
        %1570 = vmatprep.subr.bf16.mxu0 0
        %1571 = vmatpush1.bf16.msra.mxu0 0
        %1572 = vmatprep.subr.bf16.mxu0 0
        %1573 = vmatpush1.bf16.msra.mxu0 0
        %1574 = vmatprep.subr.bf16.mxu0 0
        %1575 = vmatpush1.bf16.msra.mxu0 0
        %1576 = vmatprep.subr.bf16.mxu0 0
        %1577 = vmatpush1.bf16.msra.mxu0 0
        %1578 = vmatprep.subr.bf16.mxu0 0
        %1579 = vmatpush1.bf16.msra.mxu0 0
        %1580 = vmatprep.subr.bf16.mxu0 0
        %1581 = vmatpush1.bf16.msra.mxu0 0
        %1582 = vmatprep.subr.bf16.mxu0 0
        %1583 = vmatpush1.bf16.msra.mxu0 0
        %1584 = vmatprep.subr.bf16.mxu0 0
        %1585 = vmatpush1.bf16.msra.mxu0 0
        %1586 = vmatprep.subr.bf16.mxu0 0
        %1587 = vmatpush1.bf16.msra.mxu0 0
        %1588 = vmatprep.subr.bf16.mxu0 0
        %1589 = vmatpush1.bf16.msra.mxu0 0
        %1590 = vmatprep.subr.bf16.mxu0 0
        %1591 = vmatpush1.bf16.msra.mxu0 0
        %1592 = vmatprep.subr.bf16.mxu0 0
        %1593 = vmatpush1.bf16.msra.mxu0 0
        %1594 = vmatprep.subr.bf16.mxu0 0
        %1595 = vmatpush1.bf16.msra.mxu0 0
        %1596 = vmatprep.subr.bf16.mxu0 0
        %1597 = vmatpush1.bf16.msra.mxu0 0
        %1598 = vmatprep.subr.bf16.mxu0 0
        %1599 = vmatpush1.bf16.msra.mxu0 0
        %1600 = vmatprep.mubr.bf16.mxu0 0
        %1601 = vmatmul.mubr.bf16.gmra.mrb[0].mxu0 %v1563
        %v1602 = vpop.f32.mrb[0].mxu0
        %v1603 = vadd.f32 0.0, %v1602
        %v1604 = vpop.f32.mrb[0].mxu0
        %v1605 = vpop.f32.mrb[0].mxu0
        %v1606 = vpop.f32.mrb[0].mxu0
        %1607 = vdwg.mxu0
        %v1609 = vsel %vm953, %v1510, 0
        %v1612 = vsel %vm1276, %v1514, 0
        %1614 = vmatprep.subr.bf16.mxu0 0
        %1615 = vmatpush1.bf16.msra.mxu0 %v1612
        %1616 = vmatprep.subr.bf16.mxu0 0
        %1617 = vmatpush1.bf16.msra.mxu0 0
        %1618 = vmatprep.subr.bf16.mxu0 0
        %1619 = vmatpush1.bf16.msra.mxu0 0
        %1620 = vmatprep.subr.bf16.mxu0 0
        %1621 = vmatpush1.bf16.msra.mxu0 0
        %1622 = vmatprep.subr.bf16.mxu0 0
        %1623 = vmatpush1.bf16.msra.mxu0 0
        %1624 = vmatprep.subr.bf16.mxu0 0
        %1625 = vmatpush1.bf16.msra.mxu0 0
        %1626 = vmatprep.subr.bf16.mxu0 0
        %1627 = vmatpush1.bf16.msra.mxu0 0
        %1628 = vmatprep.subr.bf16.mxu0 0
        %1629 = vmatpush1.bf16.msra.mxu0 0
        %1630 = vmatprep.subr.bf16.mxu0 0
        %1631 = vmatpush1.bf16.msra.mxu0 0
        %1632 = vmatprep.subr.bf16.mxu0 0
        %1633 = vmatpush1.bf16.msra.mxu0 0
        %1634 = vmatprep.subr.bf16.mxu0 0
        %1635 = vmatpush1.bf16.msra.mxu0 0
        %1636 = vmatprep.subr.bf16.mxu0 0
        %1637 = vmatpush1.bf16.msra.mxu0 0
        %1638 = vmatprep.subr.bf16.mxu0 0
        %1639 = vmatpush1.bf16.msra.mxu0 0
        %1640 = vmatprep.subr.bf16.mxu0 0
        %1641 = vmatpush1.bf16.msra.mxu0 0
        %1642 = vmatprep.subr.bf16.mxu0 0
        %1643 = vmatpush1.bf16.msra.mxu0 0
        %1644 = vmatprep.subr.bf16.mxu0 0
        %1645 = vmatpush1.bf16.msra.mxu0 0
        %1646 = vmatprep.mubr.bf16.mxu0 0
        %1647 = vmatmul.mubr.bf16.gmra.mrb[0].mxu0 %v1609
        %v1648 = vpop.f32.mrb[0].mxu0
        %v1649 = vadd.f32 0.0, %v1648
        %v1650 = vpop.f32.mrb[0].mxu0
        %v1651 = vpop.f32.mrb[0].mxu0
        %v1652 = vpop.f32.mrb[0].mxu0
        %1653 = vdwg.mxu0
        %v1655 = vsel %vm953, %v1511, 0
        %v1658 = vsel %vm1276, %v1515, 0
        %1660 = vmatprep.subr.bf16.mxu0 0
        %1661 = vmatpush1.bf16.msra.mxu0 %v1658
        %1662 = vmatprep.subr.bf16.mxu0 0
        %1663 = vmatpush1.bf16.msra.mxu0 0
        %1664 = vmatprep.subr.bf16.mxu0 0
        %1665 = vmatpush1.bf16.msra.mxu0 0
        %1666 = vmatprep.subr.bf16.mxu0 0
        %1667 = vmatpush1.bf16.msra.mxu0 0
        %1668 = vmatprep.subr.bf16.mxu0 0
        %1669 = vmatpush1.bf16.msra.mxu0 0
        %1670 = vmatprep.subr.bf16.mxu0 0
        %1671 = vmatpush1.bf16.msra.mxu0 0
        %1672 = vmatprep.subr.bf16.mxu0 0
        %1673 = vmatpush1.bf16.msra.mxu0 0
        %1674 = vmatprep.subr.bf16.mxu0 0
        %1675 = vmatpush1.bf16.msra.mxu0 0
        %1676 = vmatprep.subr.bf16.mxu0 0
        %1677 = vmatpush1.bf16.msra.mxu0 0
        %1678 = vmatprep.subr.bf16.mxu0 0
        %1679 = vmatpush1.bf16.msra.mxu0 0
        %1680 = vmatprep.subr.bf16.mxu0 0
        %1681 = vmatpush1.bf16.msra.mxu0 0
        %1682 = vmatprep.subr.bf16.mxu0 0
        %1683 = vmatpush1.bf16.msra.mxu0 0
        %1684 = vmatprep.subr.bf16.mxu0 0
        %1685 = vmatpush1.bf16.msra.mxu0 0
        %1686 = vmatprep.subr.bf16.mxu0 0
        %1687 = vmatpush1.bf16.msra.mxu0 0
        %1688 = vmatprep.subr.bf16.mxu0 0
        %1689 = vmatpush1.bf16.msra.mxu0 0
        %1690 = vmatprep.subr.bf16.mxu0 0
        %1691 = vmatpush1.bf16.msra.mxu0 0
        %1692 = vmatprep.mubr.bf16.mxu0 0
        %1693 = vmatmul.mubr.bf16.gmra.mrb[0].mxu0 %v1655
        %v1694 = vpop.f32.mrb[0].mxu0
        %v1695 = vadd.f32 0.0, %v1694
        %v1696 = vpop.f32.mrb[0].mxu0
        %v1697 = vpop.f32.mrb[0].mxu0
        %v1698 = vpop.f32.mrb[0].mxu0
        %1699 = vdwg.mxu0
        %v1700 = vcombine.low %v1557, %v1649
        %v1701 = vcombine.high %v1557, %v1649
        %v1703 = vunpack.c.l.s4 1983009808
        %v1704 = vunpack.c.0.s8 %v1703
        %v1705 = vlaneseq
        %v1706 = vshrl.u32 %v1705, 7
        %v1707 = vsub.s32 %v1704, %v1706
        %v1708 = vrot.slane %v1700, %v1707
        %v1710 = vunpack.c.l.s4 1983009808
        %v1711 = vunpack.c.0.s8 %v1710
        %v1712 = vlaneseq
        %v1713 = vshrl.u32 %v1712, 7
        %v1714 = vsub.s32 %v1711, %v1713
        %v1715 = vrot.slane %v1701, %v1714
        %v1716 = vcombine.low %v1603, %v1695
        %v1717 = vcombine.high %v1603, %v1695
        %v1719 = vunpack.c.l.s4 1983009808
        %v1720 = vunpack.c.0.s8 %v1719
        %v1721 = vlaneseq
        %v1722 = vshrl.u32 %v1721, 7
        %v1723 = vsub.s32 %v1720, %v1722
        %v1724 = vrot.slane %v1716, %v1723
        %v1726 = vunpack.c.l.s4 1983009808
        %v1727 = vunpack.c.0.s8 %v1726
        %v1728 = vlaneseq
        %v1729 = vshrl.u32 %v1728, 7
        %v1730 = vsub.s32 %v1727, %v1729
        %v1731 = vrot.slane %v1717, %v1730
        %v1732 = vcombine.low %v1708, %v1724
        %v1733 = vcombine.high %v1708, %v1724
        %v1735 = vunpack.c.l.s4 1934713408
        %v1736 = vunpack.c.0.s8 %v1735
        %v1737 = vlaneseq
        %v1738 = vshrl.u32 %v1737, 7
        %v1739 = vsub.s32 %v1736, %v1738
        %v1740 = vrot.slane %v1732, %v1739
        %v1742 = vunpack.c.l.s4 1934713408
        %v1743 = vunpack.c.0.s8 %v1742
        %v1744 = vlaneseq
        %v1745 = vshrl.u32 %v1744, 7
        %v1746 = vsub.s32 %v1743, %v1745
        %v1747 = vrot.slane %v1733, %v1746
        %v1748 = vcombine.low %v1715, %v1731
        %v1749 = vcombine.high %v1715, %v1731
        %v1751 = vunpack.c.l.s4 1934713408
        %v1752 = vunpack.c.0.s8 %v1751
        %v1753 = vlaneseq
        %v1754 = vshrl.u32 %v1753, 7
        %v1755 = vsub.s32 %v1752, %v1754
        %v1756 = vrot.slane %v1748, %v1755
        %v1758 = vunpack.c.l.s4 1934713408
        %v1759 = vunpack.c.0.s8 %v1758
        %v1760 = vlaneseq
        %v1761 = vshrl.u32 %v1760, 7
        %v1762 = vsub.s32 %v1759, %v1761
        %v1763 = vrot.slane %v1749, %v1762
        %v1764 = vcombine.high %v1740, 0.0
        %v1765 = vcombine.high %v1747, 0.0
        %v1766 = vcombine.high %v1756, 0.0
        %v1767 = vcombine.high %v1763, 0.0
        %v1768 = vcombine.low %v1740, %v1747
        %v1770 = vunpack.c.l.s4 1983009808
        %v1771 = vunpack.c.0.s8 %v1770
        %v1772 = vlaneseq
        %v1773 = vshrl.u32 %v1772, 7
        %v1774 = vsub.s32 %v1771, %v1773
        %v1775 = vrot.slane %v1768, %v1774
        %v1776 = vcombine.low %v1764, %v1765
        %v1778 = vunpack.c.l.s4 1983009808
        %v1779 = vunpack.c.0.s8 %v1778
        %v1780 = vlaneseq
        %v1781 = vshrl.u32 %v1780, 7
        %v1782 = vsub.s32 %v1779, %v1781
        %v1783 = vrot.slane %v1776, %v1782
        %v1784 = vcombine.low %v1756, %v1763
        %v1786 = vunpack.c.l.s4 1983009808
        %v1787 = vunpack.c.0.s8 %v1786
        %v1788 = vlaneseq
        %v1789 = vshrl.u32 %v1788, 7
        %v1790 = vsub.s32 %v1787, %v1789
        %v1791 = vrot.slane %v1784, %v1790
        %v1792 = vcombine.low %v1766, %v1767
        %v1794 = vunpack.c.l.s4 1983009808
        %v1795 = vunpack.c.0.s8 %v1794
        %v1796 = vlaneseq
        %v1797 = vshrl.u32 %v1796, 7
        %v1798 = vsub.s32 %v1795, %v1797
        %v1799 = vrot.slane %v1792, %v1798
        %v1800 = vcombine.low %v1775, %v1783
        %v1801 = vcombine.high %v1775, %v1783
        %v1803 = vunpack.c.l.s4 1934713408
        %v1804 = vunpack.c.0.s8 %v1803
        %v1805 = vlaneseq
        %v1806 = vshrl.u32 %v1805, 7
        %v1807 = vsub.s32 %v1804, %v1806
        %v1808 = vrot.slane %v1800, %v1807
        %v1810 = vunpack.c.l.s4 1934713408
        %v1811 = vunpack.c.0.s8 %v1810
        %v1812 = vlaneseq
        %v1813 = vshrl.u32 %v1812, 7
        %v1814 = vsub.s32 %v1811, %v1813
        %v1815 = vrot.slane %v1801, %v1814
        %v1816 = vcombine.low %v1791, %v1799
        %v1817 = vcombine.high %v1791, %v1799
        %v1819 = vunpack.c.l.s4 1934713408
        %v1820 = vunpack.c.0.s8 %v1819
        %v1821 = vlaneseq
        %v1822 = vshrl.u32 %v1821, 7
        %v1823 = vsub.s32 %v1820, %v1822
        %v1824 = vrot.slane %v1816, %v1823
        %v1826 = vunpack.c.l.s4 1934713408
        %v1827 = vunpack.c.0.s8 %v1826
        %v1828 = vlaneseq
        %v1829 = vshrl.u32 %v1828, 7
        %v1830 = vsub.s32 %v1827, %v1829
        %v1831 = vrot.slane %v1817, %v1830
        %v1832 = vcombine.low %v1808, %v1824
        %v1833 = vcombine.high %v1808, %v1824
        %v1834 = vcombine.low %v1815, %v1831
        %v1835 = vcombine.high %v1815, %v1831
        %1837 = vrot.lane.b32.xlu0 %v1833, 8
        %v1838 = vpop.permute.xlu0 %1837
        %1841 = vrot.lane.b32.xlu0 %v1834, 16
        %v1842 = vpop.permute.xlu0 %1841
        %1845 = vrot.lane.b32.xlu0 %v1835, 24
        %v1846 = vpop.permute.xlu0 %1845
        %v1848 = vsel %vm953, %v1832, %v1838
        %vm1849 = vcmask 130048
        %v1850 = vsel %vm1849, %v1848, %v1842
        %vm1851 = vcmask 195584
        %v1852 = vsel %vm1851, %v1850, %v1846
        %v1853 = vpack.c.bf16 %v1852, %v1852
        %v1854 = vld [vmem:[%s6] sm:$0xf]
        %v1855 = vld [vmem:[%s6 + $0x4] sm:$0xf]
        %v1856 = vld [vmem:[%s6 + $0x8] sm:$0xf]
        %v1857 = vld [vmem:[%s6 + $0xc] sm:$0xf]
        %v1862 = vunpack.c.l.b16 %v1854
        %v1863 = vunpack.c.l.b16 %v1855
        %v1864 = vunpack.c.l.b16 %v1856
        %v1865 = vunpack.c.l.b16 %v1857
        %v1866 = vpack.c.b16 %v1863, %v1862
        %v1867 = vpack.c.b16 %v1865, %v1864
        %v1871 = vsel %vm863, %v1853, 0
        %1873 = vmatprep.subr.bf16.mxu0 0
        %1874 = vmatpush1.bf16.msra.mxu0 %v1866
        %1875 = vmatprep.subr.bf16.mxu0 0
        %1876 = vmatpush1.bf16.msra.mxu0 %v1867
        %1877 = vmatprep.subr.bf16.mxu0 0
        %1878 = vmatpush1.bf16.msra.mxu0 0
        %1879 = vmatprep.subr.bf16.mxu0 0
        %1880 = vmatpush1.bf16.msra.mxu0 0
        %1881 = vmatprep.subr.bf16.mxu0 0
        %1882 = vmatpush1.bf16.msra.mxu0 0
        %1883 = vmatprep.subr.bf16.mxu0 0
        %1884 = vmatpush1.bf16.msra.mxu0 0
        %1885 = vmatprep.subr.bf16.mxu0 0
        %1886 = vmatpush1.bf16.msra.mxu0 0
        %1887 = vmatprep.subr.bf16.mxu0 0
        %1888 = vmatpush1.bf16.msra.mxu0 0
        %1889 = vmatprep.subr.bf16.mxu0 0
        %1890 = vmatpush1.bf16.msra.mxu0 0
        %1891 = vmatprep.subr.bf16.mxu0 0
        %1892 = vmatpush1.bf16.msra.mxu0 0
        %1893 = vmatprep.subr.bf16.mxu0 0
        %1894 = vmatpush1.bf16.msra.mxu0 0
        %1895 = vmatprep.subr.bf16.mxu0 0
        %1896 = vmatpush1.bf16.msra.mxu0 0
        %1897 = vmatprep.subr.bf16.mxu0 0
        %1898 = vmatpush1.bf16.msra.mxu0 0
        %1899 = vmatprep.subr.bf16.mxu0 0
        %1900 = vmatpush1.bf16.msra.mxu0 0
        %1901 = vmatprep.subr.bf16.mxu0 0
        %1902 = vmatpush1.bf16.msra.mxu0 0
        %1903 = vmatprep.subr.bf16.mxu0 0
        %1904 = vmatpush1.bf16.msra.mxu0 0
        %1905 = vmatprep.mubr.bf16.mxu0 0
        %1906 = vmatmul.mubr.bf16.gmra.mrb[0].mxu0 %v1871
        %v1907 = vpop.f32.mrb[0].mxu0
        %v1908 = vadd.f32 0.0, %v1907
        %v1909 = vpop.f32.mrb[0].mxu0
        %v1910 = vpop.f32.mrb[0].mxu0
        %v1911 = vpop.f32.mrb[0].mxu0
        %1912 = vdwg.mxu0
        %v1913 = vadd.f32 %v861, %v1908
        %v1914 = vld [vmem:[%s7] sm:$0x1]
        %v1916 = vlaneseq
        %v1917 = vshrl.u32 %v1916, 7
        %v1918 = vsub.s32 0, %v1917
        %v1919 = vrot.slane %v1914, %v1918
        %v1921 = vadd.f32 %v1913, %v1919
        %v1922 = vld [vmem:[#allocation4] sm:$0x1]
        %v1923 = vmul.f32 %v1921, %v1921
        %v1924 = vsel %vm863, %v1923, 0.0
        %1925 = vadd.xlane.f32.xlu0 %v1924
        %v1926 = vpop.xlane.xlu0 %1925
        %v1927 = vmul.f32 %v1926, %v867
        %v1928 = vadd.f32 %v1927, 1e-05
        %v1929 = vrsqrt.pop %v1928
        %v1930 = vmul.f32 %v1921, %v1929
        %v1932 = vlaneseq
        %v1933 = vshrl.u32 %v1932, 7
        %v1934 = vsub.s32 0, %v1933
        %v1935 = vrot.slane %v1922, %v1934
        %v1937 = vmul.f32 %v1930, %v1935
        %v1938 = vpack.c.bf16 %v1937, %v1937
        %v1939 = vld [vmem:[%s9] sm:$0xf]
        %v1940 = vld [vmem:[%s9 + $0x4] sm:$0xf]
        %v1941 = vld [vmem:[%s9 + $0x8] sm:$0xf]
        %v1942 = vld [vmem:[%s9 + $0xc] sm:$0xf]
        %v1947 = vunpack.c.l.b16 %v1939
        %v1948 = vunpack.c.l.b16 %v1940
        %v1949 = vunpack.c.l.b16 %v1941
        %v1950 = vunpack.c.l.b16 %v1942
        %v1951 = vpack.c.b16 %v1948, %v1947
        %v1952 = vpack.c.b16 %v1950, %v1949
        %v1956 = vsel %vm863, %v1938, 0
        %1958 = vmatprep.subr.bf16.mxu0 0
        %1959 = vmatpush1.bf16.msra.mxu0 %v1951
        %1960 = vmatprep.subr.bf16.mxu0 0
        %1961 = vmatpush1.bf16.msra.mxu0 %v1952
        %1962 = vmatprep.subr.bf16.mxu0 0
        %1963 = vmatpush1.bf16.msra.mxu0 0
        %1964 = vmatprep.subr.bf16.mxu0 0
        %1965 = vmatpush1.bf16.msra.mxu0 0
        %1966 = vmatprep.subr.bf16.mxu0 0
        %1967 = vmatpush1.bf16.msra.mxu0 0
        %1968 = vmatprep.subr.bf16.mxu0 0
        %1969 = vmatpush1.bf16.msra.mxu0 0
        %1970 = vmatprep.subr.bf16.mxu0 0
        %1971 = vmatpush1.bf16.msra.mxu0 0
        %1972 = vmatprep.subr.bf16.mxu0 0
        %1973 = vmatpush1.bf16.msra.mxu0 0
        %1974 = vmatprep.subr.bf16.mxu0 0
        %1975 = vmatpush1.bf16.msra.mxu0 0
        %1976 = vmatprep.subr.bf16.mxu0 0
        %1977 = vmatpush1.bf16.msra.mxu0 0
        %1978 = vmatprep.subr.bf16.mxu0 0
        %1979 = vmatpush1.bf16.msra.mxu0 0
        %1980 = vmatprep.subr.bf16.mxu0 0
        %1981 = vmatpush1.bf16.msra.mxu0 0
        %1982 = vmatprep.subr.bf16.mxu0 0
        %1983 = vmatpush1.bf16.msra.mxu0 0
        %1984 = vmatprep.subr.bf16.mxu0 0
        %1985 = vmatpush1.bf16.msra.mxu0 0
        %1986 = vmatprep.subr.bf16.mxu0 0
        %1987 = vmatpush1.bf16.msra.mxu0 0
        %1988 = vmatprep.subr.bf16.mxu0 0
        %1989 = vmatpush1.bf16.msra.mxu0 0
        %1990 = vmatprep.mubr.bf16.mxu0 0
        %1991 = vmatmul.mubr.bf16.gmra.mrb[0].mxu0 %v1956
        %v1992 = vpop.f32.mrb[0].mxu0
        %v1993 = vadd.f32 0.0, %v1992
        %v1994 = vpop.f32.mrb[0].mxu0
        %v1995 = vpop.f32.mrb[0].mxu0
        %v1996 = vpop.f32.mrb[0].mxu0
        %1997 = vdwg.mxu0
        %v1998 = vld [vmem:[%s10] sm:$0xf]
        %v1999 = vld [vmem:[%s10 + $0x4] sm:$0xf]
        %v2000 = vld [vmem:[%s10 + $0x8] sm:$0xf]
        %v2001 = vld [vmem:[%s10 + $0xc] sm:$0xf]
        %v2006 = vunpack.c.l.b16 %v1998
        %v2007 = vunpack.c.l.b16 %v1999
        %v2008 = vunpack.c.l.b16 %v2000
        %v2009 = vunpack.c.l.b16 %v2001
        %v2010 = vpack.c.b16 %v2007, %v2006
        %v2011 = vpack.c.b16 %v2009, %v2008
        %2014 = vmatprep.subr.bf16.mxu0 0
        %2015 = vmatpush1.bf16.msra.mxu0 %v2010
        %2016 = vmatprep.subr.bf16.mxu0 0
        %2017 = vmatpush1.bf16.msra.mxu0 %v2011
        %2018 = vmatprep.subr.bf16.mxu0 0
        %2019 = vmatpush1.bf16.msra.mxu0 0
        %2020 = vmatprep.subr.bf16.mxu0 0
        %2021 = vmatpush1.bf16.msra.mxu0 0
        %2022 = vmatprep.subr.bf16.mxu0 0
        %2023 = vmatpush1.bf16.msra.mxu0 0
        %2024 = vmatprep.subr.bf16.mxu0 0
        %2025 = vmatpush1.bf16.msra.mxu0 0
        %2026 = vmatprep.subr.bf16.mxu0 0
        %2027 = vmatpush1.bf16.msra.mxu0 0
        %2028 = vmatprep.subr.bf16.mxu0 0
        %2029 = vmatpush1.bf16.msra.mxu0 0
        %2030 = vmatprep.subr.bf16.mxu0 0
        %2031 = vmatpush1.bf16.msra.mxu0 0
        %2032 = vmatprep.subr.bf16.mxu0 0
        %2033 = vmatpush1.bf16.msra.mxu0 0
        %2034 = vmatprep.subr.bf16.mxu0 0
        %2035 = vmatpush1.bf16.msra.mxu0 0
        %2036 = vmatprep.subr.bf16.mxu0 0
        %2037 = vmatpush1.bf16.msra.mxu0 0
        %2038 = vmatprep.subr.bf16.mxu0 0
        %2039 = vmatpush1.bf16.msra.mxu0 0
        %2040 = vmatprep.subr.bf16.mxu0 0
        %2041 = vmatpush1.bf16.msra.mxu0 0
        %2042 = vmatprep.subr.bf16.mxu0 0
        %2043 = vmatpush1.bf16.msra.mxu0 0
        %2044 = vmatprep.subr.bf16.mxu0 0
        %2045 = vmatpush1.bf16.msra.mxu0 0
        %2046 = vmatprep.mubr.bf16.mxu0 0
        %2047 = vmatmul.mubr.bf16.gmra.mrb[0].mxu0 %v1956
        %v2048 = vpop.f32.mrb[0].mxu0
        %v2049 = vadd.f32 0.0, %v2048
        %v2050 = vpop.f32.mrb[0].mxu0
        %v2051 = vpop.f32.mrb[0].mxu0
        %v2052 = vpop.f32.mrb[0].mxu0
        %2053 = vdwg.mxu0
        %v2054 = vxor.u32 %v1993, 2147483648
        %v2055 = vmul.f32 %v2054, 1.442695
        %v2056 = vpow.pop %v2055
        %v2057 = vadd.f32 %v2056, 1.0
        %v2058 = vrcp.pop %v2057
        %v2059 = vmul.f32 1.0, %v2058
        %v2060 = vmul.f32 %v1993, %v2059
        %v2061 = vmul.f32 %v2060, %v2049
        %v2062 = vpack.c.bf16 %v2061, %v2061
        %v2063 = vld [vmem:[%s11] sm:$0xf]
        %v2064 = vld [vmem:[%s11 + $0x4] sm:$0xf]
        %v2065 = vld [vmem:[%s11 + $0x8] sm:$0xf]
        %v2066 = vld [vmem:[%s11 + $0xc] sm:$0xf]
        %v2067 = vld [vmem:[%s11 + $0x10] sm:$0xf]
        %v2068 = vld [vmem:[%s11 + $0x14] sm:$0xf]
        %v2069 = vld [vmem:[%s11 + $0x18] sm:$0xf]
        %v2070 = vld [vmem:[%s11 + $0x1c] sm:$0xf]
        %v2071 = vld [vmem:[%s11 + $0x20] sm:$0xf]
        %v2072 = vld [vmem:[%s11 + $0x24] sm:$0xf]
        %v2073 = vld [vmem:[%s11 + $0x28] sm:$0xf]
        %v2085 = vunpack.c.l.b16 %v2063
        %v2086 = vunpack.c.l.b16 %v2064
        %v2087 = vunpack.c.l.b16 %v2065
        %v2088 = vunpack.c.l.b16 %v2066
        %v2089 = vunpack.c.l.b16 %v2067
        %v2090 = vunpack.c.l.b16 %v2068
        %v2091 = vunpack.c.l.b16 %v2069
        %v2092 = vunpack.c.l.b16 %v2070
        %v2093 = vunpack.c.l.b16 %v2071
        %v2094 = vunpack.c.l.b16 %v2072
        %v2095 = vunpack.c.l.b16 %v2073
        %v2096 = vpack.c.b16 %v2086, %v2085
        %v2097 = vpack.c.b16 %v2088, %v2087
        %v2098 = vpack.c.b16 %v2090, %v2089
        %v2099 = vpack.c.b16 %v2092, %v2091
        %v2100 = vpack.c.b16 %v2094, %v2093
        %v2101 = vpack.c.b16 %v2095, %v2095
        %vm2107 = vcmask 719872
        %v2109 = vsel %vm2107, %v2062, 0
        %v2112 = vsel %vm1276, %v2101, 0
        %2114 = vmatprep.subr.bf16.mxu0 0
        %2115 = vmatpush1.bf16.msra.mxu0 %v2096
        %2116 = vmatprep.subr.bf16.mxu0 0
        %2117 = vmatpush1.bf16.msra.mxu0 %v2097
        %2118 = vmatprep.subr.bf16.mxu0 0
        %2119 = vmatpush1.bf16.msra.mxu0 %v2098
        %2120 = vmatprep.subr.bf16.mxu0 0
        %2121 = vmatpush1.bf16.msra.mxu0 %v2099
        %2122 = vmatprep.subr.bf16.mxu0 0
        %2123 = vmatpush1.bf16.msra.mxu0 %v2100
        %2124 = vmatprep.subr.bf16.mxu0 0
        %2125 = vmatpush1.bf16.msra.mxu0 %v2112
        %2126 = vmatprep.subr.bf16.mxu0 0
        %2127 = vmatpush1.bf16.msra.mxu0 0
        %2128 = vmatprep.subr.bf16.mxu0 0
        %2129 = vmatpush1.bf16.msra.mxu0 0
        %2130 = vmatprep.subr.bf16.mxu0 0
        %2131 = vmatpush1.bf16.msra.mxu0 0
        %2132 = vmatprep.subr.bf16.mxu0 0
        %2133 = vmatpush1.bf16.msra.mxu0 0
        %2134 = vmatprep.subr.bf16.mxu0 0
        %2135 = vmatpush1.bf16.msra.mxu0 0
        %2136 = vmatprep.subr.bf16.mxu0 0
        %2137 = vmatpush1.bf16.msra.mxu0 0
        %2138 = vmatprep.subr.bf16.mxu0 0
        %2139 = vmatpush1.bf16.msra.mxu0 0
        %2140 = vmatprep.subr.bf16.mxu0 0
        %2141 = vmatpush1.bf16.msra.mxu0 0
        %2142 = vmatprep.subr.bf16.mxu0 0
        %2143 = vmatpush1.bf16.msra.mxu0 0
        %2144 = vmatprep.subr.bf16.mxu0 0
        %2145 = vmatpush1.bf16.msra.mxu0 0
        %2146 = vmatprep.mubr.bf16.mxu0 0
        %2147 = vmatmul.mubr.bf16.gmra.mrb[0].mxu0 %v2109
        %v2148 = vpop.f32.mrb[0].mxu0
        %v2149 = vadd.f32 0.0, %v2148
        %v2150 = vpop.f32.mrb[0].mxu0
        %v2151 = vpop.f32.mrb[0].mxu0
        %v2152 = vpop.f32.mrb[0].mxu0
        %2153 = vdwg.mxu0
        %v2154 = vadd.f32 %v1921, %v2149
        %2155 = vst.msk [vmem:[%s458] sm:$0xff] %vm863, %v2154
        %s2156 = sand.u32 %s328, 1
        %s2157 = scalar_lea.sflag [#allocation6], %s2156
        %s2158 = sand.u32 %s328, 1
        %s2159 = smul.addr %s2158, 8
        %s2160 = scalar_lea.vmem [#allocation7], %s2159
        // Predicated region
        $region81: #{tpu_custom_call.1} parent=71 // pred_check
          %p2161 = pneg %p338
        $region82: #{tpu_custom_call.1} parent=71 // pred_check_branch
          %2163 = sbr.rel (%p2161) target = $region84
        $region83: #{tpu_custom_call.1} parent=71 // pred_region
          %s2165 = ssub.s32 128, 128
          %2166 = vsyncadd %s2157, %s2165
          %s2167 = sadd.s32 %s33, %s32
          %s2168 = smul.addr %s2167, 128
          %s2169 = scalar_lea.hbm %s13, %s2168
          %s2171 = sshll.u32 %s2160, 4
          %s2172 = int_to_ptr.vmem [resolvable:$true] %s2171
          %2174 = dma.vmem_to_hbm [thread:$0]  %s2172, 128, %s2169, %s2157
        $region84: #{tpu_custom_call.1} parent=71 // pred_fallthru
          _
      $region72: #{tpu_custom_call.1} parent=5 // pred_fallthru
        _
      %p2175 = scmp.le.s32.totalorder 2, %s23
      // Predicated region
      $region85: #{tpu_custom_call.1} parent=5 // pred_check
        %p2176 = pneg %p2175
      $region86: #{tpu_custom_call.1} parent=5 // pred_check_branch
        %2178 = sbr.rel (%p2176) target = $region88
      $region87: #{tpu_custom_call.1} parent=5 // pred_region
        %s2179 = ssub.s32 %s23, 2
        // Predicated region
        $region89: #{tpu_custom_call.1} parent=87 // pred_check
          %p2180 = pneg %p344
        $region90: #{tpu_custom_call.1} parent=87 // pred_check_branch
          %2182 = sbr.rel (%p2180) target = $region92
        $region91: #{tpu_custom_call.1} parent=87 // pred_region
          %s2183 = sand.u32 %s329, 1
          %s2184 = scalar_lea.sflag [#allocation6], %s2183
          %s2185 = sand.u32 %s329, 1
          %s2186 = smul.addr %s2185, 8
          %s2187 = scalar_lea.vmem [#allocation7], %s2186
          %2188 = dma.done %s2184, 128
        $region92: #{tpu_custom_call.1} parent=87 // pred_fallthru
          _
      $region88: #{tpu_custom_call.1} parent=5 // pred_fallthru
        _
    $region6: #{tpu_custom_call.1} parent=1 // loop_footer
      %s27 = sadd.s32 1, %s23
    $region7: #{tpu_custom_call.1} parent=1 // loop_footer_branch
      %22 = sbr.rel target = $region3
    $region8: #{tpu_custom_call.1} parent=1 // loop_exit
      _
    %2189 = vsyncpa [#allocation5], 1
    %s2190 = scalar_lea.sflag [#allocation5], 1
    %2191 = vsyncpa %s2190, 1
    %2192 = vsyncpa [#allocation6], 1
    %s2193 = scalar_lea.sflag [#allocation6], 1
    %2194 = vsyncpa %s2193, 1

// kernel: tpu_custom_call.1
$region0: #{tpu_custom_call.1}
  #allocation0 [shape = 'u32[]', space=smem, size = 0x4, offset = 0x4, fixed_abs, tag = 'smem constant byte address 0x4 - core index']
  #allocation1 [shape = 'u32[144,128]{1,0:T(1,128)}', space=vmem, size = 0x12000, scoped, tag = 'internal scratch']
  #allocation2 [shape = 'bf16[4,8,8]{2,1,0:T(8,128)(2,1)}', space=vmem, size = 0x2000, scoped, tag = 'scratch operand']
  #allocation3 [shape = 'bf16[4,8,8]{2,1,0:T(8,128)(2,1)}', space=vmem, size = 0x2000, scoped, tag = 'scratch operand']
  %s0 = inlined_call_operand.vmem [shape: f32[2,8,32], index: 0, kind: input, shape index: {}]
  %s1 = inlined_call_operand.vmem [shape: f32[8,4], index: 1, kind: input, shape index: {}]
  %s2 = inlined_call_operand.vmem [shape: f32[8,4], index: 2, kind: input, shape index: {}]
  %s3 = inlined_call_operand.vmem [shape: f32[1,32], index: 3, kind: input, shape index: {}]
  %s4 = inlined_call_operand.vmem [shape: bf16[32,32], index: 4, kind: input, shape index: {}]
  %s5 = inlined_call_operand.vmem [shape: bf16[32,64], index: 5, kind: input, shape index: {}]
  %s6 = inlined_call_operand.vmem [shape: bf16[32,32], index: 6, kind: input, shape index: {}]
  %s7 = inlined_call_operand.vmem [shape: f32[1,32], index: 7, kind: input, shape index: {}]
  %s8 = inlined_call_operand.hbm [shape: f32[1,32], index: 8, kind: input, shape index: {}]
  %s9 = inlined_call_operand.vmem [shape: bf16[32,88], index: 9, kind: input, shape index: {}]
  %s10 = inlined_call_operand.vmem [shape: bf16[32,88], index: 10, kind: input, shape index: {}]
  %s11 = inlined_call_operand.vmem [shape: bf16[88,32], index: 11, kind: input, shape index: {}]
  %s12 = inlined_call_operand.vmem [shape: f32[1,32], index: 12, kind: input, shape index: {}]
  %s13 = inlined_call_operand.hbm [shape: f32[2,8,32], index: 13, kind: output, shape index: {}]
  %s14 = sld [smem:[#allocation0]]
  $region93: #{tpu_custom_call.1} parent=0
    _
  %s16 = ssub.s32 1, %s14
  %s17 = scalar_select 0, %s16, %s14
  $region1: #{tpu_custom_call.1} parent=0
    #allocation4 [shape = 'u8[512]{0}', space=vmem, size = 0x400, scoped, tag = 'input window, operand 8, single buffered']
    #allocation5 [shape = 's32[2]{0}', space=sflag, size = 0x8, scoped, tag = 'scoped memory for tpu_custom_call.1']
    #allocation6 [shape = 's32[2]{0}', space=sflag, size = 0x8, scoped, tag = 'scoped memory for tpu_custom_call.1']
    #allocation7 [shape = 'u8[8192]{0}', space=vmem, size = 0x2000, scoped, tag = 'output window, operand 0']
    %18 = vsyncpa [#allocation5], 0
    %19 = vsyncpa [#allocation6], 0
    %s20 = scalar_lea.sflag [#allocation6], 1
    %21 = vsyncpa %s20, 0
    loop: start=0, step=1, limit=4
    $region2: #{tpu_custom_call.1} parent=1 // loop_pre_header
      _
    $region3: #{tpu_custom_call.1} parent=1 // loop_header
      %s23 = sphi 0, %s27
      %p24 = scmp.ge.s32.totalorder %s23, 4
      %s30 = sphi 0, %s42
      %s31 = sphi 0, %s38
      %s32 = sphi 0, %s30
      %s33 = sphi 0, %s31
      %s34 = sphi 0, %s32
      %s35 = sphi 0, %s33
      %s45 = sphi 0, %s47
      %s48 = sphi 0, %s45
      %s49 = sphi 0, %s48
      %s65 = sphi 0, %s49
      %s69 = sphi 0, %s69
      %s71 = sphi 0, %s69
      %s72 = sphi 0, %s71
      %s86 = sphi 0, %s72
      %s90 = sphi 0, %s90
      %s92 = sphi 0, %s90
      %s93 = sphi 0, %s92
      %s107 = sphi 0, %s93
      %s111 = sphi 0, %s111
      %s113 = sphi 0, %s111
      %s114 = sphi 0, %s113
      %s128 = sphi 0, %s114
      %s132 = sphi 0, %s132
      %s134 = sphi 0, %s132
      %s135 = sphi 0, %s134
      %s149 = sphi 0, %s135
      %s153 = sphi 0, %s153
      %s155 = sphi 0, %s153
      %s156 = sphi 0, %s155
      %s170 = sphi 0, %s156
      %s174 = sphi 0, %s174
      %s176 = sphi 0, %s174
      %s177 = sphi 0, %s176
      %s191 = sphi 0, %s177
      %s195 = sphi 0, %s195
      %s197 = sphi 0, %s195
      %s198 = sphi 0, %s197
      %s212 = sphi 0, %s198
      %s216 = sphi 0, %s216
      %s218 = sphi 0, %s216
      %s219 = sphi 0, %s218
      %s233 = sphi 0, %s219
      %s237 = sphi 0, %s237
      %s239 = sphi 0, %s237
      %s240 = sphi 0, %s239
      %s254 = sphi 0, %s240
      %s258 = sphi 0, %s258
      %s260 = sphi 0, %s258
      %s261 = sphi 0, %s260
      %s275 = sphi 0, %s261
      %s279 = sphi 0, %s279
      %s281 = sphi 0, %s279
      %s282 = sphi 0, %s281
      %s296 = sphi 0, %s282
      %s300 = sphi 0, %s300
      %s302 = sphi 0, %s300
      %s303 = sphi 0, %s302
      %s317 = sphi 0, %s303
      %s325 = sphi 0, %s327
      %s328 = sphi 0, %s325
      %s329 = sphi 0, %s328
      %s345 = sphi 0, %s329
    $region4: #{tpu_custom_call.1} parent=1 // loop_header_branch
      %26 = sbr.rel (%p24) target = $region8
    $region5: #{tpu_custom_call.1} parent=1 // loop_body
      %s28 = ssub.s32 %s23, 1
      %s29 = ssub.s32 %s23, 2
      %s36 = sadd.s32 1, %s31
      %p37 = scmp.ge.s32.totalorder %s36, 1
      %s38 = scalar_select %p37, 0, %s36
      %s39 = sadd.s32 1, %s30
      %s40 = scalar_select %p37, %s39, %s30
      %p41 = scmp.ge.s32.totalorder %s40, 2
      %s42 = scalar_select %p41, 0, %s40
      %s43 = ssub.s32 %s30, %s42
      %p44 = scmp.eq.s32.totalorder %s43, 0
      %s46 = sadd.s32 %s45, 1
      %s47 = scalar_select %p44, %s45, %s46
      %p50 = pneg %p44
      %p51 = scmp.eq.s32.totalorder %s23, 1
      %p52 = por %p50, %p51
      %p53 = scmp.ne.s32.totalorder %s45, %s48
      %p54 = scmp.eq.s32.totalorder %s23, 0
      %p55 = por %p53, %p54
      %p56 = scmp.ne.s32.totalorder %s45, %s48
      %p57 = scmp.eq.s32.totalorder %s28, 1
      %p58 = por %p56, %p57
      %p59 = scmp.ne.s32.totalorder %s48, %s49
      %p60 = scmp.eq.s32.totalorder %s28, 0
      %p61 = por %p59, %p60
      %p62 = scmp.ne.s32.totalorder %s48, %s49
      %p63 = scmp.eq.s32.totalorder %s29, 1
      %p64 = por %p62, %p63
      %p66 = scmp.ne.s32.totalorder %s49, %s65
      %p67 = scmp.eq.s32.totalorder %s29, 0
      %p68 = por %p66, %p67
      %s70 = sadd.s32 %s69, 1
      %p73 = scmp.eq.s32.totalorder %s23, 1
      %p74 = scmp.ne.s32.totalorder %s69, %s71
      %p75 = scmp.eq.s32.totalorder %s23, 0
      %p76 = por %p74, %p75
      %p77 = scmp.ne.s32.totalorder %s69, %s71
      %p78 = scmp.eq.s32.totalorder %s28, 1
      %p79 = por %p77, %p78
      %p80 = scmp.ne.s32.totalorder %s71, %s72
      %p81 = scmp.eq.s32.totalorder %s28, 0
      %p82 = por %p80, %p81
      %p83 = scmp.ne.s32.totalorder %s71, %s72
      %p84 = scmp.eq.s32.totalorder %s29, 1
      %p85 = por %p83, %p84
      %p87 = scmp.ne.s32.totalorder %s72, %s86
      %p88 = scmp.eq.s32.totalorder %s29, 0
      %p89 = por %p87, %p88
      %s91 = sadd.s32 %s90, 1
      %p94 = scmp.eq.s32.totalorder %s23, 1
      %p95 = scmp.ne.s32.totalorder %s90, %s92
      %p96 = scmp.eq.s32.totalorder %s23, 0
      %p97 = por %p95, %p96
      %p98 = scmp.ne.s32.totalorder %s90, %s92
      %p99 = scmp.eq.s32.totalorder %s28, 1
      %p100 = por %p98, %p99
      %p101 = scmp.ne.s32.totalorder %s92, %s93
      %p102 = scmp.eq.s32.totalorder %s28, 0
      %p103 = por %p101, %p102
      %p104 = scmp.ne.s32.totalorder %s92, %s93
      %p105 = scmp.eq.s32.totalorder %s29, 1
      %p106 = por %p104, %p105
      %p108 = scmp.ne.s32.totalorder %s93, %s107
      %p109 = scmp.eq.s32.totalorder %s29, 0
      %p110 = por %p108, %p109
      %s112 = sadd.s32 %s111, 1
      %p115 = scmp.eq.s32.totalorder %s23, 1
      %p116 = scmp.ne.s32.totalorder %s111, %s113
      %p117 = scmp.eq.s32.totalorder %s23, 0
      %p118 = por %p116, %p117
      %p119 = scmp.ne.s32.totalorder %s111, %s113
      %p120 = scmp.eq.s32.totalorder %s28, 1
      %p121 = por %p119, %p120
      %p122 = scmp.ne.s32.totalorder %s113, %s114
      %p123 = scmp.eq.s32.totalorder %s28, 0
      %p124 = por %p122, %p123
      %p125 = scmp.ne.s32.totalorder %s113, %s114
      %p126 = scmp.eq.s32.totalorder %s29, 1
      %p127 = por %p125, %p126
      %p129 = scmp.ne.s32.totalorder %s114, %s128
      %p130 = scmp.eq.s32.totalorder %s29, 0
      %p131 = por %p129, %p130
      %s133 = sadd.s32 %s132, 1
      %p136 = scmp.eq.s32.totalorder %s23, 1
      %p137 = scmp.ne.s32.totalorder %s132, %s134
      %p138 = scmp.eq.s32.totalorder %s23, 0
      %p139 = por %p137, %p138
      %p140 = scmp.ne.s32.totalorder %s132, %s134
      %p141 = scmp.eq.s32.totalorder %s28, 1
      %p142 = por %p140, %p141
      %p143 = scmp.ne.s32.totalorder %s134, %s135
      %p144 = scmp.eq.s32.totalorder %s28, 0
      %p145 = por %p143, %p144
      %p146 = scmp.ne.s32.totalorder %s134, %s135
      %p147 = scmp.eq.s32.totalorder %s29, 1
      %p148 = por %p146, %p147
      %p150 = scmp.ne.s32.totalorder %s135, %s149
      %p151 = scmp.eq.s32.totalorder %s29, 0
      %p152 = por %p150, %p151
      %s154 = sadd.s32 %s153, 1
      %p157 = scmp.eq.s32.totalorder %s23, 1
      %p158 = scmp.ne.s32.totalorder %s153, %s155
      %p159 = scmp.eq.s32.totalorder %s23, 0
      %p160 = por %p158, %p159
      %p161 = scmp.ne.s32.totalorder %s153, %s155
      %p162 = scmp.eq.s32.totalorder %s28, 1
      %p163 = por %p161, %p162
      %p164 = scmp.ne.s32.totalorder %s155, %s156
      %p165 = scmp.eq.s32.totalorder %s28, 0
      %p166 = por %p164, %p165
      %p167 = scmp.ne.s32.totalorder %s155, %s156
      %p168 = scmp.eq.s32.totalorder %s29, 1
      %p169 = por %p167, %p168
      %p171 = scmp.ne.s32.totalorder %s156, %s170
      %p172 = scmp.eq.s32.totalorder %s29, 0
      %p173 = por %p171, %p172
      %s175 = sadd.s32 %s174, 1
      %p178 = scmp.eq.s32.totalorder %s23, 1
      %p179 = scmp.ne.s32.totalorder %s174, %s176
      %p180 = scmp.eq.s32.totalorder %s23, 0
      %p181 = por %p179, %p180
      %p182 = scmp.ne.s32.totalorder %s174, %s176
      %p183 = scmp.eq.s32.totalorder %s28, 1
      %p184 = por %p182, %p183
      %p185 = scmp.ne.s32.totalorder %s176, %s177
      %p186 = scmp.eq.s32.totalorder %s28, 0
      %p187 = por %p185, %p186
      %p188 = scmp.ne.s32.totalorder %s176, %s177
      %p189 = scmp.eq.s32.totalorder %s29, 1
      %p190 = por %p188, %p189
      %p192 = scmp.ne.s32.totalorder %s177, %s191
      %p193 = scmp.eq.s32.totalorder %s29, 0
      %p194 = por %p192, %p193
      %s196 = sadd.s32 %s195, 1
      %p199 = scmp.eq.s32.totalorder %s23, 1
      %p200 = scmp.ne.s32.totalorder %s195, %s197
      %p201 = scmp.eq.s32.totalorder %s23, 0
      %p202 = por %p200, %p201
      %p203 = scmp.ne.s32.totalorder %s195, %s197
      %p204 = scmp.eq.s32.totalorder %s28, 1
      %p205 = por %p203, %p204
      %p206 = scmp.ne.s32.totalorder %s197, %s198
      %p207 = scmp.eq.s32.totalorder %s28, 0
      %p208 = por %p206, %p207
      %p209 = scmp.ne.s32.totalorder %s197, %s198
      %p210 = scmp.eq.s32.totalorder %s29, 1
      %p211 = por %p209, %p210
      %p213 = scmp.ne.s32.totalorder %s198, %s212
      %p214 = scmp.eq.s32.totalorder %s29, 0
      %p215 = por %p213, %p214
      %s217 = sadd.s32 %s216, 1
      %p220 = scmp.eq.s32.totalorder %s23, 1
      %p221 = scmp.ne.s32.totalorder %s216, %s218
      %p222 = scmp.eq.s32.totalorder %s23, 0
      %p223 = por %p221, %p222
      %p224 = scmp.ne.s32.totalorder %s216, %s218
      %p225 = scmp.eq.s32.totalorder %s28, 1
      %p226 = por %p224, %p225
      %p227 = scmp.ne.s32.totalorder %s218, %s219
      %p228 = scmp.eq.s32.totalorder %s28, 0
      %p229 = por %p227, %p228
      %p230 = scmp.ne.s32.totalorder %s218, %s219
      %p231 = scmp.eq.s32.totalorder %s29, 1
      %p232 = por %p230, %p231
      %p234 = scmp.ne.s32.totalorder %s219, %s233
      %p235 = scmp.eq.s32.totalorder %s29, 0
      %p236 = por %p234, %p235
      %s238 = sadd.s32 %s237, 1
      %p241 = scmp.eq.s32.totalorder %s23, 1
      %p242 = scmp.ne.s32.totalorder %s237, %s239
      %p243 = scmp.eq.s32.totalorder %s23, 0
      %p244 = por %p242, %p243
      %p245 = scmp.ne.s32.totalorder %s237, %s239
      %p246 = scmp.eq.s32.totalorder %s28, 1
      %p247 = por %p245, %p246
      %p248 = scmp.ne.s32.totalorder %s239, %s240
      %p249 = scmp.eq.s32.totalorder %s28, 0
      %p250 = por %p248, %p249
      %p251 = scmp.ne.s32.totalorder %s239, %s240
      %p252 = scmp.eq.s32.totalorder %s29, 1
      %p253 = por %p251, %p252
      %p255 = scmp.ne.s32.totalorder %s240, %s254
      %p256 = scmp.eq.s32.totalorder %s29, 0
      %p257 = por %p255, %p256
      %s259 = sadd.s32 %s258, 1
      %p262 = scmp.eq.s32.totalorder %s23, 1
      %p263 = scmp.ne.s32.totalorder %s258, %s260
      %p264 = scmp.eq.s32.totalorder %s23, 0
      %p265 = por %p263, %p264
      %p266 = scmp.ne.s32.totalorder %s258, %s260
      %p267 = scmp.eq.s32.totalorder %s28, 1
      %p268 = por %p266, %p267
      %p269 = scmp.ne.s32.totalorder %s260, %s261
      %p270 = scmp.eq.s32.totalorder %s28, 0
      %p271 = por %p269, %p270
      %p272 = scmp.ne.s32.totalorder %s260, %s261
      %p273 = scmp.eq.s32.totalorder %s29, 1
      %p274 = por %p272, %p273
      %p276 = scmp.ne.s32.totalorder %s261, %s275
      %p277 = scmp.eq.s32.totalorder %s29, 0
      %p278 = por %p276, %p277
      %s280 = sadd.s32 %s279, 1
      %p283 = scmp.eq.s32.totalorder %s23, 1
      %p284 = scmp.ne.s32.totalorder %s279, %s281
      %p285 = scmp.eq.s32.totalorder %s23, 0
      %p286 = por %p284, %p285
      %p287 = scmp.ne.s32.totalorder %s279, %s281
      %p288 = scmp.eq.s32.totalorder %s28, 1
      %p289 = por %p287, %p288
      %p290 = scmp.ne.s32.totalorder %s281, %s282
      %p291 = scmp.eq.s32.totalorder %s28, 0
      %p292 = por %p290, %p291
      %p293 = scmp.ne.s32.totalorder %s281, %s282
      %p294 = scmp.eq.s32.totalorder %s29, 1
      %p295 = por %p293, %p294
      %p297 = scmp.ne.s32.totalorder %s282, %s296
      %p298 = scmp.eq.s32.totalorder %s29, 0
      %p299 = por %p297, %p298
      %s301 = sadd.s32 %s300, 1
      %p304 = scmp.eq.s32.totalorder %s23, 1
      %p305 = scmp.ne.s32.totalorder %s300, %s302
      %p306 = scmp.eq.s32.totalorder %s23, 0
      %p307 = por %p305, %p306
      %p308 = scmp.ne.s32.totalorder %s300, %s302
      %p309 = scmp.eq.s32.totalorder %s28, 1
      %p310 = por %p308, %p309
      %p311 = scmp.ne.s32.totalorder %s302, %s303
      %p312 = scmp.eq.s32.totalorder %s28, 0
      %p313 = por %p311, %p312
      %p314 = scmp.ne.s32.totalorder %s302, %s303
      %p315 = scmp.eq.s32.totalorder %s29, 1
      %p316 = por %p314, %p315
      %p318 = scmp.ne.s32.totalorder %s303, %s317
      %p319 = scmp.eq.s32.totalorder %s29, 0
      %p320 = por %p318, %p319
      %s321 = ssub.s32 %s30, %s42
      %s322 = ssub.s32 %s31, %s38
      %s323 = sor.u32 %s321, %s322
      %p324 = scmp.eq.s32.totalorder %s323, 0
      %s326 = sadd.s32 %s325, 1
      %s327 = scalar_select %p324, %s325, %s326
      %p330 = pneg %p324
      %p331 = scmp.eq.s32.totalorder %s23, 1
      %p332 = por %p330, %p331
      %p333 = scmp.ne.s32.totalorder %s325, %s328
      %p334 = scmp.eq.s32.totalorder %s23, 0
      %p335 = por %p333, %p334
      %p336 = scmp.ne.s32.totalorder %s325, %s328
      %p337 = scmp.eq.s32.totalorder %s28, 1
      %p338 = por %p336, %p337
      %p339 = scmp.ne.s32.totalorder %s328, %s329
      %p340 = scmp.eq.s32.totalorder %s28, 0
      %p341 = por %p339, %p340
      %p342 = scmp.ne.s32.totalorder %s328, %s329
      %p343 = scmp.eq.s32.totalorder %s29, 1
      %p344 = por %p342, %p343
      %p346 = scmp.ne.s32.totalorder %s329, %s345
      %p347 = scmp.eq.s32.totalorder %s29, 0
      %p348 = por %p346, %p347
      %p349 = scmp.le.s32.totalorder 1, %s23
      %p350 = scmp.lt.s32.totalorder %s23, 3
      %p351 = pnand %p349, %p350
      %p352 = pneg %p351
      // Predicated region
      $region9: #{tpu_custom_call.1} parent=5 // pred_check
        _
      $region10: #{tpu_custom_call.1} parent=5 // pred_check_branch
        %354 = sbr.rel (%p351) target = $region12
      $region11: #{tpu_custom_call.1} parent=5 // pred_region
        %s355 = ssub.s32 %s23, 1
        // Predicated region
        $region13: #{tpu_custom_call.1} parent=11 // pred_check
          %p356 = pneg %p82
        $region14: #{tpu_custom_call.1} parent=11 // pred_check_branch
          %358 = sbr.rel (%p356) target = $region16
        $region15: #{tpu_custom_call.1} parent=11 // pred_region
          _
        $region16: #{tpu_custom_call.1} parent=11 // pred_fallthru
          _
        // Predicated region
        $region17: #{tpu_custom_call.1} parent=11 // pred_check
          %p359 = pneg %p103
        $region18: #{tpu_custom_call.1} parent=11 // pred_check_branch
          %361 = sbr.rel (%p359) target = $region20
        $region19: #{tpu_custom_call.1} parent=11 // pred_region
          _
        $region20: #{tpu_custom_call.1} parent=11 // pred_fallthru
          _
        // Predicated region
        $region21: #{tpu_custom_call.1} parent=11 // pred_check
          %p362 = pneg %p124
        $region22: #{tpu_custom_call.1} parent=11 // pred_check_branch
          %364 = sbr.rel (%p362) target = $region24
        $region23: #{tpu_custom_call.1} parent=11 // pred_region
          _
        $region24: #{tpu_custom_call.1} parent=11 // pred_fallthru
          _
        // Predicated region
        $region25: #{tpu_custom_call.1} parent=11 // pred_check
          %p365 = pneg %p145
        $region26: #{tpu_custom_call.1} parent=11 // pred_check_branch
          %367 = sbr.rel (%p365) target = $region28
        $region27: #{tpu_custom_call.1} parent=11 // pred_region
          _
        $region28: #{tpu_custom_call.1} parent=11 // pred_fallthru
          _
        // Predicated region
        $region29: #{tpu_custom_call.1} parent=11 // pred_check
          %p368 = pneg %p166
        $region30: #{tpu_custom_call.1} parent=11 // pred_check_branch
          %370 = sbr.rel (%p368) target = $region32
        $region31: #{tpu_custom_call.1} parent=11 // pred_region
          _
        $region32: #{tpu_custom_call.1} parent=11 // pred_fallthru
          _
        // Predicated region
        $region33: #{tpu_custom_call.1} parent=11 // pred_check
          %p371 = pneg %p187
        $region34: #{tpu_custom_call.1} parent=11 // pred_check_branch
          %373 = sbr.rel (%p371) target = $region36
        $region35: #{tpu_custom_call.1} parent=11 // pred_region
          _
        $region36: #{tpu_custom_call.1} parent=11 // pred_fallthru
          _
        // Predicated region
        $region37: #{tpu_custom_call.1} parent=11 // pred_check
          %p374 = pneg %p208
        $region38: #{tpu_custom_call.1} parent=11 // pred_check_branch
          %376 = sbr.rel (%p374) target = $region40
        $region39: #{tpu_custom_call.1} parent=11 // pred_region
          _
        $region40: #{tpu_custom_call.1} parent=11 // pred_fallthru
          _
        // Predicated region
        $region41: #{tpu_custom_call.1} parent=11 // pred_check
          %p377 = pneg %p229
        $region42: #{tpu_custom_call.1} parent=11 // pred_check_branch
          %379 = sbr.rel (%p377) target = $region44
        $region43: #{tpu_custom_call.1} parent=11 // pred_region
          %s381 = ssub.s32 16, 16
          %382 = vsyncadd [#allocation5], %s381
          %s384 = sshll.u32 [#allocation4], 4
          %s385 = int_to_ptr.vmem [resolvable:$true] %s384
          %387 = dma.hbm_to_vmem [thread:$0]  %s8, 16, %s385, [#allocation5]
        $region44: #{tpu_custom_call.1} parent=11 // pred_fallthru
          _
        // Predicated region
        $region45: #{tpu_custom_call.1} parent=11 // pred_check
          %p388 = pneg %p250
        $region46: #{tpu_custom_call.1} parent=11 // pred_check_branch
          %390 = sbr.rel (%p388) target = $region48
        $region47: #{tpu_custom_call.1} parent=11 // pred_region
          _
        $region48: #{tpu_custom_call.1} parent=11 // pred_fallthru
          _
        // Predicated region
        $region49: #{tpu_custom_call.1} parent=11 // pred_check
          %p391 = pneg %p271
        $region50: #{tpu_custom_call.1} parent=11 // pred_check_branch
          %393 = sbr.rel (%p391) target = $region52
        $region51: #{tpu_custom_call.1} parent=11 // pred_region
          _
        $region52: #{tpu_custom_call.1} parent=11 // pred_fallthru
          _
        // Predicated region
        $region53: #{tpu_custom_call.1} parent=11 // pred_check
          %p394 = pneg %p292
        $region54: #{tpu_custom_call.1} parent=11 // pred_check_branch
          %396 = sbr.rel (%p394) target = $region56
        $region55: #{tpu_custom_call.1} parent=11 // pred_region
          _
        $region56: #{tpu_custom_call.1} parent=11 // pred_fallthru
          _
        // Predicated region
        $region57: #{tpu_custom_call.1} parent=11 // pred_check
          %p397 = pneg %p313
        $region58: #{tpu_custom_call.1} parent=11 // pred_check_branch
          %399 = sbr.rel (%p397) target = $region60
        $region59: #{tpu_custom_call.1} parent=11 // pred_region
          _
        $region60: #{tpu_custom_call.1} parent=11 // pred_fallthru
          _
      $region12: #{tpu_custom_call.1} parent=5 // pred_fallthru
        _
      %p400 = scmp.lt.s32.totalorder %s23, 2
      // Predicated region
      $region61: #{tpu_custom_call.1} parent=5 // pred_check
        %p401 = pneg %p400
      $region62: #{tpu_custom_call.1} parent=5 // pred_check_branch
        %403 = sbr.rel (%p401) target = $region64
      $region63: #{tpu_custom_call.1} parent=5 // pred_region
        // Predicated region
        $region65: #{tpu_custom_call.1} parent=63 // pred_check
          %p404 = pneg %p55
        $region66: #{tpu_custom_call.1} parent=63 // pred_check_branch
          %406 = sbr.rel (%p404) target = $region68
        $region67: #{tpu_custom_call.1} parent=63 // pred_region
          %p407 = scmp.lt.s32.totalorder %s30, 1
          %s408 = scalar_select %p407, %s30, 1
          %s409 = smul.addr %s408, 8
          %s410 = scalar_lea.vmem %s0, %s409
        $region68: #{tpu_custom_call.1} parent=63 // pred_fallthru
          _
      $region64: #{tpu_custom_call.1} parent=5 // pred_fallthru
        _
      %p411 = scmp.le.s32.totalorder 1, %s23
      %p412 = scmp.lt.s32.totalorder %s23, 3
      %p413 = pnand %p411, %p412
      %p414 = pneg %p413
      // Predicated region
      $region69: #{tpu_custom_call.1} parent=5 // pred_check
        _
      $region70: #{tpu_custom_call.1} parent=5 // pred_check_branch
        %416 = sbr.rel (%p413) target = $region72
      $region71: #{tpu_custom_call.1} parent=5 // pred_region
        %s417 = ssub.s32 %s23, 1
        // Predicated region
        $region73: #{tpu_custom_call.1} parent=71 // pred_check
          %p418 = pneg %p229
        $region74: #{tpu_custom_call.1} parent=71 // pred_check_branch
          %420 = sbr.rel (%p418) target = $region76
        $region75: #{tpu_custom_call.1} parent=71 // pred_region
          %421 = dma.done [#allocation5], 16
        $region76: #{tpu_custom_call.1} parent=71 // pred_fallthru
          _
        %p422 = scmp.lt.s32.totalorder %s32, 1
        %s423 = scalar_select %p422, %s32, 1
        %s424 = smul.addr %s423, 8
        %s425 = scalar_lea.vmem %s0, %s424
        %p426 = pneg %p61
        %p427 = pneg %p58
        %p428 = pneg %p82
        %p429 = pneg %p79
        %p430 = pneg %p103
        %p431 = pneg %p100
        %p432 = pneg %p124
        %p433 = pneg %p121
        %p434 = pneg %p145
        %p435 = pneg %p142
        %p436 = pneg %p166
        %p437 = pneg %p163
        %p438 = pneg %p187
        %p439 = pneg %p184
        %p440 = pneg %p208
        %p441 = pneg %p205
        %p442 = pneg %p229
        %p443 = pneg %p226
        %p444 = pneg %p250
        %p445 = pneg %p247
        %p446 = pneg %p271
        %p447 = pneg %p268
        %p448 = pneg %p292
        %p449 = pneg %p289
        %p450 = pneg %p313
        %p451 = pneg %p310
        %p452 = pneg %p341
        %p453 = pneg %p338
        %s454 = sand.u32 %s328, 1
        %s455 = scalar_lea.sflag [#allocation6], %s454
        %s456 = sand.u32 %s328, 1
        %s457 = smul.addr %s456, 8
        %s458 = scalar_lea.vmem [#allocation7], %s457
        %p459 = scmp.lt.s32.totalorder %s32, 1
        %s460 = scalar_select %p459, %s32, 1
        %s461 = smul.addr %s460, 8
        %s462 = scalar_lea.vmem %s0, %s461
        %s464 = smul.u32 %s33, 8
        %v465 = vld [vmem:[%s3] sm:$0x1]
        %p466 = scmp.eq.s32.totalorder %s33, 0
        // Predicated region
        $region77: #{tpu_custom_call.1} parent=71 // pred_check
          %p467 = pneg %p466
        $region78: #{tpu_custom_call.1} parent=71 // pred_check_branch
          %469 = sbr.rel (%p467) target = $region80
        $region79: #{tpu_custom_call.1} parent=71 // pred_region
          %v470 = vld [vmem:[%s462] sm:$0xff]
          %v471 = vmul.f32 %v470, %v470
          %vm472 = vcmask 261120
          %v473 = vsel %vm472, %v471, 0.0
          %474 = vadd.xlane.f32.xlu0 %v473
          %v475 = vpop.xlane.xlu0 %474
          %v476 = vrcp.pop 32.0
          %v477 = vmul.f32 %v475, %v476
          %v478 = vadd.f32 %v477, 1e-05
          %v479 = vrsqrt.pop %v478
          %v480 = vmul.f32 %v470, %v479
          %v482 = vlaneseq
          %v483 = vshrl.u32 %v482, 7
          %v484 = vsub.s32 0, %v483
          %v485 = vrot.slane %v465, %v484
          %v487 = vmul.f32 %v480, %v485
          %v488 = vpack.c.bf16 %v487, %v487
          %v489 = vld [vmem:[%s5] sm:$0xf]
          %v490 = vld [vmem:[%s5 + $0x4] sm:$0xf]
          %v491 = vld [vmem:[%s5 + $0x8] sm:$0xf]
          %v492 = vld [vmem:[%s5 + $0xc] sm:$0xf]
          %v497 = vunpack.c.l.b16 %v489
          %v498 = vunpack.c.l.b16 %v490
          %v499 = vunpack.c.l.b16 %v491
          %v500 = vunpack.c.l.b16 %v492
          %v501 = vpack.c.b16 %v498, %v497
          %v502 = vpack.c.b16 %v500, %v499
          %v506 = vsel %vm472, %v488, 0
          %508 = vmatprep.subr.bf16.mxu0 0
          %509 = vmatpush1.bf16.msra.mxu0 %v501
          %510 = vmatprep.subr.bf16.mxu0 0
          %511 = vmatpush1.bf16.msra.mxu0 %v502
          %512 = vmatprep.subr.bf16.mxu0 0
          %513 = vmatpush1.bf16.msra.mxu0 0
          %514 = vmatprep.subr.bf16.mxu0 0
          %515 = vmatpush1.bf16.msra.mxu0 0
          %516 = vmatprep.subr.bf16.mxu0 0
          %517 = vmatpush1.bf16.msra.mxu0 0
          %518 = vmatprep.subr.bf16.mxu0 0
          %519 = vmatpush1.bf16.msra.mxu0 0
          %520 = vmatprep.subr.bf16.mxu0 0
          %521 = vmatpush1.bf16.msra.mxu0 0
          %522 = vmatprep.subr.bf16.mxu0 0
          %523 = vmatpush1.bf16.msra.mxu0 0
          %524 = vmatprep.subr.bf16.mxu0 0
          %525 = vmatpush1.bf16.msra.mxu0 0
          %526 = vmatprep.subr.bf16.mxu0 0
          %527 = vmatpush1.bf16.msra.mxu0 0
          %528 = vmatprep.subr.bf16.mxu0 0
          %529 = vmatpush1.bf16.msra.mxu0 0
          %530 = vmatprep.subr.bf16.mxu0 0
          %531 = vmatpush1.bf16.msra.mxu0 0
          %532 = vmatprep.subr.bf16.mxu0 0
          %533 = vmatpush1.bf16.msra.mxu0 0
          %534 = vmatprep.subr.bf16.mxu0 0
          %535 = vmatpush1.bf16.msra.mxu0 0
          %536 = vmatprep.subr.bf16.mxu0 0
          %537 = vmatpush1.bf16.msra.mxu0 0
          %538 = vmatprep.subr.bf16.mxu0 0
          %539 = vmatpush1.bf16.msra.mxu0 0
          %540 = vmatprep.mubr.bf16.mxu0 0
          %541 = vmatmul.mubr.bf16.gmra.mrb[0].mxu0 %v506
          %v542 = vpop.f32.mrb[0].mxu0
          %v543 = vadd.f32 0.0, %v542
          %v544 = vpop.f32.mrb[0].mxu0
          %v545 = vpop.f32.mrb[0].mxu0
          %v546 = vpop.f32.mrb[0].mxu0
          %547 = vdwg.mxu0
          %v548 = vld [vmem:[%s1] sm:$0xff]
          %550 = vrot.lane.b32.xlu0 %v548, 4
          %v551 = vpop.permute.xlu0 %550
          %553 = vrot.lane.b32.xlu0 %v548, 8
          %v554 = vpop.permute.xlu0 %553
          %556 = vrot.lane.b32.xlu0 %v548, 12
          %v557 = vpop.permute.xlu0 %556
          %vm559 = vcmask 31744
          %v560 = vsel %vm559, %v548, %v551
          %vm561 = vcmask 64512
          %v562 = vsel %vm561, %v560, %v554
          %vm563 = vcmask 97280
          %v564 = vsel %vm563, %v562, %v557
          %v565 = vld [vmem:[%s2] sm:$0xff]
          %567 = vrot.lane.b32.xlu0 %v565, 4
          %v568 = vpop.permute.xlu0 %567
          %570 = vrot.lane.b32.xlu0 %v565, 8
          %v571 = vpop.permute.xlu0 %570
          %573 = vrot.lane.b32.xlu0 %v565, 12
          %v574 = vpop.permute.xlu0 %573
          %v576 = vsel %vm559, %v565, %v568
          %v577 = vsel %vm561, %v576, %v571
          %v578 = vsel %vm563, %v577, %v574
          %v579 = vmul.f32 %v543, %v564
          %581 = vrot.lane.b32.xlu0 %v578, 16
          %v582 = vpop.permute.xlu0 %581
          %v584 = vmul.f32 %v543, %v582
          %586 = vrot.lane.b32.xlu0 %v584, 112
          %v587 = vpop.permute.xlu0 %586
          %v589 = vsub.f32 %v579, %v587
          %v590 = vmul.f32 %v543, %v578
          %592 = vrot.lane.b32.xlu0 %v564, 16
          %v593 = vpop.permute.xlu0 %592
          %v595 = vmul.f32 %v543, %v593
          %597 = vrot.lane.b32.xlu0 %v595, 112
          %v598 = vpop.permute.xlu0 %597
          %v600 = vadd.f32 %v590, %v598
          %601 = vxpose.xlu0.b32.start [1/16] %v589, 128
          %602 = vxpose.xlu0.b32.cont [2/16] 0.0, 128
          %603 = vxpose.xlu0.b32.cont [3/16] 0.0, 128
          %604 = vxpose.xlu0.b32.cont [4/16] 0.0, 128
          %605 = vxpose.xlu0.b32.cont [5/16] 0.0, 128
          %606 = vxpose.xlu0.b32.cont [6/16] 0.0, 128
          %607 = vxpose.xlu0.b32.cont [7/16] 0.0, 128
          %608 = vxpose.xlu0.b32.cont [8/16] 0.0, 128
          %609 = vxpose.xlu0.b32.cont [9/16] 0.0, 128
          %610 = vxpose.xlu0.b32.cont [10/16] 0.0, 128
          %611 = vxpose.xlu0.b32.cont [11/16] 0.0, 128
          %612 = vxpose.xlu0.b32.cont [12/16] 0.0, 128
          %613 = vxpose.xlu0.b32.cont [13/16] 0.0, 128
          %614 = vxpose.xlu0.b32.cont [14/16] 0.0, 128
          %615 = vxpose.xlu0.b32.cont [15/16] 0.0, 128
          %616 = vxpose.xlu0.b32.end [16/16] 0.0, 128
          %v617 = vpop.trf.xlu0
          %v618 = vpop.trf.xlu0
          %v619 = vpop.trf.xlu0
          %v620 = vpop.trf.xlu0
          %v621 = vpop.trf.xlu0
          %v622 = vpop.trf.xlu0
          %v623 = vpop.trf.xlu0
          %v624 = vpop.trf.xlu0
          %v625 = vpop.trf.xlu0
          %v626 = vpop.trf.xlu0
          %v627 = vpop.trf.xlu0
          %v628 = vpop.trf.xlu0
          %v629 = vpop.trf.xlu0
          %v630 = vpop.trf.xlu0
          %v631 = vpop.trf.xlu0
          %v632 = vpop.trf.xlu0
          %v635 = vcombine.high %v617, %v617
          %v636 = vcombine.high %v618, %v618
          %639 = vxpose.xlu0.b32.start [1/16] %v600, 128
          %640 = vxpose.xlu0.b32.cont [2/16] 0.0, 128
          %641 = vxpose.xlu0.b32.cont [3/16] 0.0, 128
          %642 = vxpose.xlu0.b32.cont [4/16] 0.0, 128
          %643 = vxpose.xlu0.b32.cont [5/16] 0.0, 128
          %644 = vxpose.xlu0.b32.cont [6/16] 0.0, 128
          %645 = vxpose.xlu0.b32.cont [7/16] 0.0, 128
          %646 = vxpose.xlu0.b32.cont [8/16] 0.0, 128
          %647 = vxpose.xlu0.b32.cont [9/16] 0.0, 128
          %648 = vxpose.xlu0.b32.cont [10/16] 0.0, 128
          %649 = vxpose.xlu0.b32.cont [11/16] 0.0, 128
          %650 = vxpose.xlu0.b32.cont [12/16] 0.0, 128
          %651 = vxpose.xlu0.b32.cont [13/16] 0.0, 128
          %652 = vxpose.xlu0.b32.cont [14/16] 0.0, 128
          %653 = vxpose.xlu0.b32.cont [15/16] 0.0, 128
          %654 = vxpose.xlu0.b32.end [16/16] 0.0, 128
          %v655 = vpop.trf.xlu0
          %v656 = vpop.trf.xlu0
          %v657 = vpop.trf.xlu0
          %v658 = vpop.trf.xlu0
          %v659 = vpop.trf.xlu0
          %v660 = vpop.trf.xlu0
          %v661 = vpop.trf.xlu0
          %v662 = vpop.trf.xlu0
          %v663 = vpop.trf.xlu0
          %v664 = vpop.trf.xlu0
          %v665 = vpop.trf.xlu0
          %v666 = vpop.trf.xlu0
          %v667 = vpop.trf.xlu0
          %v668 = vpop.trf.xlu0
          %v669 = vpop.trf.xlu0
          %v670 = vpop.trf.xlu0
          %v673 = vcombine.high %v655, %v655
          %v674 = vcombine.high %v656, %v656
          %v675 = vcombine.low %v655, %v655
          %v676 = vcombine.low %v673, %v673
          %v677 = vcombine.low %v656, %v656
          %v678 = vcombine.low %v674, %v674
          %vm683 = vcmask 1043456
          %v684 = vsel %vm683, %v617, %v675
          %v685 = vsel %vm683, %v635, %v676
          %v686 = vsel %vm683, %v618, %v677
          %v687 = vsel %vm683, %v636, %v678
          %v688 = vpack.c.bf16 %v684, %v684
          %v689 = vpack.c.bf16 %v685, %v685
          %v690 = vpack.c.bf16 %v686, %v686
          %v691 = vpack.c.bf16 %v687, %v687
          %vm692 = vcmask 60416
          %693 = vst.msk [vmem:[#allocation2] sm:$0xf] %vm692, %v688
          %694 = vst.msk [vmem:[#allocation2 + $0x4] sm:$0xf] %vm692, %v689
          %695 = vst.msk [vmem:[#allocation2 + $0x8] sm:$0xf] %vm692, %v690
          %696 = vst.msk [vmem:[#allocation2 + $0xc] sm:$0xf] %vm692, %v691
          %698 = vrot.lane.b32.xlu0 %v543, 120
          %v699 = vpop.permute.xlu0 %698
          %700 = vrot.lane.b32.xlu0 %v543, 112
          %v701 = vpop.permute.xlu0 %700
          %702 = vrot.lane.b32.xlu0 %v543, 104
          %v703 = vpop.permute.xlu0 %702
          %704 = vrot.lane.b32.xlu0 %v543, 96
          %v705 = vpop.permute.xlu0 %704
          %706 = vrot.lane.b32.xlu0 %v699, 96
          %v707 = vpop.permute.xlu0 %706
          %708 = vrot.lane.b32.xlu0 %v701, 96
          %v709 = vpop.permute.xlu0 %708
          %710 = vrot.lane.b32.xlu0 %v703, 96
          %v711 = vpop.permute.xlu0 %710
          %v716 = vcombine.low %v705, %v709
          %v717 = vcombine.high %v705, %v709
          %v719 = vunpack.c.l.s4 1983009808
          %v720 = vunpack.c.0.s8 %v719
          %v721 = vlaneseq
          %v722 = vshrl.u32 %v721, 7
          %v723 = vsub.s32 %v720, %v722
          %v724 = vrot.slane %v716, %v723
          %v726 = vunpack.c.l.s4 1983009808
          %v727 = vunpack.c.0.s8 %v726
          %v728 = vlaneseq
          %v729 = vshrl.u32 %v728, 7
          %v730 = vsub.s32 %v727, %v729
          %v731 = vrot.slane %v717, %v730
          %v732 = vcombine.low %v707, %v711
          %v733 = vcombine.high %v707, %v711
          %v735 = vunpack.c.l.s4 1983009808
          %v736 = vunpack.c.0.s8 %v735
          %v737 = vlaneseq
          %v738 = vshrl.u32 %v737, 7
          %v739 = vsub.s32 %v736, %v738
          %v740 = vrot.slane %v732, %v739
          %v742 = vunpack.c.l.s4 1983009808
          %v743 = vunpack.c.0.s8 %v742
          %v744 = vlaneseq
          %v745 = vshrl.u32 %v744, 7
          %v746 = vsub.s32 %v743, %v745
          %v747 = vrot.slane %v733, %v746
          %v748 = vcombine.low %v724, %v740
          %v749 = vcombine.high %v724, %v740
          %v751 = vunpack.c.l.s4 1934713408
          %v752 = vunpack.c.0.s8 %v751
          %v753 = vlaneseq
          %v754 = vshrl.u32 %v753, 7
          %v755 = vsub.s32 %v752, %v754
          %v756 = vrot.slane %v748, %v755
          %v758 = vunpack.c.l.s4 1934713408
          %v759 = vunpack.c.0.s8 %v758
          %v760 = vlaneseq
          %v761 = vshrl.u32 %v760, 7
          %v762 = vsub.s32 %v759, %v761
          %v763 = vrot.slane %v749, %v762
          %v764 = vcombine.low %v731, %v747
          %v765 = vcombine.high %v731, %v747
          %v767 = vunpack.c.l.s4 1934713408
          %v768 = vunpack.c.0.s8 %v767
          %v769 = vlaneseq
          %v770 = vshrl.u32 %v769, 7
          %v771 = vsub.s32 %v768, %v770
          %v772 = vrot.slane %v764, %v771
          %v774 = vunpack.c.l.s4 1934713408
          %v775 = vunpack.c.0.s8 %v774
          %v776 = vlaneseq
          %v777 = vshrl.u32 %v776, 7
          %v778 = vsub.s32 %v775, %v777
          %v779 = vrot.slane %v765, %v778
          %v780 = vcombine.high %v756, 0.0
          %v781 = vcombine.high %v763, 0.0
          %v782 = vcombine.high %v772, 0.0
          %v783 = vcombine.high %v779, 0.0
          %v784 = vcombine.low %v756, %v763
          %v786 = vunpack.c.l.s4 1983009808
          %v787 = vunpack.c.0.s8 %v786
          %v788 = vlaneseq
          %v789 = vshrl.u32 %v788, 7
          %v790 = vsub.s32 %v787, %v789
          %v791 = vrot.slane %v784, %v790
          %v792 = vcombine.low %v780, %v781
          %v794 = vunpack.c.l.s4 1983009808
          %v795 = vunpack.c.0.s8 %v794
          %v796 = vlaneseq
          %v797 = vshrl.u32 %v796, 7
          %v798 = vsub.s32 %v795, %v797
          %v799 = vrot.slane %v792, %v798
          %v800 = vcombine.low %v772, %v779
          %v802 = vunpack.c.l.s4 1983009808
          %v803 = vunpack.c.0.s8 %v802
          %v804 = vlaneseq
          %v805 = vshrl.u32 %v804, 7
          %v806 = vsub.s32 %v803, %v805
          %v807 = vrot.slane %v800, %v806
          %v808 = vcombine.low %v782, %v783
          %v810 = vunpack.c.l.s4 1983009808
          %v811 = vunpack.c.0.s8 %v810
          %v812 = vlaneseq
          %v813 = vshrl.u32 %v812, 7
          %v814 = vsub.s32 %v811, %v813
          %v815 = vrot.slane %v808, %v814
          %v816 = vcombine.low %v791, %v799
          %v817 = vcombine.high %v791, %v799
          %v819 = vunpack.c.l.s4 1934713408
          %v820 = vunpack.c.0.s8 %v819
          %v821 = vlaneseq
          %v822 = vshrl.u32 %v821, 7
          %v823 = vsub.s32 %v820, %v822
          %v824 = vrot.slane %v816, %v823
          %v826 = vunpack.c.l.s4 1934713408
          %v827 = vunpack.c.0.s8 %v826
          %v828 = vlaneseq
          %v829 = vshrl.u32 %v828, 7
          %v830 = vsub.s32 %v827, %v829
          %v831 = vrot.slane %v817, %v830
          %v832 = vcombine.low %v807, %v815
          %v833 = vcombine.high %v807, %v815
          %v835 = vunpack.c.l.s4 1934713408
          %v836 = vunpack.c.0.s8 %v835
          %v837 = vlaneseq
          %v838 = vshrl.u32 %v837, 7
          %v839 = vsub.s32 %v836, %v838
          %v840 = vrot.slane %v832, %v839
          %v842 = vunpack.c.l.s4 1934713408
          %v843 = vunpack.c.0.s8 %v842
          %v844 = vlaneseq
          %v845 = vshrl.u32 %v844, 7
          %v846 = vsub.s32 %v843, %v845
          %v847 = vrot.slane %v833, %v846
          %v848 = vcombine.low %v824, %v840
          %v849 = vcombine.high %v824, %v840
          %v850 = vcombine.low %v831, %v847
          %v851 = vcombine.high %v831, %v847
          %v852 = vpack.c.bf16 %v848, %v848
          %v853 = vpack.c.bf16 %v849, %v849
          %v854 = vpack.c.bf16 %v850, %v850
          %v855 = vpack.c.bf16 %v851, %v851
          %856 = vst.msk [vmem:[#allocation3] sm:$0xf] %vm692, %v852
          %857 = vst.msk [vmem:[#allocation3 + $0x4] sm:$0xf] %vm692, %v853
          %858 = vst.msk [vmem:[#allocation3 + $0x8] sm:$0xf] %vm692, %v854
          %859 = vst.msk [vmem:[#allocation3 + $0xc] sm:$0xf] %vm692, %v855
        $region80: #{tpu_custom_call.1} parent=71 // pred_fallthru
          _
        %s860 = scalar_lea.vmem %s462, %s464
        %v861 = vld [vmem:[%s860] sm:$0xff]
        %v862 = vmul.f32 %v861, %v861
        %vm863 = vcmask 261120
        %v864 = vsel %vm863, %v862, 0.0
        %865 = vadd.xlane.f32.xlu0 %v864
        %v866 = vpop.xlane.xlu0 %865
        %v867 = vrcp.pop 32.0
        %v868 = vmul.f32 %v866, %v867
        %v869 = vadd.f32 %v868, 1e-05
        %v870 = vrsqrt.pop %v869
        %v871 = vmul.f32 %v861, %v870
        %v873 = vlaneseq
        %v874 = vshrl.u32 %v873, 7
        %v875 = vsub.s32 0, %v874
        %v876 = vrot.slane %v465, %v875
        %v878 = vmul.f32 %v871, %v876
        %v879 = vpack.c.bf16 %v878, %v878
        %v880 = vld [vmem:[%s4] sm:$0xf]
        %v881 = vld [vmem:[%s4 + $0x4] sm:$0xf]
        %v882 = vld [vmem:[%s4 + $0x8] sm:$0xf]
        %v883 = vld [vmem:[%s4 + $0xc] sm:$0xf]
        %v888 = vunpack.c.l.b16 %v880
        %v889 = vunpack.c.l.b16 %v881
        %v890 = vunpack.c.l.b16 %v882
        %v891 = vunpack.c.l.b16 %v883
        %v892 = vpack.c.b16 %v889, %v888
        %v893 = vpack.c.b16 %v891, %v890
        %v897 = vsel %vm863, %v879, 0
        %899 = vmatprep.subr.bf16.mxu0 0
        %900 = vmatpush1.bf16.msra.mxu0 %v892
        %901 = vmatprep.subr.bf16.mxu0 0
        %902 = vmatpush1.bf16.msra.mxu0 %v893
        %903 = vmatprep.subr.bf16.mxu0 0
        %904 = vmatpush1.bf16.msra.mxu0 0
        %905 = vmatprep.subr.bf16.mxu0 0
        %906 = vmatpush1.bf16.msra.mxu0 0
        %907 = vmatprep.subr.bf16.mxu0 0
        %908 = vmatpush1.bf16.msra.mxu0 0
        %909 = vmatprep.subr.bf16.mxu0 0
        %910 = vmatpush1.bf16.msra.mxu0 0
        %911 = vmatprep.subr.bf16.mxu0 0
        %912 = vmatpush1.bf16.msra.mxu0 0
        %913 = vmatprep.subr.bf16.mxu0 0
        %914 = vmatpush1.bf16.msra.mxu0 0
        %915 = vmatprep.subr.bf16.mxu0 0
        %916 = vmatpush1.bf16.msra.mxu0 0
        %917 = vmatprep.subr.bf16.mxu0 0
        %918 = vmatpush1.bf16.msra.mxu0 0
        %919 = vmatprep.subr.bf16.mxu0 0
        %920 = vmatpush1.bf16.msra.mxu0 0
        %921 = vmatprep.subr.bf16.mxu0 0
        %922 = vmatpush1.bf16.msra.mxu0 0
        %923 = vmatprep.subr.bf16.mxu0 0
        %924 = vmatpush1.bf16.msra.mxu0 0
        %925 = vmatprep.subr.bf16.mxu0 0
        %926 = vmatpush1.bf16.msra.mxu0 0
        %927 = vmatprep.subr.bf16.mxu0 0
        %928 = vmatpush1.bf16.msra.mxu0 0
        %929 = vmatprep.subr.bf16.mxu0 0
        %930 = vmatpush1.bf16.msra.mxu0 0
        %931 = vmatprep.mubr.bf16.mxu0 0
        %932 = vmatmul.mubr.bf16.gmra.mrb[0].mxu0 %v897
        %v933 = vpop.f32.mrb[0].mxu0
        %v934 = vadd.f32 0.0, %v933
        %v935 = vpop.f32.mrb[0].mxu0
        %v936 = vpop.f32.mrb[0].mxu0
        %v937 = vpop.f32.mrb[0].mxu0
        %938 = vdwg.mxu0
        %s939 = scalar_lea.vmem %s1, %s464
        %v940 = vld [vmem:[%s939] sm:$0xff]
        %942 = vrot.lane.b32.xlu0 %v940, 4
        %v943 = vpop.permute.xlu0 %942
        %945 = vrot.lane.b32.xlu0 %v940, 8
        %v946 = vpop.permute.xlu0 %945
        %948 = vrot.lane.b32.xlu0 %v940, 12
        %v949 = vpop.permute.xlu0 %948
        %vm951 = vcmask 31744
        %v952 = vsel %vm951, %v940, %v943
        %vm953 = vcmask 64512
        %v954 = vsel %vm953, %v952, %v946
        %vm955 = vcmask 97280
        %v956 = vsel %vm955, %v954, %v949
        %s957 = scalar_lea.vmem %s2, %s464
        %v958 = vld [vmem:[%s957] sm:$0xff]
        %960 = vrot.lane.b32.xlu0 %v958, 4
        %v961 = vpop.permute.xlu0 %960
        %963 = vrot.lane.b32.xlu0 %v958, 8
        %v964 = vpop.permute.xlu0 %963
        %966 = vrot.lane.b32.xlu0 %v958, 12
        %v967 = vpop.permute.xlu0 %966
        %v969 = vsel %vm951, %v958, %v961
        %v970 = vsel %vm953, %v969, %v964
        %v971 = vsel %vm955, %v970, %v967
        %v972 = vmul.f32 %v934, %v956
        %974 = vrot.lane.b32.xlu0 %v971, 16
        %v975 = vpop.permute.xlu0 %974
        %v977 = vmul.f32 %v934, %v975
        %979 = vrot.lane.b32.xlu0 %v977, 112
        %v980 = vpop.permute.xlu0 %979
        %v982 = vsub.f32 %v972, %v980
        %v983 = vmul.f32 %v934, %v971
        %985 = vrot.lane.b32.xlu0 %v956, 16
        %v986 = vpop.permute.xlu0 %985
        %v988 = vmul.f32 %v934, %v986
        %990 = vrot.lane.b32.xlu0 %v988, 112
        %v991 = vpop.permute.xlu0 %990
        %v993 = vadd.f32 %v983, %v991
        %v994 = vlaneseq
        %v995 = vshrl.u32 %v994, 7
        %v996 = vstv %s464
        %v997 = vadd.s32 %v996, %v995
        %v998 = vlaneseq
        %v999 = vand.u32 %v998, 127
        %vm1000 = vcmp.le.s32.totalorder %v999, %v997
        %1002 = vrot.lane.b32.xlu0 %v982, 124
        %v1003 = vpop.permute.xlu0 %1002
        %1005 = vrot.lane.b32.xlu0 %v982, 120
        %v1006 = vpop.permute.xlu0 %1005
        %1008 = vrot.lane.b32.xlu0 %v982, 116
        %v1009 = vpop.permute.xlu0 %1008
        %v1011 = vcombine.low %v982, %v1006
        %v1012 = vcombine.high %v982, %v1006
        %v1014 = vunpack.c.l.s4 1983009808
        %v1015 = vunpack.c.0.s8 %v1014
        %v1016 = vlaneseq
        %v1017 = vshrl.u32 %v1016, 7
        %v1018 = vsub.s32 %v1015, %v1017
        %v1019 = vrot.slane %v1011, %v1018
        %v1021 = vunpack.c.l.s4 1983009808
        %v1022 = vunpack.c.0.s8 %v1021
        %v1023 = vlaneseq
        %v1024 = vshrl.u32 %v1023, 7
        %v1025 = vsub.s32 %v1022, %v1024
        %v1026 = vrot.slane %v1012, %v1025
        %v1027 = vcombine.low %v1003, %v1009
        %v1028 = vcombine.high %v1003, %v1009
        %v1030 = vunpack.c.l.s4 1983009808
        %v1031 = vunpack.c.0.s8 %v1030
        %v1032 = vlaneseq
        %v1033 = vshrl.u32 %v1032, 7
        %v1034 = vsub.s32 %v1031, %v1033
        %v1035 = vrot.slane %v1027, %v1034
        %v1037 = vunpack.c.l.s4 1983009808
        %v1038 = vunpack.c.0.s8 %v1037
        %v1039 = vlaneseq
        %v1040 = vshrl.u32 %v1039, 7
        %v1041 = vsub.s32 %v1038, %v1040
        %v1042 = vrot.slane %v1028, %v1041
        %v1043 = vcombine.low %v1019, %v1035
        %v1044 = vcombine.high %v1019, %v1035
        %v1046 = vunpack.c.l.s4 1934713408
        %v1047 = vunpack.c.0.s8 %v1046
        %v1048 = vlaneseq
        %v1049 = vshrl.u32 %v1048, 7
        %v1050 = vsub.s32 %v1047, %v1049
        %v1051 = vrot.slane %v1043, %v1050
        %v1053 = vunpack.c.l.s4 1934713408
        %v1054 = vunpack.c.0.s8 %v1053
        %v1055 = vlaneseq
        %v1056 = vshrl.u32 %v1055, 7
        %v1057 = vsub.s32 %v1054, %v1056
        %v1058 = vrot.slane %v1044, %v1057
        %v1059 = vcombine.low %v1026, %v1042
        %v1060 = vcombine.high %v1026, %v1042
        %v1062 = vunpack.c.l.s4 1934713408
        %v1063 = vunpack.c.0.s8 %v1062
        %v1064 = vlaneseq
        %v1065 = vshrl.u32 %v1064, 7
        %v1066 = vsub.s32 %v1063, %v1065
        %v1067 = vrot.slane %v1059, %v1066
        %v1069 = vunpack.c.l.s4 1934713408
        %v1070 = vunpack.c.0.s8 %v1069
        %v1071 = vlaneseq
        %v1072 = vshrl.u32 %v1071, 7
        %v1073 = vsub.s32 %v1070, %v1072
        %v1074 = vrot.slane %v1060, %v1073
        %v1075 = vcombine.high %v1051, 0.0
        %v1076 = vcombine.high %v1058, 0.0
        %v1077 = vcombine.high %v1067, 0.0
        %v1078 = vcombine.high %v1074, 0.0
        %1080 = vrot.lane.b32.xlu0 %v993, 124
        %v1081 = vpop.permute.xlu0 %1080
        %1083 = vrot.lane.b32.xlu0 %v993, 120
        %v1084 = vpop.permute.xlu0 %1083
        %1086 = vrot.lane.b32.xlu0 %v993, 116
        %v1087 = vpop.permute.xlu0 %1086
        %v1089 = vcombine.low %v993, %v1084
        %v1090 = vcombine.high %v993, %v1084
        %v1092 = vunpack.c.l.s4 1983009808
        %v1093 = vunpack.c.0.s8 %v1092
        %v1094 = vlaneseq
        %v1095 = vshrl.u32 %v1094, 7
        %v1096 = vsub.s32 %v1093, %v1095
        %v1097 = vrot.slane %v1089, %v1096
        %v1099 = vunpack.c.l.s4 1983009808
        %v1100 = vunpack.c.0.s8 %v1099
        %v1101 = vlaneseq
        %v1102 = vshrl.u32 %v1101, 7
        %v1103 = vsub.s32 %v1100, %v1102
        %v1104 = vrot.slane %v1090, %v1103
        %v1105 = vcombine.low %v1081, %v1087
        %v1106 = vcombine.high %v1081, %v1087
        %v1108 = vunpack.c.l.s4 1983009808
        %v1109 = vunpack.c.0.s8 %v1108
        %v1110 = vlaneseq
        %v1111 = vshrl.u32 %v1110, 7
        %v1112 = vsub.s32 %v1109, %v1111
        %v1113 = vrot.slane %v1105, %v1112
        %v1115 = vunpack.c.l.s4 1983009808
        %v1116 = vunpack.c.0.s8 %v1115
        %v1117 = vlaneseq
        %v1118 = vshrl.u32 %v1117, 7
        %v1119 = vsub.s32 %v1116, %v1118
        %v1120 = vrot.slane %v1106, %v1119
        %v1121 = vcombine.low %v1097, %v1113
        %v1122 = vcombine.high %v1097, %v1113
        %v1124 = vunpack.c.l.s4 1934713408
        %v1125 = vunpack.c.0.s8 %v1124
        %v1126 = vlaneseq
        %v1127 = vshrl.u32 %v1126, 7
        %v1128 = vsub.s32 %v1125, %v1127
        %v1129 = vrot.slane %v1121, %v1128
        %v1131 = vunpack.c.l.s4 1934713408
        %v1132 = vunpack.c.0.s8 %v1131
        %v1133 = vlaneseq
        %v1134 = vshrl.u32 %v1133, 7
        %v1135 = vsub.s32 %v1132, %v1134
        %v1136 = vrot.slane %v1122, %v1135
        %v1137 = vcombine.low %v1104, %v1120
        %v1138 = vcombine.high %v1104, %v1120
        %v1140 = vunpack.c.l.s4 1934713408
        %v1141 = vunpack.c.0.s8 %v1140
        %v1142 = vlaneseq
        %v1143 = vshrl.u32 %v1142, 7
        %v1144 = vsub.s32 %v1141, %v1143
        %v1145 = vrot.slane %v1137, %v1144
        %v1147 = vunpack.c.l.s4 1934713408
        %v1148 = vunpack.c.0.s8 %v1147
        %v1149 = vlaneseq
        %v1150 = vshrl.u32 %v1149, 7
        %v1151 = vsub.s32 %v1148, %v1150
        %v1152 = vrot.slane %v1138, %v1151
        %v1153 = vcombine.high %v1129, 0.0
        %v1154 = vcombine.high %v1136, 0.0
        %v1155 = vcombine.high %v1145, 0.0
        %v1156 = vcombine.high %v1152, 0.0
        %1165 = vrot.lane.b32.xlu0 %v1129, 4
        %v1166 = vpop.permute.xlu0 %1165
        %1167 = vrot.lane.b32.xlu0 %v1153, 4
        %v1168 = vpop.permute.xlu0 %1167
        %1169 = vrot.lane.b32.xlu0 %v1136, 4
        %v1170 = vpop.permute.xlu0 %1169
        %1171 = vrot.lane.b32.xlu0 %v1154, 4
        %v1172 = vpop.permute.xlu0 %1171
        %1173 = vrot.lane.b32.xlu0 %v1145, 4
        %v1174 = vpop.permute.xlu0 %1173
        %1175 = vrot.lane.b32.xlu0 %v1155, 4
        %v1176 = vpop.permute.xlu0 %1175
        %1177 = vrot.lane.b32.xlu0 %v1152, 4
        %v1178 = vpop.permute.xlu0 %1177
        %1179 = vrot.lane.b32.xlu0 %v1156, 4
        %v1180 = vpop.permute.xlu0 %1179
        %v1189 = vsel %vm951, %v1051, %v1166
        %v1190 = vsel %vm951, %v1075, %v1168
        %v1191 = vsel %vm951, %v1058, %v1170
        %v1192 = vsel %vm951, %v1076, %v1172
        %v1193 = vsel %vm951, %v1067, %v1174
        %v1194 = vsel %vm951, %v1077, %v1176
        %v1195 = vsel %vm951, %v1074, %v1178
        %v1196 = vsel %vm951, %v1078, %v1180
        %v1197 = vcombine.low %v1189, %v1191
        %v1199 = vunpack.c.l.s4 1983009808
        %v1200 = vunpack.c.0.s8 %v1199
        %v1201 = vlaneseq
        %v1202 = vshrl.u32 %v1201, 7
        %v1203 = vsub.s32 %v1200, %v1202
        %v1204 = vrot.slane %v1197, %v1203
        %v1205 = vcombine.low %v1190, %v1192
        %v1207 = vunpack.c.l.s4 1983009808
        %v1208 = vunpack.c.0.s8 %v1207
        %v1209 = vlaneseq
        %v1210 = vshrl.u32 %v1209, 7
        %v1211 = vsub.s32 %v1208, %v1210
        %v1212 = vrot.slane %v1205, %v1211
        %v1213 = vcombine.low %v1193, %v1195
        %v1215 = vunpack.c.l.s4 1983009808
        %v1216 = vunpack.c.0.s8 %v1215
        %v1217 = vlaneseq
        %v1218 = vshrl.u32 %v1217, 7
        %v1219 = vsub.s32 %v1216, %v1218
        %v1220 = vrot.slane %v1213, %v1219
        %v1221 = vcombine.low %v1194, %v1196
        %v1223 = vunpack.c.l.s4 1983009808
        %v1224 = vunpack.c.0.s8 %v1223
        %v1225 = vlaneseq
        %v1226 = vshrl.u32 %v1225, 7
        %v1227 = vsub.s32 %v1224, %v1226
        %v1228 = vrot.slane %v1221, %v1227
        %v1229 = vcombine.low %v1204, %v1212
        %v1230 = vcombine.high %v1204, %v1212
        %v1232 = vunpack.c.l.s4 1934713408
        %v1233 = vunpack.c.0.s8 %v1232
        %v1234 = vlaneseq
        %v1235 = vshrl.u32 %v1234, 7
        %v1236 = vsub.s32 %v1233, %v1235
        %v1237 = vrot.slane %v1229, %v1236
        %v1239 = vunpack.c.l.s4 1934713408
        %v1240 = vunpack.c.0.s8 %v1239
        %v1241 = vlaneseq
        %v1242 = vshrl.u32 %v1241, 7
        %v1243 = vsub.s32 %v1240, %v1242
        %v1244 = vrot.slane %v1230, %v1243
        %v1245 = vcombine.low %v1220, %v1228
        %v1246 = vcombine.high %v1220, %v1228
        %v1248 = vunpack.c.l.s4 1934713408
        %v1249 = vunpack.c.0.s8 %v1248
        %v1250 = vlaneseq
        %v1251 = vshrl.u32 %v1250, 7
        %v1252 = vsub.s32 %v1249, %v1251
        %v1253 = vrot.slane %v1245, %v1252
        %v1255 = vunpack.c.l.s4 1934713408
        %v1256 = vunpack.c.0.s8 %v1255
        %v1257 = vlaneseq
        %v1258 = vshrl.u32 %v1257, 7
        %v1259 = vsub.s32 %v1256, %v1258
        %v1260 = vrot.slane %v1246, %v1259
        %v1261 = vcombine.low %v1237, %v1253
        %v1262 = vcombine.high %v1237, %v1253
        %v1263 = vcombine.low %v1244, %v1260
        %v1264 = vcombine.high %v1244, %v1260
        %v1265 = vpack.c.bf16 %v1261, %v1261
        %v1266 = vpack.c.bf16 %v1262, %v1262
        %v1267 = vpack.c.bf16 %v1263, %v1263
        %v1268 = vpack.c.bf16 %v1264, %v1264
        %v1269 = vld [vmem:[#allocation2] sm:$0xf]
        %v1270 = vld [vmem:[#allocation2 + $0x4] sm:$0xf]
        %v1271 = vld [vmem:[#allocation2 + $0x8] sm:$0xf]
        %v1272 = vld [vmem:[#allocation2 + $0xc] sm:$0xf]
        %v1274 = vsel %vm953, %v1265, 0
        %vm1276 = vcmask 1043456
        %v1278 = vsel %vm1276, %v1269, 0
        %1280 = vmatprep.subr.bf16.mxu0 0
        %1281 = vmatpush1.bf16.msra.mxu0 %v1278
        %1282 = vmatprep.subr.bf16.mxu0 0
        %1283 = vmatpush1.bf16.msra.mxu0 0
        %1284 = vmatprep.subr.bf16.mxu0 0
        %1285 = vmatpush1.bf16.msra.mxu0 0
        %1286 = vmatprep.subr.bf16.mxu0 0
        %1287 = vmatpush1.bf16.msra.mxu0 0
        %1288 = vmatprep.subr.bf16.mxu0 0
        %1289 = vmatpush1.bf16.msra.mxu0 0
        %1290 = vmatprep.subr.bf16.mxu0 0
        %1291 = vmatpush1.bf16.msra.mxu0 0
        %1292 = vmatprep.subr.bf16.mxu0 0
        %1293 = vmatpush1.bf16.msra.mxu0 0
        %1294 = vmatprep.subr.bf16.mxu0 0
        %1295 = vmatpush1.bf16.msra.mxu0 0
        %1296 = vmatprep.subr.bf16.mxu0 0
        %1297 = vmatpush1.bf16.msra.mxu0 0
        %1298 = vmatprep.subr.bf16.mxu0 0
        %1299 = vmatpush1.bf16.msra.mxu0 0
        %1300 = vmatprep.subr.bf16.mxu0 0
        %1301 = vmatpush1.bf16.msra.mxu0 0
        %1302 = vmatprep.subr.bf16.mxu0 0
        %1303 = vmatpush1.bf16.msra.mxu0 0
        %1304 = vmatprep.subr.bf16.mxu0 0
        %1305 = vmatpush1.bf16.msra.mxu0 0
        %1306 = vmatprep.subr.bf16.mxu0 0
        %1307 = vmatpush1.bf16.msra.mxu0 0
        %1308 = vmatprep.subr.bf16.mxu0 0
        %1309 = vmatpush1.bf16.msra.mxu0 0
        %1310 = vmatprep.subr.bf16.mxu0 0
        %1311 = vmatpush1.bf16.msra.mxu0 0
        %1312 = vmatprep.mubr.bf16.mxu0 0
        %1313 = vmatmul.mubr.bf16.gmra.mrb[0].mxu0 %v1274
        %v1314 = vpop.f32.mrb[0].mxu0
        %v1315 = vadd.f32 0.0, %v1314
        %v1316 = vpop.f32.mrb[0].mxu0
        %v1317 = vpop.f32.mrb[0].mxu0
        %v1318 = vpop.f32.mrb[0].mxu0
        %1319 = vdwg.mxu0
        %v1321 = vsel %vm953, %v1266, 0
        %v1324 = vsel %vm1276, %v1270, 0
        %1326 = vmatprep.subr.bf16.mxu0 0
        %1327 = vmatpush1.bf16.msra.mxu0 %v1324
        %1328 = vmatprep.subr.bf16.mxu0 0
        %1329 = vmatpush1.bf16.msra.mxu0 0
        %1330 = vmatprep.subr.bf16.mxu0 0
        %1331 = vmatpush1.bf16.msra.mxu0 0
        %1332 = vmatprep.subr.bf16.mxu0 0
        %1333 = vmatpush1.bf16.msra.mxu0 0
        %1334 = vmatprep.subr.bf16.mxu0 0
        %1335 = vmatpush1.bf16.msra.mxu0 0
        %1336 = vmatprep.subr.bf16.mxu0 0
        %1337 = vmatpush1.bf16.msra.mxu0 0
        %1338 = vmatprep.subr.bf16.mxu0 0
        %1339 = vmatpush1.bf16.msra.mxu0 0
        %1340 = vmatprep.subr.bf16.mxu0 0
        %1341 = vmatpush1.bf16.msra.mxu0 0
        %1342 = vmatprep.subr.bf16.mxu0 0
        %1343 = vmatpush1.bf16.msra.mxu0 0
        %1344 = vmatprep.subr.bf16.mxu0 0
        %1345 = vmatpush1.bf16.msra.mxu0 0
        %1346 = vmatprep.subr.bf16.mxu0 0
        %1347 = vmatpush1.bf16.msra.mxu0 0
        %1348 = vmatprep.subr.bf16.mxu0 0
        %1349 = vmatpush1.bf16.msra.mxu0 0
        %1350 = vmatprep.subr.bf16.mxu0 0
        %1351 = vmatpush1.bf16.msra.mxu0 0
        %1352 = vmatprep.subr.bf16.mxu0 0
        %1353 = vmatpush1.bf16.msra.mxu0 0
        %1354 = vmatprep.subr.bf16.mxu0 0
        %1355 = vmatpush1.bf16.msra.mxu0 0
        %1356 = vmatprep.subr.bf16.mxu0 0
        %1357 = vmatpush1.bf16.msra.mxu0 0
        %1358 = vmatprep.mubr.bf16.mxu0 0
        %1359 = vmatmul.mubr.bf16.gmra.mrb[0].mxu0 %v1321
        %v1360 = vpop.f32.mrb[0].mxu0
        %v1361 = vadd.f32 0.0, %v1360
        %v1362 = vpop.f32.mrb[0].mxu0
        %v1363 = vpop.f32.mrb[0].mxu0
        %v1364 = vpop.f32.mrb[0].mxu0
        %1365 = vdwg.mxu0
        %v1367 = vsel %vm953, %v1267, 0
        %v1370 = vsel %vm1276, %v1271, 0
        %1372 = vmatprep.subr.bf16.mxu0 0
        %1373 = vmatpush1.bf16.msra.mxu0 %v1370
        %1374 = vmatprep.subr.bf16.mxu0 0
        %1375 = vmatpush1.bf16.msra.mxu0 0
        %1376 = vmatprep.subr.bf16.mxu0 0
        %1377 = vmatpush1.bf16.msra.mxu0 0
        %1378 = vmatprep.subr.bf16.mxu0 0
        %1379 = vmatpush1.bf16.msra.mxu0 0
        %1380 = vmatprep.subr.bf16.mxu0 0
        %1381 = vmatpush1.bf16.msra.mxu0 0
        %1382 = vmatprep.subr.bf16.mxu0 0
        %1383 = vmatpush1.bf16.msra.mxu0 0
        %1384 = vmatprep.subr.bf16.mxu0 0
        %1385 = vmatpush1.bf16.msra.mxu0 0
        %1386 = vmatprep.subr.bf16.mxu0 0
        %1387 = vmatpush1.bf16.msra.mxu0 0
        %1388 = vmatprep.subr.bf16.mxu0 0
        %1389 = vmatpush1.bf16.msra.mxu0 0
        %1390 = vmatprep.subr.bf16.mxu0 0
        %1391 = vmatpush1.bf16.msra.mxu0 0
        %1392 = vmatprep.subr.bf16.mxu0 0
        %1393 = vmatpush1.bf16.msra.mxu0 0
        %1394 = vmatprep.subr.bf16.mxu0 0
        %1395 = vmatpush1.bf16.msra.mxu0 0
        %1396 = vmatprep.subr.bf16.mxu0 0
        %1397 = vmatpush1.bf16.msra.mxu0 0
        %1398 = vmatprep.subr.bf16.mxu0 0
        %1399 = vmatpush1.bf16.msra.mxu0 0
        %1400 = vmatprep.subr.bf16.mxu0 0
        %1401 = vmatpush1.bf16.msra.mxu0 0
        %1402 = vmatprep.subr.bf16.mxu0 0
        %1403 = vmatpush1.bf16.msra.mxu0 0
        %1404 = vmatprep.mubr.bf16.mxu0 0
        %1405 = vmatmul.mubr.bf16.gmra.mrb[0].mxu0 %v1367
        %v1406 = vpop.f32.mrb[0].mxu0
        %v1407 = vadd.f32 0.0, %v1406
        %v1408 = vpop.f32.mrb[0].mxu0
        %v1409 = vpop.f32.mrb[0].mxu0
        %v1410 = vpop.f32.mrb[0].mxu0
        %1411 = vdwg.mxu0
        %v1413 = vsel %vm953, %v1268, 0
        %v1416 = vsel %vm1276, %v1272, 0
        %1418 = vmatprep.subr.bf16.mxu0 0
        %1419 = vmatpush1.bf16.msra.mxu0 %v1416
        %1420 = vmatprep.subr.bf16.mxu0 0
        %1421 = vmatpush1.bf16.msra.mxu0 0
        %1422 = vmatprep.subr.bf16.mxu0 0
        %1423 = vmatpush1.bf16.msra.mxu0 0
        %1424 = vmatprep.subr.bf16.mxu0 0
        %1425 = vmatpush1.bf16.msra.mxu0 0
        %1426 = vmatprep.subr.bf16.mxu0 0
        %1427 = vmatpush1.bf16.msra.mxu0 0
        %1428 = vmatprep.subr.bf16.mxu0 0
        %1429 = vmatpush1.bf16.msra.mxu0 0
        %1430 = vmatprep.subr.bf16.mxu0 0
        %1431 = vmatpush1.bf16.msra.mxu0 0
        %1432 = vmatprep.subr.bf16.mxu0 0
        %1433 = vmatpush1.bf16.msra.mxu0 0
        %1434 = vmatprep.subr.bf16.mxu0 0
        %1435 = vmatpush1.bf16.msra.mxu0 0
        %1436 = vmatprep.subr.bf16.mxu0 0
        %1437 = vmatpush1.bf16.msra.mxu0 0
        %1438 = vmatprep.subr.bf16.mxu0 0
        %1439 = vmatpush1.bf16.msra.mxu0 0
        %1440 = vmatprep.subr.bf16.mxu0 0
        %1441 = vmatpush1.bf16.msra.mxu0 0
        %1442 = vmatprep.subr.bf16.mxu0 0
        %1443 = vmatpush1.bf16.msra.mxu0 0
        %1444 = vmatprep.subr.bf16.mxu0 0
        %1445 = vmatpush1.bf16.msra.mxu0 0
        %1446 = vmatprep.subr.bf16.mxu0 0
        %1447 = vmatpush1.bf16.msra.mxu0 0
        %1448 = vmatprep.subr.bf16.mxu0 0
        %1449 = vmatpush1.bf16.msra.mxu0 0
        %1450 = vmatprep.mubr.bf16.mxu0 0
        %1451 = vmatmul.mubr.bf16.gmra.mrb[0].mxu0 %v1413
        %v1452 = vpop.f32.mrb[0].mxu0
        %v1453 = vadd.f32 0.0, %v1452
        %v1454 = vpop.f32.mrb[0].mxu0
        %v1455 = vpop.f32.mrb[0].mxu0
        %v1456 = vpop.f32.mrb[0].mxu0
        %1457 = vdwg.mxu0
        %v1458 = vsel %vm1000, 1, 0
        %vm1459 = vcmp.eq.s32.totalorder %v1458, 1
        %v1460 = vsel %vm1459, %v1315, -1e+30
        %v1461 = vsel %vm1459, %v1361, -1e+30
        %v1462 = vsel %vm1459, %v1407, -1e+30
        %v1463 = vsel %vm1459, %v1453, -1e+30
        %v1464 = vsel %vm953, %v1460, -inf
        %1465 = vmax.xlane.f32.xlu0 %v1464
        %v1466 = vpop.xlane.xlu0 %1465
        %v1467 = vsel %vm953, %v1461, -inf
        %1468 = vmax.xlane.f32.xlu0 %v1467
        %v1469 = vpop.xlane.xlu0 %1468
        %v1470 = vsel %vm953, %v1462, -inf
        %1471 = vmax.xlane.f32.xlu0 %v1470
        %v1472 = vpop.xlane.xlu0 %1471
        %v1473 = vsel %vm953, %v1463, -inf
        %1474 = vmax.xlane.f32.xlu0 %v1473
        %v1475 = vpop.xlane.xlu0 %1474
        %v1476 = vsub.f32 %v1460, %v1466
        %v1477 = vsub.f32 %v1461, %v1469
        %v1478 = vsub.f32 %v1462, %v1472
        %v1479 = vsub.f32 %v1463, %v1475
        %v1480 = vmul.f32 %v1476, 1.442695
        %v1481 = vpow.pop %v1480
        %v1482 = vmul.f32 %v1477, 1.442695
        %v1483 = vpow.pop %v1482
        %v1484 = vmul.f32 %v1478, 1.442695
        %v1485 = vpow.pop %v1484
        %v1486 = vmul.f32 %v1479, 1.442695
        %v1487 = vpow.pop %v1486
        %v1488 = vsel %vm953, %v1481, 0.0
        %1489 = vadd.xlane.f32.xlu0 %v1488
        %v1490 = vpop.xlane.xlu0 %1489
        %v1491 = vsel %vm953, %v1483, 0.0
        %1492 = vadd.xlane.f32.xlu0 %v1491
        %v1493 = vpop.xlane.xlu0 %1492
        %v1494 = vsel %vm953, %v1485, 0.0
        %1495 = vadd.xlane.f32.xlu0 %v1494
        %v1496 = vpop.xlane.xlu0 %1495
        %v1497 = vsel %vm953, %v1487, 0.0
        %1498 = vadd.xlane.f32.xlu0 %v1497
        %v1499 = vpop.xlane.xlu0 %1498
        %v1500 = vrcp.pop %v1490
        %v1501 = vrcp.pop %v1493
        %v1502 = vrcp.pop %v1496
        %v1503 = vrcp.pop %v1499
        %v1504 = vmul.f32 %v1481, %v1500
        %v1505 = vmul.f32 %v1483, %v1501
        %v1506 = vmul.f32 %v1485, %v1502
        %v1507 = vmul.f32 %v1487, %v1503
        %v1508 = vpack.c.bf16 %v1504, %v1504
        %v1509 = vpack.c.bf16 %v1505, %v1505
        %v1510 = vpack.c.bf16 %v1506, %v1506
        %v1511 = vpack.c.bf16 %v1507, %v1507
        %v1512 = vld [vmem:[#allocation3] sm:$0xf]
        %v1513 = vld [vmem:[#allocation3 + $0x4] sm:$0xf]
        %v1514 = vld [vmem:[#allocation3 + $0x8] sm:$0xf]
        %v1515 = vld [vmem:[#allocation3 + $0xc] sm:$0xf]
        %v1517 = vsel %vm953, %v1508, 0
        %v1520 = vsel %vm1276, %v1512, 0
        %1522 = vmatprep.subr.bf16.mxu0 0
        %1523 = vmatpush1.bf16.msra.mxu0 %v1520
        %1524 = vmatprep.subr.bf16.mxu0 0
        %1525 = vmatpush1.bf16.msra.mxu0 0
        %1526 = vmatprep.subr.bf16.mxu0 0
        %1527 = vmatpush1.bf16.msra.mxu0 0
        %1528 = vmatprep.subr.bf16.mxu0 0
        %1529 = vmatpush1.bf16.msra.mxu0 0
        %1530 = vmatprep.subr.bf16.mxu0 0
        %1531 = vmatpush1.bf16.msra.mxu0 0
        %1532 = vmatprep.subr.bf16.mxu0 0
        %1533 = vmatpush1.bf16.msra.mxu0 0
        %1534 = vmatprep.subr.bf16.mxu0 0
        %1535 = vmatpush1.bf16.msra.mxu0 0
        %1536 = vmatprep.subr.bf16.mxu0 0
        %1537 = vmatpush1.bf16.msra.mxu0 0
        %1538 = vmatprep.subr.bf16.mxu0 0
        %1539 = vmatpush1.bf16.msra.mxu0 0
        %1540 = vmatprep.subr.bf16.mxu0 0
        %1541 = vmatpush1.bf16.msra.mxu0 0
        %1542 = vmatprep.subr.bf16.mxu0 0
        %1543 = vmatpush1.bf16.msra.mxu0 0
        %1544 = vmatprep.subr.bf16.mxu0 0
        %1545 = vmatpush1.bf16.msra.mxu0 0
        %1546 = vmatprep.subr.bf16.mxu0 0
        %1547 = vmatpush1.bf16.msra.mxu0 0
        %1548 = vmatprep.subr.bf16.mxu0 0
        %1549 = vmatpush1.bf16.msra.mxu0 0
        %1550 = vmatprep.subr.bf16.mxu0 0
        %1551 = vmatpush1.bf16.msra.mxu0 0
        %1552 = vmatprep.subr.bf16.mxu0 0
        %1553 = vmatpush1.bf16.msra.mxu0 0
        %1554 = vmatprep.mubr.bf16.mxu0 0
        %1555 = vmatmul.mubr.bf16.gmra.mrb[0].mxu0 %v1517
        %v1556 = vpop.f32.mrb[0].mxu0
        %v1557 = vadd.f32 0.0, %v1556
        %v1558 = vpop.f32.mrb[0].mxu0
        %v1559 = vpop.f32.mrb[0].mxu0
        %v1560 = vpop.f32.mrb[0].mxu0
        %1561 = vdwg.mxu0
        %v1563 = vsel %vm953, %v1509, 0
        %v1566 = vsel %vm1276, %v1513, 0
        %1568 = vmatprep.subr.bf16.mxu0 0
        %1569 = vmatpush1.bf16.msra.mxu0 %v1566
        %1570 = vmatprep.subr.bf16.mxu0 0
        %1571 = vmatpush1.bf16.msra.mxu0 0
        %1572 = vmatprep.subr.bf16.mxu0 0
        %1573 = vmatpush1.bf16.msra.mxu0 0
        %1574 = vmatprep.subr.bf16.mxu0 0
        %1575 = vmatpush1.bf16.msra.mxu0 0
        %1576 = vmatprep.subr.bf16.mxu0 0
        %1577 = vmatpush1.bf16.msra.mxu0 0
        %1578 = vmatprep.subr.bf16.mxu0 0
        %1579 = vmatpush1.bf16.msra.mxu0 0
        %1580 = vmatprep.subr.bf16.mxu0 0
        %1581 = vmatpush1.bf16.msra.mxu0 0
        %1582 = vmatprep.subr.bf16.mxu0 0
        %1583 = vmatpush1.bf16.msra.mxu0 0
        %1584 = vmatprep.subr.bf16.mxu0 0
        %1585 = vmatpush1.bf16.msra.mxu0 0
        %1586 = vmatprep.subr.bf16.mxu0 0
        %1587 = vmatpush1.bf16.msra.mxu0 0
        %1588 = vmatprep.subr.bf16.mxu0 0
        %1589 = vmatpush1.bf16.msra.mxu0 0
        %1590 = vmatprep.subr.bf16.mxu0 0
        %1591 = vmatpush1.bf16.msra.mxu0 0
        %1592 = vmatprep.subr.bf16.mxu0 0
        %1593 = vmatpush1.bf16.msra.mxu0 0
        %1594 = vmatprep.subr.bf16.mxu0 0
        %1595 = vmatpush1.bf16.msra.mxu0 0
        %1596 = vmatprep.subr.bf16.mxu0 0
        %1597 = vmatpush1.bf16.msra.mxu0 0
        %1598 = vmatprep.subr.bf16.mxu0 0
        %1599 = vmatpush1.bf16.msra.mxu0 0
        %1600 = vmatprep.mubr.bf16.mxu0 0
        %1601 = vmatmul.mubr.bf16.gmra.mrb[0].mxu0 %v1563
        %v1602 = vpop.f32.mrb[0].mxu0
        %v1603 = vadd.f32 0.0, %v1602
        %v1604 = vpop.f32.mrb[0].mxu0
        %v1605 = vpop.f32.mrb[0].mxu0
        %v1606 = vpop.f32.mrb[0].mxu0
        %1607 = vdwg.mxu0
        %v1609 = vsel %vm953, %v1510, 0
        %v1612 = vsel %vm1276, %v1514, 0
        %1614 = vmatprep.subr.bf16.mxu0 0
        %1615 = vmatpush1.bf16.msra.mxu0 %v1612
        %1616 = vmatprep.subr.bf16.mxu0 0
        %1617 = vmatpush1.bf16.msra.mxu0 0
        %1618 = vmatprep.subr.bf16.mxu0 0
        %1619 = vmatpush1.bf16.msra.mxu0 0
        %1620 = vmatprep.subr.bf16.mxu0 0
        %1621 = vmatpush1.bf16.msra.mxu0 0
        %1622 = vmatprep.subr.bf16.mxu0 0
        %1623 = vmatpush1.bf16.msra.mxu0 0
        %1624 = vmatprep.subr.bf16.mxu0 0
        %1625 = vmatpush1.bf16.msra.mxu0 0
        %1626 = vmatprep.subr.bf16.mxu0 0
        %1627 = vmatpush1.bf16.msra.mxu0 0
        %1628 = vmatprep.subr.bf16.mxu0 0
        %1629 = vmatpush1.bf16.msra.mxu0 0
        %1630 = vmatprep.subr.bf16.mxu0 0
        %1631 = vmatpush1.bf16.msra.mxu0 0
        %1632 = vmatprep.subr.bf16.mxu0 0
        %1633 = vmatpush1.bf16.msra.mxu0 0
        %1634 = vmatprep.subr.bf16.mxu0 0
        %1635 = vmatpush1.bf16.msra.mxu0 0
        %1636 = vmatprep.subr.bf16.mxu0 0
        %1637 = vmatpush1.bf16.msra.mxu0 0
        %1638 = vmatprep.subr.bf16.mxu0 0
        %1639 = vmatpush1.bf16.msra.mxu0 0
        %1640 = vmatprep.subr.bf16.mxu0 0
        %1641 = vmatpush1.bf16.msra.mxu0 0
        %1642 = vmatprep.subr.bf16.mxu0 0
        %1643 = vmatpush1.bf16.msra.mxu0 0
        %1644 = vmatprep.subr.bf16.mxu0 0
        %1645 = vmatpush1.bf16.msra.mxu0 0
        %1646 = vmatprep.mubr.bf16.mxu0 0
        %1647 = vmatmul.mubr.bf16.gmra.mrb[0].mxu0 %v1609
        %v1648 = vpop.f32.mrb[0].mxu0
        %v1649 = vadd.f32 0.0, %v1648
        %v1650 = vpop.f32.mrb[0].mxu0
        %v1651 = vpop.f32.mrb[0].mxu0
        %v1652 = vpop.f32.mrb[0].mxu0
        %1653 = vdwg.mxu0
        %v1655 = vsel %vm953, %v1511, 0
        %v1658 = vsel %vm1276, %v1515, 0
        %1660 = vmatprep.subr.bf16.mxu0 0
        %1661 = vmatpush1.bf16.msra.mxu0 %v1658
        %1662 = vmatprep.subr.bf16.mxu0 0
        %1663 = vmatpush1.bf16.msra.mxu0 0
        %1664 = vmatprep.subr.bf16.mxu0 0
        %1665 = vmatpush1.bf16.msra.mxu0 0
        %1666 = vmatprep.subr.bf16.mxu0 0
        %1667 = vmatpush1.bf16.msra.mxu0 0
        %1668 = vmatprep.subr.bf16.mxu0 0
        %1669 = vmatpush1.bf16.msra.mxu0 0
        %1670 = vmatprep.subr.bf16.mxu0 0
        %1671 = vmatpush1.bf16.msra.mxu0 0
        %1672 = vmatprep.subr.bf16.mxu0 0
        %1673 = vmatpush1.bf16.msra.mxu0 0
        %1674 = vmatprep.subr.bf16.mxu0 0
        %1675 = vmatpush1.bf16.msra.mxu0 0
        %1676 = vmatprep.subr.bf16.mxu0 0
        %1677 = vmatpush1.bf16.msra.mxu0 0
        %1678 = vmatprep.subr.bf16.mxu0 0
        %1679 = vmatpush1.bf16.msra.mxu0 0
        %1680 = vmatprep.subr.bf16.mxu0 0
        %1681 = vmatpush1.bf16.msra.mxu0 0
        %1682 = vmatprep.subr.bf16.mxu0 0
        %1683 = vmatpush1.bf16.msra.mxu0 0
        %1684 = vmatprep.subr.bf16.mxu0 0
        %1685 = vmatpush1.bf16.msra.mxu0 0
        %1686 = vmatprep.subr.bf16.mxu0 0
        %1687 = vmatpush1.bf16.msra.mxu0 0
        %1688 = vmatprep.subr.bf16.mxu0 0
        %1689 = vmatpush1.bf16.msra.mxu0 0
        %1690 = vmatprep.subr.bf16.mxu0 0
        %1691 = vmatpush1.bf16.msra.mxu0 0
        %1692 = vmatprep.mubr.bf16.mxu0 0
        %1693 = vmatmul.mubr.bf16.gmra.mrb[0].mxu0 %v1655
        %v1694 = vpop.f32.mrb[0].mxu0
        %v1695 = vadd.f32 0.0, %v1694
        %v1696 = vpop.f32.mrb[0].mxu0
        %v1697 = vpop.f32.mrb[0].mxu0
        %v1698 = vpop.f32.mrb[0].mxu0
        %1699 = vdwg.mxu0
        %v1700 = vcombine.low %v1557, %v1649
        %v1701 = vcombine.high %v1557, %v1649
        %v1703 = vunpack.c.l.s4 1983009808
        %v1704 = vunpack.c.0.s8 %v1703
        %v1705 = vlaneseq
        %v1706 = vshrl.u32 %v1705, 7
        %v1707 = vsub.s32 %v1704, %v1706
        %v1708 = vrot.slane %v1700, %v1707
        %v1710 = vunpack.c.l.s4 1983009808
        %v1711 = vunpack.c.0.s8 %v1710
        %v1712 = vlaneseq
        %v1713 = vshrl.u32 %v1712, 7
        %v1714 = vsub.s32 %v1711, %v1713
        %v1715 = vrot.slane %v1701, %v1714
        %v1716 = vcombine.low %v1603, %v1695
        %v1717 = vcombine.high %v1603, %v1695
        %v1719 = vunpack.c.l.s4 1983009808
        %v1720 = vunpack.c.0.s8 %v1719
        %v1721 = vlaneseq
        %v1722 = vshrl.u32 %v1721, 7
        %v1723 = vsub.s32 %v1720, %v1722
        %v1724 = vrot.slane %v1716, %v1723
        %v1726 = vunpack.c.l.s4 1983009808
        %v1727 = vunpack.c.0.s8 %v1726
        %v1728 = vlaneseq
        %v1729 = vshrl.u32 %v1728, 7
        %v1730 = vsub.s32 %v1727, %v1729
        %v1731 = vrot.slane %v1717, %v1730
        %v1732 = vcombine.low %v1708, %v1724
        %v1733 = vcombine.high %v1708, %v1724
        %v1735 = vunpack.c.l.s4 1934713408
        %v1736 = vunpack.c.0.s8 %v1735
        %v1737 = vlaneseq
        %v1738 = vshrl.u32 %v1737, 7
        %v1739 = vsub.s32 %v1736, %v1738
        %v1740 = vrot.slane %v1732, %v1739
        %v1742 = vunpack.c.l.s4 1934713408
        %v1743 = vunpack.c.0.s8 %v1742
        %v1744 = vlaneseq
        %v1745 = vshrl.u32 %v1744, 7
        %v1746 = vsub.s32 %v1743, %v1745
        %v1747 = vrot.slane %v1733, %v1746
        %v1748 = vcombine.low %v1715, %v1731
        %v1749 = vcombine.high %v1715, %v1731
        %v1751 = vunpack.c.l.s4 1934713408
        %v1752 = vunpack.c.0.s8 %v1751
        %v1753 = vlaneseq
        %v1754 = vshrl.u32 %v1753, 7
        %v1755 = vsub.s32 %v1752, %v1754
        %v1756 = vrot.slane %v1748, %v1755
        %v1758 = vunpack.c.l.s4 1934713408
        %v1759 = vunpack.c.0.s8 %v1758
        %v1760 = vlaneseq
        %v1761 = vshrl.u32 %v1760, 7
        %v1762 = vsub.s32 %v1759, %v1761
        %v1763 = vrot.slane %v1749, %v1762
        %v1764 = vcombine.high %v1740, 0.0
        %v1765 = vcombine.high %v1747, 0.0
        %v1766 = vcombine.high %v1756, 0.0
        %v1767 = vcombine.high %v1763, 0.0
        %v1768 = vcombine.low %v1740, %v1747
        %v1770 = vunpack.c.l.s4 1983009808
        %v1771 = vunpack.c.0.s8 %v1770
        %v1772 = vlaneseq
        %v1773 = vshrl.u32 %v1772, 7
        %v1774 = vsub.s32 %v1771, %v1773
        %v1775 = vrot.slane %v1768, %v1774
        %v1776 = vcombine.low %v1764, %v1765
        %v1778 = vunpack.c.l.s4 1983009808
        %v1779 = vunpack.c.0.s8 %v1778
        %v1780 = vlaneseq
        %v1781 = vshrl.u32 %v1780, 7
        %v1782 = vsub.s32 %v1779, %v1781
        %v1783 = vrot.slane %v1776, %v1782
        %v1784 = vcombine.low %v1756, %v1763
        %v1786 = vunpack.c.l.s4 1983009808
        %v1787 = vunpack.c.0.s8 %v1786
        %v1788 = vlaneseq
        %v1789 = vshrl.u32 %v1788, 7
        %v1790 = vsub.s32 %v1787, %v1789
        %v1791 = vrot.slane %v1784, %v1790
        %v1792 = vcombine.low %v1766, %v1767
        %v1794 = vunpack.c.l.s4 1983009808
        %v1795 = vunpack.c.0.s8 %v1794
        %v1796 = vlaneseq
        %v1797 = vshrl.u32 %v1796, 7
        %v1798 = vsub.s32 %v1795, %v1797
        %v1799 = vrot.slane %v1792, %v1798
        %v1800 = vcombine.low %v1775, %v1783
        %v1801 = vcombine.high %v1775, %v1783
        %v1803 = vunpack.c.l.s4 1934713408
        %v1804 = vunpack.c.0.s8 %v1803
        %v1805 = vlaneseq
        %v1806 = vshrl.u32 %v1805, 7
        %v1807 = vsub.s32 %v1804, %v1806
        %v1808 = vrot.slane %v1800, %v1807
        %v1810 = vunpack.c.l.s4 1934713408
        %v1811 = vunpack.c.0.s8 %v1810
        %v1812 = vlaneseq
        %v1813 = vshrl.u32 %v1812, 7
        %v1814 = vsub.s32 %v1811, %v1813
        %v1815 = vrot.slane %v1801, %v1814
        %v1816 = vcombine.low %v1791, %v1799
        %v1817 = vcombine.high %v1791, %v1799
        %v1819 = vunpack.c.l.s4 1934713408
        %v1820 = vunpack.c.0.s8 %v1819
        %v1821 = vlaneseq
        %v1822 = vshrl.u32 %v1821, 7
        %v1823 = vsub.s32 %v1820, %v1822
        %v1824 = vrot.slane %v1816, %v1823
        %v1826 = vunpack.c.l.s4 1934713408
        %v1827 = vunpack.c.0.s8 %v1826
        %v1828 = vlaneseq
        %v1829 = vshrl.u32 %v1828, 7
        %v1830 = vsub.s32 %v1827, %v1829
        %v1831 = vrot.slane %v1817, %v1830
        %v1832 = vcombine.low %v1808, %v1824
        %v1833 = vcombine.high %v1808, %v1824
        %v1834 = vcombine.low %v1815, %v1831
        %v1835 = vcombine.high %v1815, %v1831
        %1837 = vrot.lane.b32.xlu0 %v1833, 8
        %v1838 = vpop.permute.xlu0 %1837
        %1841 = vrot.lane.b32.xlu0 %v1834, 16
        %v1842 = vpop.permute.xlu0 %1841
        %1845 = vrot.lane.b32.xlu0 %v1835, 24
        %v1846 = vpop.permute.xlu0 %1845
        %v1848 = vsel %vm953, %v1832, %v1838
        %vm1849 = vcmask 130048
        %v1850 = vsel %vm1849, %v1848, %v1842
        %vm1851 = vcmask 195584
        %v1852 = vsel %vm1851, %v1850, %v1846
        %v1853 = vpack.c.bf16 %v1852, %v1852
        %v1854 = vld [vmem:[%s6] sm:$0xf]
        %v1855 = vld [vmem:[%s6 + $0x4] sm:$0xf]
        %v1856 = vld [vmem:[%s6 + $0x8] sm:$0xf]
        %v1857 = vld [vmem:[%s6 + $0xc] sm:$0xf]
        %v1862 = vunpack.c.l.b16 %v1854
        %v1863 = vunpack.c.l.b16 %v1855
        %v1864 = vunpack.c.l.b16 %v1856
        %v1865 = vunpack.c.l.b16 %v1857
        %v1866 = vpack.c.b16 %v1863, %v1862
        %v1867 = vpack.c.b16 %v1865, %v1864
        %v1871 = vsel %vm863, %v1853, 0
        %1873 = vmatprep.subr.bf16.mxu0 0
        %1874 = vmatpush1.bf16.msra.mxu0 %v1866
        %1875 = vmatprep.subr.bf16.mxu0 0
        %1876 = vmatpush1.bf16.msra.mxu0 %v1867
        %1877 = vmatprep.subr.bf16.mxu0 0
        %1878 = vmatpush1.bf16.msra.mxu0 0
        %1879 = vmatprep.subr.bf16.mxu0 0
        %1880 = vmatpush1.bf16.msra.mxu0 0
        %1881 = vmatprep.subr.bf16.mxu0 0
        %1882 = vmatpush1.bf16.msra.mxu0 0
        %1883 = vmatprep.subr.bf16.mxu0 0
        %1884 = vmatpush1.bf16.msra.mxu0 0
        %1885 = vmatprep.subr.bf16.mxu0 0
        %1886 = vmatpush1.bf16.msra.mxu0 0
        %1887 = vmatprep.subr.bf16.mxu0 0
        %1888 = vmatpush1.bf16.msra.mxu0 0
        %1889 = vmatprep.subr.bf16.mxu0 0
        %1890 = vmatpush1.bf16.msra.mxu0 0
        %1891 = vmatprep.subr.bf16.mxu0 0
        %1892 = vmatpush1.bf16.msra.mxu0 0
        %1893 = vmatprep.subr.bf16.mxu0 0
        %1894 = vmatpush1.bf16.msra.mxu0 0
        %1895 = vmatprep.subr.bf16.mxu0 0
        %1896 = vmatpush1.bf16.msra.mxu0 0
        %1897 = vmatprep.subr.bf16.mxu0 0
        %1898 = vmatpush1.bf16.msra.mxu0 0
        %1899 = vmatprep.subr.bf16.mxu0 0
        %1900 = vmatpush1.bf16.msra.mxu0 0
        %1901 = vmatprep.subr.bf16.mxu0 0
        %1902 = vmatpush1.bf16.msra.mxu0 0
        %1903 = vmatprep.subr.bf16.mxu0 0
        %1904 = vmatpush1.bf16.msra.mxu0 0
        %1905 = vmatprep.mubr.bf16.mxu0 0
        %1906 = vmatmul.mubr.bf16.gmra.mrb[0].mxu0 %v1871
        %v1907 = vpop.f32.mrb[0].mxu0
        %v1908 = vadd.f32 0.0, %v1907
        %v1909 = vpop.f32.mrb[0].mxu0
        %v1910 = vpop.f32.mrb[0].mxu0
        %v1911 = vpop.f32.mrb[0].mxu0
        %1912 = vdwg.mxu0
        %v1913 = vadd.f32 %v861, %v1908
        %v1914 = vld [vmem:[%s7] sm:$0x1]
        %v1916 = vlaneseq
        %v1917 = vshrl.u32 %v1916, 7
        %v1918 = vsub.s32 0, %v1917
        %v1919 = vrot.slane %v1914, %v1918
        %v1921 = vadd.f32 %v1913, %v1919
        %v1922 = vld [vmem:[#allocation4] sm:$0x1]
        %v1923 = vmul.f32 %v1921, %v1921
        %v1924 = vsel %vm863, %v1923, 0.0
        %1925 = vadd.xlane.f32.xlu0 %v1924
        %v1926 = vpop.xlane.xlu0 %1925
        %v1927 = vmul.f32 %v1926, %v867
        %v1928 = vadd.f32 %v1927, 1e-05
        %v1929 = vrsqrt.pop %v1928
        %v1930 = vmul.f32 %v1921, %v1929
        %v1932 = vlaneseq
        %v1933 = vshrl.u32 %v1932, 7
        %v1934 = vsub.s32 0, %v1933
        %v1935 = vrot.slane %v1922, %v1934
        %v1937 = vmul.f32 %v1930, %v1935
        %v1938 = vpack.c.bf16 %v1937, %v1937
        %v1939 = vld [vmem:[%s9] sm:$0xf]
        %v1940 = vld [vmem:[%s9 + $0x4] sm:$0xf]
        %v1941 = vld [vmem:[%s9 + $0x8] sm:$0xf]
        %v1942 = vld [vmem:[%s9 + $0xc] sm:$0xf]
        %v1947 = vunpack.c.l.b16 %v1939
        %v1948 = vunpack.c.l.b16 %v1940
        %v1949 = vunpack.c.l.b16 %v1941
        %v1950 = vunpack.c.l.b16 %v1942
        %v1951 = vpack.c.b16 %v1948, %v1947
        %v1952 = vpack.c.b16 %v1950, %v1949
        %v1956 = vsel %vm863, %v1938, 0
        %1958 = vmatprep.subr.bf16.mxu0 0
        %1959 = vmatpush1.bf16.msra.mxu0 %v1951
        %1960 = vmatprep.subr.bf16.mxu0 0
        %1961 = vmatpush1.bf16.msra.mxu0 %v1952
        %1962 = vmatprep.subr.bf16.mxu0 0
        %1963 = vmatpush1.bf16.msra.mxu0 0
        %1964 = vmatprep.subr.bf16.mxu0 0
        %1965 = vmatpush1.bf16.msra.mxu0 0
        %1966 = vmatprep.subr.bf16.mxu0 0
        %1967 = vmatpush1.bf16.msra.mxu0 0
        %1968 = vmatprep.subr.bf16.mxu0 0
        %1969 = vmatpush1.bf16.msra.mxu0 0
        %1970 = vmatprep.subr.bf16.mxu0 0
        %1971 = vmatpush1.bf16.msra.mxu0 0
        %1972 = vmatprep.subr.bf16.mxu0 0
        %1973 = vmatpush1.bf16.msra.mxu0 0
        %1974 = vmatprep.subr.bf16.mxu0 0
        %1975 = vmatpush1.bf16.msra.mxu0 0
        %1976 = vmatprep.subr.bf16.mxu0 0
        %1977 = vmatpush1.bf16.msra.mxu0 0
        %1978 = vmatprep.subr.bf16.mxu0 0
        %1979 = vmatpush1.bf16.msra.mxu0 0
        %1980 = vmatprep.subr.bf16.mxu0 0
        %1981 = vmatpush1.bf16.msra.mxu0 0
        %1982 = vmatprep.subr.bf16.mxu0 0
        %1983 = vmatpush1.bf16.msra.mxu0 0
        %1984 = vmatprep.subr.bf16.mxu0 0
        %1985 = vmatpush1.bf16.msra.mxu0 0
        %1986 = vmatprep.subr.bf16.mxu0 0
        %1987 = vmatpush1.bf16.msra.mxu0 0
        %1988 = vmatprep.subr.bf16.mxu0 0
        %1989 = vmatpush1.bf16.msra.mxu0 0
        %1990 = vmatprep.mubr.bf16.mxu0 0
        %1991 = vmatmul.mubr.bf16.gmra.mrb[0].mxu0 %v1956
        %v1992 = vpop.f32.mrb[0].mxu0
        %v1993 = vadd.f32 0.0, %v1992
        %v1994 = vpop.f32.mrb[0].mxu0
        %v1995 = vpop.f32.mrb[0].mxu0
        %v1996 = vpop.f32.mrb[0].mxu0
        %1997 = vdwg.mxu0
        %v1998 = vld [vmem:[%s10] sm:$0xf]
        %v1999 = vld [vmem:[%s10 + $0x4] sm:$0xf]
        %v2000 = vld [vmem:[%s10 + $0x8] sm:$0xf]
        %v2001 = vld [vmem:[%s10 + $0xc] sm:$0xf]
        %v2006 = vunpack.c.l.b16 %v1998
        %v2007 = vunpack.c.l.b16 %v1999
        %v2008 = vunpack.c.l.b16 %v2000
        %v2009 = vunpack.c.l.b16 %v2001
        %v2010 = vpack.c.b16 %v2007, %v2006
        %v2011 = vpack.c.b16 %v2009, %v2008
        %2014 = vmatprep.subr.bf16.mxu0 0
        %2015 = vmatpush1.bf16.msra.mxu0 %v2010
        %2016 = vmatprep.subr.bf16.mxu0 0
        %2017 = vmatpush1.bf16.msra.mxu0 %v2011
        %2018 = vmatprep.subr.bf16.mxu0 0
        %2019 = vmatpush1.bf16.msra.mxu0 0
        %2020 = vmatprep.subr.bf16.mxu0 0
        %2021 = vmatpush1.bf16.msra.mxu0 0
        %2022 = vmatprep.subr.bf16.mxu0 0
        %2023 = vmatpush1.bf16.msra.mxu0 0
        %2024 = vmatprep.subr.bf16.mxu0 0
        %2025 = vmatpush1.bf16.msra.mxu0 0
        %2026 = vmatprep.subr.bf16.mxu0 0
        %2027 = vmatpush1.bf16.msra.mxu0 0
        %2028 = vmatprep.subr.bf16.mxu0 0
        %2029 = vmatpush1.bf16.msra.mxu0 0
        %2030 = vmatprep.subr.bf16.mxu0 0
        %2031 = vmatpush1.bf16.msra.mxu0 0
        %2032 = vmatprep.subr.bf16.mxu0 0
        %2033 = vmatpush1.bf16.msra.mxu0 0
        %2034 = vmatprep.subr.bf16.mxu0 0
        %2035 = vmatpush1.bf16.msra.mxu0 0
        %2036 = vmatprep.subr.bf16.mxu0 0
        %2037 = vmatpush1.bf16.msra.mxu0 0
        %2038 = vmatprep.subr.bf16.mxu0 0
        %2039 = vmatpush1.bf16.msra.mxu0 0
        %2040 = vmatprep.subr.bf16.mxu0 0
        %2041 = vmatpush1.bf16.msra.mxu0 0
        %2042 = vmatprep.subr.bf16.mxu0 0
        %2043 = vmatpush1.bf16.msra.mxu0 0
        %2044 = vmatprep.subr.bf16.mxu0 0
        %2045 = vmatpush1.bf16.msra.mxu0 0
        %2046 = vmatprep.mubr.bf16.mxu0 0
        %2047 = vmatmul.mubr.bf16.gmra.mrb[0].mxu0 %v1956
        %v2048 = vpop.f32.mrb[0].mxu0
        %v2049 = vadd.f32 0.0, %v2048
        %v2050 = vpop.f32.mrb[0].mxu0
        %v2051 = vpop.f32.mrb[0].mxu0
        %v2052 = vpop.f32.mrb[0].mxu0
        %2053 = vdwg.mxu0
        %v2054 = vxor.u32 %v1993, 2147483648
        %v2055 = vmul.f32 %v2054, 1.442695
        %v2056 = vpow.pop %v2055
        %v2057 = vadd.f32 %v2056, 1.0
        %v2058 = vrcp.pop %v2057
        %v2059 = vmul.f32 1.0, %v2058
        %v2060 = vmul.f32 %v1993, %v2059
        %v2061 = vmul.f32 %v2060, %v2049
        %v2062 = vpack.c.bf16 %v2061, %v2061
        %v2063 = vld [vmem:[%s11] sm:$0xf]
        %v2064 = vld [vmem:[%s11 + $0x4] sm:$0xf]
        %v2065 = vld [vmem:[%s11 + $0x8] sm:$0xf]
        %v2066 = vld [vmem:[%s11 + $0xc] sm:$0xf]
        %v2067 = vld [vmem:[%s11 + $0x10] sm:$0xf]
        %v2068 = vld [vmem:[%s11 + $0x14] sm:$0xf]
        %v2069 = vld [vmem:[%s11 + $0x18] sm:$0xf]
        %v2070 = vld [vmem:[%s11 + $0x1c] sm:$0xf]
        %v2071 = vld [vmem:[%s11 + $0x20] sm:$0xf]
        %v2072 = vld [vmem:[%s11 + $0x24] sm:$0xf]
        %v2073 = vld [vmem:[%s11 + $0x28] sm:$0xf]
        %v2085 = vunpack.c.l.b16 %v2063
        %v2086 = vunpack.c.l.b16 %v2064
        %v2087 = vunpack.c.l.b16 %v2065
        %v2088 = vunpack.c.l.b16 %v2066
        %v2089 = vunpack.c.l.b16 %v2067
        %v2090 = vunpack.c.l.b16 %v2068
        %v2091 = vunpack.c.l.b16 %v2069
        %v2092 = vunpack.c.l.b16 %v2070
        %v2093 = vunpack.c.l.b16 %v2071
        %v2094 = vunpack.c.l.b16 %v2072
        %v2095 = vunpack.c.l.b16 %v2073
        %v2096 = vpack.c.b16 %v2086, %v2085
        %v2097 = vpack.c.b16 %v2088, %v2087
        %v2098 = vpack.c.b16 %v2090, %v2089
        %v2099 = vpack.c.b16 %v2092, %v2091
        %v2100 = vpack.c.b16 %v2094, %v2093
        %v2101 = vpack.c.b16 %v2095, %v2095
        %vm2107 = vcmask 719872
        %v2109 = vsel %vm2107, %v2062, 0
        %v2112 = vsel %vm1276, %v2101, 0
        %2114 = vmatprep.subr.bf16.mxu0 0
        %2115 = vmatpush1.bf16.msra.mxu0 %v2096
        %2116 = vmatprep.subr.bf16.mxu0 0
        %2117 = vmatpush1.bf16.msra.mxu0 %v2097
        %2118 = vmatprep.subr.bf16.mxu0 0
        %2119 = vmatpush1.bf16.msra.mxu0 %v2098
        %2120 = vmatprep.subr.bf16.mxu0 0
        %2121 = vmatpush1.bf16.msra.mxu0 %v2099
        %2122 = vmatprep.subr.bf16.mxu0 0
        %2123 = vmatpush1.bf16.msra.mxu0 %v2100
        %2124 = vmatprep.subr.bf16.mxu0 0
        %2125 = vmatpush1.bf16.msra.mxu0 %v2112
        %2126 = vmatprep.subr.bf16.mxu0 0
        %2127 = vmatpush1.bf16.msra.mxu0 0
        %2128 = vmatprep.subr.bf16.mxu0 0
        %2129 = vmatpush1.bf16.msra.mxu0 0
        %2130 = vmatprep.subr.bf16.mxu0 0
        %2131 = vmatpush1.bf16.msra.mxu0 0
        %2132 = vmatprep.subr.bf16.mxu0 0
        %2133 = vmatpush1.bf16.msra.mxu0 0
        %2134 = vmatprep.subr.bf16.mxu0 0
        %2135 = vmatpush1.bf16.msra.mxu0 0
        %2136 = vmatprep.subr.bf16.mxu0 0
        %2137 = vmatpush1.bf16.msra.mxu0 0
        %2138 = vmatprep.subr.bf16.mxu0 0
        %2139 = vmatpush1.bf16.msra.mxu0 0
        %2140 = vmatprep.subr.bf16.mxu0 0
        %2141 = vmatpush1.bf16.msra.mxu0 0
        %2142 = vmatprep.subr.bf16.mxu0 0
        %2143 = vmatpush1.bf16.msra.mxu0 0
        %2144 = vmatprep.subr.bf16.mxu0 0
        %2145 = vmatpush1.bf16.msra.mxu0 0
        %2146 = vmatprep.mubr.bf16.mxu0 0
        %2147 = vmatmul.mubr.bf16.gmra.mrb[0].mxu0 %v2109
        %v2148 = vpop.f32.mrb[0].mxu0
        %v2149 = vadd.f32 0.0, %v2148
        %v2150 = vpop.f32.mrb[0].mxu0
        %v2151 = vpop.f32.mrb[0].mxu0
        %v2152 = vpop.f32.mrb[0].mxu0
        %2153 = vdwg.mxu0
        %v2154 = vadd.f32 %v1921, %v2149
        %2155 = vst.msk [vmem:[%s458] sm:$0xff] %vm863, %v2154
        %s2156 = sand.u32 %s328, 1
        %s2157 = scalar_lea.sflag [#allocation6], %s2156
        %s2158 = sand.u32 %s328, 1
        %s2159 = smul.addr %s2158, 8
        %s2160 = scalar_lea.vmem [#allocation7], %s2159
        // Predicated region
        $region81: #{tpu_custom_call.1} parent=71 // pred_check
          %p2161 = pneg %p338
        $region82: #{tpu_custom_call.1} parent=71 // pred_check_branch
          %2163 = sbr.rel (%p2161) target = $region84
        $region83: #{tpu_custom_call.1} parent=71 // pred_region
          %s2165 = ssub.s32 128, 128
          %2166 = vsyncadd %s2157, %s2165
          %s2167 = sadd.s32 %s33, %s32
          %s2168 = smul.addr %s2167, 128
          %s2169 = scalar_lea.hbm %s13, %s2168
          %s2171 = sshll.u32 %s2160, 4
          %s2172 = int_to_ptr.vmem [resolvable:$true] %s2171
          %2174 = dma.vmem_to_hbm [thread:$0]  %s2172, 128, %s2169, %s2157
        $region84: #{tpu_custom_call.1} parent=71 // pred_fallthru
          _
      $region72: #{tpu_custom_call.1} parent=5 // pred_fallthru
        _
      %p2175 = scmp.le.s32.totalorder 2, %s23
      // Predicated region
      $region85: #{tpu_custom_call.1} parent=5 // pred_check
        %p2176 = pneg %p2175
      $region86: #{tpu_custom_call.1} parent=5 // pred_check_branch
        %2178 = sbr.rel (%p2176) target = $region88
      $region87: #{tpu_custom_call.1} parent=5 // pred_region
        %s2179 = ssub.s32 %s23, 2
        // Predicated region
        $region89: #{tpu_custom_call.1} parent=87 // pred_check
          %p2180 = pneg %p344
        $region90: #{tpu_custom_call.1} parent=87 // pred_check_branch
          %2182 = sbr.rel (%p2180) target = $region92
        $region91: #{tpu_custom_call.1} parent=87 // pred_region
          %s2183 = sand.u32 %s329, 1
          %s2184 = scalar_lea.sflag [#allocation6], %s2183
          %s2185 = sand.u32 %s329, 1
          %s2186 = smul.addr %s2185, 8
          %s2187 = scalar_lea.vmem [#allocation7], %s2186
          %2188 = dma.done %s2184, 128
        $region92: #{tpu_custom_call.1} parent=87 // pred_fallthru
          _
      $region88: #{tpu_custom_call.1} parent=5 // pred_fallthru
        _
    $region6: #{tpu_custom_call.1} parent=1 // loop_footer
      %s27 = sadd.s32 1, %s23
    $region7: #{tpu_custom_call.1} parent=1 // loop_footer_branch
      %22 = sbr.rel target = $region3
    $region8: #{tpu_custom_call.1} parent=1 // loop_exit
      _
    %2189 = vsyncpa [#allocation5], 1
    %s2190 = scalar_lea.sflag [#allocation5], 1
    %2191 = vsyncpa %s2190, 1
    %2192 = vsyncpa [#allocation6], 1
    %s2193 = scalar_lea.sflag [#allocation6], 1
    %2194 = vsyncpa %s2193, 1

// kernel: tpu_custom_call.1
$region0: #{tpu_custom_call.1}
  #allocation0 [shape = 'u32[]', space=smem, size = 0x4, offset = 0x4, fixed_abs, tag = 'smem constant byte address 0x4 - core index']
  #allocation1 [shape = 'u32[144,128]{1,0:T(1,128)}', space=vmem, size = 0x12000, scoped, tag = 'internal scratch']
  #allocation2 [shape = 'f32[8,16]{1,0:T(8,128)}', space=vmem, size = 0x1000, scoped, tag = 'scratch operand']
  #allocation3 [shape = 'f32[8,16]{1,0:T(8,128)}', space=vmem, size = 0x1000, scoped, tag = 'scratch operand']
  #allocation4 [shape = 'f32[8,32]{1,0:T(8,128)}', space=vmem, size = 0x1000, scoped, tag = 'scratch operand']
  %s0 = inlined_call_operand.vmem [shape: f32[2,8,32], index: 0, kind: input, shape index: {}]
  %s1 = inlined_call_operand.vmem [shape: f32[8,4], index: 1, kind: input, shape index: {}]
  %s2 = inlined_call_operand.vmem [shape: f32[8,4], index: 2, kind: input, shape index: {}]
  %s3 = inlined_call_operand.vmem [shape: f32[1,32], index: 3, kind: input, shape index: {}]
  %s4 = inlined_call_operand.vmem [shape: bf16[32,32], index: 4, kind: input, shape index: {}]
  %s5 = inlined_call_operand.vmem [shape: bf16[32,64], index: 5, kind: input, shape index: {}]
  %s6 = inlined_call_operand.vmem [shape: bf16[32,32], index: 6, kind: input, shape index: {}]
  %s7 = inlined_call_operand.vmem [shape: f32[1,32], index: 7, kind: input, shape index: {}]
  %s8 = inlined_call_operand.hbm [shape: f32[1,32], index: 8, kind: input, shape index: {}]
  %s9 = inlined_call_operand.vmem [shape: bf16[32,88], index: 9, kind: input, shape index: {}]
  %s10 = inlined_call_operand.vmem [shape: bf16[32,88], index: 10, kind: input, shape index: {}]
  %s11 = inlined_call_operand.vmem [shape: bf16[88,32], index: 11, kind: input, shape index: {}]
  %s12 = inlined_call_operand.vmem [shape: f32[1,32], index: 12, kind: input, shape index: {}]
  %s13 = inlined_call_operand.hbm [shape: f32[2,8,32], index: 13, kind: output, shape index: {}]
  %s14 = sld [smem:[#allocation0]]
  $region93: #{tpu_custom_call.1} parent=0
    _
  %s16 = ssub.s32 1, %s14
  %s17 = scalar_select 0, %s16, %s14
  $region1: #{tpu_custom_call.1} parent=0
    #allocation5 [shape = 'u8[512]{0}', space=vmem, size = 0x400, scoped, tag = 'input window, operand 8, single buffered']
    #allocation6 [shape = 's32[2]{0}', space=sflag, size = 0x8, scoped, tag = 'scoped memory for tpu_custom_call.1']
    #allocation7 [shape = 's32[2]{0}', space=sflag, size = 0x8, scoped, tag = 'scoped memory for tpu_custom_call.1']
    #allocation8 [shape = 'u8[8192]{0}', space=vmem, size = 0x2000, scoped, tag = 'output window, operand 0']
    %18 = vsyncpa [#allocation6], 0
    %19 = vsyncpa [#allocation7], 0
    %s20 = scalar_lea.sflag [#allocation7], 1
    %21 = vsyncpa %s20, 0
    loop: start=0, step=1, limit=4
    $region2: #{tpu_custom_call.1} parent=1 // loop_pre_header
      _
    $region3: #{tpu_custom_call.1} parent=1 // loop_header
      %s23 = sphi 0, %s27
      %p24 = scmp.ge.s32.totalorder %s23, 4
      %s30 = sphi 0, %s42
      %s31 = sphi 0, %s38
      %s32 = sphi 0, %s30
      %s33 = sphi 0, %s31
      %s34 = sphi 0, %s32
      %s35 = sphi 0, %s33
      %s45 = sphi 0, %s47
      %s48 = sphi 0, %s45
      %s49 = sphi 0, %s48
      %s65 = sphi 0, %s49
      %s69 = sphi 0, %s69
      %s71 = sphi 0, %s69
      %s72 = sphi 0, %s71
      %s86 = sphi 0, %s72
      %s90 = sphi 0, %s90
      %s92 = sphi 0, %s90
      %s93 = sphi 0, %s92
      %s107 = sphi 0, %s93
      %s111 = sphi 0, %s111
      %s113 = sphi 0, %s111
      %s114 = sphi 0, %s113
      %s128 = sphi 0, %s114
      %s132 = sphi 0, %s132
      %s134 = sphi 0, %s132
      %s135 = sphi 0, %s134
      %s149 = sphi 0, %s135
      %s153 = sphi 0, %s153
      %s155 = sphi 0, %s153
      %s156 = sphi 0, %s155
      %s170 = sphi 0, %s156
      %s174 = sphi 0, %s174
      %s176 = sphi 0, %s174
      %s177 = sphi 0, %s176
      %s191 = sphi 0, %s177
      %s195 = sphi 0, %s195
      %s197 = sphi 0, %s195
      %s198 = sphi 0, %s197
      %s212 = sphi 0, %s198
      %s216 = sphi 0, %s216
      %s218 = sphi 0, %s216
      %s219 = sphi 0, %s218
      %s233 = sphi 0, %s219
      %s237 = sphi 0, %s237
      %s239 = sphi 0, %s237
      %s240 = sphi 0, %s239
      %s254 = sphi 0, %s240
      %s258 = sphi 0, %s258
      %s260 = sphi 0, %s258
      %s261 = sphi 0, %s260
      %s275 = sphi 0, %s261
      %s279 = sphi 0, %s279
      %s281 = sphi 0, %s279
      %s282 = sphi 0, %s281
      %s296 = sphi 0, %s282
      %s300 = sphi 0, %s300
      %s302 = sphi 0, %s300
      %s303 = sphi 0, %s302
      %s317 = sphi 0, %s303
      %s325 = sphi 0, %s327
      %s328 = sphi 0, %s325
      %s329 = sphi 0, %s328
      %s345 = sphi 0, %s329
    $region4: #{tpu_custom_call.1} parent=1 // loop_header_branch
      %26 = sbr.rel (%p24) target = $region8
    $region5: #{tpu_custom_call.1} parent=1 // loop_body
      %s28 = ssub.s32 %s23, 1
      %s29 = ssub.s32 %s23, 2
      %s36 = sadd.s32 1, %s31
      %p37 = scmp.ge.s32.totalorder %s36, 1
      %s38 = scalar_select %p37, 0, %s36
      %s39 = sadd.s32 1, %s30
      %s40 = scalar_select %p37, %s39, %s30
      %p41 = scmp.ge.s32.totalorder %s40, 2
      %s42 = scalar_select %p41, 0, %s40
      %s43 = ssub.s32 %s30, %s42
      %p44 = scmp.eq.s32.totalorder %s43, 0
      %s46 = sadd.s32 %s45, 1
      %s47 = scalar_select %p44, %s45, %s46
      %p50 = pneg %p44
      %p51 = scmp.eq.s32.totalorder %s23, 1
      %p52 = por %p50, %p51
      %p53 = scmp.ne.s32.totalorder %s45, %s48
      %p54 = scmp.eq.s32.totalorder %s23, 0
      %p55 = por %p53, %p54
      %p56 = scmp.ne.s32.totalorder %s45, %s48
      %p57 = scmp.eq.s32.totalorder %s28, 1
      %p58 = por %p56, %p57
      %p59 = scmp.ne.s32.totalorder %s48, %s49
      %p60 = scmp.eq.s32.totalorder %s28, 0
      %p61 = por %p59, %p60
      %p62 = scmp.ne.s32.totalorder %s48, %s49
      %p63 = scmp.eq.s32.totalorder %s29, 1
      %p64 = por %p62, %p63
      %p66 = scmp.ne.s32.totalorder %s49, %s65
      %p67 = scmp.eq.s32.totalorder %s29, 0
      %p68 = por %p66, %p67
      %s70 = sadd.s32 %s69, 1
      %p73 = scmp.eq.s32.totalorder %s23, 1
      %p74 = scmp.ne.s32.totalorder %s69, %s71
      %p75 = scmp.eq.s32.totalorder %s23, 0
      %p76 = por %p74, %p75
      %p77 = scmp.ne.s32.totalorder %s69, %s71
      %p78 = scmp.eq.s32.totalorder %s28, 1
      %p79 = por %p77, %p78
      %p80 = scmp.ne.s32.totalorder %s71, %s72
      %p81 = scmp.eq.s32.totalorder %s28, 0
      %p82 = por %p80, %p81
      %p83 = scmp.ne.s32.totalorder %s71, %s72
      %p84 = scmp.eq.s32.totalorder %s29, 1
      %p85 = por %p83, %p84
      %p87 = scmp.ne.s32.totalorder %s72, %s86
      %p88 = scmp.eq.s32.totalorder %s29, 0
      %p89 = por %p87, %p88
      %s91 = sadd.s32 %s90, 1
      %p94 = scmp.eq.s32.totalorder %s23, 1
      %p95 = scmp.ne.s32.totalorder %s90, %s92
      %p96 = scmp.eq.s32.totalorder %s23, 0
      %p97 = por %p95, %p96
      %p98 = scmp.ne.s32.totalorder %s90, %s92
      %p99 = scmp.eq.s32.totalorder %s28, 1
      %p100 = por %p98, %p99
      %p101 = scmp.ne.s32.totalorder %s92, %s93
      %p102 = scmp.eq.s32.totalorder %s28, 0
      %p103 = por %p101, %p102
      %p104 = scmp.ne.s32.totalorder %s92, %s93
      %p105 = scmp.eq.s32.totalorder %s29, 1
      %p106 = por %p104, %p105
      %p108 = scmp.ne.s32.totalorder %s93, %s107
      %p109 = scmp.eq.s32.totalorder %s29, 0
      %p110 = por %p108, %p109
      %s112 = sadd.s32 %s111, 1
      %p115 = scmp.eq.s32.totalorder %s23, 1
      %p116 = scmp.ne.s32.totalorder %s111, %s113
      %p117 = scmp.eq.s32.totalorder %s23, 0
      %p118 = por %p116, %p117
      %p119 = scmp.ne.s32.totalorder %s111, %s113
      %p120 = scmp.eq.s32.totalorder %s28, 1
      %p121 = por %p119, %p120
      %p122 = scmp.ne.s32.totalorder %s113, %s114
      %p123 = scmp.eq.s32.totalorder %s28, 0
      %p124 = por %p122, %p123
      %p125 = scmp.ne.s32.totalorder %s113, %s114
      %p126 = scmp.eq.s32.totalorder %s29, 1
      %p127 = por %p125, %p126
      %p129 = scmp.ne.s32.totalorder %s114, %s128
      %p130 = scmp.eq.s32.totalorder %s29, 0
      %p131 = por %p129, %p130
      %s133 = sadd.s32 %s132, 1
      %p136 = scmp.eq.s32.totalorder %s23, 1
      %p137 = scmp.ne.s32.totalorder %s132, %s134
      %p138 = scmp.eq.s32.totalorder %s23, 0
      %p139 = por %p137, %p138
      %p140 = scmp.ne.s32.totalorder %s132, %s134
      %p141 = scmp.eq.s32.totalorder %s28, 1
      %p142 = por %p140, %p141
      %p143 = scmp.ne.s32.totalorder %s134, %s135
      %p144 = scmp.eq.s32.totalorder %s28, 0
      %p145 = por %p143, %p144
      %p146 = scmp.ne.s32.totalorder %s134, %s135
      %p147 = scmp.eq.s32.totalorder %s29, 1
      %p148 = por %p146, %p147
      %p150 = scmp.ne.s32.totalorder %s135, %s149
      %p151 = scmp.eq.s32.totalorder %s29, 0
      %p152 = por %p150, %p151
      %s154 = sadd.s32 %s153, 1
      %p157 = scmp.eq.s32.totalorder %s23, 1
      %p158 = scmp.ne.s32.totalorder %s153, %s155
      %p159 = scmp.eq.s32.totalorder %s23, 0
      %p160 = por %p158, %p159
      %p161 = scmp.ne.s32.totalorder %s153, %s155
      %p162 = scmp.eq.s32.totalorder %s28, 1
      %p163 = por %p161, %p162
      %p164 = scmp.ne.s32.totalorder %s155, %s156
      %p165 = scmp.eq.s32.totalorder %s28, 0
      %p166 = por %p164, %p165
      %p167 = scmp.ne.s32.totalorder %s155, %s156
      %p168 = scmp.eq.s32.totalorder %s29, 1
      %p169 = por %p167, %p168
      %p171 = scmp.ne.s32.totalorder %s156, %s170
      %p172 = scmp.eq.s32.totalorder %s29, 0
      %p173 = por %p171, %p172
      %s175 = sadd.s32 %s174, 1
      %p178 = scmp.eq.s32.totalorder %s23, 1
      %p179 = scmp.ne.s32.totalorder %s174, %s176
      %p180 = scmp.eq.s32.totalorder %s23, 0
      %p181 = por %p179, %p180
      %p182 = scmp.ne.s32.totalorder %s174, %s176
      %p183 = scmp.eq.s32.totalorder %s28, 1
      %p184 = por %p182, %p183
      %p185 = scmp.ne.s32.totalorder %s176, %s177
      %p186 = scmp.eq.s32.totalorder %s28, 0
      %p187 = por %p185, %p186
      %p188 = scmp.ne.s32.totalorder %s176, %s177
      %p189 = scmp.eq.s32.totalorder %s29, 1
      %p190 = por %p188, %p189
      %p192 = scmp.ne.s32.totalorder %s177, %s191
      %p193 = scmp.eq.s32.totalorder %s29, 0
      %p194 = por %p192, %p193
      %s196 = sadd.s32 %s195, 1
      %p199 = scmp.eq.s32.totalorder %s23, 1
      %p200 = scmp.ne.s32.totalorder %s195, %s197
      %p201 = scmp.eq.s32.totalorder %s23, 0
      %p202 = por %p200, %p201
      %p203 = scmp.ne.s32.totalorder %s195, %s197
      %p204 = scmp.eq.s32.totalorder %s28, 1
      %p205 = por %p203, %p204
      %p206 = scmp.ne.s32.totalorder %s197, %s198
      %p207 = scmp.eq.s32.totalorder %s28, 0
      %p208 = por %p206, %p207
      %p209 = scmp.ne.s32.totalorder %s197, %s198
      %p210 = scmp.eq.s32.totalorder %s29, 1
      %p211 = por %p209, %p210
      %p213 = scmp.ne.s32.totalorder %s198, %s212
      %p214 = scmp.eq.s32.totalorder %s29, 0
      %p215 = por %p213, %p214
      %s217 = sadd.s32 %s216, 1
      %p220 = scmp.eq.s32.totalorder %s23, 1
      %p221 = scmp.ne.s32.totalorder %s216, %s218
      %p222 = scmp.eq.s32.totalorder %s23, 0
      %p223 = por %p221, %p222
      %p224 = scmp.ne.s32.totalorder %s216, %s218
      %p225 = scmp.eq.s32.totalorder %s28, 1
      %p226 = por %p224, %p225
      %p227 = scmp.ne.s32.totalorder %s218, %s219
      %p228 = scmp.eq.s32.totalorder %s28, 0
      %p229 = por %p227, %p228
      %p230 = scmp.ne.s32.totalorder %s218, %s219
      %p231 = scmp.eq.s32.totalorder %s29, 1
      %p232 = por %p230, %p231
      %p234 = scmp.ne.s32.totalorder %s219, %s233
      %p235 = scmp.eq.s32.totalorder %s29, 0
      %p236 = por %p234, %p235
      %s238 = sadd.s32 %s237, 1
      %p241 = scmp.eq.s32.totalorder %s23, 1
      %p242 = scmp.ne.s32.totalorder %s237, %s239
      %p243 = scmp.eq.s32.totalorder %s23, 0
      %p244 = por %p242, %p243
      %p245 = scmp.ne.s32.totalorder %s237, %s239
      %p246 = scmp.eq.s32.totalorder %s28, 1
      %p247 = por %p245, %p246
      %p248 = scmp.ne.s32.totalorder %s239, %s240
      %p249 = scmp.eq.s32.totalorder %s28, 0
      %p250 = por %p248, %p249
      %p251 = scmp.ne.s32.totalorder %s239, %s240
      %p252 = scmp.eq.s32.totalorder %s29, 1
      %p253 = por %p251, %p252
      %p255 = scmp.ne.s32.totalorder %s240, %s254
      %p256 = scmp.eq.s32.totalorder %s29, 0
      %p257 = por %p255, %p256
      %s259 = sadd.s32 %s258, 1
      %p262 = scmp.eq.s32.totalorder %s23, 1
      %p263 = scmp.ne.s32.totalorder %s258, %s260
      %p264 = scmp.eq.s32.totalorder %s23, 0
      %p265 = por %p263, %p264
      %p266 = scmp.ne.s32.totalorder %s258, %s260
      %p267 = scmp.eq.s32.totalorder %s28, 1
      %p268 = por %p266, %p267
      %p269 = scmp.ne.s32.totalorder %s260, %s261
      %p270 = scmp.eq.s32.totalorder %s28, 0
      %p271 = por %p269, %p270
      %p272 = scmp.ne.s32.totalorder %s260, %s261
      %p273 = scmp.eq.s32.totalorder %s29, 1
      %p274 = por %p272, %p273
      %p276 = scmp.ne.s32.totalorder %s261, %s275
      %p277 = scmp.eq.s32.totalorder %s29, 0
      %p278 = por %p276, %p277
      %s280 = sadd.s32 %s279, 1
      %p283 = scmp.eq.s32.totalorder %s23, 1
      %p284 = scmp.ne.s32.totalorder %s279, %s281
      %p285 = scmp.eq.s32.totalorder %s23, 0
      %p286 = por %p284, %p285
      %p287 = scmp.ne.s32.totalorder %s279, %s281
      %p288 = scmp.eq.s32.totalorder %s28, 1
      %p289 = por %p287, %p288
      %p290 = scmp.ne.s32.totalorder %s281, %s282
      %p291 = scmp.eq.s32.totalorder %s28, 0
      %p292 = por %p290, %p291
      %p293 = scmp.ne.s32.totalorder %s281, %s282
      %p294 = scmp.eq.s32.totalorder %s29, 1
      %p295 = por %p293, %p294
      %p297 = scmp.ne.s32.totalorder %s282, %s296
      %p298 = scmp.eq.s32.totalorder %s29, 0
      %p299 = por %p297, %p298
      %s301 = sadd.s32 %s300, 1
      %p304 = scmp.eq.s32.totalorder %s23, 1
      %p305 = scmp.ne.s32.totalorder %s300, %s302
      %p306 = scmp.eq.s32.totalorder %s23, 0
      %p307 = por %p305, %p306
      %p308 = scmp.ne.s32.totalorder %s300, %s302
      %p309 = scmp.eq.s32.totalorder %s28, 1
      %p310 = por %p308, %p309
      %p311 = scmp.ne.s32.totalorder %s302, %s303
      %p312 = scmp.eq.s32.totalorder %s28, 0
      %p313 = por %p311, %p312
      %p314 = scmp.ne.s32.totalorder %s302, %s303
      %p315 = scmp.eq.s32.totalorder %s29, 1
      %p316 = por %p314, %p315
      %p318 = scmp.ne.s32.totalorder %s303, %s317
      %p319 = scmp.eq.s32.totalorder %s29, 0
      %p320 = por %p318, %p319
      %s321 = ssub.s32 %s30, %s42
      %s322 = ssub.s32 %s31, %s38
      %s323 = sor.u32 %s321, %s322
      %p324 = scmp.eq.s32.totalorder %s323, 0
      %s326 = sadd.s32 %s325, 1
      %s327 = scalar_select %p324, %s325, %s326
      %p330 = pneg %p324
      %p331 = scmp.eq.s32.totalorder %s23, 1
      %p332 = por %p330, %p331
      %p333 = scmp.ne.s32.totalorder %s325, %s328
      %p334 = scmp.eq.s32.totalorder %s23, 0
      %p335 = por %p333, %p334
      %p336 = scmp.ne.s32.totalorder %s325, %s328
      %p337 = scmp.eq.s32.totalorder %s28, 1
      %p338 = por %p336, %p337
      %p339 = scmp.ne.s32.totalorder %s328, %s329
      %p340 = scmp.eq.s32.totalorder %s28, 0
      %p341 = por %p339, %p340
      %p342 = scmp.ne.s32.totalorder %s328, %s329
      %p343 = scmp.eq.s32.totalorder %s29, 1
      %p344 = por %p342, %p343
      %p346 = scmp.ne.s32.totalorder %s329, %s345
      %p347 = scmp.eq.s32.totalorder %s29, 0
      %p348 = por %p346, %p347
      %p349 = scmp.le.s32.totalorder 1, %s23
      %p350 = scmp.lt.s32.totalorder %s23, 3
      %p351 = pnand %p349, %p350
      %p352 = pneg %p351
      // Predicated region
      $region9: #{tpu_custom_call.1} parent=5 // pred_check
        _
      $region10: #{tpu_custom_call.1} parent=5 // pred_check_branch
        %354 = sbr.rel (%p351) target = $region12
      $region11: #{tpu_custom_call.1} parent=5 // pred_region
        %s355 = ssub.s32 %s23, 1
        // Predicated region
        $region13: #{tpu_custom_call.1} parent=11 // pred_check
          %p356 = pneg %p82
        $region14: #{tpu_custom_call.1} parent=11 // pred_check_branch
          %358 = sbr.rel (%p356) target = $region16
        $region15: #{tpu_custom_call.1} parent=11 // pred_region
          _
        $region16: #{tpu_custom_call.1} parent=11 // pred_fallthru
          _
        // Predicated region
        $region17: #{tpu_custom_call.1} parent=11 // pred_check
          %p359 = pneg %p103
        $region18: #{tpu_custom_call.1} parent=11 // pred_check_branch
          %361 = sbr.rel (%p359) target = $region20
        $region19: #{tpu_custom_call.1} parent=11 // pred_region
          _
        $region20: #{tpu_custom_call.1} parent=11 // pred_fallthru
          _
        // Predicated region
        $region21: #{tpu_custom_call.1} parent=11 // pred_check
          %p362 = pneg %p124
        $region22: #{tpu_custom_call.1} parent=11 // pred_check_branch
          %364 = sbr.rel (%p362) target = $region24
        $region23: #{tpu_custom_call.1} parent=11 // pred_region
          _
        $region24: #{tpu_custom_call.1} parent=11 // pred_fallthru
          _
        // Predicated region
        $region25: #{tpu_custom_call.1} parent=11 // pred_check
          %p365 = pneg %p145
        $region26: #{tpu_custom_call.1} parent=11 // pred_check_branch
          %367 = sbr.rel (%p365) target = $region28
        $region27: #{tpu_custom_call.1} parent=11 // pred_region
          _
        $region28: #{tpu_custom_call.1} parent=11 // pred_fallthru
          _
        // Predicated region
        $region29: #{tpu_custom_call.1} parent=11 // pred_check
          %p368 = pneg %p166
        $region30: #{tpu_custom_call.1} parent=11 // pred_check_branch
          %370 = sbr.rel (%p368) target = $region32
        $region31: #{tpu_custom_call.1} parent=11 // pred_region
          _
        $region32: #{tpu_custom_call.1} parent=11 // pred_fallthru
          _
        // Predicated region
        $region33: #{tpu_custom_call.1} parent=11 // pred_check
          %p371 = pneg %p187
        $region34: #{tpu_custom_call.1} parent=11 // pred_check_branch
          %373 = sbr.rel (%p371) target = $region36
        $region35: #{tpu_custom_call.1} parent=11 // pred_region
          _
        $region36: #{tpu_custom_call.1} parent=11 // pred_fallthru
          _
        // Predicated region
        $region37: #{tpu_custom_call.1} parent=11 // pred_check
          %p374 = pneg %p208
        $region38: #{tpu_custom_call.1} parent=11 // pred_check_branch
          %376 = sbr.rel (%p374) target = $region40
        $region39: #{tpu_custom_call.1} parent=11 // pred_region
          _
        $region40: #{tpu_custom_call.1} parent=11 // pred_fallthru
          _
        // Predicated region
        $region41: #{tpu_custom_call.1} parent=11 // pred_check
          %p377 = pneg %p229
        $region42: #{tpu_custom_call.1} parent=11 // pred_check_branch
          %379 = sbr.rel (%p377) target = $region44
        $region43: #{tpu_custom_call.1} parent=11 // pred_region
          %s381 = ssub.s32 16, 16
          %382 = vsyncadd [#allocation6], %s381
          %s384 = sshll.u32 [#allocation5], 4
          %s385 = int_to_ptr.vmem [resolvable:$true] %s384
          %387 = dma.hbm_to_vmem [thread:$0]  %s8, 16, %s385, [#allocation6]
        $region44: #{tpu_custom_call.1} parent=11 // pred_fallthru
          _
        // Predicated region
        $region45: #{tpu_custom_call.1} parent=11 // pred_check
          %p388 = pneg %p250
        $region46: #{tpu_custom_call.1} parent=11 // pred_check_branch
          %390 = sbr.rel (%p388) target = $region48
        $region47: #{tpu_custom_call.1} parent=11 // pred_region
          _
        $region48: #{tpu_custom_call.1} parent=11 // pred_fallthru
          _
        // Predicated region
        $region49: #{tpu_custom_call.1} parent=11 // pred_check
          %p391 = pneg %p271
        $region50: #{tpu_custom_call.1} parent=11 // pred_check_branch
          %393 = sbr.rel (%p391) target = $region52
        $region51: #{tpu_custom_call.1} parent=11 // pred_region
          _
        $region52: #{tpu_custom_call.1} parent=11 // pred_fallthru
          _
        // Predicated region
        $region53: #{tpu_custom_call.1} parent=11 // pred_check
          %p394 = pneg %p292
        $region54: #{tpu_custom_call.1} parent=11 // pred_check_branch
          %396 = sbr.rel (%p394) target = $region56
        $region55: #{tpu_custom_call.1} parent=11 // pred_region
          _
        $region56: #{tpu_custom_call.1} parent=11 // pred_fallthru
          _
        // Predicated region
        $region57: #{tpu_custom_call.1} parent=11 // pred_check
          %p397 = pneg %p313
        $region58: #{tpu_custom_call.1} parent=11 // pred_check_branch
          %399 = sbr.rel (%p397) target = $region60
        $region59: #{tpu_custom_call.1} parent=11 // pred_region
          _
        $region60: #{tpu_custom_call.1} parent=11 // pred_fallthru
          _
      $region12: #{tpu_custom_call.1} parent=5 // pred_fallthru
        _
      %p400 = scmp.lt.s32.totalorder %s23, 2
      // Predicated region
      $region61: #{tpu_custom_call.1} parent=5 // pred_check
        %p401 = pneg %p400
      $region62: #{tpu_custom_call.1} parent=5 // pred_check_branch
        %403 = sbr.rel (%p401) target = $region64
      $region63: #{tpu_custom_call.1} parent=5 // pred_region
        // Predicated region
        $region65: #{tpu_custom_call.1} parent=63 // pred_check
          %p404 = pneg %p55
        $region66: #{tpu_custom_call.1} parent=63 // pred_check_branch
          %406 = sbr.rel (%p404) target = $region68
        $region67: #{tpu_custom_call.1} parent=63 // pred_region
          %p407 = scmp.lt.s32.totalorder %s30, 1
          %s408 = scalar_select %p407, %s30, 1
          %s409 = smul.addr %s408, 8
          %s410 = scalar_lea.vmem %s0, %s409
        $region68: #{tpu_custom_call.1} parent=63 // pred_fallthru
          _
      $region64: #{tpu_custom_call.1} parent=5 // pred_fallthru
        _
      %p411 = scmp.le.s32.totalorder 1, %s23
      %p412 = scmp.lt.s32.totalorder %s23, 3
      %p413 = pnand %p411, %p412
      %p414 = pneg %p413
      // Predicated region
      $region69: #{tpu_custom_call.1} parent=5 // pred_check
        _
      $region70: #{tpu_custom_call.1} parent=5 // pred_check_branch
        %416 = sbr.rel (%p413) target = $region72
      $region71: #{tpu_custom_call.1} parent=5 // pred_region
        %s417 = ssub.s32 %s23, 1
        // Predicated region
        $region73: #{tpu_custom_call.1} parent=71 // pred_check
          %p418 = pneg %p229
        $region74: #{tpu_custom_call.1} parent=71 // pred_check_branch
          %420 = sbr.rel (%p418) target = $region76
        $region75: #{tpu_custom_call.1} parent=71 // pred_region
          %421 = dma.done [#allocation6], 16
        $region76: #{tpu_custom_call.1} parent=71 // pred_fallthru
          _
        %p422 = scmp.lt.s32.totalorder %s32, 1
        %s423 = scalar_select %p422, %s32, 1
        %s424 = smul.addr %s423, 8
        %s425 = scalar_lea.vmem %s0, %s424
        %p426 = pneg %p61
        %p427 = pneg %p58
        %p428 = pneg %p82
        %p429 = pneg %p79
        %p430 = pneg %p103
        %p431 = pneg %p100
        %p432 = pneg %p124
        %p433 = pneg %p121
        %p434 = pneg %p145
        %p435 = pneg %p142
        %p436 = pneg %p166
        %p437 = pneg %p163
        %p438 = pneg %p187
        %p439 = pneg %p184
        %p440 = pneg %p208
        %p441 = pneg %p205
        %p442 = pneg %p229
        %p443 = pneg %p226
        %p444 = pneg %p250
        %p445 = pneg %p247
        %p446 = pneg %p271
        %p447 = pneg %p268
        %p448 = pneg %p292
        %p449 = pneg %p289
        %p450 = pneg %p313
        %p451 = pneg %p310
        %p452 = pneg %p341
        %p453 = pneg %p338
        %s454 = sand.u32 %s328, 1
        %s455 = scalar_lea.sflag [#allocation7], %s454
        %s456 = sand.u32 %s328, 1
        %s457 = smul.addr %s456, 8
        %s458 = scalar_lea.vmem [#allocation8], %s457
        %p459 = scmp.lt.s32.totalorder %s32, 1
        %s460 = scalar_select %p459, %s32, 1
        %s461 = smul.addr %s460, 8
        %s462 = scalar_lea.vmem %s0, %s461
        %s464 = smul.u32 %s33, 8
        %v465 = vld [vmem:[%s3] sm:$0x1]
        %p466 = scmp.eq.s32.totalorder %s33, 0
        // Predicated region
        $region77: #{tpu_custom_call.1} parent=71 // pred_check
          %p467 = pneg %p466
        $region78: #{tpu_custom_call.1} parent=71 // pred_check_branch
          %469 = sbr.rel (%p467) target = $region80
        $region79: #{tpu_custom_call.1} parent=71 // pred_region
          %v470 = vld [vmem:[%s462] sm:$0xff]
          %v471 = vmul.f32 %v470, %v470
          %vm472 = vcmask 261120
          %v473 = vsel %vm472, %v471, 0.0
          %474 = vadd.xlane.f32.xlu0 %v473
          %v475 = vpop.xlane.xlu0 %474
          %v476 = vrcp.pop 32.0
          %v477 = vmul.f32 %v475, %v476
          %v478 = vadd.f32 %v477, 1e-05
          %v479 = vrsqrt.pop %v478
          %v480 = vmul.f32 %v470, %v479
          %v482 = vlaneseq
          %v483 = vshrl.u32 %v482, 7
          %v484 = vsub.s32 0, %v483
          %v485 = vrot.slane %v465, %v484
          %v487 = vmul.f32 %v480, %v485
          %v488 = vpack.c.bf16 %v487, %v487
          %v489 = vld [vmem:[%s5] sm:$0xf]
          %v490 = vld [vmem:[%s5 + $0x4] sm:$0xf]
          %v491 = vld [vmem:[%s5 + $0x8] sm:$0xf]
          %v492 = vld [vmem:[%s5 + $0xc] sm:$0xf]
          %v497 = vunpack.c.l.b16 %v489
          %v498 = vunpack.c.l.b16 %v490
          %v499 = vunpack.c.l.b16 %v491
          %v500 = vunpack.c.l.b16 %v492
          %v501 = vpack.c.b16 %v498, %v497
          %v502 = vpack.c.b16 %v500, %v499
          %v506 = vsel %vm472, %v488, 0
          %508 = vmatprep.subr.bf16.mxu0 0
          %509 = vmatpush1.bf16.msra.mxu0 %v501
          %510 = vmatprep.subr.bf16.mxu0 0
          %511 = vmatpush1.bf16.msra.mxu0 %v502
          %512 = vmatprep.subr.bf16.mxu0 0
          %513 = vmatpush1.bf16.msra.mxu0 0
          %514 = vmatprep.subr.bf16.mxu0 0
          %515 = vmatpush1.bf16.msra.mxu0 0
          %516 = vmatprep.subr.bf16.mxu0 0
          %517 = vmatpush1.bf16.msra.mxu0 0
          %518 = vmatprep.subr.bf16.mxu0 0
          %519 = vmatpush1.bf16.msra.mxu0 0
          %520 = vmatprep.subr.bf16.mxu0 0
          %521 = vmatpush1.bf16.msra.mxu0 0
          %522 = vmatprep.subr.bf16.mxu0 0
          %523 = vmatpush1.bf16.msra.mxu0 0
          %524 = vmatprep.subr.bf16.mxu0 0
          %525 = vmatpush1.bf16.msra.mxu0 0
          %526 = vmatprep.subr.bf16.mxu0 0
          %527 = vmatpush1.bf16.msra.mxu0 0
          %528 = vmatprep.subr.bf16.mxu0 0
          %529 = vmatpush1.bf16.msra.mxu0 0
          %530 = vmatprep.subr.bf16.mxu0 0
          %531 = vmatpush1.bf16.msra.mxu0 0
          %532 = vmatprep.subr.bf16.mxu0 0
          %533 = vmatpush1.bf16.msra.mxu0 0
          %534 = vmatprep.subr.bf16.mxu0 0
          %535 = vmatpush1.bf16.msra.mxu0 0
          %536 = vmatprep.subr.bf16.mxu0 0
          %537 = vmatpush1.bf16.msra.mxu0 0
          %538 = vmatprep.subr.bf16.mxu0 0
          %539 = vmatpush1.bf16.msra.mxu0 0
          %540 = vmatprep.mubr.bf16.mxu0 0
          %541 = vmatmul.mubr.bf16.gmra.mrb[0].mxu0 %v506
          %v542 = vpop.f32.mrb[0].mxu0
          %v543 = vadd.f32 0.0, %v542
          %v544 = vpop.f32.mrb[0].mxu0
          %v545 = vpop.f32.mrb[0].mxu0
          %v546 = vpop.f32.mrb[0].mxu0
          %547 = vdwg.mxu0
          %v548 = vld [vmem:[%s1] sm:$0xff]
          %550 = vrot.lane.b32.xlu0 %v548, 4
          %v551 = vpop.permute.xlu0 %550
          %553 = vrot.lane.b32.xlu0 %v548, 8
          %v554 = vpop.permute.xlu0 %553
          %556 = vrot.lane.b32.xlu0 %v548, 12
          %v557 = vpop.permute.xlu0 %556
          %vm559 = vcmask 31744
          %v560 = vsel %vm559, %v548, %v551
          %vm561 = vcmask 64512
          %v562 = vsel %vm561, %v560, %v554
          %vm563 = vcmask 97280
          %v564 = vsel %vm563, %v562, %v557
          %v565 = vld [vmem:[%s2] sm:$0xff]
          %567 = vrot.lane.b32.xlu0 %v565, 4
          %v568 = vpop.permute.xlu0 %567
          %570 = vrot.lane.b32.xlu0 %v565, 8
          %v571 = vpop.permute.xlu0 %570
          %573 = vrot.lane.b32.xlu0 %v565, 12
          %v574 = vpop.permute.xlu0 %573
          %v576 = vsel %vm559, %v565, %v568
          %v577 = vsel %vm561, %v576, %v571
          %v578 = vsel %vm563, %v577, %v574
          %v579 = vmul.f32 %v543, %v564
          %581 = vrot.lane.b32.xlu0 %v578, 16
          %v582 = vpop.permute.xlu0 %581
          %v584 = vmul.f32 %v543, %v582
          %586 = vrot.lane.b32.xlu0 %v584, 112
          %v587 = vpop.permute.xlu0 %586
          %v589 = vsub.f32 %v579, %v587
          %v590 = vmul.f32 %v543, %v578
          %592 = vrot.lane.b32.xlu0 %v564, 16
          %v593 = vpop.permute.xlu0 %592
          %v595 = vmul.f32 %v543, %v593
          %597 = vrot.lane.b32.xlu0 %v595, 112
          %v598 = vpop.permute.xlu0 %597
          %v600 = vadd.f32 %v590, %v598
          %vm601 = vcmask 130048
          %602 = vst.msk [vmem:[#allocation2] sm:$0xff] %vm601, %v589
          %603 = vst.msk [vmem:[#allocation3] sm:$0xff] %vm601, %v600
          %605 = vrot.lane.b32.xlu0 %v543, 96
          %v606 = vpop.permute.xlu0 %605
          %608 = vst.msk [vmem:[#allocation4] sm:$0xff] %vm472, %v606
        $region80: #{tpu_custom_call.1} parent=71 // pred_fallthru
          _
        %s609 = scalar_lea.vmem %s462, %s464
        %v610 = vld [vmem:[%s609] sm:$0xff]
        %v611 = vmul.f32 %v610, %v610
        %vm612 = vcmask 261120
        %v613 = vsel %vm612, %v611, 0.0
        %614 = vadd.xlane.f32.xlu0 %v613
        %v615 = vpop.xlane.xlu0 %614
        %v616 = vrcp.pop 32.0
        %v617 = vmul.f32 %v615, %v616
        %v618 = vadd.f32 %v617, 1e-05
        %v619 = vrsqrt.pop %v618
        %v620 = vmul.f32 %v610, %v619
        %v622 = vlaneseq
        %v623 = vshrl.u32 %v622, 7
        %v624 = vsub.s32 0, %v623
        %v625 = vrot.slane %v465, %v624
        %v627 = vmul.f32 %v620, %v625
        %v628 = vpack.c.bf16 %v627, %v627
        %v629 = vld [vmem:[%s4] sm:$0xf]
        %v630 = vld [vmem:[%s4 + $0x4] sm:$0xf]
        %v631 = vld [vmem:[%s4 + $0x8] sm:$0xf]
        %v632 = vld [vmem:[%s4 + $0xc] sm:$0xf]
        %v637 = vunpack.c.l.b16 %v629
        %v638 = vunpack.c.l.b16 %v630
        %v639 = vunpack.c.l.b16 %v631
        %v640 = vunpack.c.l.b16 %v632
        %v641 = vpack.c.b16 %v638, %v637
        %v642 = vpack.c.b16 %v640, %v639
        %v646 = vsel %vm612, %v628, 0
        %648 = vmatprep.subr.bf16.mxu0 0
        %649 = vmatpush1.bf16.msra.mxu0 %v641
        %650 = vmatprep.subr.bf16.mxu0 0
        %651 = vmatpush1.bf16.msra.mxu0 %v642
        %652 = vmatprep.subr.bf16.mxu0 0
        %653 = vmatpush1.bf16.msra.mxu0 0
        %654 = vmatprep.subr.bf16.mxu0 0
        %655 = vmatpush1.bf16.msra.mxu0 0
        %656 = vmatprep.subr.bf16.mxu0 0
        %657 = vmatpush1.bf16.msra.mxu0 0
        %658 = vmatprep.subr.bf16.mxu0 0
        %659 = vmatpush1.bf16.msra.mxu0 0
        %660 = vmatprep.subr.bf16.mxu0 0
        %661 = vmatpush1.bf16.msra.mxu0 0
        %662 = vmatprep.subr.bf16.mxu0 0
        %663 = vmatpush1.bf16.msra.mxu0 0
        %664 = vmatprep.subr.bf16.mxu0 0
        %665 = vmatpush1.bf16.msra.mxu0 0
        %666 = vmatprep.subr.bf16.mxu0 0
        %667 = vmatpush1.bf16.msra.mxu0 0
        %668 = vmatprep.subr.bf16.mxu0 0
        %669 = vmatpush1.bf16.msra.mxu0 0
        %670 = vmatprep.subr.bf16.mxu0 0
        %671 = vmatpush1.bf16.msra.mxu0 0
        %672 = vmatprep.subr.bf16.mxu0 0
        %673 = vmatpush1.bf16.msra.mxu0 0
        %674 = vmatprep.subr.bf16.mxu0 0
        %675 = vmatpush1.bf16.msra.mxu0 0
        %676 = vmatprep.subr.bf16.mxu0 0
        %677 = vmatpush1.bf16.msra.mxu0 0
        %678 = vmatprep.subr.bf16.mxu0 0
        %679 = vmatpush1.bf16.msra.mxu0 0
        %680 = vmatprep.mubr.bf16.mxu0 0
        %681 = vmatmul.mubr.bf16.gmra.mrb[0].mxu0 %v646
        %v682 = vpop.f32.mrb[0].mxu0
        %v683 = vadd.f32 0.0, %v682
        %v684 = vpop.f32.mrb[0].mxu0
        %v685 = vpop.f32.mrb[0].mxu0
        %v686 = vpop.f32.mrb[0].mxu0
        %687 = vdwg.mxu0
        %s688 = scalar_lea.vmem %s1, %s464
        %v689 = vld [vmem:[%s688] sm:$0xff]
        %691 = vrot.lane.b32.xlu0 %v689, 4
        %v692 = vpop.permute.xlu0 %691
        %694 = vrot.lane.b32.xlu0 %v689, 8
        %v695 = vpop.permute.xlu0 %694
        %697 = vrot.lane.b32.xlu0 %v689, 12
        %v698 = vpop.permute.xlu0 %697
        %vm700 = vcmask 31744
        %v701 = vsel %vm700, %v689, %v692
        %vm702 = vcmask 64512
        %v703 = vsel %vm702, %v701, %v695
        %vm704 = vcmask 97280
        %v705 = vsel %vm704, %v703, %v698
        %s706 = scalar_lea.vmem %s2, %s464
        %v707 = vld [vmem:[%s706] sm:$0xff]
        %709 = vrot.lane.b32.xlu0 %v707, 4
        %v710 = vpop.permute.xlu0 %709
        %712 = vrot.lane.b32.xlu0 %v707, 8
        %v713 = vpop.permute.xlu0 %712
        %715 = vrot.lane.b32.xlu0 %v707, 12
        %v716 = vpop.permute.xlu0 %715
        %v718 = vsel %vm700, %v707, %v710
        %v719 = vsel %vm702, %v718, %v713
        %v720 = vsel %vm704, %v719, %v716
        %v721 = vmul.f32 %v683, %v705
        %723 = vrot.lane.b32.xlu0 %v720, 16
        %v724 = vpop.permute.xlu0 %723
        %v726 = vmul.f32 %v683, %v724
        %728 = vrot.lane.b32.xlu0 %v726, 112
        %v729 = vpop.permute.xlu0 %728
        %v731 = vsub.f32 %v721, %v729
        %v732 = vmul.f32 %v683, %v720
        %734 = vrot.lane.b32.xlu0 %v705, 16
        %v735 = vpop.permute.xlu0 %734
        %v737 = vmul.f32 %v683, %v735
        %739 = vrot.lane.b32.xlu0 %v737, 112
        %v740 = vpop.permute.xlu0 %739
        %v742 = vadd.f32 %v732, %v740
        %v743 = vlaneseq
        %v744 = vshrl.u32 %v743, 7
        %v745 = vstv %s464
        %v746 = vadd.s32 %v745, %v744
        %v747 = vlaneseq
        %v748 = vand.u32 %v747, 127
        %vm749 = vcmp.le.s32.totalorder %v748, %v746
        %v750 = vld [vmem:[#allocation2] sm:$0xff]
        %v751 = vld [vmem:[#allocation3] sm:$0xff]
        %v752 = vld [vmem:[#allocation4] sm:$0xff]
        %754 = vrot.lane.b32.xlu0 %v742, 4
        %v755 = vpop.permute.xlu0 %754
        %v757 = vsel %vm700, %v731, %v755
        %v758 = vpack.c.bf16 %v757, %v757
        %760 = vrot.lane.b32.xlu0 %v751, 4
        %v761 = vpop.permute.xlu0 %760
        %v763 = vsel %vm700, %v750, %v761
        %v764 = vpack.c.bf16 %v763, %v763
        %v766 = vsel %vm702, %v758, 0
        %v769 = vsel %vm702, %v764, 0
        %771 = vmatprep.subr.bf16.mxu0 0
        %772 = vmatpush1.bf16.xpose.msra.mxu0 %v769
        %773 = vmatprep.subr.bf16.mxu0 0
        %774 = vmatpush1.bf16.xpose.msra.mxu0 0
        %775 = vmatprep.subr.bf16.mxu0 0
        %776 = vmatpush1.bf16.xpose.msra.mxu0 0
        %777 = vmatprep.subr.bf16.mxu0 0
        %778 = vmatpush1.bf16.xpose.msra.mxu0 0
        %779 = vmatprep.subr.bf16.mxu0 0
        %780 = vmatpush1.bf16.xpose.msra.mxu0 0
        %781 = vmatprep.subr.bf16.mxu0 0
        %782 = vmatpush1.bf16.xpose.msra.mxu0 0
        %783 = vmatprep.subr.bf16.mxu0 0
        %784 = vmatpush1.bf16.xpose.msra.mxu0 0
        %785 = vmatprep.subr.bf16.mxu0 0
        %786 = vmatpush1.bf16.xpose.msra.mxu0 0
        %787 = vmatprep.subr.bf16.mxu0 0
        %788 = vmatpush1.bf16.xpose.msra.mxu0 0
        %789 = vmatprep.subr.bf16.mxu0 0
        %790 = vmatpush1.bf16.xpose.msra.mxu0 0
        %791 = vmatprep.subr.bf16.mxu0 0
        %792 = vmatpush1.bf16.xpose.msra.mxu0 0
        %793 = vmatprep.subr.bf16.mxu0 0
        %794 = vmatpush1.bf16.xpose.msra.mxu0 0
        %795 = vmatprep.subr.bf16.mxu0 0
        %796 = vmatpush1.bf16.xpose.msra.mxu0 0
        %797 = vmatprep.subr.bf16.mxu0 0
        %798 = vmatpush1.bf16.xpose.msra.mxu0 0
        %799 = vmatprep.subr.bf16.mxu0 0
        %800 = vmatpush1.bf16.xpose.msra.mxu0 0
        %801 = vmatprep.subr.bf16.mxu0 0
        %802 = vmatpush1.bf16.xpose.msra.mxu0 0
        %803 = vmatprep.mubr.bf16.mxu0 0
        %804 = vmatmul.mubr.bf16.gmra.mrb[0].mxu0 %v766
        %v805 = vpop.f32.mrb[0].mxu0
        %v806 = vadd.f32 0.0, %v805
        %v807 = vpop.f32.mrb[0].mxu0
        %v808 = vpop.f32.mrb[0].mxu0
        %v809 = vpop.f32.mrb[0].mxu0
        %810 = vdwg.mxu0
        %v811 = vsel %vm749, %v806, -1e+30
        %v812 = vsel %vm702, %v811, -inf
        %813 = vmax.xlane.f32.xlu0 %v812
        %v814 = vpop.xlane.xlu0 %813
        %v815 = vsub.f32 %v811, %v814
        %v816 = vmul.f32 %v815, 1.442695
        %v817 = vpow.pop %v816
        %v818 = vsel %vm702, %v817, 0.0
        %819 = vadd.xlane.f32.xlu0 %v818
        %v820 = vpop.xlane.xlu0 %819
        %v821 = vrcp.pop %v820
        %v822 = vmul.f32 %v817, %v821
        %v823 = vpack.c.bf16 %v822, %v822
        %v824 = vpack.c.bf16 %v752, %v752
        %v826 = vsel %vm702, %v823, 0
        %vm828 = vcmask 1043456
        %v830 = vsel %vm828, %v824, 0
        %832 = vmatprep.subr.bf16.mxu0 0
        %833 = vmatpush1.bf16.msra.mxu0 %v830
        %834 = vmatprep.subr.bf16.mxu0 0
        %835 = vmatpush1.bf16.msra.mxu0 0
        %836 = vmatprep.subr.bf16.mxu0 0
        %837 = vmatpush1.bf16.msra.mxu0 0
        %838 = vmatprep.subr.bf16.mxu0 0
        %839 = vmatpush1.bf16.msra.mxu0 0
        %840 = vmatprep.subr.bf16.mxu0 0
        %841 = vmatpush1.bf16.msra.mxu0 0
        %842 = vmatprep.subr.bf16.mxu0 0
        %843 = vmatpush1.bf16.msra.mxu0 0
        %844 = vmatprep.subr.bf16.mxu0 0
        %845 = vmatpush1.bf16.msra.mxu0 0
        %846 = vmatprep.subr.bf16.mxu0 0
        %847 = vmatpush1.bf16.msra.mxu0 0
        %848 = vmatprep.subr.bf16.mxu0 0
        %849 = vmatpush1.bf16.msra.mxu0 0
        %850 = vmatprep.subr.bf16.mxu0 0
        %851 = vmatpush1.bf16.msra.mxu0 0
        %852 = vmatprep.subr.bf16.mxu0 0
        %853 = vmatpush1.bf16.msra.mxu0 0
        %854 = vmatprep.subr.bf16.mxu0 0
        %855 = vmatpush1.bf16.msra.mxu0 0
        %856 = vmatprep.subr.bf16.mxu0 0
        %857 = vmatpush1.bf16.msra.mxu0 0
        %858 = vmatprep.subr.bf16.mxu0 0
        %859 = vmatpush1.bf16.msra.mxu0 0
        %860 = vmatprep.subr.bf16.mxu0 0
        %861 = vmatpush1.bf16.msra.mxu0 0
        %862 = vmatprep.subr.bf16.mxu0 0
        %863 = vmatpush1.bf16.msra.mxu0 0
        %864 = vmatprep.mubr.bf16.mxu0 0
        %865 = vmatmul.mubr.bf16.gmra.mrb[0].mxu0 %v826
        %v866 = vpop.f32.mrb[0].mxu0
        %v867 = vadd.f32 0.0, %v866
        %v868 = vpop.f32.mrb[0].mxu0
        %v869 = vpop.f32.mrb[0].mxu0
        %v870 = vpop.f32.mrb[0].mxu0
        %871 = vdwg.mxu0
        %873 = vrot.lane.b32.xlu0 %v731, 124
        %v874 = vpop.permute.xlu0 %873
        %v876 = vsel %vm700, %v874, %v742
        %v877 = vpack.c.bf16 %v876, %v876
        %879 = vrot.lane.b32.xlu0 %v750, 124
        %v880 = vpop.permute.xlu0 %879
        %v882 = vsel %vm700, %v880, %v751
        %v883 = vpack.c.bf16 %v882, %v882
        %v885 = vsel %vm702, %v877, 0
        %v888 = vsel %vm702, %v883, 0
        %890 = vmatprep.subr.bf16.mxu0 0
        %891 = vmatpush1.bf16.xpose.msra.mxu0 %v888
        %892 = vmatprep.subr.bf16.mxu0 0
        %893 = vmatpush1.bf16.xpose.msra.mxu0 0
        %894 = vmatprep.subr.bf16.mxu0 0
        %895 = vmatpush1.bf16.xpose.msra.mxu0 0
        %896 = vmatprep.subr.bf16.mxu0 0
        %897 = vmatpush1.bf16.xpose.msra.mxu0 0
        %898 = vmatprep.subr.bf16.mxu0 0
        %899 = vmatpush1.bf16.xpose.msra.mxu0 0
        %900 = vmatprep.subr.bf16.mxu0 0
        %901 = vmatpush1.bf16.xpose.msra.mxu0 0
        %902 = vmatprep.subr.bf16.mxu0 0
        %903 = vmatpush1.bf16.xpose.msra.mxu0 0
        %904 = vmatprep.subr.bf16.mxu0 0
        %905 = vmatpush1.bf16.xpose.msra.mxu0 0
        %906 = vmatprep.subr.bf16.mxu0 0
        %907 = vmatpush1.bf16.xpose.msra.mxu0 0
        %908 = vmatprep.subr.bf16.mxu0 0
        %909 = vmatpush1.bf16.xpose.msra.mxu0 0
        %910 = vmatprep.subr.bf16.mxu0 0
        %911 = vmatpush1.bf16.xpose.msra.mxu0 0
        %912 = vmatprep.subr.bf16.mxu0 0
        %913 = vmatpush1.bf16.xpose.msra.mxu0 0
        %914 = vmatprep.subr.bf16.mxu0 0
        %915 = vmatpush1.bf16.xpose.msra.mxu0 0
        %916 = vmatprep.subr.bf16.mxu0 0
        %917 = vmatpush1.bf16.xpose.msra.mxu0 0
        %918 = vmatprep.subr.bf16.mxu0 0
        %919 = vmatpush1.bf16.xpose.msra.mxu0 0
        %920 = vmatprep.subr.bf16.mxu0 0
        %921 = vmatpush1.bf16.xpose.msra.mxu0 0
        %922 = vmatprep.mubr.bf16.mxu0 0
        %923 = vmatmul.mubr.bf16.gmra.mrb[0].mxu0 %v885
        %v924 = vpop.f32.mrb[0].mxu0
        %v925 = vadd.f32 0.0, %v924
        %v926 = vpop.f32.mrb[0].mxu0
        %v927 = vpop.f32.mrb[0].mxu0
        %v928 = vpop.f32.mrb[0].mxu0
        %929 = vdwg.mxu0
        %v930 = vsel %vm749, %v925, -1e+30
        %v931 = vsel %vm702, %v930, -inf
        %932 = vmax.xlane.f32.xlu0 %v931
        %v933 = vpop.xlane.xlu0 %932
        %v934 = vsub.f32 %v930, %v933
        %v935 = vmul.f32 %v934, 1.442695
        %v936 = vpow.pop %v935
        %v937 = vsel %vm702, %v936, 0.0
        %938 = vadd.xlane.f32.xlu0 %v937
        %v939 = vpop.xlane.xlu0 %938
        %v940 = vrcp.pop %v939
        %v941 = vmul.f32 %v936, %v940
        %v942 = vpack.c.bf16 %v941, %v941
        %944 = vrot.lane.b32.xlu0 %v824, 120
        %v945 = vpop.permute.xlu0 %944
        %v947 = vsel %vm702, %v942, 0
        %v950 = vsel %vm828, %v945, 0
        %952 = vmatprep.subr.bf16.mxu0 0
        %953 = vmatpush1.bf16.msra.mxu0 %v950
        %954 = vmatprep.subr.bf16.mxu0 0
        %955 = vmatpush1.bf16.msra.mxu0 0
        %956 = vmatprep.subr.bf16.mxu0 0
        %957 = vmatpush1.bf16.msra.mxu0 0
        %958 = vmatprep.subr.bf16.mxu0 0
        %959 = vmatpush1.bf16.msra.mxu0 0
        %960 = vmatprep.subr.bf16.mxu0 0
        %961 = vmatpush1.bf16.msra.mxu0 0
        %962 = vmatprep.subr.bf16.mxu0 0
        %963 = vmatpush1.bf16.msra.mxu0 0
        %964 = vmatprep.subr.bf16.mxu0 0
        %965 = vmatpush1.bf16.msra.mxu0 0
        %966 = vmatprep.subr.bf16.mxu0 0
        %967 = vmatpush1.bf16.msra.mxu0 0
        %968 = vmatprep.subr.bf16.mxu0 0
        %969 = vmatpush1.bf16.msra.mxu0 0
        %970 = vmatprep.subr.bf16.mxu0 0
        %971 = vmatpush1.bf16.msra.mxu0 0
        %972 = vmatprep.subr.bf16.mxu0 0
        %973 = vmatpush1.bf16.msra.mxu0 0
        %974 = vmatprep.subr.bf16.mxu0 0
        %975 = vmatpush1.bf16.msra.mxu0 0
        %976 = vmatprep.subr.bf16.mxu0 0
        %977 = vmatpush1.bf16.msra.mxu0 0
        %978 = vmatprep.subr.bf16.mxu0 0
        %979 = vmatpush1.bf16.msra.mxu0 0
        %980 = vmatprep.subr.bf16.mxu0 0
        %981 = vmatpush1.bf16.msra.mxu0 0
        %982 = vmatprep.subr.bf16.mxu0 0
        %983 = vmatpush1.bf16.msra.mxu0 0
        %984 = vmatprep.mubr.bf16.mxu0 0
        %985 = vmatmul.mubr.bf16.gmra.mrb[0].mxu0 %v947
        %v986 = vpop.f32.mrb[0].mxu0
        %v987 = vadd.f32 0.0, %v986
        %v988 = vpop.f32.mrb[0].mxu0
        %v989 = vpop.f32.mrb[0].mxu0
        %v990 = vpop.f32.mrb[0].mxu0
        %991 = vdwg.mxu0
        %992 = vrot.lane.b32.xlu0 %v731, 120
        %v993 = vpop.permute.xlu0 %992
        %995 = vrot.lane.b32.xlu0 %v742, 124
        %v996 = vpop.permute.xlu0 %995
        %v998 = vsel %vm700, %v993, %v996
        %v999 = vpack.c.bf16 %v998, %v998
        %1000 = vrot.lane.b32.xlu0 %v750, 120
        %v1001 = vpop.permute.xlu0 %1000
        %1003 = vrot.lane.b32.xlu0 %v751, 124
        %v1004 = vpop.permute.xlu0 %1003
        %v1006 = vsel %vm700, %v1001, %v1004
        %v1007 = vpack.c.bf16 %v1006, %v1006
        %v1009 = vsel %vm702, %v999, 0
        %v1012 = vsel %vm702, %v1007, 0
        %1014 = vmatprep.subr.bf16.mxu0 0
        %1015 = vmatpush1.bf16.xpose.msra.mxu0 %v1012
        %1016 = vmatprep.subr.bf16.mxu0 0
        %1017 = vmatpush1.bf16.xpose.msra.mxu0 0
        %1018 = vmatprep.subr.bf16.mxu0 0
        %1019 = vmatpush1.bf16.xpose.msra.mxu0 0
        %1020 = vmatprep.subr.bf16.mxu0 0
        %1021 = vmatpush1.bf16.xpose.msra.mxu0 0
        %1022 = vmatprep.subr.bf16.mxu0 0
        %1023 = vmatpush1.bf16.xpose.msra.mxu0 0
        %1024 = vmatprep.subr.bf16.mxu0 0
        %1025 = vmatpush1.bf16.xpose.msra.mxu0 0
        %1026 = vmatprep.subr.bf16.mxu0 0
        %1027 = vmatpush1.bf16.xpose.msra.mxu0 0
        %1028 = vmatprep.subr.bf16.mxu0 0
        %1029 = vmatpush1.bf16.xpose.msra.mxu0 0
        %1030 = vmatprep.subr.bf16.mxu0 0
        %1031 = vmatpush1.bf16.xpose.msra.mxu0 0
        %1032 = vmatprep.subr.bf16.mxu0 0
        %1033 = vmatpush1.bf16.xpose.msra.mxu0 0
        %1034 = vmatprep.subr.bf16.mxu0 0
        %1035 = vmatpush1.bf16.xpose.msra.mxu0 0
        %1036 = vmatprep.subr.bf16.mxu0 0
        %1037 = vmatpush1.bf16.xpose.msra.mxu0 0
        %1038 = vmatprep.subr.bf16.mxu0 0
        %1039 = vmatpush1.bf16.xpose.msra.mxu0 0
        %1040 = vmatprep.subr.bf16.mxu0 0
        %1041 = vmatpush1.bf16.xpose.msra.mxu0 0
        %1042 = vmatprep.subr.bf16.mxu0 0
        %1043 = vmatpush1.bf16.xpose.msra.mxu0 0
        %1044 = vmatprep.subr.bf16.mxu0 0
        %1045 = vmatpush1.bf16.xpose.msra.mxu0 0
        %1046 = vmatprep.mubr.bf16.mxu0 0
        %1047 = vmatmul.mubr.bf16.gmra.mrb[0].mxu0 %v1009
        %v1048 = vpop.f32.mrb[0].mxu0
        %v1049 = vadd.f32 0.0, %v1048
        %v1050 = vpop.f32.mrb[0].mxu0
        %v1051 = vpop.f32.mrb[0].mxu0
        %v1052 = vpop.f32.mrb[0].mxu0
        %1053 = vdwg.mxu0
        %v1054 = vsel %vm749, %v1049, -1e+30
        %v1055 = vsel %vm702, %v1054, -inf
        %1056 = vmax.xlane.f32.xlu0 %v1055
        %v1057 = vpop.xlane.xlu0 %1056
        %v1058 = vsub.f32 %v1054, %v1057
        %v1059 = vmul.f32 %v1058, 1.442695
        %v1060 = vpow.pop %v1059
        %v1061 = vsel %vm702, %v1060, 0.0
        %1062 = vadd.xlane.f32.xlu0 %v1061
        %v1063 = vpop.xlane.xlu0 %1062
        %v1064 = vrcp.pop %v1063
        %v1065 = vmul.f32 %v1060, %v1064
        %v1066 = vpack.c.bf16 %v1065, %v1065
        %1067 = vrot.lane.b32.xlu0 %v824, 112
        %v1068 = vpop.permute.xlu0 %1067
        %v1070 = vsel %vm702, %v1066, 0
        %v1073 = vsel %vm828, %v1068, 0
        %1075 = vmatprep.subr.bf16.mxu0 0
        %1076 = vmatpush1.bf16.msra.mxu0 %v1073
        %1077 = vmatprep.subr.bf16.mxu0 0
        %1078 = vmatpush1.bf16.msra.mxu0 0
        %1079 = vmatprep.subr.bf16.mxu0 0
        %1080 = vmatpush1.bf16.msra.mxu0 0
        %1081 = vmatprep.subr.bf16.mxu0 0
        %1082 = vmatpush1.bf16.msra.mxu0 0
        %1083 = vmatprep.subr.bf16.mxu0 0
        %1084 = vmatpush1.bf16.msra.mxu0 0
        %1085 = vmatprep.subr.bf16.mxu0 0
        %1086 = vmatpush1.bf16.msra.mxu0 0
        %1087 = vmatprep.subr.bf16.mxu0 0
        %1088 = vmatpush1.bf16.msra.mxu0 0
        %1089 = vmatprep.subr.bf16.mxu0 0
        %1090 = vmatpush1.bf16.msra.mxu0 0
        %1091 = vmatprep.subr.bf16.mxu0 0
        %1092 = vmatpush1.bf16.msra.mxu0 0
        %1093 = vmatprep.subr.bf16.mxu0 0
        %1094 = vmatpush1.bf16.msra.mxu0 0
        %1095 = vmatprep.subr.bf16.mxu0 0
        %1096 = vmatpush1.bf16.msra.mxu0 0
        %1097 = vmatprep.subr.bf16.mxu0 0
        %1098 = vmatpush1.bf16.msra.mxu0 0
        %1099 = vmatprep.subr.bf16.mxu0 0
        %1100 = vmatpush1.bf16.msra.mxu0 0
        %1101 = vmatprep.subr.bf16.mxu0 0
        %1102 = vmatpush1.bf16.msra.mxu0 0
        %1103 = vmatprep.subr.bf16.mxu0 0
        %1104 = vmatpush1.bf16.msra.mxu0 0
        %1105 = vmatprep.subr.bf16.mxu0 0
        %1106 = vmatpush1.bf16.msra.mxu0 0
        %1107 = vmatprep.mubr.bf16.mxu0 0
        %1108 = vmatmul.mubr.bf16.gmra.mrb[0].mxu0 %v1070
        %v1109 = vpop.f32.mrb[0].mxu0
        %v1110 = vadd.f32 0.0, %v1109
        %v1111 = vpop.f32.mrb[0].mxu0
        %v1112 = vpop.f32.mrb[0].mxu0
        %v1113 = vpop.f32.mrb[0].mxu0
        %1114 = vdwg.mxu0
        %1115 = vrot.lane.b32.xlu0 %v731, 116
        %v1116 = vpop.permute.xlu0 %1115
        %1118 = vrot.lane.b32.xlu0 %v742, 120
        %v1119 = vpop.permute.xlu0 %1118
        %v1121 = vsel %vm700, %v1116, %v1119
        %v1122 = vpack.c.bf16 %v1121, %v1121
        %1123 = vrot.lane.b32.xlu0 %v750, 116
        %v1124 = vpop.permute.xlu0 %1123
        %1126 = vrot.lane.b32.xlu0 %v751, 120
        %v1127 = vpop.permute.xlu0 %1126
        %v1129 = vsel %vm700, %v1124, %v1127
        %v1130 = vpack.c.bf16 %v1129, %v1129
        %v1132 = vsel %vm702, %v1122, 0
        %v1135 = vsel %vm702, %v1130, 0
        %1137 = vmatprep.subr.bf16.mxu0 0
        %1138 = vmatpush1.bf16.xpose.msra.mxu0 %v1135
        %1139 = vmatprep.subr.bf16.mxu0 0
        %1140 = vmatpush1.bf16.xpose.msra.mxu0 0
        %1141 = vmatprep.subr.bf16.mxu0 0
        %1142 = vmatpush1.bf16.xpose.msra.mxu0 0
        %1143 = vmatprep.subr.bf16.mxu0 0
        %1144 = vmatpush1.bf16.xpose.msra.mxu0 0
        %1145 = vmatprep.subr.bf16.mxu0 0
        %1146 = vmatpush1.bf16.xpose.msra.mxu0 0
        %1147 = vmatprep.subr.bf16.mxu0 0
        %1148 = vmatpush1.bf16.xpose.msra.mxu0 0
        %1149 = vmatprep.subr.bf16.mxu0 0
        %1150 = vmatpush1.bf16.xpose.msra.mxu0 0
        %1151 = vmatprep.subr.bf16.mxu0 0
        %1152 = vmatpush1.bf16.xpose.msra.mxu0 0
        %1153 = vmatprep.subr.bf16.mxu0 0
        %1154 = vmatpush1.bf16.xpose.msra.mxu0 0
        %1155 = vmatprep.subr.bf16.mxu0 0
        %1156 = vmatpush1.bf16.xpose.msra.mxu0 0
        %1157 = vmatprep.subr.bf16.mxu0 0
        %1158 = vmatpush1.bf16.xpose.msra.mxu0 0
        %1159 = vmatprep.subr.bf16.mxu0 0
        %1160 = vmatpush1.bf16.xpose.msra.mxu0 0
        %1161 = vmatprep.subr.bf16.mxu0 0
        %1162 = vmatpush1.bf16.xpose.msra.mxu0 0
        %1163 = vmatprep.subr.bf16.mxu0 0
        %1164 = vmatpush1.bf16.xpose.msra.mxu0 0
        %1165 = vmatprep.subr.bf16.mxu0 0
        %1166 = vmatpush1.bf16.xpose.msra.mxu0 0
        %1167 = vmatprep.subr.bf16.mxu0 0
        %1168 = vmatpush1.bf16.xpose.msra.mxu0 0
        %1169 = vmatprep.mubr.bf16.mxu0 0
        %1170 = vmatmul.mubr.bf16.gmra.mrb[0].mxu0 %v1132
        %v1171 = vpop.f32.mrb[0].mxu0
        %v1172 = vadd.f32 0.0, %v1171
        %v1173 = vpop.f32.mrb[0].mxu0
        %v1174 = vpop.f32.mrb[0].mxu0
        %v1175 = vpop.f32.mrb[0].mxu0
        %1176 = vdwg.mxu0
        %v1177 = vsel %vm749, %v1172, -1e+30
        %v1178 = vsel %vm702, %v1177, -inf
        %1179 = vmax.xlane.f32.xlu0 %v1178
        %v1180 = vpop.xlane.xlu0 %1179
        %v1181 = vsub.f32 %v1177, %v1180
        %v1182 = vmul.f32 %v1181, 1.442695
        %v1183 = vpow.pop %v1182
        %v1184 = vsel %vm702, %v1183, 0.0
        %1185 = vadd.xlane.f32.xlu0 %v1184
        %v1186 = vpop.xlane.xlu0 %1185
        %v1187 = vrcp.pop %v1186
        %v1188 = vmul.f32 %v1183, %v1187
        %v1189 = vpack.c.bf16 %v1188, %v1188
        %1190 = vrot.lane.b32.xlu0 %v824, 104
        %v1191 = vpop.permute.xlu0 %1190
        %v1193 = vsel %vm702, %v1189, 0
        %v1196 = vsel %vm828, %v1191, 0
        %1198 = vmatprep.subr.bf16.mxu0 0
        %1199 = vmatpush1.bf16.msra.mxu0 %v1196
        %1200 = vmatprep.subr.bf16.mxu0 0
        %1201 = vmatpush1.bf16.msra.mxu0 0
        %1202 = vmatprep.subr.bf16.mxu0 0
        %1203 = vmatpush1.bf16.msra.mxu0 0
        %1204 = vmatprep.subr.bf16.mxu0 0
        %1205 = vmatpush1.bf16.msra.mxu0 0
        %1206 = vmatprep.subr.bf16.mxu0 0
        %1207 = vmatpush1.bf16.msra.mxu0 0
        %1208 = vmatprep.subr.bf16.mxu0 0
        %1209 = vmatpush1.bf16.msra.mxu0 0
        %1210 = vmatprep.subr.bf16.mxu0 0
        %1211 = vmatpush1.bf16.msra.mxu0 0
        %1212 = vmatprep.subr.bf16.mxu0 0
        %1213 = vmatpush1.bf16.msra.mxu0 0
        %1214 = vmatprep.subr.bf16.mxu0 0
        %1215 = vmatpush1.bf16.msra.mxu0 0
        %1216 = vmatprep.subr.bf16.mxu0 0
        %1217 = vmatpush1.bf16.msra.mxu0 0
        %1218 = vmatprep.subr.bf16.mxu0 0
        %1219 = vmatpush1.bf16.msra.mxu0 0
        %1220 = vmatprep.subr.bf16.mxu0 0
        %1221 = vmatpush1.bf16.msra.mxu0 0
        %1222 = vmatprep.subr.bf16.mxu0 0
        %1223 = vmatpush1.bf16.msra.mxu0 0
        %1224 = vmatprep.subr.bf16.mxu0 0
        %1225 = vmatpush1.bf16.msra.mxu0 0
        %1226 = vmatprep.subr.bf16.mxu0 0
        %1227 = vmatpush1.bf16.msra.mxu0 0
        %1228 = vmatprep.subr.bf16.mxu0 0
        %1229 = vmatpush1.bf16.msra.mxu0 0
        %1230 = vmatprep.mubr.bf16.mxu0 0
        %1231 = vmatmul.mubr.bf16.gmra.mrb[0].mxu0 %v1193
        %v1232 = vpop.f32.mrb[0].mxu0
        %v1233 = vadd.f32 0.0, %v1232
        %v1234 = vpop.f32.mrb[0].mxu0
        %v1235 = vpop.f32.mrb[0].mxu0
        %v1236 = vpop.f32.mrb[0].mxu0
        %1237 = vdwg.mxu0
        %1239 = vrot.lane.b32.xlu0 %v987, 8
        %v1240 = vpop.permute.xlu0 %1239
        %1243 = vrot.lane.b32.xlu0 %v1110, 16
        %v1244 = vpop.permute.xlu0 %1243
        %1247 = vrot.lane.b32.xlu0 %v1233, 24
        %v1248 = vpop.permute.xlu0 %1247
        %v1250 = vsel %vm702, %v867, %v1240
        %vm1251 = vcmask 130048
        %v1252 = vsel %vm1251, %v1250, %v1244
        %vm1253 = vcmask 195584
        %v1254 = vsel %vm1253, %v1252, %v1248
        %v1255 = vpack.c.bf16 %v1254, %v1254
        %v1256 = vld [vmem:[%s6] sm:$0xf]
        %v1257 = vld [vmem:[%s6 + $0x4] sm:$0xf]
        %v1258 = vld [vmem:[%s6 + $0x8] sm:$0xf]
        %v1259 = vld [vmem:[%s6 + $0xc] sm:$0xf]
        %v1264 = vunpack.c.l.b16 %v1256
        %v1265 = vunpack.c.l.b16 %v1257
        %v1266 = vunpack.c.l.b16 %v1258
        %v1267 = vunpack.c.l.b16 %v1259
        %v1268 = vpack.c.b16 %v1265, %v1264
        %v1269 = vpack.c.b16 %v1267, %v1266
        %v1273 = vsel %vm612, %v1255, 0
        %1275 = vmatprep.subr.bf16.mxu0 0
        %1276 = vmatpush1.bf16.msra.mxu0 %v1268
        %1277 = vmatprep.subr.bf16.mxu0 0
        %1278 = vmatpush1.bf16.msra.mxu0 %v1269
        %1279 = vmatprep.subr.bf16.mxu0 0
        %1280 = vmatpush1.bf16.msra.mxu0 0
        %1281 = vmatprep.subr.bf16.mxu0 0
        %1282 = vmatpush1.bf16.msra.mxu0 0
        %1283 = vmatprep.subr.bf16.mxu0 0
        %1284 = vmatpush1.bf16.msra.mxu0 0
        %1285 = vmatprep.subr.bf16.mxu0 0
        %1286 = vmatpush1.bf16.msra.mxu0 0
        %1287 = vmatprep.subr.bf16.mxu0 0
        %1288 = vmatpush1.bf16.msra.mxu0 0
        %1289 = vmatprep.subr.bf16.mxu0 0
        %1290 = vmatpush1.bf16.msra.mxu0 0
        %1291 = vmatprep.subr.bf16.mxu0 0
        %1292 = vmatpush1.bf16.msra.mxu0 0
        %1293 = vmatprep.subr.bf16.mxu0 0
        %1294 = vmatpush1.bf16.msra.mxu0 0
        %1295 = vmatprep.subr.bf16.mxu0 0
        %1296 = vmatpush1.bf16.msra.mxu0 0
        %1297 = vmatprep.subr.bf16.mxu0 0
        %1298 = vmatpush1.bf16.msra.mxu0 0
        %1299 = vmatprep.subr.bf16.mxu0 0
        %1300 = vmatpush1.bf16.msra.mxu0 0
        %1301 = vmatprep.subr.bf16.mxu0 0
        %1302 = vmatpush1.bf16.msra.mxu0 0
        %1303 = vmatprep.subr.bf16.mxu0 0
        %1304 = vmatpush1.bf16.msra.mxu0 0
        %1305 = vmatprep.subr.bf16.mxu0 0
        %1306 = vmatpush1.bf16.msra.mxu0 0
        %1307 = vmatprep.mubr.bf16.mxu0 0
        %1308 = vmatmul.mubr.bf16.gmra.mrb[0].mxu0 %v1273
        %v1309 = vpop.f32.mrb[0].mxu0
        %v1310 = vadd.f32 0.0, %v1309
        %v1311 = vpop.f32.mrb[0].mxu0
        %v1312 = vpop.f32.mrb[0].mxu0
        %v1313 = vpop.f32.mrb[0].mxu0
        %1314 = vdwg.mxu0
        %v1315 = vadd.f32 %v610, %v1310
        %v1316 = vld [vmem:[%s7] sm:$0x1]
        %v1318 = vlaneseq
        %v1319 = vshrl.u32 %v1318, 7
        %v1320 = vsub.s32 0, %v1319
        %v1321 = vrot.slane %v1316, %v1320
        %v1323 = vadd.f32 %v1315, %v1321
        %v1324 = vld [vmem:[#allocation5] sm:$0x1]
        %v1325 = vmul.f32 %v1323, %v1323
        %v1326 = vsel %vm612, %v1325, 0.0
        %1327 = vadd.xlane.f32.xlu0 %v1326
        %v1328 = vpop.xlane.xlu0 %1327
        %v1329 = vmul.f32 %v1328, %v616
        %v1330 = vadd.f32 %v1329, 1e-05
        %v1331 = vrsqrt.pop %v1330
        %v1332 = vmul.f32 %v1323, %v1331
        %v1334 = vlaneseq
        %v1335 = vshrl.u32 %v1334, 7
        %v1336 = vsub.s32 0, %v1335
        %v1337 = vrot.slane %v1324, %v1336
        %v1339 = vmul.f32 %v1332, %v1337
        %v1340 = vpack.c.bf16 %v1339, %v1339
        %v1341 = vld [vmem:[%s9] sm:$0xf]
        %v1342 = vld [vmem:[%s9 + $0x4] sm:$0xf]
        %v1343 = vld [vmem:[%s9 + $0x8] sm:$0xf]
        %v1344 = vld [vmem:[%s9 + $0xc] sm:$0xf]
        %v1349 = vunpack.c.l.b16 %v1341
        %v1350 = vunpack.c.l.b16 %v1342
        %v1351 = vunpack.c.l.b16 %v1343
        %v1352 = vunpack.c.l.b16 %v1344
        %v1353 = vpack.c.b16 %v1350, %v1349
        %v1354 = vpack.c.b16 %v1352, %v1351
        %v1358 = vsel %vm612, %v1340, 0
        %1360 = vmatprep.subr.bf16.mxu0 0
        %1361 = vmatpush1.bf16.msra.mxu0 %v1353
        %1362 = vmatprep.subr.bf16.mxu0 0
        %1363 = vmatpush1.bf16.msra.mxu0 %v1354
        %1364 = vmatprep.subr.bf16.mxu0 0
        %1365 = vmatpush1.bf16.msra.mxu0 0
        %1366 = vmatprep.subr.bf16.mxu0 0
        %1367 = vmatpush1.bf16.msra.mxu0 0
        %1368 = vmatprep.subr.bf16.mxu0 0
        %1369 = vmatpush1.bf16.msra.mxu0 0
        %1370 = vmatprep.subr.bf16.mxu0 0
        %1371 = vmatpush1.bf16.msra.mxu0 0
        %1372 = vmatprep.subr.bf16.mxu0 0
        %1373 = vmatpush1.bf16.msra.mxu0 0
        %1374 = vmatprep.subr.bf16.mxu0 0
        %1375 = vmatpush1.bf16.msra.mxu0 0
        %1376 = vmatprep.subr.bf16.mxu0 0
        %1377 = vmatpush1.bf16.msra.mxu0 0
        %1378 = vmatprep.subr.bf16.mxu0 0
        %1379 = vmatpush1.bf16.msra.mxu0 0
        %1380 = vmatprep.subr.bf16.mxu0 0
        %1381 = vmatpush1.bf16.msra.mxu0 0
        %1382 = vmatprep.subr.bf16.mxu0 0
        %1383 = vmatpush1.bf16.msra.mxu0 0
        %1384 = vmatprep.subr.bf16.mxu0 0
        %1385 = vmatpush1.bf16.msra.mxu0 0
        %1386 = vmatprep.subr.bf16.mxu0 0
        %1387 = vmatpush1.bf16.msra.mxu0 0
        %1388 = vmatprep.subr.bf16.mxu0 0
        %1389 = vmatpush1.bf16.msra.mxu0 0
        %1390 = vmatprep.subr.bf16.mxu0 0
        %1391 = vmatpush1.bf16.msra.mxu0 0
        %1392 = vmatprep.mubr.bf16.mxu0 0
        %1393 = vmatmul.mubr.bf16.gmra.mrb[0].mxu0 %v1358
        %v1394 = vpop.f32.mrb[0].mxu0
        %v1395 = vadd.f32 0.0, %v1394
        %v1396 = vpop.f32.mrb[0].mxu0
        %v1397 = vpop.f32.mrb[0].mxu0
        %v1398 = vpop.f32.mrb[0].mxu0
        %1399 = vdwg.mxu0
        %v1400 = vld [vmem:[%s10] sm:$0xf]
        %v1401 = vld [vmem:[%s10 + $0x4] sm:$0xf]
        %v1402 = vld [vmem:[%s10 + $0x8] sm:$0xf]
        %v1403 = vld [vmem:[%s10 + $0xc] sm:$0xf]
        %v1408 = vunpack.c.l.b16 %v1400
        %v1409 = vunpack.c.l.b16 %v1401
        %v1410 = vunpack.c.l.b16 %v1402
        %v1411 = vunpack.c.l.b16 %v1403
        %v1412 = vpack.c.b16 %v1409, %v1408
        %v1413 = vpack.c.b16 %v1411, %v1410
        %1416 = vmatprep.subr.bf16.mxu0 0
        %1417 = vmatpush1.bf16.msra.mxu0 %v1412
        %1418 = vmatprep.subr.bf16.mxu0 0
        %1419 = vmatpush1.bf16.msra.mxu0 %v1413
        %1420 = vmatprep.subr.bf16.mxu0 0
        %1421 = vmatpush1.bf16.msra.mxu0 0
        %1422 = vmatprep.subr.bf16.mxu0 0
        %1423 = vmatpush1.bf16.msra.mxu0 0
        %1424 = vmatprep.subr.bf16.mxu0 0
        %1425 = vmatpush1.bf16.msra.mxu0 0
        %1426 = vmatprep.subr.bf16.mxu0 0
        %1427 = vmatpush1.bf16.msra.mxu0 0
        %1428 = vmatprep.subr.bf16.mxu0 0
        %1429 = vmatpush1.bf16.msra.mxu0 0
        %1430 = vmatprep.subr.bf16.mxu0 0
        %1431 = vmatpush1.bf16.msra.mxu0 0
        %1432 = vmatprep.subr.bf16.mxu0 0
        %1433 = vmatpush1.bf16.msra.mxu0 0
        %1434 = vmatprep.subr.bf16.mxu0 0
        %1435 = vmatpush1.bf16.msra.mxu0 0
        %1436 = vmatprep.subr.bf16.mxu0 0
        %1437 = vmatpush1.bf16.msra.mxu0 0
        %1438 = vmatprep.subr.bf16.mxu0 0
        %1439 = vmatpush1.bf16.msra.mxu0 0
        %1440 = vmatprep.subr.bf16.mxu0 0
        %1441 = vmatpush1.bf16.msra.mxu0 0
        %1442 = vmatprep.subr.bf16.mxu0 0
        %1443 = vmatpush1.bf16.msra.mxu0 0
        %1444 = vmatprep.subr.bf16.mxu0 0
        %1445 = vmatpush1.bf16.msra.mxu0 0
        %1446 = vmatprep.subr.bf16.mxu0 0
        %1447 = vmatpush1.bf16.msra.mxu0 0
        %1448 = vmatprep.mubr.bf16.mxu0 0
        %1449 = vmatmul.mubr.bf16.gmra.mrb[0].mxu0 %v1358
        %v1450 = vpop.f32.mrb[0].mxu0
        %v1451 = vadd.f32 0.0, %v1450
        %v1452 = vpop.f32.mrb[0].mxu0
        %v1453 = vpop.f32.mrb[0].mxu0
        %v1454 = vpop.f32.mrb[0].mxu0
        %1455 = vdwg.mxu0
        %v1456 = vxor.u32 %v1395, 2147483648
        %v1457 = vmul.f32 %v1456, 1.442695
        %v1458 = vpow.pop %v1457
        %v1459 = vadd.f32 %v1458, 1.0
        %v1460 = vrcp.pop %v1459
        %v1461 = vmul.f32 1.0, %v1460
        %v1462 = vmul.f32 %v1395, %v1461
        %v1463 = vmul.f32 %v1462, %v1451
        %v1464 = vpack.c.bf16 %v1463, %v1463
        %v1465 = vld [vmem:[%s11] sm:$0xf]
        %v1466 = vld [vmem:[%s11 + $0x4] sm:$0xf]
        %v1467 = vld [vmem:[%s11 + $0x8] sm:$0xf]
        %v1468 = vld [vmem:[%s11 + $0xc] sm:$0xf]
        %v1469 = vld [vmem:[%s11 + $0x10] sm:$0xf]
        %v1470 = vld [vmem:[%s11 + $0x14] sm:$0xf]
        %v1471 = vld [vmem:[%s11 + $0x18] sm:$0xf]
        %v1472 = vld [vmem:[%s11 + $0x1c] sm:$0xf]
        %v1473 = vld [vmem:[%s11 + $0x20] sm:$0xf]
        %v1474 = vld [vmem:[%s11 + $0x24] sm:$0xf]
        %v1475 = vld [vmem:[%s11 + $0x28] sm:$0xf]
        %v1487 = vunpack.c.l.b16 %v1465
        %v1488 = vunpack.c.l.b16 %v1466
        %v1489 = vunpack.c.l.b16 %v1467
        %v1490 = vunpack.c.l.b16 %v1468
        %v1491 = vunpack.c.l.b16 %v1469
        %v1492 = vunpack.c.l.b16 %v1470
        %v1493 = vunpack.c.l.b16 %v1471
        %v1494 = vunpack.c.l.b16 %v1472
        %v1495 = vunpack.c.l.b16 %v1473
        %v1496 = vunpack.c.l.b16 %v1474
        %v1497 = vunpack.c.l.b16 %v1475
        %v1498 = vpack.c.b16 %v1488, %v1487
        %v1499 = vpack.c.b16 %v1490, %v1489
        %v1500 = vpack.c.b16 %v1492, %v1491
        %v1501 = vpack.c.b16 %v1494, %v1493
        %v1502 = vpack.c.b16 %v1496, %v1495
        %v1503 = vpack.c.b16 %v1497, %v1497
        %vm1509 = vcmask 719872
        %v1511 = vsel %vm1509, %v1464, 0
        %v1514 = vsel %vm828, %v1503, 0
        %1516 = vmatprep.subr.bf16.mxu0 0
        %1517 = vmatpush1.bf16.msra.mxu0 %v1498
        %1518 = vmatprep.subr.bf16.mxu0 0
        %1519 = vmatpush1.bf16.msra.mxu0 %v1499
        %1520 = vmatprep.subr.bf16.mxu0 0
        %1521 = vmatpush1.bf16.msra.mxu0 %v1500
        %1522 = vmatprep.subr.bf16.mxu0 0
        %1523 = vmatpush1.bf16.msra.mxu0 %v1501
        %1524 = vmatprep.subr.bf16.mxu0 0
        %1525 = vmatpush1.bf16.msra.mxu0 %v1502
        %1526 = vmatprep.subr.bf16.mxu0 0
        %1527 = vmatpush1.bf16.msra.mxu0 %v1514
        %1528 = vmatprep.subr.bf16.mxu0 0
        %1529 = vmatpush1.bf16.msra.mxu0 0
        %1530 = vmatprep.subr.bf16.mxu0 0
        %1531 = vmatpush1.bf16.msra.mxu0 0
        %1532 = vmatprep.subr.bf16.mxu0 0
        %1533 = vmatpush1.bf16.msra.mxu0 0
        %1534 = vmatprep.subr.bf16.mxu0 0
        %1535 = vmatpush1.bf16.msra.mxu0 0
        %1536 = vmatprep.subr.bf16.mxu0 0
        %1537 = vmatpush1.bf16.msra.mxu0 0
        %1538 = vmatprep.subr.bf16.mxu0 0
        %1539 = vmatpush1.bf16.msra.mxu0 0
        %1540 = vmatprep.subr.bf16.mxu0 0
        %1541 = vmatpush1.bf16.msra.mxu0 0
        %1542 = vmatprep.subr.bf16.mxu0 0
        %1543 = vmatpush1.bf16.msra.mxu0 0
        %1544 = vmatprep.subr.bf16.mxu0 0
        %1545 = vmatpush1.bf16.msra.mxu0 0
        %1546 = vmatprep.subr.bf16.mxu0 0
        %1547 = vmatpush1.bf16.msra.mxu0 0
        %1548 = vmatprep.mubr.bf16.mxu0 0
        %1549 = vmatmul.mubr.bf16.gmra.mrb[0].mxu0 %v1511
        %v1550 = vpop.f32.mrb[0].mxu0
        %v1551 = vadd.f32 0.0, %v1550
        %v1552 = vpop.f32.mrb[0].mxu0
        %v1553 = vpop.f32.mrb[0].mxu0
        %v1554 = vpop.f32.mrb[0].mxu0
        %1555 = vdwg.mxu0
        %v1556 = vadd.f32 %v1323, %v1551
        %1557 = vst.msk [vmem:[%s458] sm:$0xff] %vm612, %v1556
        %s1558 = sand.u32 %s328, 1
        %s1559 = scalar_lea.sflag [#allocation7], %s1558
        %s1560 = sand.u32 %s328, 1
        %s1561 = smul.addr %s1560, 8
        %s1562 = scalar_lea.vmem [#allocation8], %s1561
        // Predicated region
        $region81: #{tpu_custom_call.1} parent=71 // pred_check
          %p1563 = pneg %p338
        $region82: #{tpu_custom_call.1} parent=71 // pred_check_branch
          %1565 = sbr.rel (%p1563) target = $region84
        $region83: #{tpu_custom_call.1} parent=71 // pred_region
          %s1567 = ssub.s32 128, 128
          %1568 = vsyncadd %s1559, %s1567
          %s1569 = sadd.s32 %s33, %s32
          %s1570 = smul.addr %s1569, 128
          %s1571 = scalar_lea.hbm %s13, %s1570
          %s1573 = sshll.u32 %s1562, 4
          %s1574 = int_to_ptr.vmem [resolvable:$true] %s1573
          %1576 = dma.vmem_to_hbm [thread:$0]  %s1574, 128, %s1571, %s1559
        $region84: #{tpu_custom_call.1} parent=71 // pred_fallthru
          _
      $region72: #{tpu_custom_call.1} parent=5 // pred_fallthru
        _
      %p1577 = scmp.le.s32.totalorder 2, %s23
      // Predicated region
      $region85: #{tpu_custom_call.1} parent=5 // pred_check
        %p1578 = pneg %p1577
      $region86: #{tpu_custom_call.1} parent=5 // pred_check_branch
        %1580 = sbr.rel (%p1578) target = $region88
      $region87: #{tpu_custom_call.1} parent=5 // pred_region
        %s1581 = ssub.s32 %s23, 2
        // Predicated region
        $region89: #{tpu_custom_call.1} parent=87 // pred_check
          %p1582 = pneg %p344
        $region90: #{tpu_custom_call.1} parent=87 // pred_check_branch
          %1584 = sbr.rel (%p1582) target = $region92
        $region91: #{tpu_custom_call.1} parent=87 // pred_region
          %s1585 = sand.u32 %s329, 1
          %s1586 = scalar_lea.sflag [#allocation7], %s1585
          %s1587 = sand.u32 %s329, 1
          %s1588 = smul.addr %s1587, 8
          %s1589 = scalar_lea.vmem [#allocation8], %s1588
          %1590 = dma.done %s1586, 128
        $region92: #{tpu_custom_call.1} parent=87 // pred_fallthru
          _
      $region88: #{tpu_custom_call.1} parent=5 // pred_fallthru
        _
    $region6: #{tpu_custom_call.1} parent=1 // loop_footer
      %s27 = sadd.s32 1, %s23
    $region7: #{tpu_custom_call.1} parent=1 // loop_footer_branch
      %22 = sbr.rel target = $region3
    $region8: #{tpu_custom_call.1} parent=1 // loop_exit
      _
    %1591 = vsyncpa [#allocation6], 1
    %s1592 = scalar_lea.sflag [#allocation6], 1
    %1593 = vsyncpa %s1592, 1
    %1594 = vsyncpa [#allocation7], 1
    %s1595 = scalar_lea.sflag [#allocation7], 1
    %1596 = vsyncpa %s1595, 1

// kernel: tpu_custom_call.1
$region0: #{tpu_custom_call.1}
  #allocation0 [shape = 'u32[]', space=smem, size = 0x4, offset = 0x4, fixed_abs, tag = 'smem constant byte address 0x4 - core index']
  #allocation1 [shape = 'u32[144,128]{1,0:T(1,128)}', space=vmem, size = 0x12000, scoped, tag = 'internal scratch']
  #allocation2 [shape = 'f32[8,16]{1,0:T(8,128)}', space=vmem, size = 0x1000, scoped, tag = 'scratch operand']
  #allocation3 [shape = 'f32[8,16]{1,0:T(8,128)}', space=vmem, size = 0x1000, scoped, tag = 'scratch operand']
  #allocation4 [shape = 'f32[8,32]{1,0:T(8,128)}', space=vmem, size = 0x1000, scoped, tag = 'scratch operand']
  %s0 = inlined_call_operand.vmem [shape: f32[2,8,32], index: 0, kind: input, shape index: {}]
  %s1 = inlined_call_operand.vmem [shape: f32[8,4], index: 1, kind: input, shape index: {}]
  %s2 = inlined_call_operand.vmem [shape: f32[8,4], index: 2, kind: input, shape index: {}]
  %s3 = inlined_call_operand.vmem [shape: f32[1,32], index: 3, kind: input, shape index: {}]
  %s4 = inlined_call_operand.vmem [shape: bf16[32,32], index: 4, kind: input, shape index: {}]
  %s5 = inlined_call_operand.vmem [shape: bf16[32,64], index: 5, kind: input, shape index: {}]
  %s6 = inlined_call_operand.vmem [shape: bf16[32,32], index: 6, kind: input, shape index: {}]
  %s7 = inlined_call_operand.vmem [shape: f32[1,32], index: 7, kind: input, shape index: {}]
  %s8 = inlined_call_operand.hbm [shape: f32[1,32], index: 8, kind: input, shape index: {}]
  %s9 = inlined_call_operand.vmem [shape: bf16[32,88], index: 9, kind: input, shape index: {}]
  %s10 = inlined_call_operand.vmem [shape: bf16[32,88], index: 10, kind: input, shape index: {}]
  %s11 = inlined_call_operand.vmem [shape: bf16[88,32], index: 11, kind: input, shape index: {}]
  %s12 = inlined_call_operand.vmem [shape: f32[1,32], index: 12, kind: input, shape index: {}]
  %s13 = inlined_call_operand.hbm [shape: f32[2,8,32], index: 13, kind: output, shape index: {}]
  %s14 = sld [smem:[#allocation0]]
  $region93: #{tpu_custom_call.1} parent=0
    _
  %s16 = ssub.s32 1, %s14
  %s17 = scalar_select 0, %s16, %s14
  $region1: #{tpu_custom_call.1} parent=0
    #allocation5 [shape = 'u8[512]{0}', space=vmem, size = 0x400, scoped, tag = 'input window, operand 8, single buffered']
    #allocation6 [shape = 's32[2]{0}', space=sflag, size = 0x8, scoped, tag = 'scoped memory for tpu_custom_call.1']
    #allocation7 [shape = 's32[2]{0}', space=sflag, size = 0x8, scoped, tag = 'scoped memory for tpu_custom_call.1']
    #allocation8 [shape = 'u8[8192]{0}', space=vmem, size = 0x2000, scoped, tag = 'output window, operand 0']
    %18 = vsyncpa [#allocation6], 0
    %19 = vsyncpa [#allocation7], 0
    %s20 = scalar_lea.sflag [#allocation7], 1
    %21 = vsyncpa %s20, 0
    loop: start=0, step=1, limit=4
    $region2: #{tpu_custom_call.1} parent=1 // loop_pre_header
      _
    $region3: #{tpu_custom_call.1} parent=1 // loop_header
      %s23 = sphi 0, %s27
      %p24 = scmp.ge.s32.totalorder %s23, 4
      %s30 = sphi 0, %s42
      %s31 = sphi 0, %s38
      %s32 = sphi 0, %s30
      %s33 = sphi 0, %s31
      %s34 = sphi 0, %s32
      %s35 = sphi 0, %s33
      %s45 = sphi 0, %s47
      %s48 = sphi 0, %s45
      %s49 = sphi 0, %s48
      %s65 = sphi 0, %s49
      %s69 = sphi 0, %s69
      %s71 = sphi 0, %s69
      %s72 = sphi 0, %s71
      %s86 = sphi 0, %s72
      %s90 = sphi 0, %s90
      %s92 = sphi 0, %s90
      %s93 = sphi 0, %s92
      %s107 = sphi 0, %s93
      %s111 = sphi 0, %s111
      %s113 = sphi 0, %s111
      %s114 = sphi 0, %s113
      %s128 = sphi 0, %s114
      %s132 = sphi 0, %s132
      %s134 = sphi 0, %s132
      %s135 = sphi 0, %s134
      %s149 = sphi 0, %s135
      %s153 = sphi 0, %s153
      %s155 = sphi 0, %s153
      %s156 = sphi 0, %s155
      %s170 = sphi 0, %s156
      %s174 = sphi 0, %s174
      %s176 = sphi 0, %s174
      %s177 = sphi 0, %s176
      %s191 = sphi 0, %s177
      %s195 = sphi 0, %s195
      %s197 = sphi 0, %s195
      %s198 = sphi 0, %s197
      %s212 = sphi 0, %s198
      %s216 = sphi 0, %s216
      %s218 = sphi 0, %s216
      %s219 = sphi 0, %s218
      %s233 = sphi 0, %s219
      %s237 = sphi 0, %s237
      %s239 = sphi 0, %s237
      %s240 = sphi 0, %s239
      %s254 = sphi 0, %s240
      %s258 = sphi 0, %s258
      %s260 = sphi 0, %s258
      %s261 = sphi 0, %s260
      %s275 = sphi 0, %s261
      %s279 = sphi 0, %s279
      %s281 = sphi 0, %s279
      %s282 = sphi 0, %s281
      %s296 = sphi 0, %s282
      %s300 = sphi 0, %s300
      %s302 = sphi 0, %s300
      %s303 = sphi 0, %s302
      %s317 = sphi 0, %s303
      %s325 = sphi 0, %s327
      %s328 = sphi 0, %s325
      %s329 = sphi 0, %s328
      %s345 = sphi 0, %s329
    $region4: #{tpu_custom_call.1} parent=1 // loop_header_branch
      %26 = sbr.rel (%p24) target = $region8
    $region5: #{tpu_custom_call.1} parent=1 // loop_body
      %s28 = ssub.s32 %s23, 1
      %s29 = ssub.s32 %s23, 2
      %s36 = sadd.s32 1, %s31
      %p37 = scmp.ge.s32.totalorder %s36, 1
      %s38 = scalar_select %p37, 0, %s36
      %s39 = sadd.s32 1, %s30
      %s40 = scalar_select %p37, %s39, %s30
      %p41 = scmp.ge.s32.totalorder %s40, 2
      %s42 = scalar_select %p41, 0, %s40
      %s43 = ssub.s32 %s30, %s42
      %p44 = scmp.eq.s32.totalorder %s43, 0
      %s46 = sadd.s32 %s45, 1
      %s47 = scalar_select %p44, %s45, %s46
      %p50 = pneg %p44
      %p51 = scmp.eq.s32.totalorder %s23, 1
      %p52 = por %p50, %p51
      %p53 = scmp.ne.s32.totalorder %s45, %s48
      %p54 = scmp.eq.s32.totalorder %s23, 0
      %p55 = por %p53, %p54
      %p56 = scmp.ne.s32.totalorder %s45, %s48
      %p57 = scmp.eq.s32.totalorder %s28, 1
      %p58 = por %p56, %p57
      %p59 = scmp.ne.s32.totalorder %s48, %s49
      %p60 = scmp.eq.s32.totalorder %s28, 0
      %p61 = por %p59, %p60
      %p62 = scmp.ne.s32.totalorder %s48, %s49
      %p63 = scmp.eq.s32.totalorder %s29, 1
      %p64 = por %p62, %p63
      %p66 = scmp.ne.s32.totalorder %s49, %s65
      %p67 = scmp.eq.s32.totalorder %s29, 0
      %p68 = por %p66, %p67
      %s70 = sadd.s32 %s69, 1
      %p73 = scmp.eq.s32.totalorder %s23, 1
      %p74 = scmp.ne.s32.totalorder %s69, %s71
      %p75 = scmp.eq.s32.totalorder %s23, 0
      %p76 = por %p74, %p75
      %p77 = scmp.ne.s32.totalorder %s69, %s71
      %p78 = scmp.eq.s32.totalorder %s28, 1
      %p79 = por %p77, %p78
      %p80 = scmp.ne.s32.totalorder %s71, %s72
      %p81 = scmp.eq.s32.totalorder %s28, 0
      %p82 = por %p80, %p81
      %p83 = scmp.ne.s32.totalorder %s71, %s72
      %p84 = scmp.eq.s32.totalorder %s29, 1
      %p85 = por %p83, %p84
      %p87 = scmp.ne.s32.totalorder %s72, %s86
      %p88 = scmp.eq.s32.totalorder %s29, 0
      %p89 = por %p87, %p88
      %s91 = sadd.s32 %s90, 1
      %p94 = scmp.eq.s32.totalorder %s23, 1
      %p95 = scmp.ne.s32.totalorder %s90, %s92
      %p96 = scmp.eq.s32.totalorder %s23, 0
      %p97 = por %p95, %p96
      %p98 = scmp.ne.s32.totalorder %s90, %s92
      %p99 = scmp.eq.s32.totalorder %s28, 1
      %p100 = por %p98, %p99
      %p101 = scmp.ne.s32.totalorder %s92, %s93
      %p102 = scmp.eq.s32.totalorder %s28, 0
      %p103 = por %p101, %p102
      %p104 = scmp.ne.s32.totalorder %s92, %s93
      %p105 = scmp.eq.s32.totalorder %s29, 1
      %p106 = por %p104, %p105
      %p108 = scmp.ne.s32.totalorder %s93, %s107
      %p109 = scmp.eq.s32.totalorder %s29, 0
      %p110 = por %p108, %p109
      %s112 = sadd.s32 %s111, 1
      %p115 = scmp.eq.s32.totalorder %s23, 1
      %p116 = scmp.ne.s32.totalorder %s111, %s113
      %p117 = scmp.eq.s32.totalorder %s23, 0
      %p118 = por %p116, %p117
      %p119 = scmp.ne.s32.totalorder %s111, %s113
      %p120 = scmp.eq.s32.totalorder %s28, 1
      %p121 = por %p119, %p120
      %p122 = scmp.ne.s32.totalorder %s113, %s114
      %p123 = scmp.eq.s32.totalorder %s28, 0
      %p124 = por %p122, %p123
      %p125 = scmp.ne.s32.totalorder %s113, %s114
      %p126 = scmp.eq.s32.totalorder %s29, 1
      %p127 = por %p125, %p126
      %p129 = scmp.ne.s32.totalorder %s114, %s128
      %p130 = scmp.eq.s32.totalorder %s29, 0
      %p131 = por %p129, %p130
      %s133 = sadd.s32 %s132, 1
      %p136 = scmp.eq.s32.totalorder %s23, 1
      %p137 = scmp.ne.s32.totalorder %s132, %s134
      %p138 = scmp.eq.s32.totalorder %s23, 0
      %p139 = por %p137, %p138
      %p140 = scmp.ne.s32.totalorder %s132, %s134
      %p141 = scmp.eq.s32.totalorder %s28, 1
      %p142 = por %p140, %p141
      %p143 = scmp.ne.s32.totalorder %s134, %s135
      %p144 = scmp.eq.s32.totalorder %s28, 0
      %p145 = por %p143, %p144
      %p146 = scmp.ne.s32.totalorder %s134, %s135
      %p147 = scmp.eq.s32.totalorder %s29, 1
      %p148 = por %p146, %p147
      %p150 = scmp.ne.s32.totalorder %s135, %s149
      %p151 = scmp.eq.s32.totalorder %s29, 0
      %p152 = por %p150, %p151
      %s154 = sadd.s32 %s153, 1
      %p157 = scmp.eq.s32.totalorder %s23, 1
      %p158 = scmp.ne.s32.totalorder %s153, %s155
      %p159 = scmp.eq.s32.totalorder %s23, 0
      %p160 = por %p158, %p159
      %p161 = scmp.ne.s32.totalorder %s153, %s155
      %p162 = scmp.eq.s32.totalorder %s28, 1
      %p163 = por %p161, %p162
      %p164 = scmp.ne.s32.totalorder %s155, %s156
      %p165 = scmp.eq.s32.totalorder %s28, 0
      %p166 = por %p164, %p165
      %p167 = scmp.ne.s32.totalorder %s155, %s156
      %p168 = scmp.eq.s32.totalorder %s29, 1
      %p169 = por %p167, %p168
      %p171 = scmp.ne.s32.totalorder %s156, %s170
      %p172 = scmp.eq.s32.totalorder %s29, 0
      %p173 = por %p171, %p172
      %s175 = sadd.s32 %s174, 1
      %p178 = scmp.eq.s32.totalorder %s23, 1
      %p179 = scmp.ne.s32.totalorder %s174, %s176
      %p180 = scmp.eq.s32.totalorder %s23, 0
      %p181 = por %p179, %p180
      %p182 = scmp.ne.s32.totalorder %s174, %s176
      %p183 = scmp.eq.s32.totalorder %s28, 1
      %p184 = por %p182, %p183
      %p185 = scmp.ne.s32.totalorder %s176, %s177
      %p186 = scmp.eq.s32.totalorder %s28, 0
      %p187 = por %p185, %p186
      %p188 = scmp.ne.s32.totalorder %s176, %s177
      %p189 = scmp.eq.s32.totalorder %s29, 1
      %p190 = por %p188, %p189
      %p192 = scmp.ne.s32.totalorder %s177, %s191
      %p193 = scmp.eq.s32.totalorder %s29, 0
      %p194 = por %p192, %p193
      %s196 = sadd.s32 %s195, 1
      %p199 = scmp.eq.s32.totalorder %s23, 1
      %p200 = scmp.ne.s32.totalorder %s195, %s197
      %p201 = scmp.eq.s32.totalorder %s23, 0
      %p202 = por %p200, %p201
      %p203 = scmp.ne.s32.totalorder %s195, %s197
      %p204 = scmp.eq.s32.totalorder %s28, 1
      %p205 = por %p203, %p204
      %p206 = scmp.ne.s32.totalorder %s197, %s198
      %p207 = scmp.eq.s32.totalorder %s28, 0
      %p208 = por %p206, %p207
      %p209 = scmp.ne.s32.totalorder %s197, %s198
      %p210 = scmp.eq.s32.totalorder %s29, 1
      %p211 = por %p209, %p210
      %p213 = scmp.ne.s32.totalorder %s198, %s212
      %p214 = scmp.eq.s32.totalorder %s29, 0
      %p215 = por %p213, %p214
      %s217 = sadd.s32 %s216, 1
      %p220 = scmp.eq.s32.totalorder %s23, 1
      %p221 = scmp.ne.s32.totalorder %s216, %s218
      %p222 = scmp.eq.s32.totalorder %s23, 0
      %p223 = por %p221, %p222
      %p224 = scmp.ne.s32.totalorder %s216, %s218
      %p225 = scmp.eq.s32.totalorder %s28, 1
      %p226 = por %p224, %p225
      %p227 = scmp.ne.s32.totalorder %s218, %s219
      %p228 = scmp.eq.s32.totalorder %s28, 0
      %p229 = por %p227, %p228
      %p230 = scmp.ne.s32.totalorder %s218, %s219
      %p231 = scmp.eq.s32.totalorder %s29, 1
      %p232 = por %p230, %p231
      %p234 = scmp.ne.s32.totalorder %s219, %s233
      %p235 = scmp.eq.s32.totalorder %s29, 0
      %p236 = por %p234, %p235
      %s238 = sadd.s32 %s237, 1
      %p241 = scmp.eq.s32.totalorder %s23, 1
      %p242 = scmp.ne.s32.totalorder %s237, %s239
      %p243 = scmp.eq.s32.totalorder %s23, 0
      %p244 = por %p242, %p243
      %p245 = scmp.ne.s32.totalorder %s237, %s239
      %p246 = scmp.eq.s32.totalorder %s28, 1
      %p247 = por %p245, %p246
      %p248 = scmp.ne.s32.totalorder %s239, %s240
      %p249 = scmp.eq.s32.totalorder %s28, 0
      %p250 = por %p248, %p249
      %p251 = scmp.ne.s32.totalorder %s239, %s240
      %p252 = scmp.eq.s32.totalorder %s29, 1
      %p253 = por %p251, %p252
      %p255 = scmp.ne.s32.totalorder %s240, %s254
      %p256 = scmp.eq.s32.totalorder %s29, 0
      %p257 = por %p255, %p256
      %s259 = sadd.s32 %s258, 1
      %p262 = scmp.eq.s32.totalorder %s23, 1
      %p263 = scmp.ne.s32.totalorder %s258, %s260
      %p264 = scmp.eq.s32.totalorder %s23, 0
      %p265 = por %p263, %p264
      %p266 = scmp.ne.s32.totalorder %s258, %s260
      %p267 = scmp.eq.s32.totalorder %s28, 1
      %p268 = por %p266, %p267
      %p269 = scmp.ne.s32.totalorder %s260, %s261
      %p270 = scmp.eq.s32.totalorder %s28, 0
      %p271 = por %p269, %p270
      %p272 = scmp.ne.s32.totalorder %s260, %s261
      %p273 = scmp.eq.s32.totalorder %s29, 1
      %p274 = por %p272, %p273
      %p276 = scmp.ne.s32.totalorder %s261, %s275
      %p277 = scmp.eq.s32.totalorder %s29, 0
      %p278 = por %p276, %p277
      %s280 = sadd.s32 %s279, 1
      %p283 = scmp.eq.s32.totalorder %s23, 1
      %p284 = scmp.ne.s32.totalorder %s279, %s281
      %p285 = scmp.eq.s32.totalorder %s23, 0
      %p286 = por %p284, %p285
      %p287 = scmp.ne.s32.totalorder %s279, %s281
      %p288 = scmp.eq.s32.totalorder %s28, 1
      %p289 = por %p287, %p288
      %p290 = scmp.ne.s32.totalorder %s281, %s282
      %p291 = scmp.eq.s32.totalorder %s28, 0
      %p292 = por %p290, %p291
      %p293 = scmp.ne.s32.totalorder %s281, %s282
      %p294 = scmp.eq.s32.totalorder %s29, 1
      %p295 = por %p293, %p294
      %p297 = scmp.ne.s32.totalorder %s282, %s296
      %p298 = scmp.eq.s32.totalorder %s29, 0
      %p299 = por %p297, %p298
      %s301 = sadd.s32 %s300, 1
      %p304 = scmp.eq.s32.totalorder %s23, 1
      %p305 = scmp.ne.s32.totalorder %s300, %s302
      %p306 = scmp.eq.s32.totalorder %s23, 0
      %p307 = por %p305, %p306
      %p308 = scmp.ne.s32.totalorder %s300, %s302
      %p309 = scmp.eq.s32.totalorder %s28, 1
      %p310 = por %p308, %p309
      %p311 = scmp.ne.s32.totalorder %s302, %s303
      %p312 = scmp.eq.s32.totalorder %s28, 0
      %p313 = por %p311, %p312
      %p314 = scmp.ne.s32.totalorder %s302, %s303
      %p315 = scmp.eq.s32.totalorder %s29, 1
      %p316 = por %p314, %p315
      %p318 = scmp.ne.s32.totalorder %s303, %s317
      %p319 = scmp.eq.s32.totalorder %s29, 0
      %p320 = por %p318, %p319
      %s321 = ssub.s32 %s30, %s42
      %s322 = ssub.s32 %s31, %s38
      %s323 = sor.u32 %s321, %s322
      %p324 = scmp.eq.s32.totalorder %s323, 0
      %s326 = sadd.s32 %s325, 1
      %s327 = scalar_select %p324, %s325, %s326
      %p330 = pneg %p324
      %p331 = scmp.eq.s32.totalorder %s23, 1
      %p332 = por %p330, %p331
      %p333 = scmp.ne.s32.totalorder %s325, %s328
      %p334 = scmp.eq.s32.totalorder %s23, 0
      %p335 = por %p333, %p334
      %p336 = scmp.ne.s32.totalorder %s325, %s328
      %p337 = scmp.eq.s32.totalorder %s28, 1
      %p338 = por %p336, %p337
      %p339 = scmp.ne.s32.totalorder %s328, %s329
      %p340 = scmp.eq.s32.totalorder %s28, 0
      %p341 = por %p339, %p340
      %p342 = scmp.ne.s32.totalorder %s328, %s329
      %p343 = scmp.eq.s32.totalorder %s29, 1
      %p344 = por %p342, %p343
      %p346 = scmp.ne.s32.totalorder %s329, %s345
      %p347 = scmp.eq.s32.totalorder %s29, 0
      %p348 = por %p346, %p347
      %p349 = scmp.le.s32.totalorder 1, %s23
      %p350 = scmp.lt.s32.totalorder %s23, 3
      %p351 = pnand %p349, %p350
      %p352 = pneg %p351
      // Predicated region
      $region9: #{tpu_custom_call.1} parent=5 // pred_check
        _
      $region10: #{tpu_custom_call.1} parent=5 // pred_check_branch
        %354 = sbr.rel (%p351) target = $region12
      $region11: #{tpu_custom_call.1} parent=5 // pred_region
        %s355 = ssub.s32 %s23, 1
        // Predicated region
        $region13: #{tpu_custom_call.1} parent=11 // pred_check
          %p356 = pneg %p82
        $region14: #{tpu_custom_call.1} parent=11 // pred_check_branch
          %358 = sbr.rel (%p356) target = $region16
        $region15: #{tpu_custom_call.1} parent=11 // pred_region
          _
        $region16: #{tpu_custom_call.1} parent=11 // pred_fallthru
          _
        // Predicated region
        $region17: #{tpu_custom_call.1} parent=11 // pred_check
          %p359 = pneg %p103
        $region18: #{tpu_custom_call.1} parent=11 // pred_check_branch
          %361 = sbr.rel (%p359) target = $region20
        $region19: #{tpu_custom_call.1} parent=11 // pred_region
          _
        $region20: #{tpu_custom_call.1} parent=11 // pred_fallthru
          _
        // Predicated region
        $region21: #{tpu_custom_call.1} parent=11 // pred_check
          %p362 = pneg %p124
        $region22: #{tpu_custom_call.1} parent=11 // pred_check_branch
          %364 = sbr.rel (%p362) target = $region24
        $region23: #{tpu_custom_call.1} parent=11 // pred_region
          _
        $region24: #{tpu_custom_call.1} parent=11 // pred_fallthru
          _
        // Predicated region
        $region25: #{tpu_custom_call.1} parent=11 // pred_check
          %p365 = pneg %p145
        $region26: #{tpu_custom_call.1} parent=11 // pred_check_branch
          %367 = sbr.rel (%p365) target = $region28
        $region27: #{tpu_custom_call.1} parent=11 // pred_region
          _
        $region28: #{tpu_custom_call.1} parent=11 // pred_fallthru
          _
        // Predicated region
        $region29: #{tpu_custom_call.1} parent=11 // pred_check
          %p368 = pneg %p166
        $region30: #{tpu_custom_call.1} parent=11 // pred_check_branch
          %370 = sbr.rel (%p368) target = $region32
        $region31: #{tpu_custom_call.1} parent=11 // pred_region
          _
        $region32: #{tpu_custom_call.1} parent=11 // pred_fallthru
          _
        // Predicated region
        $region33: #{tpu_custom_call.1} parent=11 // pred_check
          %p371 = pneg %p187
        $region34: #{tpu_custom_call.1} parent=11 // pred_check_branch
          %373 = sbr.rel (%p371) target = $region36
        $region35: #{tpu_custom_call.1} parent=11 // pred_region
          _
        $region36: #{tpu_custom_call.1} parent=11 // pred_fallthru
          _
        // Predicated region
        $region37: #{tpu_custom_call.1} parent=11 // pred_check
          %p374 = pneg %p208
        $region38: #{tpu_custom_call.1} parent=11 // pred_check_branch
          %376 = sbr.rel (%p374) target = $region40
        $region39: #{tpu_custom_call.1} parent=11 // pred_region
          _
        $region40: #{tpu_custom_call.1} parent=11 // pred_fallthru
          _
        // Predicated region
        $region41: #{tpu_custom_call.1} parent=11 // pred_check
          %p377 = pneg %p229
        $region42: #{tpu_custom_call.1} parent=11 // pred_check_branch
          %379 = sbr.rel (%p377) target = $region44
        $region43: #{tpu_custom_call.1} parent=11 // pred_region
          %s381 = ssub.s32 16, 16
          %382 = vsyncadd [#allocation6], %s381
          %s384 = sshll.u32 [#allocation5], 4
          %s385 = int_to_ptr.vmem [resolvable:$true] %s384
          %387 = dma.hbm_to_vmem [thread:$0]  %s8, 16, %s385, [#allocation6]
        $region44: #{tpu_custom_call.1} parent=11 // pred_fallthru
          _
        // Predicated region
        $region45: #{tpu_custom_call.1} parent=11 // pred_check
          %p388 = pneg %p250
        $region46: #{tpu_custom_call.1} parent=11 // pred_check_branch
          %390 = sbr.rel (%p388) target = $region48
        $region47: #{tpu_custom_call.1} parent=11 // pred_region
          _
        $region48: #{tpu_custom_call.1} parent=11 // pred_fallthru
          _
        // Predicated region
        $region49: #{tpu_custom_call.1} parent=11 // pred_check
          %p391 = pneg %p271
        $region50: #{tpu_custom_call.1} parent=11 // pred_check_branch
          %393 = sbr.rel (%p391) target = $region52
        $region51: #{tpu_custom_call.1} parent=11 // pred_region
          _
        $region52: #{tpu_custom_call.1} parent=11 // pred_fallthru
          _
        // Predicated region
        $region53: #{tpu_custom_call.1} parent=11 // pred_check
          %p394 = pneg %p292
        $region54: #{tpu_custom_call.1} parent=11 // pred_check_branch
          %396 = sbr.rel (%p394) target = $region56
        $region55: #{tpu_custom_call.1} parent=11 // pred_region
          _
        $region56: #{tpu_custom_call.1} parent=11 // pred_fallthru
          _
        // Predicated region
        $region57: #{tpu_custom_call.1} parent=11 // pred_check
          %p397 = pneg %p313
        $region58: #{tpu_custom_call.1} parent=11 // pred_check_branch
          %399 = sbr.rel (%p397) target = $region60
        $region59: #{tpu_custom_call.1} parent=11 // pred_region
          _
        $region60: #{tpu_custom_call.1} parent=11 // pred_fallthru
          _
      $region12: #{tpu_custom_call.1} parent=5 // pred_fallthru
        _
      %p400 = scmp.lt.s32.totalorder %s23, 2
      // Predicated region
      $region61: #{tpu_custom_call.1} parent=5 // pred_check
        %p401 = pneg %p400
      $region62: #{tpu_custom_call.1} parent=5 // pred_check_branch
        %403 = sbr.rel (%p401) target = $region64
      $region63: #{tpu_custom_call.1} parent=5 // pred_region
        // Predicated region
        $region65: #{tpu_custom_call.1} parent=63 // pred_check
          %p404 = pneg %p55
        $region66: #{tpu_custom_call.1} parent=63 // pred_check_branch
          %406 = sbr.rel (%p404) target = $region68
        $region67: #{tpu_custom_call.1} parent=63 // pred_region
          %p407 = scmp.lt.s32.totalorder %s30, 1
          %s408 = scalar_select %p407, %s30, 1
          %s409 = smul.addr %s408, 8
          %s410 = scalar_lea.vmem %s0, %s409
        $region68: #{tpu_custom_call.1} parent=63 // pred_fallthru
          _
      $region64: #{tpu_custom_call.1} parent=5 // pred_fallthru
        _
      %p411 = scmp.le.s32.totalorder 1, %s23
      %p412 = scmp.lt.s32.totalorder %s23, 3
      %p413 = pnand %p411, %p412
      %p414 = pneg %p413
      // Predicated region
      $region69: #{tpu_custom_call.1} parent=5 // pred_check
        _
      $region70: #{tpu_custom_call.1} parent=5 // pred_check_branch
        %416 = sbr.rel (%p413) target = $region72
      $region71: #{tpu_custom_call.1} parent=5 // pred_region
        %s417 = ssub.s32 %s23, 1
        // Predicated region
        $region73: #{tpu_custom_call.1} parent=71 // pred_check
          %p418 = pneg %p229
        $region74: #{tpu_custom_call.1} parent=71 // pred_check_branch
          %420 = sbr.rel (%p418) target = $region76
        $region75: #{tpu_custom_call.1} parent=71 // pred_region
          %421 = dma.done [#allocation6], 16
        $region76: #{tpu_custom_call.1} parent=71 // pred_fallthru
          _
        %p422 = scmp.lt.s32.totalorder %s32, 1
        %s423 = scalar_select %p422, %s32, 1
        %s424 = smul.addr %s423, 8
        %s425 = scalar_lea.vmem %s0, %s424
        %p426 = pneg %p61
        %p427 = pneg %p58
        %p428 = pneg %p82
        %p429 = pneg %p79
        %p430 = pneg %p103
        %p431 = pneg %p100
        %p432 = pneg %p124
        %p433 = pneg %p121
        %p434 = pneg %p145
        %p435 = pneg %p142
        %p436 = pneg %p166
        %p437 = pneg %p163
        %p438 = pneg %p187
        %p439 = pneg %p184
        %p440 = pneg %p208
        %p441 = pneg %p205
        %p442 = pneg %p229
        %p443 = pneg %p226
        %p444 = pneg %p250
        %p445 = pneg %p247
        %p446 = pneg %p271
        %p447 = pneg %p268
        %p448 = pneg %p292
        %p449 = pneg %p289
        %p450 = pneg %p313
        %p451 = pneg %p310
        %p452 = pneg %p341
        %p453 = pneg %p338
        %s454 = sand.u32 %s328, 1
        %s455 = scalar_lea.sflag [#allocation7], %s454
        %s456 = sand.u32 %s328, 1
        %s457 = smul.addr %s456, 8
        %s458 = scalar_lea.vmem [#allocation8], %s457
        %p459 = scmp.lt.s32.totalorder %s32, 1
        %s460 = scalar_select %p459, %s32, 1
        %s461 = smul.addr %s460, 8
        %s462 = scalar_lea.vmem %s0, %s461
        %s464 = smul.u32 %s33, 8
        %v465 = vld [vmem:[%s3] sm:$0x1]
        %p466 = scmp.eq.s32.totalorder %s33, 0
        // Predicated region
        $region77: #{tpu_custom_call.1} parent=71 // pred_check
          %p467 = pneg %p466
        $region78: #{tpu_custom_call.1} parent=71 // pred_check_branch
          %469 = sbr.rel (%p467) target = $region80
        $region79: #{tpu_custom_call.1} parent=71 // pred_region
          %v470 = vld [vmem:[%s462] sm:$0xff]
          %v471 = vmul.f32 %v470, %v470
          %vm472 = vcmask 261120
          %v473 = vsel %vm472, %v471, 0.0
          %474 = vadd.xlane.f32.xlu0 %v473
          %v475 = vpop.xlane.xlu0 %474
          %v476 = vrcp.pop 32.0
          %v477 = vmul.f32 %v475, %v476
          %v478 = vadd.f32 %v477, 1e-05
          %v479 = vrsqrt.pop %v478
          %v480 = vmul.f32 %v470, %v479
          %v482 = vlaneseq
          %v483 = vshrl.u32 %v482, 7
          %v484 = vsub.s32 0, %v483
          %v485 = vrot.slane %v465, %v484
          %v487 = vmul.f32 %v480, %v485
          %v488 = vpack.c.bf16 %v487, %v487
          %v489 = vld [vmem:[%s5] sm:$0xf]
          %v490 = vld [vmem:[%s5 + $0x4] sm:$0xf]
          %v491 = vld [vmem:[%s5 + $0x8] sm:$0xf]
          %v492 = vld [vmem:[%s5 + $0xc] sm:$0xf]
          %v497 = vunpack.c.l.b16 %v489
          %v498 = vunpack.c.l.b16 %v490
          %v499 = vunpack.c.l.b16 %v491
          %v500 = vunpack.c.l.b16 %v492
          %v501 = vpack.c.b16 %v498, %v497
          %v502 = vpack.c.b16 %v500, %v499
          %v506 = vsel %vm472, %v488, 0
          %508 = vmatprep.subr.bf16.mxu0 0
          %509 = vmatpush1.bf16.msra.mxu0 %v501
          %510 = vmatprep.subr.bf16.mxu0 0
          %511 = vmatpush1.bf16.msra.mxu0 %v502
          %512 = vmatprep.subr.bf16.mxu0 0
          %513 = vmatpush1.bf16.msra.mxu0 0
          %514 = vmatprep.subr.bf16.mxu0 0
          %515 = vmatpush1.bf16.msra.mxu0 0
          %516 = vmatprep.subr.bf16.mxu0 0
          %517 = vmatpush1.bf16.msra.mxu0 0
          %518 = vmatprep.subr.bf16.mxu0 0
          %519 = vmatpush1.bf16.msra.mxu0 0
          %520 = vmatprep.subr.bf16.mxu0 0
          %521 = vmatpush1.bf16.msra.mxu0 0
          %522 = vmatprep.subr.bf16.mxu0 0
          %523 = vmatpush1.bf16.msra.mxu0 0
          %524 = vmatprep.subr.bf16.mxu0 0
          %525 = vmatpush1.bf16.msra.mxu0 0
          %526 = vmatprep.subr.bf16.mxu0 0
          %527 = vmatpush1.bf16.msra.mxu0 0
          %528 = vmatprep.subr.bf16.mxu0 0
          %529 = vmatpush1.bf16.msra.mxu0 0
          %530 = vmatprep.subr.bf16.mxu0 0
          %531 = vmatpush1.bf16.msra.mxu0 0
          %532 = vmatprep.subr.bf16.mxu0 0
          %533 = vmatpush1.bf16.msra.mxu0 0
          %534 = vmatprep.subr.bf16.mxu0 0
          %535 = vmatpush1.bf16.msra.mxu0 0
          %536 = vmatprep.subr.bf16.mxu0 0
          %537 = vmatpush1.bf16.msra.mxu0 0
          %538 = vmatprep.subr.bf16.mxu0 0
          %539 = vmatpush1.bf16.msra.mxu0 0
          %540 = vmatprep.mubr.bf16.mxu0 0
          %541 = vmatmul.mubr.bf16.gmra.mrb[0].mxu0 %v506
          %v542 = vpop.f32.mrb[0].mxu0
          %v543 = vadd.f32 0.0, %v542
          %v544 = vpop.f32.mrb[0].mxu0
          %v545 = vpop.f32.mrb[0].mxu0
          %v546 = vpop.f32.mrb[0].mxu0
          %547 = vdwg.mxu0
          %v548 = vld [vmem:[%s1] sm:$0xff]
          %550 = vrot.lane.b32.xlu0 %v548, 4
          %v551 = vpop.permute.xlu0 %550
          %553 = vrot.lane.b32.xlu0 %v548, 8
          %v554 = vpop.permute.xlu0 %553
          %556 = vrot.lane.b32.xlu0 %v548, 12
          %v557 = vpop.permute.xlu0 %556
          %vm559 = vcmask 31744
          %v560 = vsel %vm559, %v548, %v551
          %vm561 = vcmask 64512
          %v562 = vsel %vm561, %v560, %v554
          %vm563 = vcmask 97280
          %v564 = vsel %vm563, %v562, %v557
          %v565 = vld [vmem:[%s2] sm:$0xff]
          %567 = vrot.lane.b32.xlu0 %v565, 4
          %v568 = vpop.permute.xlu0 %567
          %570 = vrot.lane.b32.xlu0 %v565, 8
          %v571 = vpop.permute.xlu0 %570
          %573 = vrot.lane.b32.xlu0 %v565, 12
          %v574 = vpop.permute.xlu0 %573
          %v576 = vsel %vm559, %v565, %v568
          %v577 = vsel %vm561, %v576, %v571
          %v578 = vsel %vm563, %v577, %v574
          %v579 = vmul.f32 %v543, %v564
          %581 = vrot.lane.b32.xlu0 %v578, 16
          %v582 = vpop.permute.xlu0 %581
          %v584 = vmul.f32 %v543, %v582
          %586 = vrot.lane.b32.xlu0 %v584, 112
          %v587 = vpop.permute.xlu0 %586
          %v589 = vsub.f32 %v579, %v587
          %v590 = vmul.f32 %v543, %v578
          %592 = vrot.lane.b32.xlu0 %v564, 16
          %v593 = vpop.permute.xlu0 %592
          %v595 = vmul.f32 %v543, %v593
          %597 = vrot.lane.b32.xlu0 %v595, 112
          %v598 = vpop.permute.xlu0 %597
          %v600 = vadd.f32 %v590, %v598
          %vm601 = vcmask 130048
          %602 = vst.msk [vmem:[#allocation2] sm:$0xff] %vm601, %v589
          %603 = vst.msk [vmem:[#allocation3] sm:$0xff] %vm601, %v600
          %605 = vrot.lane.b32.xlu0 %v543, 96
          %v606 = vpop.permute.xlu0 %605
          %608 = vst.msk [vmem:[#allocation4] sm:$0xff] %vm472, %v606
        $region80: #{tpu_custom_call.1} parent=71 // pred_fallthru
          _
        %s609 = scalar_lea.vmem %s462, %s464
        %v610 = vld [vmem:[%s609] sm:$0xff]
        %v611 = vmul.f32 %v610, %v610
        %vm612 = vcmask 261120
        %v613 = vsel %vm612, %v611, 0.0
        %614 = vadd.xlane.f32.xlu0 %v613
        %v615 = vpop.xlane.xlu0 %614
        %v616 = vrcp.pop 32.0
        %v617 = vmul.f32 %v615, %v616
        %v618 = vadd.f32 %v617, 1e-05
        %v619 = vrsqrt.pop %v618
        %v620 = vmul.f32 %v610, %v619
        %v622 = vlaneseq
        %v623 = vshrl.u32 %v622, 7
        %v624 = vsub.s32 0, %v623
        %v625 = vrot.slane %v465, %v624
        %v627 = vmul.f32 %v620, %v625
        %v628 = vpack.c.bf16 %v627, %v627
        %v629 = vld [vmem:[%s4] sm:$0xf]
        %v630 = vld [vmem:[%s4 + $0x4] sm:$0xf]
        %v631 = vld [vmem:[%s4 + $0x8] sm:$0xf]
        %v632 = vld [vmem:[%s4 + $0xc] sm:$0xf]
        %v637 = vunpack.c.l.b16 %v629
        %v638 = vunpack.c.l.b16 %v630
        %v639 = vunpack.c.l.b16 %v631
        %v640 = vunpack.c.l.b16 %v632
        %v641 = vpack.c.b16 %v638, %v637
        %v642 = vpack.c.b16 %v640, %v639
        %v646 = vsel %vm612, %v628, 0
        %648 = vmatprep.subr.bf16.mxu0 0
        %649 = vmatpush1.bf16.msra.mxu0 %v641
        %650 = vmatprep.subr.bf16.mxu0 0
        %651 = vmatpush1.bf16.msra.mxu0 %v642
        %652 = vmatprep.subr.bf16.mxu0 0
        %653 = vmatpush1.bf16.msra.mxu0 0
        %654 = vmatprep.subr.bf16.mxu0 0
        %655 = vmatpush1.bf16.msra.mxu0 0
        %656 = vmatprep.subr.bf16.mxu0 0
        %657 = vmatpush1.bf16.msra.mxu0 0
        %658 = vmatprep.subr.bf16.mxu0 0
        %659 = vmatpush1.bf16.msra.mxu0 0
        %660 = vmatprep.subr.bf16.mxu0 0
        %661 = vmatpush1.bf16.msra.mxu0 0
        %662 = vmatprep.subr.bf16.mxu0 0
        %663 = vmatpush1.bf16.msra.mxu0 0
        %664 = vmatprep.subr.bf16.mxu0 0
        %665 = vmatpush1.bf16.msra.mxu0 0
        %666 = vmatprep.subr.bf16.mxu0 0
        %667 = vmatpush1.bf16.msra.mxu0 0
        %668 = vmatprep.subr.bf16.mxu0 0
        %669 = vmatpush1.bf16.msra.mxu0 0
        %670 = vmatprep.subr.bf16.mxu0 0
        %671 = vmatpush1.bf16.msra.mxu0 0
        %672 = vmatprep.subr.bf16.mxu0 0
        %673 = vmatpush1.bf16.msra.mxu0 0
        %674 = vmatprep.subr.bf16.mxu0 0
        %675 = vmatpush1.bf16.msra.mxu0 0
        %676 = vmatprep.subr.bf16.mxu0 0
        %677 = vmatpush1.bf16.msra.mxu0 0
        %678 = vmatprep.subr.bf16.mxu0 0
        %679 = vmatpush1.bf16.msra.mxu0 0
        %680 = vmatprep.mubr.bf16.mxu0 0
        %681 = vmatmul.mubr.bf16.gmra.mrb[0].mxu0 %v646
        %v682 = vpop.f32.mrb[0].mxu0
        %v683 = vadd.f32 0.0, %v682
        %v684 = vpop.f32.mrb[0].mxu0
        %v685 = vpop.f32.mrb[0].mxu0
        %v686 = vpop.f32.mrb[0].mxu0
        %687 = vdwg.mxu0
        %s688 = scalar_lea.vmem %s1, %s464
        %v689 = vld [vmem:[%s688] sm:$0xff]
        %691 = vrot.lane.b32.xlu0 %v689, 4
        %v692 = vpop.permute.xlu0 %691
        %694 = vrot.lane.b32.xlu0 %v689, 8
        %v695 = vpop.permute.xlu0 %694
        %697 = vrot.lane.b32.xlu0 %v689, 12
        %v698 = vpop.permute.xlu0 %697
        %vm700 = vcmask 31744
        %v701 = vsel %vm700, %v689, %v692
        %vm702 = vcmask 64512
        %v703 = vsel %vm702, %v701, %v695
        %vm704 = vcmask 97280
        %v705 = vsel %vm704, %v703, %v698
        %s706 = scalar_lea.vmem %s2, %s464
        %v707 = vld [vmem:[%s706] sm:$0xff]
        %709 = vrot.lane.b32.xlu0 %v707, 4
        %v710 = vpop.permute.xlu0 %709
        %712 = vrot.lane.b32.xlu0 %v707, 8
        %v713 = vpop.permute.xlu0 %712
        %715 = vrot.lane.b32.xlu0 %v707, 12
        %v716 = vpop.permute.xlu0 %715
        %v718 = vsel %vm700, %v707, %v710
        %v719 = vsel %vm702, %v718, %v713
        %v720 = vsel %vm704, %v719, %v716
        %v721 = vmul.f32 %v683, %v705
        %723 = vrot.lane.b32.xlu0 %v720, 16
        %v724 = vpop.permute.xlu0 %723
        %v726 = vmul.f32 %v683, %v724
        %728 = vrot.lane.b32.xlu0 %v726, 112
        %v729 = vpop.permute.xlu0 %728
        %v731 = vsub.f32 %v721, %v729
        %v732 = vmul.f32 %v683, %v720
        %734 = vrot.lane.b32.xlu0 %v705, 16
        %v735 = vpop.permute.xlu0 %734
        %v737 = vmul.f32 %v683, %v735
        %739 = vrot.lane.b32.xlu0 %v737, 112
        %v740 = vpop.permute.xlu0 %739
        %v742 = vadd.f32 %v732, %v740
        %v743 = vlaneseq
        %v744 = vshrl.u32 %v743, 7
        %v745 = vstv %s464
        %v746 = vadd.s32 %v745, %v744
        %v747 = vlaneseq
        %v748 = vand.u32 %v747, 127
        %vm749 = vcmp.le.s32.totalorder %v748, %v746
        %v750 = vld [vmem:[#allocation2] sm:$0xff]
        %v751 = vld [vmem:[#allocation3] sm:$0xff]
        %v752 = vld [vmem:[#allocation4] sm:$0xff]
        %754 = vrot.lane.b32.xlu0 %v742, 4
        %v755 = vpop.permute.xlu0 %754
        %v757 = vsel %vm700, %v731, %v755
        %v758 = vpack.c.bf16 %v757, %v757
        %760 = vrot.lane.b32.xlu0 %v751, 4
        %v761 = vpop.permute.xlu0 %760
        %v763 = vsel %vm700, %v750, %v761
        %v764 = vpack.c.bf16 %v763, %v763
        %v766 = vsel %vm702, %v758, 0
        %v769 = vsel %vm702, %v764, 0
        %771 = vmatprep.subr.bf16.mxu0 0
        %772 = vmatpush1.bf16.xpose.msra.mxu0 %v769
        %773 = vmatprep.subr.bf16.mxu0 0
        %774 = vmatpush1.bf16.xpose.msra.mxu0 0
        %775 = vmatprep.subr.bf16.mxu0 0
        %776 = vmatpush1.bf16.xpose.msra.mxu0 0
        %777 = vmatprep.subr.bf16.mxu0 0
        %778 = vmatpush1.bf16.xpose.msra.mxu0 0
        %779 = vmatprep.subr.bf16.mxu0 0
        %780 = vmatpush1.bf16.xpose.msra.mxu0 0
        %781 = vmatprep.subr.bf16.mxu0 0
        %782 = vmatpush1.bf16.xpose.msra.mxu0 0
        %783 = vmatprep.subr.bf16.mxu0 0
        %784 = vmatpush1.bf16.xpose.msra.mxu0 0
        %785 = vmatprep.subr.bf16.mxu0 0
        %786 = vmatpush1.bf16.xpose.msra.mxu0 0
        %787 = vmatprep.subr.bf16.mxu0 0
        %788 = vmatpush1.bf16.xpose.msra.mxu0 0
        %789 = vmatprep.subr.bf16.mxu0 0
        %790 = vmatpush1.bf16.xpose.msra.mxu0 0
        %791 = vmatprep.subr.bf16.mxu0 0
        %792 = vmatpush1.bf16.xpose.msra.mxu0 0
        %793 = vmatprep.subr.bf16.mxu0 0
        %794 = vmatpush1.bf16.xpose.msra.mxu0 0
        %795 = vmatprep.subr.bf16.mxu0 0
        %796 = vmatpush1.bf16.xpose.msra.mxu0 0
        %797 = vmatprep.subr.bf16.mxu0 0
        %798 = vmatpush1.bf16.xpose.msra.mxu0 0
        %799 = vmatprep.subr.bf16.mxu0 0
        %800 = vmatpush1.bf16.xpose.msra.mxu0 0
        %801 = vmatprep.subr.bf16.mxu0 0
        %802 = vmatpush1.bf16.xpose.msra.mxu0 0
        %803 = vmatprep.mubr.bf16.mxu0 0
        %804 = vmatmul.mubr.bf16.gmra.mrb[0].mxu0 %v766
        %v805 = vpop.f32.mrb[0].mxu0
        %v806 = vadd.f32 0.0, %v805
        %v807 = vpop.f32.mrb[0].mxu0
        %v808 = vpop.f32.mrb[0].mxu0
        %v809 = vpop.f32.mrb[0].mxu0
        %810 = vdwg.mxu0
        %v811 = vsel %vm749, %v806, -1e+30
        %v812 = vsel %vm702, %v811, -inf
        %813 = vmax.xlane.f32.xlu0 %v812
        %v814 = vpop.xlane.xlu0 %813
        %v815 = vsub.f32 %v811, %v814
        %v816 = vmul.f32 %v815, 1.442695
        %v817 = vpow.pop %v816
        %v818 = vsel %vm702, %v817, 0.0
        %819 = vadd.xlane.f32.xlu0 %v818
        %v820 = vpop.xlane.xlu0 %819
        %v821 = vrcp.pop %v820
        %v822 = vmul.f32 %v817, %v821
        %v823 = vpack.c.bf16 %v822, %v822
        %v824 = vpack.c.bf16 %v752, %v752
        %v826 = vsel %vm702, %v823, 0
        %vm828 = vcmask 1043456
        %v830 = vsel %vm828, %v824, 0
        %832 = vmatprep.subr.bf16.mxu0 0
        %833 = vmatpush1.bf16.msra.mxu0 %v830
        %834 = vmatprep.subr.bf16.mxu0 0
        %835 = vmatpush1.bf16.msra.mxu0 0
        %836 = vmatprep.subr.bf16.mxu0 0
        %837 = vmatpush1.bf16.msra.mxu0 0
        %838 = vmatprep.subr.bf16.mxu0 0
        %839 = vmatpush1.bf16.msra.mxu0 0
        %840 = vmatprep.subr.bf16.mxu0 0
        %841 = vmatpush1.bf16.msra.mxu0 0
        %842 = vmatprep.subr.bf16.mxu0 0
        %843 = vmatpush1.bf16.msra.mxu0 0
        %844 = vmatprep.subr.bf16.mxu0 0
        %845 = vmatpush1.bf16.msra.mxu0 0
        %846 = vmatprep.subr.bf16.mxu0 0
        %847 = vmatpush1.bf16.msra.mxu0 0
        %848 = vmatprep.subr.bf16.mxu0 0
        %849 = vmatpush1.bf16.msra.mxu0 0
        %850 = vmatprep.subr.bf16.mxu0 0
        %851 = vmatpush1.bf16.msra.mxu0 0
        %852 = vmatprep.subr.bf16.mxu0 0
        %853 = vmatpush1.bf16.msra.mxu0 0
        %854 = vmatprep.subr.bf16.mxu0 0
        %855 = vmatpush1.bf16.msra.mxu0 0
        %856 = vmatprep.subr.bf16.mxu0 0
        %857 = vmatpush1.bf16.msra.mxu0 0
        %858 = vmatprep.subr.bf16.mxu0 0
        %859 = vmatpush1.bf16.msra.mxu0 0
        %860 = vmatprep.subr.bf16.mxu0 0
        %861 = vmatpush1.bf16.msra.mxu0 0
        %862 = vmatprep.subr.bf16.mxu0 0
        %863 = vmatpush1.bf16.msra.mxu0 0
        %864 = vmatprep.mubr.bf16.mxu0 0
        %865 = vmatmul.mubr.bf16.gmra.mrb[0].mxu0 %v826
        %v866 = vpop.f32.mrb[0].mxu0
        %v867 = vadd.f32 0.0, %v866
        %v868 = vpop.f32.mrb[0].mxu0
        %v869 = vpop.f32.mrb[0].mxu0
        %v870 = vpop.f32.mrb[0].mxu0
        %871 = vdwg.mxu0
        %873 = vrot.lane.b32.xlu0 %v731, 124
        %v874 = vpop.permute.xlu0 %873
        %v876 = vsel %vm700, %v874, %v742
        %v877 = vpack.c.bf16 %v876, %v876
        %879 = vrot.lane.b32.xlu0 %v750, 124
        %v880 = vpop.permute.xlu0 %879
        %v882 = vsel %vm700, %v880, %v751
        %v883 = vpack.c.bf16 %v882, %v882
        %v885 = vsel %vm702, %v877, 0
        %v888 = vsel %vm702, %v883, 0
        %890 = vmatprep.subr.bf16.mxu0 0
        %891 = vmatpush1.bf16.xpose.msra.mxu0 %v888
        %892 = vmatprep.subr.bf16.mxu0 0
        %893 = vmatpush1.bf16.xpose.msra.mxu0 0
        %894 = vmatprep.subr.bf16.mxu0 0
        %895 = vmatpush1.bf16.xpose.msra.mxu0 0
        %896 = vmatprep.subr.bf16.mxu0 0
        %897 = vmatpush1.bf16.xpose.msra.mxu0 0
        %898 = vmatprep.subr.bf16.mxu0 0
        %899 = vmatpush1.bf16.xpose.msra.mxu0 0
        %900 = vmatprep.subr.bf16.mxu0 0
        %901 = vmatpush1.bf16.xpose.msra.mxu0 0
        %902 = vmatprep.subr.bf16.mxu0 0
        %903 = vmatpush1.bf16.xpose.msra.mxu0 0
        %904 = vmatprep.subr.bf16.mxu0 0
        %905 = vmatpush1.bf16.xpose.msra.mxu0 0
        %906 = vmatprep.subr.bf16.mxu0 0
        %907 = vmatpush1.bf16.xpose.msra.mxu0 0
        %908 = vmatprep.subr.bf16.mxu0 0
        %909 = vmatpush1.bf16.xpose.msra.mxu0 0
        %910 = vmatprep.subr.bf16.mxu0 0
        %911 = vmatpush1.bf16.xpose.msra.mxu0 0
        %912 = vmatprep.subr.bf16.mxu0 0
        %913 = vmatpush1.bf16.xpose.msra.mxu0 0
        %914 = vmatprep.subr.bf16.mxu0 0
        %915 = vmatpush1.bf16.xpose.msra.mxu0 0
        %916 = vmatprep.subr.bf16.mxu0 0
        %917 = vmatpush1.bf16.xpose.msra.mxu0 0
        %918 = vmatprep.subr.bf16.mxu0 0
        %919 = vmatpush1.bf16.xpose.msra.mxu0 0
        %920 = vmatprep.subr.bf16.mxu0 0
        %921 = vmatpush1.bf16.xpose.msra.mxu0 0
        %922 = vmatprep.mubr.bf16.mxu0 0
        %923 = vmatmul.mubr.bf16.gmra.mrb[0].mxu0 %v885
        %v924 = vpop.f32.mrb[0].mxu0
        %v925 = vadd.f32 0.0, %v924
        %v926 = vpop.f32.mrb[0].mxu0
        %v927 = vpop.f32.mrb[0].mxu0
        %v928 = vpop.f32.mrb[0].mxu0
        %929 = vdwg.mxu0
        %v930 = vsel %vm749, %v925, -1e+30
        %v931 = vsel %vm702, %v930, -inf
        %932 = vmax.xlane.f32.xlu0 %v931
        %v933 = vpop.xlane.xlu0 %932
        %v934 = vsub.f32 %v930, %v933
        %v935 = vmul.f32 %v934, 1.442695
        %v936 = vpow.pop %v935
        %v937 = vsel %vm702, %v936, 0.0
        %938 = vadd.xlane.f32.xlu0 %v937
        %v939 = vpop.xlane.xlu0 %938
        %v940 = vrcp.pop %v939
        %v941 = vmul.f32 %v936, %v940
        %v942 = vpack.c.bf16 %v941, %v941
        %944 = vrot.lane.b32.xlu0 %v824, 120
        %v945 = vpop.permute.xlu0 %944
        %v947 = vsel %vm702, %v942, 0
        %v950 = vsel %vm828, %v945, 0
        %952 = vmatprep.subr.bf16.mxu0 0
        %953 = vmatpush1.bf16.msra.mxu0 %v950
        %954 = vmatprep.subr.bf16.mxu0 0
        %955 = vmatpush1.bf16.msra.mxu0 0
        %956 = vmatprep.subr.bf16.mxu0 0
        %957 = vmatpush1.bf16.msra.mxu0 0
        %958 = vmatprep.subr.bf16.mxu0 0
        %959 = vmatpush1.bf16.msra.mxu0 0
        %960 = vmatprep.subr.bf16.mxu0 0
        %961 = vmatpush1.bf16.msra.mxu0 0
        %962 = vmatprep.subr.bf16.mxu0 0
        %963 = vmatpush1.bf16.msra.mxu0 0
        %964 = vmatprep.subr.bf16.mxu0 0
        %965 = vmatpush1.bf16.msra.mxu0 0
        %966 = vmatprep.subr.bf16.mxu0 0
        %967 = vmatpush1.bf16.msra.mxu0 0
        %968 = vmatprep.subr.bf16.mxu0 0
        %969 = vmatpush1.bf16.msra.mxu0 0
        %970 = vmatprep.subr.bf16.mxu0 0
        %971 = vmatpush1.bf16.msra.mxu0 0
        %972 = vmatprep.subr.bf16.mxu0 0
        %973 = vmatpush1.bf16.msra.mxu0 0
        %974 = vmatprep.subr.bf16.mxu0 0
        %975 = vmatpush1.bf16.msra.mxu0 0
        %976 = vmatprep.subr.bf16.mxu0 0
        %977 = vmatpush1.bf16.msra.mxu0 0
        %978 = vmatprep.subr.bf16.mxu0 0
        %979 = vmatpush1.bf16.msra.mxu0 0
        %980 = vmatprep.subr.bf16.mxu0 0
        %981 = vmatpush1.bf16.msra.mxu0 0
        %982 = vmatprep.subr.bf16.mxu0 0
        %983 = vmatpush1.bf16.msra.mxu0 0
        %984 = vmatprep.mubr.bf16.mxu0 0
        %985 = vmatmul.mubr.bf16.gmra.mrb[0].mxu0 %v947
        %v986 = vpop.f32.mrb[0].mxu0
        %v987 = vadd.f32 0.0, %v986
        %v988 = vpop.f32.mrb[0].mxu0
        %v989 = vpop.f32.mrb[0].mxu0
        %v990 = vpop.f32.mrb[0].mxu0
        %991 = vdwg.mxu0
        %992 = vrot.lane.b32.xlu0 %v731, 120
        %v993 = vpop.permute.xlu0 %992
        %995 = vrot.lane.b32.xlu0 %v742, 124
        %v996 = vpop.permute.xlu0 %995
        %v998 = vsel %vm700, %v993, %v996
        %v999 = vpack.c.bf16 %v998, %v998
        %1000 = vrot.lane.b32.xlu0 %v750, 120
        %v1001 = vpop.permute.xlu0 %1000
        %1003 = vrot.lane.b32.xlu0 %v751, 124
        %v1004 = vpop.permute.xlu0 %1003
        %v1006 = vsel %vm700, %v1001, %v1004
        %v1007 = vpack.c.bf16 %v1006, %v1006
        %v1009 = vsel %vm702, %v999, 0
        %v1012 = vsel %vm702, %v1007, 0
        %1014 = vmatprep.subr.bf16.mxu0 0
        %1015 = vmatpush1.bf16.xpose.msra.mxu0 %v1012
        %1016 = vmatprep.subr.bf16.mxu0 0
        %1017 = vmatpush1.bf16.xpose.msra.mxu0 0
        %1018 = vmatprep.subr.bf16.mxu0 0
        %1019 = vmatpush1.bf16.xpose.msra.mxu0 0
        %1020 = vmatprep.subr.bf16.mxu0 0
        %1021 = vmatpush1.bf16.xpose.msra.mxu0 0
        %1022 = vmatprep.subr.bf16.mxu0 0
        %1023 = vmatpush1.bf16.xpose.msra.mxu0 0
        %1024 = vmatprep.subr.bf16.mxu0 0
        %1025 = vmatpush1.bf16.xpose.msra.mxu0 0
        %1026 = vmatprep.subr.bf16.mxu0 0
        %1027 = vmatpush1.bf16.xpose.msra.mxu0 0
        %1028 = vmatprep.subr.bf16.mxu0 0
        %1029 = vmatpush1.bf16.xpose.msra.mxu0 0
        %1030 = vmatprep.subr.bf16.mxu0 0
        %1031 = vmatpush1.bf16.xpose.msra.mxu0 0
        %1032 = vmatprep.subr.bf16.mxu0 0
        %1033 = vmatpush1.bf16.xpose.msra.mxu0 0
        %1034 = vmatprep.subr.bf16.mxu0 0
        %1035 = vmatpush1.bf16.xpose.msra.mxu0 0
        %1036 = vmatprep.subr.bf16.mxu0 0
        %1037 = vmatpush1.bf16.xpose.msra.mxu0 0
        %1038 = vmatprep.subr.bf16.mxu0 0
        %1039 = vmatpush1.bf16.xpose.msra.mxu0 0
        %1040 = vmatprep.subr.bf16.mxu0 0
        %1041 = vmatpush1.bf16.xpose.msra.mxu0 0
        %1042 = vmatprep.subr.bf16.mxu0 0
        %1043 = vmatpush1.bf16.xpose.msra.mxu0 0
        %1044 = vmatprep.subr.bf16.mxu0 0
        %1045 = vmatpush1.bf16.xpose.msra.mxu0 0
        %1046 = vmatprep.mubr.bf16.mxu0 0
        %1047 = vmatmul.mubr.bf16.gmra.mrb[0].mxu0 %v1009
        %v1048 = vpop.f32.mrb[0].mxu0
        %v1049 = vadd.f32 0.0, %v1048
        %v1050 = vpop.f32.mrb[0].mxu0
        %v1051 = vpop.f32.mrb[0].mxu0
        %v1052 = vpop.f32.mrb[0].mxu0
        %1053 = vdwg.mxu0
        %v1054 = vsel %vm749, %v1049, -1e+30
        %v1055 = vsel %vm702, %v1054, -inf
        %1056 = vmax.xlane.f32.xlu0 %v1055
        %v1057 = vpop.xlane.xlu0 %1056
        %v1058 = vsub.f32 %v1054, %v1057
        %v1059 = vmul.f32 %v1058, 1.442695
        %v1060 = vpow.pop %v1059
        %v1061 = vsel %vm702, %v1060, 0.0
        %1062 = vadd.xlane.f32.xlu0 %v1061
        %v1063 = vpop.xlane.xlu0 %1062
        %v1064 = vrcp.pop %v1063
        %v1065 = vmul.f32 %v1060, %v1064
        %v1066 = vpack.c.bf16 %v1065, %v1065
        %1067 = vrot.lane.b32.xlu0 %v824, 112
        %v1068 = vpop.permute.xlu0 %1067
        %v1070 = vsel %vm702, %v1066, 0
        %v1073 = vsel %vm828, %v1068, 0
        %1075 = vmatprep.subr.bf16.mxu0 0
        %1076 = vmatpush1.bf16.msra.mxu0 %v1073
        %1077 = vmatprep.subr.bf16.mxu0 0
        %1078 = vmatpush1.bf16.msra.mxu0 0
        %1079 = vmatprep.subr.bf16.mxu0 0
        %1080 = vmatpush1.bf16.msra.mxu0 0
        %1081 = vmatprep.subr.bf16.mxu0 0
        %1082 = vmatpush1.bf16.msra.mxu0 0
        %1083 = vmatprep.subr.bf16.mxu0 0
        %1084 = vmatpush1.bf16.msra.mxu0 0
        %1085 = vmatprep.subr.bf16.mxu0 0
        %1086 = vmatpush1.bf16.msra.mxu0 0
        %1087 = vmatprep.subr.bf16.mxu0 0
        %1088 = vmatpush1.bf16.msra.mxu0 0
        %1089 = vmatprep.subr.bf16.mxu0 0
        %1090 = vmatpush1.bf16.msra.mxu0 0
        %1091 = vmatprep.subr.bf16.mxu0 0
        %1092 = vmatpush1.bf16.msra.mxu0 0
        %1093 = vmatprep.subr.bf16.mxu0 0
        %1094 = vmatpush1.bf16.msra.mxu0 0
        %1095 = vmatprep.subr.bf16.mxu0 0
        %1096 = vmatpush1.bf16.msra.mxu0 0
        %1097 = vmatprep.subr.bf16.mxu0 0
        %1098 = vmatpush1.bf16.msra.mxu0 0
        %1099 = vmatprep.subr.bf16.mxu0 0
        %1100 = vmatpush1.bf16.msra.mxu0 0
        %1101 = vmatprep.subr.bf16.mxu0 0
        %1102 = vmatpush1.bf16.msra.mxu0 0
        %1103 = vmatprep.subr.bf16.mxu0 0
        %1104 = vmatpush1.bf16.msra.mxu0 0
        %1105 = vmatprep.subr.bf16.mxu0 0
        %1106 = vmatpush1.bf16.msra.mxu0 0
        %1107 = vmatprep.mubr.bf16.mxu0 0
        %1108 = vmatmul.mubr.bf16.gmra.mrb[0].mxu0 %v1070
        %v1109 = vpop.f32.mrb[0].mxu0
        %v1110 = vadd.f32 0.0, %v1109
        %v1111 = vpop.f32.mrb[0].mxu0
        %v1112 = vpop.f32.mrb[0].mxu0
        %v1113 = vpop.f32.mrb[0].mxu0
        %1114 = vdwg.mxu0
        %1115 = vrot.lane.b32.xlu0 %v731, 116
        %v1116 = vpop.permute.xlu0 %1115
        %1118 = vrot.lane.b32.xlu0 %v742, 120
        %v1119 = vpop.permute.xlu0 %1118
        %v1121 = vsel %vm700, %v1116, %v1119
        %v1122 = vpack.c.bf16 %v1121, %v1121
        %1123 = vrot.lane.b32.xlu0 %v750, 116
        %v1124 = vpop.permute.xlu0 %1123
        %1126 = vrot.lane.b32.xlu0 %v751, 120
        %v1127 = vpop.permute.xlu0 %1126
        %v1129 = vsel %vm700, %v1124, %v1127
        %v1130 = vpack.c.bf16 %v1129, %v1129
        %v1132 = vsel %vm702, %v1122, 0
        %v1135 = vsel %vm702, %v1130, 0
        %1137 = vmatprep.subr.bf16.mxu0 0
        %1138 = vmatpush1.bf16.xpose.msra.mxu0 %v1135
        %1139 = vmatprep.subr.bf16.mxu0 0
        %1140 = vmatpush1.bf16.xpose.msra.mxu0 0
        %1141 = vmatprep.subr.bf16.mxu0 0
        %1142 = vmatpush1.bf16.xpose.msra.mxu0 0
        %1143 = vmatprep.subr.bf16.mxu0 0
        %1144 = vmatpush1.bf16.xpose.msra.mxu0 0
        %1145 = vmatprep.subr.bf16.mxu0 0
        %1146 = vmatpush1.bf16.xpose.msra.mxu0 0
        %1147 = vmatprep.subr.bf16.mxu0 0
        %1148 = vmatpush1.bf16.xpose.msra.mxu0 0
        %1149 = vmatprep.subr.bf16.mxu0 0
        %1150 = vmatpush1.bf16.xpose.msra.mxu0 0
        %1151 = vmatprep.subr.bf16.mxu0 0
        %1152 = vmatpush1.bf16.xpose.msra.mxu0 0
        %1153 = vmatprep.subr.bf16.mxu0 0
        %1154 = vmatpush1.bf16.xpose.msra.mxu0 0
        %1155 = vmatprep.subr.bf16.mxu0 0
        %1156 = vmatpush1.bf16.xpose.msra.mxu0 0
        %1157 = vmatprep.subr.bf16.mxu0 0
        %1158 = vmatpush1.bf16.xpose.msra.mxu0 0
        %1159 = vmatprep.subr.bf16.mxu0 0
        %1160 = vmatpush1.bf16.xpose.msra.mxu0 0
        %1161 = vmatprep.subr.bf16.mxu0 0
        %1162 = vmatpush1.bf16.xpose.msra.mxu0 0
        %1163 = vmatprep.subr.bf16.mxu0 0
        %1164 = vmatpush1.bf16.xpose.msra.mxu0 0
        %1165 = vmatprep.subr.bf16.mxu0 0
        %1166 = vmatpush1.bf16.xpose.msra.mxu0 0
        %1167 = vmatprep.subr.bf16.mxu0 0
        %1168 = vmatpush1.bf16.xpose.msra.mxu0 0
        %1169 = vmatprep.mubr.bf16.mxu0 0
        %1170 = vmatmul.mubr.bf16.gmra.mrb[0].mxu0 %v1132
        %v1171 = vpop.f32.mrb[0].mxu0
        %v1172 = vadd.f32 0.0, %v1171
        %v1173 = vpop.f32.mrb[0].mxu0
        %v1174 = vpop.f32.mrb[0].mxu0
        %v1175 = vpop.f32.mrb[0].mxu0
        %1176 = vdwg.mxu0
        %v1177 = vsel %vm749, %v1172, -1e+30
        %v1178 = vsel %vm702, %v1177, -inf
        %1179 = vmax.xlane.f32.xlu0 %v1178
        %v1180 = vpop.xlane.xlu0 %1179
        %v1181 = vsub.f32 %v1177, %v1180
        %v1182 = vmul.f32 %v1181, 1.442695
        %v1183 = vpow.pop %v1182
        %v1184 = vsel %vm702, %v1183, 0.0
        %1185 = vadd.xlane.f32.xlu0 %v1184
        %v1186 = vpop.xlane.xlu0 %1185
        %v1187 = vrcp.pop %v1186
        %v1188 = vmul.f32 %v1183, %v1187
        %v1189 = vpack.c.bf16 %v1188, %v1188
        %1190 = vrot.lane.b32.xlu0 %v824, 104
        %v1191 = vpop.permute.xlu0 %1190
        %v1193 = vsel %vm702, %v1189, 0
        %v1196 = vsel %vm828, %v1191, 0
        %1198 = vmatprep.subr.bf16.mxu0 0
        %1199 = vmatpush1.bf16.msra.mxu0 %v1196
        %1200 = vmatprep.subr.bf16.mxu0 0
        %1201 = vmatpush1.bf16.msra.mxu0 0
        %1202 = vmatprep.subr.bf16.mxu0 0
        %1203 = vmatpush1.bf16.msra.mxu0 0
        %1204 = vmatprep.subr.bf16.mxu0 0
        %1205 = vmatpush1.bf16.msra.mxu0 0
        %1206 = vmatprep.subr.bf16.mxu0 0
        %1207 = vmatpush1.bf16.msra.mxu0 0
        %1208 = vmatprep.subr.bf16.mxu0 0
        %1209 = vmatpush1.bf16.msra.mxu0 0
        %1210 = vmatprep.subr.bf16.mxu0 0
        %1211 = vmatpush1.bf16.msra.mxu0 0
        %1212 = vmatprep.subr.bf16.mxu0 0
        %1213 = vmatpush1.bf16.msra.mxu0 0
        %1214 = vmatprep.subr.bf16.mxu0 0
        %1215 = vmatpush1.bf16.msra.mxu0 0
        %1216 = vmatprep.subr.bf16.mxu0 0
        %1217 = vmatpush1.bf16.msra.mxu0 0
        %1218 = vmatprep.subr.bf16.mxu0 0
        %1219 = vmatpush1.bf16.msra.mxu0 0
        %1220 = vmatprep.subr.bf16.mxu0 0
        %1221 = vmatpush1.bf16.msra.mxu0 0
        %1222 = vmatprep.subr.bf16.mxu0 0
        %1223 = vmatpush1.bf16.msra.mxu0 0
        %1224 = vmatprep.subr.bf16.mxu0 0
        %1225 = vmatpush1.bf16.msra.mxu0 0
        %1226 = vmatprep.subr.bf16.mxu0 0
        %1227 = vmatpush1.bf16.msra.mxu0 0
        %1228 = vmatprep.subr.bf16.mxu0 0
        %1229 = vmatpush1.bf16.msra.mxu0 0
        %1230 = vmatprep.mubr.bf16.mxu0 0
        %1231 = vmatmul.mubr.bf16.gmra.mrb[0].mxu0 %v1193
        %v1232 = vpop.f32.mrb[0].mxu0
        %v1233 = vadd.f32 0.0, %v1232
        %v1234 = vpop.f32.mrb[0].mxu0
        %v1235 = vpop.f32.mrb[0].mxu0
        %v1236 = vpop.f32.mrb[0].mxu0
        %1237 = vdwg.mxu0
        %1239 = vrot.lane.b32.xlu0 %v987, 8
        %v1240 = vpop.permute.xlu0 %1239
        %1243 = vrot.lane.b32.xlu0 %v1110, 16
        %v1244 = vpop.permute.xlu0 %1243
        %1247 = vrot.lane.b32.xlu0 %v1233, 24
        %v1248 = vpop.permute.xlu0 %1247
        %v1250 = vsel %vm702, %v867, %v1240
        %vm1251 = vcmask 130048
        %v1252 = vsel %vm1251, %v1250, %v1244
        %vm1253 = vcmask 195584
        %v1254 = vsel %vm1253, %v1252, %v1248
        %v1255 = vpack.c.bf16 %v1254, %v1254
        %v1256 = vld [vmem:[%s6] sm:$0xf]
        %v1257 = vld [vmem:[%s6 + $0x4] sm:$0xf]
        %v1258 = vld [vmem:[%s6 + $0x8] sm:$0xf]
        %v1259 = vld [vmem:[%s6 + $0xc] sm:$0xf]
        %v1264 = vunpack.c.l.b16 %v1256
        %v1265 = vunpack.c.l.b16 %v1257
        %v1266 = vunpack.c.l.b16 %v1258
        %v1267 = vunpack.c.l.b16 %v1259
        %v1268 = vpack.c.b16 %v1265, %v1264
        %v1269 = vpack.c.b16 %v1267, %v1266
        %v1273 = vsel %vm612, %v1255, 0
        %1275 = vmatprep.subr.bf16.mxu0 0
        %1276 = vmatpush1.bf16.msra.mxu0 %v1268
        %1277 = vmatprep.subr.bf16.mxu0 0
        %1278 = vmatpush1.bf16.msra.mxu0 %v1269
        %1279 = vmatprep.subr.bf16.mxu0 0
        %1280 = vmatpush1.bf16.msra.mxu0 0
        %1281 = vmatprep.subr.bf16.mxu0 0
        %1282 = vmatpush1.bf16.msra.mxu0 0
        %1283 = vmatprep.subr.bf16.mxu0 0
        %1284 = vmatpush1.bf16.msra.mxu0 0
        %1285 = vmatprep.subr.bf16.mxu0 0
        %1286 = vmatpush1.bf16.msra.mxu0 0
        %1287 = vmatprep.subr.bf16.mxu0 0
        %1288 = vmatpush1.bf16.msra.mxu0 0
        %1289 = vmatprep.subr.bf16.mxu0 0
        %1290 = vmatpush1.bf16.msra.mxu0 0
        %1291 = vmatprep.subr.bf16.mxu0 0
        %1292 = vmatpush1.bf16.msra.mxu0 0
        %1293 = vmatprep.subr.bf16.mxu0 0
        %1294 = vmatpush1.bf16.msra.mxu0 0
        %1295 = vmatprep.subr.bf16.mxu0 0
        %1296 = vmatpush1.bf16.msra.mxu0 0
        %1297 = vmatprep.subr.bf16.mxu0 0
        %1298 = vmatpush1.bf16.msra.mxu0 0
        %1299 = vmatprep.subr.bf16.mxu0 0
        %1300 = vmatpush1.bf16.msra.mxu0 0
        %1301 = vmatprep.subr.bf16.mxu0 0
        %1302 = vmatpush1.bf16.msra.mxu0 0
        %1303 = vmatprep.subr.bf16.mxu0 0
        %1304 = vmatpush1.bf16.msra.mxu0 0
        %1305 = vmatprep.subr.bf16.mxu0 0
        %1306 = vmatpush1.bf16.msra.mxu0 0
        %1307 = vmatprep.mubr.bf16.mxu0 0
        %1308 = vmatmul.mubr.bf16.gmra.mrb[0].mxu0 %v1273
        %v1309 = vpop.f32.mrb[0].mxu0
        %v1310 = vadd.f32 0.0, %v1309
        %v1311 = vpop.f32.mrb[0].mxu0
        %v1312 = vpop.f32.mrb[0].mxu0
        %v1313 = vpop.f32.mrb[0].mxu0
        %1314 = vdwg.mxu0
        %v1315 = vadd.f32 %v610, %v1310
        %v1316 = vld [vmem:[%s7] sm:$0x1]
        %v1318 = vlaneseq
        %v1319 = vshrl.u32 %v1318, 7
        %v1320 = vsub.s32 0, %v1319
        %v1321 = vrot.slane %v1316, %v1320
        %v1323 = vadd.f32 %v1315, %v1321
        %v1324 = vld [vmem:[#allocation5] sm:$0x1]
        %v1325 = vmul.f32 %v1323, %v1323
        %v1326 = vsel %vm612, %v1325, 0.0
        %1327 = vadd.xlane.f32.xlu0 %v1326
        %v1328 = vpop.xlane.xlu0 %1327
        %v1329 = vmul.f32 %v1328, %v616
        %v1330 = vadd.f32 %v1329, 1e-05
        %v1331 = vrsqrt.pop %v1330
        %v1332 = vmul.f32 %v1323, %v1331
        %v1334 = vlaneseq
        %v1335 = vshrl.u32 %v1334, 7
        %v1336 = vsub.s32 0, %v1335
        %v1337 = vrot.slane %v1324, %v1336
        %v1339 = vmul.f32 %v1332, %v1337
        %v1340 = vpack.c.bf16 %v1339, %v1339
        %v1341 = vld [vmem:[%s9] sm:$0xf]
        %v1342 = vld [vmem:[%s9 + $0x4] sm:$0xf]
        %v1343 = vld [vmem:[%s9 + $0x8] sm:$0xf]
        %v1344 = vld [vmem:[%s9 + $0xc] sm:$0xf]
        %v1349 = vunpack.c.l.b16 %v1341
        %v1350 = vunpack.c.l.b16 %v1342
        %v1351 = vunpack.c.l.b16 %v1343
        %v1352 = vunpack.c.l.b16 %v1344
        %v1353 = vpack.c.b16 %v1350, %v1349
        %v1354 = vpack.c.b16 %v1352, %v1351
        %v1358 = vsel %vm612, %v1340, 0
        %1360 = vmatprep.subr.bf16.mxu0 0
        %1361 = vmatpush1.bf16.msra.mxu0 %v1353
        %1362 = vmatprep.subr.bf16.mxu0 0
        %1363 = vmatpush1.bf16.msra.mxu0 %v1354
        %1364 = vmatprep.subr.bf16.mxu0 0
        %1365 = vmatpush1.bf16.msra.mxu0 0
        %1366 = vmatprep.subr.bf16.mxu0 0
        %1367 = vmatpush1.bf16.msra.mxu0 0
        %1368 = vmatprep.subr.bf16.mxu0 0
        %1369 = vmatpush1.bf16.msra.mxu0 0
        %1370 = vmatprep.subr.bf16.mxu0 0
        %1371 = vmatpush1.bf16.msra.mxu0 0
        %1372 = vmatprep.subr.bf16.mxu0 0
        %1373 = vmatpush1.bf16.msra.mxu0 0
        %1374 = vmatprep.subr.bf16.mxu0 0
        %1375 = vmatpush1.bf16.msra.mxu0 0
        %1376 = vmatprep.subr.bf16.mxu0 0
        %1377 = vmatpush1.bf16.msra.mxu0 0
        %1378 = vmatprep.subr.bf16.mxu0 0
        %1379 = vmatpush1.bf16.msra.mxu0 0
        %1380 = vmatprep.subr.bf16.mxu0 0
        %1381 = vmatpush1.bf16.msra.mxu0 0
        %1382 = vmatprep.subr.bf16.mxu0 0
        %1383 = vmatpush1.bf16.msra.mxu0 0
        %1384 = vmatprep.subr.bf16.mxu0 0
        %1385 = vmatpush1.bf16.msra.mxu0 0
        %1386 = vmatprep.subr.bf16.mxu0 0
        %1387 = vmatpush1.bf16.msra.mxu0 0
        %1388 = vmatprep.subr.bf16.mxu0 0
        %1389 = vmatpush1.bf16.msra.mxu0 0
        %1390 = vmatprep.subr.bf16.mxu0 0
        %1391 = vmatpush1.bf16.msra.mxu0 0
        %1392 = vmatprep.mubr.bf16.mxu0 0
        %1393 = vmatmul.mubr.bf16.gmra.mrb[0].mxu0 %v1358
        %v1394 = vpop.f32.mrb[0].mxu0
        %v1395 = vadd.f32 0.0, %v1394
        %v1396 = vpop.f32.mrb[0].mxu0
        %v1397 = vpop.f32.mrb[0].mxu0
        %v1398 = vpop.f32.mrb[0].mxu0
        %1399 = vdwg.mxu0
        %v1400 = vld [vmem:[%s10] sm:$0xf]
        %v1401 = vld [vmem:[%s10 + $0x4] sm:$0xf]
        %v1402 = vld [vmem:[%s10 + $0x8] sm:$0xf]
        %v1403 = vld [vmem:[%s10 + $0xc] sm:$0xf]
        %v1408 = vunpack.c.l.b16 %v1400
        %v1409 = vunpack.c.l.b16 %v1401
        %v1410 = vunpack.c.l.b16 %v1402
        %v1411 = vunpack.c.l.b16 %v1403
        %v1412 = vpack.c.b16 %v1409, %v1408
        %v1413 = vpack.c.b16 %v1411, %v1410
        %1416 = vmatprep.subr.bf16.mxu0 0
        %1417 = vmatpush1.bf16.msra.mxu0 %v1412
        %1418 = vmatprep.subr.bf16.mxu0 0
        %1419 = vmatpush1.bf16.msra.mxu0 %v1413
        %1420 = vmatprep.subr.bf16.mxu0 0
        %1421 = vmatpush1.bf16.msra.mxu0 0
        %1422 = vmatprep.subr.bf16.mxu0 0
        %1423 = vmatpush1.bf16.msra.mxu0 0
        %1424 = vmatprep.subr.bf16.mxu0 0
        %1425 = vmatpush1.bf16.msra.mxu0 0
        %1426 = vmatprep.subr.bf16.mxu0 0
        %1427 = vmatpush1.bf16.msra.mxu0 0
        %1428 = vmatprep.subr.bf16.mxu0 0
        %1429 = vmatpush1.bf16.msra.mxu0 0
        %1430 = vmatprep.subr.bf16.mxu0 0
        %1431 = vmatpush1.bf16.msra.mxu0 0
        %1432 = vmatprep.subr.bf16.mxu0 0
        %1433 = vmatpush1.bf16.msra.mxu0 0
        %1434 = vmatprep.subr.bf16.mxu0 0
        %1435 = vmatpush1.bf16.msra.mxu0 0
        %1436 = vmatprep.subr.bf16.mxu0 0
        %1437 = vmatpush1.bf16.msra.mxu0 0
        %1438 = vmatprep.subr.bf16.mxu0 0
        %1439 = vmatpush1.bf16.msra.mxu0 0
        %1440 = vmatprep.subr.bf16.mxu0 0
        %1441 = vmatpush1.bf16.msra.mxu0 0
        %1442 = vmatprep.subr.bf16.mxu0 0
        %1443 = vmatpush1.bf16.msra.mxu0 0
        %1444 = vmatprep.subr.bf16.mxu0 0
        %1445 = vmatpush1.bf16.msra.mxu0 0
        %1446 = vmatprep.subr.bf16.mxu0 0
        %1447 = vmatpush1.bf16.msra.mxu0 0
        %1448 = vmatprep.mubr.bf16.mxu0 0
        %1449 = vmatmul.mubr.bf16.gmra.mrb[0].mxu0 %v1358
        %v1450 = vpop.f32.mrb[0].mxu0
        %v1451 = vadd.f32 0.0, %v1450
        %v1452 = vpop.f32.mrb[0].mxu0
        %v1453 = vpop.f32.mrb[0].mxu0
        %v1454 = vpop.f32.mrb[0].mxu0
        %1455 = vdwg.mxu0
        %v1456 = vxor.u32 %v1395, 2147483648
        %v1457 = vmul.f32 %v1456, 1.442695
        %v1458 = vpow.pop %v1457
        %v1459 = vadd.f32 %v1458, 1.0
        %v1460 = vrcp.pop %v1459
        %v1461 = vmul.f32 1.0, %v1460
        %v1462 = vmul.f32 %v1395, %v1461
        %v1463 = vmul.f32 %v1462, %v1451
        %v1464 = vpack.c.bf16 %v1463, %v1463
        %v1465 = vld [vmem:[%s11] sm:$0xf]
        %v1466 = vld [vmem:[%s11 + $0x4] sm:$0xf]
        %v1467 = vld [vmem:[%s11 + $0x8] sm:$0xf]
        %v1468 = vld [vmem:[%s11 + $0xc] sm:$0xf]
        %v1469 = vld [vmem:[%s11 + $0x10] sm:$0xf]
        %v1470 = vld [vmem:[%s11 + $0x14] sm:$0xf]
        %v1471 = vld [vmem:[%s11 + $0x18] sm:$0xf]
        %v1472 = vld [vmem:[%s11 + $0x1c] sm:$0xf]
        %v1473 = vld [vmem:[%s11 + $0x20] sm:$0xf]
        %v1474 = vld [vmem:[%s11 + $0x24] sm:$0xf]
        %v1475 = vld [vmem:[%s11 + $0x28] sm:$0xf]
        %v1487 = vunpack.c.l.b16 %v1465
        %v1488 = vunpack.c.l.b16 %v1466
        %v1489 = vunpack.c.l.b16 %v1467
        %v1490 = vunpack.c.l.b16 %v1468
        %v1491 = vunpack.c.l.b16 %v1469
        %v1492 = vunpack.c.l.b16 %v1470
        %v1493 = vunpack.c.l.b16 %v1471
        %v1494 = vunpack.c.l.b16 %v1472
        %v1495 = vunpack.c.l.b16 %v1473
        %v1496 = vunpack.c.l.b16 %v1474
        %v1497 = vunpack.c.l.b16 %v1475
        %v1498 = vpack.c.b16 %v1488, %v1487
        %v1499 = vpack.c.b16 %v1490, %v1489
        %v1500 = vpack.c.b16 %v1492, %v1491
        %v1501 = vpack.c.b16 %v1494, %v1493
        %v1502 = vpack.c.b16 %v1496, %v1495
        %v1503 = vpack.c.b16 %v1497, %v1497
        %vm1509 = vcmask 719872
        %v1511 = vsel %vm1509, %v1464, 0
        %v1514 = vsel %vm828, %v1503, 0
        %1516 = vmatprep.subr.bf16.mxu0 0
        %1517 = vmatpush1.bf16.msra.mxu0 %v1498
        %1518 = vmatprep.subr.bf16.mxu0 0
        %1519 = vmatpush1.bf16.msra.mxu0 %v1499
        %1520 = vmatprep.subr.bf16.mxu0 0
        %1521 = vmatpush1.bf16.msra.mxu0 %v1500
        %1522 = vmatprep.subr.bf16.mxu0 0
        %1523 = vmatpush1.bf16.msra.mxu0 %v1501
        %1524 = vmatprep.subr.bf16.mxu0 0
        %1525 = vmatpush1.bf16.msra.mxu0 %v1502
        %1526 = vmatprep.subr.bf16.mxu0 0
        %1527 = vmatpush1.bf16.msra.mxu0 %v1514
        %1528 = vmatprep.subr.bf16.mxu0 0
        %1529 = vmatpush1.bf16.msra.mxu0 0
        %1530 = vmatprep.subr.bf16.mxu0 0
        %1531 = vmatpush1.bf16.msra.mxu0 0
        %1532 = vmatprep.subr.bf16.mxu0 0
        %1533 = vmatpush1.bf16.msra.mxu0 0
        %1534 = vmatprep.subr.bf16.mxu0 0
        %1535 = vmatpush1.bf16.msra.mxu0 0
        %1536 = vmatprep.subr.bf16.mxu0 0
        %1537 = vmatpush1.bf16.msra.mxu0 0
        %1538 = vmatprep.subr.bf16.mxu0 0
        %1539 = vmatpush1.bf16.msra.mxu0 0
        %1540 = vmatprep.subr.bf16.mxu0 0
        %1541 = vmatpush1.bf16.msra.mxu0 0
        %1542 = vmatprep.subr.bf16.mxu0 0
        %1543 = vmatpush1.bf16.msra.mxu0 0
        %1544 = vmatprep.subr.bf16.mxu0 0
        %1545 = vmatpush1.bf16.msra.mxu0 0
        %1546 = vmatprep.subr.bf16.mxu0 0
        %1547 = vmatpush1.bf16.msra.mxu0 0
        %1548 = vmatprep.mubr.bf16.mxu0 0
        %1549 = vmatmul.mubr.bf16.gmra.mrb[0].mxu0 %v1511
        %v1550 = vpop.f32.mrb[0].mxu0
        %v1551 = vadd.f32 0.0, %v1550
        %v1552 = vpop.f32.mrb[0].mxu0
        %v1553 = vpop.f32.mrb[0].mxu0
        %v1554 = vpop.f32.mrb[0].mxu0
        %1555 = vdwg.mxu0
        %v1556 = vadd.f32 %v1323, %v1551
        %1557 = vst.msk [vmem:[%s458] sm:$0xff] %vm612, %v1556
        %s1558 = sand.u32 %s328, 1
        %s1559 = scalar_lea.sflag [#allocation7], %s1558
        %s1560 = sand.u32 %s328, 1
        %s1561 = smul.addr %s1560, 8
        %s1562 = scalar_lea.vmem [#allocation8], %s1561
        // Predicated region
        $region81: #{tpu_custom_call.1} parent=71 // pred_check
          %p1563 = pneg %p338
        $region82: #{tpu_custom_call.1} parent=71 // pred_check_branch
          %1565 = sbr.rel (%p1563) target = $region84
        $region83: #{tpu_custom_call.1} parent=71 // pred_region
          %s1567 = ssub.s32 128, 128
          %1568 = vsyncadd %s1559, %s1567
          %s1569 = sadd.s32 %s33, %s32
          %s1570 = smul.addr %s1569, 128
          %s1571 = scalar_lea.hbm %s13, %s1570
          %s1573 = sshll.u32 %s1562, 4
          %s1574 = int_to_ptr.vmem [resolvable:$true] %s1573
          %1576 = dma.vmem_to_hbm [thread:$0]  %s1574, 128, %s1571, %s1559
        $region84: #{tpu_custom_call.1} parent=71 // pred_fallthru
          _
      $region72: #{tpu_custom_call.1} parent=5 // pred_fallthru
        _
      %p1577 = scmp.le.s32.totalorder 2, %s23
      // Predicated region
      $region85: #{tpu_custom_call.1} parent=5 // pred_check
        %p1578 = pneg %p1577
      $region86: #{tpu_custom_call.1} parent=5 // pred_check_branch
        %1580 = sbr.rel (%p1578) target = $region88
      $region87: #{tpu_custom_call.1} parent=5 // pred_region
        %s1581 = ssub.s32 %s23, 2
        // Predicated region
        $region89: #{tpu_custom_call.1} parent=87 // pred_check
          %p1582 = pneg %p344
        $region90: #{tpu_custom_call.1} parent=87 // pred_check_branch
          %1584 = sbr.rel (%p1582) target = $region92
        $region91: #{tpu_custom_call.1} parent=87 // pred_region
          %s1585 = sand.u32 %s329, 1
          %s1586 = scalar_lea.sflag [#allocation7], %s1585
          %s1587 = sand.u32 %s329, 1
          %s1588 = smul.addr %s1587, 8
          %s1589 = scalar_lea.vmem [#allocation8], %s1588
          %1590 = dma.done %s1586, 128
        $region92: #{tpu_custom_call.1} parent=87 // pred_fallthru
          _
      $region88: #{tpu_custom_call.1} parent=5 // pred_fallthru
        _
    $region6: #{tpu_custom_call.1} parent=1 // loop_footer
      %s27 = sadd.s32 1, %s23
    $region7: #{tpu_custom_call.1} parent=1 // loop_footer_branch
      %22 = sbr.rel target = $region3
    $region8: #{tpu_custom_call.1} parent=1 // loop_exit
      _
    %1591 = vsyncpa [#allocation6], 1
    %s1592 = scalar_lea.sflag [#allocation6], 1
    %1593 = vsyncpa %s1592, 1
    %1594 = vsyncpa [#allocation7], 1
    %s1595 = scalar_lea.sflag [#allocation7], 1
    %1596 = vsyncpa %s1595, 1

</llo_original>
